<compile_context>
chip_gen: v7x
topology: tpu7x:2x2x1
jax: 0.10.0
libtpu: 0.0.40
codegen_flags: <defaults>
</compile_context>

<pallas_src>
import functools

import jax
import jax.numpy as jnp
from jax import lax
from jax.experimental import pallas as pl
from jax.experimental.pallas import tpu as pltpu


LANE_PAD = 128  # fc1 hidden (64) zero-padded to a full lane width.


# --------------------------- fused forward kernel ---------------------------
def _critic_fused_kernel(p1_ref, w1_ref, b1_ref, w2_ref, b2_ref, w3_hbm,
                         b3_ref, w4_ref, b4_ref, o_ref,
                         w3_vmem, p2_ref, flat_ref, w3_sem, *, dims):
    (B, KH, KW, C1, C2, OH1, OW1, OH2, OW2, P1, P2) = dims

    # Kick off the dominant HBM transfer (fc1 weight) immediately so it
    # overlaps with all of the conv work; wait right before it is needed.
    w3_copy = pltpu.make_async_copy(w3_hbm, w3_vmem, w3_sem)
    w3_copy.start()

    # ---- conv1: ONE im2col matmul for the whole batch (bf16 -> f32 acc) ----
    h1 = jnp.tanh(jnp.dot(p1_ref[...], w1_ref[...],
                          preferred_element_type=jnp.float32) + b1_ref[...])
    # h1: (B*P1, C1), rows ordered (b, oh1, ow1).

    # ---- conv2 im2col: 9 windowed tap slices per sample -> bf16 scratch ----
    for b in range(B):
        h1_b = h1[b * P1:(b + 1) * P1, :].reshape(OH1, OW1, C1)
        for i in range(KH):
            for j in range(KW):
                tap = i * KW + j
                p2_ref[b * P2:(b + 1) * P2, tap * C1:(tap + 1) * C1] = (
                    h1_b[i:i + OH2, j:j + OW2, :]
                    .reshape(P2, C1).astype(p2_ref.dtype))

    # ---- conv2: ONE im2col matmul for the whole batch ----------------------
    h2 = jnp.tanh(jnp.dot(p2_ref[...], w2_ref[...],
                          preferred_element_type=jnp.float32) + b2_ref[...])
    # h2: (B*P2, C2), rows ordered (b, p).

    # ---- flatten to torch's NCHW order: ONE XLU transpose + 64 wide stores -
    # After the transpose each (c, b) pair is a contiguous 144-lane run, so
    # the flat vector flat[b, c*P2 + p] is assembled with B*C2 full-width
    # stores instead of B*P2 masked 32-lane stores.
    h2t = jnp.transpose(h2, (1, 0))                      # (C2, B*P2) f32
    for b in range(B):
        for c in range(C2):
            flat_ref[b:b + 1, c * P2:(c + 1) * P2] = (
                h2t[c:c + 1, b * P2:(b + 1) * P2].astype(flat_ref.dtype))

    # ---- fc1 (hidden padded to 128 lanes) + fc2 fused -----------------------
    w3_copy.wait()
    h3 = jnp.tanh(jnp.dot(flat_ref[...], w3_vmem[...],
                          preferred_element_type=jnp.float32) + b3_ref[...])
    # fc2 (64 -> 1): padded lanes of h3 are exactly zero (b3/w4 zero-padded),
    # so a VPU multiply + lane reduction replaces an N=1 matmul.
    value = jnp.sum(h3 * w4_ref[...], axis=-1, keepdims=True) + b4_ref[...]
    o_ref[...] = value.astype(o_ref.dtype)


# ------------------------------- wrapper ------------------------------------
@jax.jit
def critic_forward(params, x_nchw):
    """x_nchw: (B, C, H, W) -- PyTorch convention."""
    B, C, H, W = x_nchw.shape
    K1, C1 = params["w1f"].shape
    K2, C2 = params["w2f"].shape
    FLAT, HP = params["w3f"].shape
    taps = K1 // C
    KH = KW = int(round(taps ** 0.5))
    OH1, OW1 = H - KH + 1, W - KW + 1
    OH2, OW2 = OH1 - KH + 1, OW1 - KW + 1
    P1, P2 = OH1 * OW1, OH2 * OW2
    assert K2 == taps * C1 and FLAT == C2 * P2

    # conv1 im2col in the wrapper (tiny XLA gather, ~28 KB bf16); k1 ordered
    # (i, j, cin) to match w1f's prep-time layout.
    x = jnp.transpose(x_nchw.astype(jnp.float32), (0, 2, 3, 1))     # NHWC
    cols = [x[:, i:i + OH1, j:j + OW1, :]
            for i in range(KH) for j in range(KW)]
    patches1 = (jnp.concatenate(cols, axis=-1)
                .reshape(B * P1, K1).astype(jnp.bfloat16))

    kernel = functools.partial(
        _critic_fused_kernel,
        dims=(B, KH, KW, C1, C2, OH1, OW1, OH2, OW2, P1, P2))

    return pl.pallas_call(
        kernel,
        out_shape=jax.ShapeDtypeStruct((B, 1), jnp.float32),
        grid=(1,),
        in_specs=[
            pl.BlockSpec((B * P1, K1), lambda i: (0, 0)),     # conv1 patches
            pl.BlockSpec((K1, C1), lambda i: (0, 0)),         # w1 (im2col)
            pl.BlockSpec((1, C1), lambda i: (0, 0)),          # b1
            pl.BlockSpec((K2, C2), lambda i: (0, 0)),         # w2 (im2col)
            pl.BlockSpec((1, C2), lambda i: (0, 0)),          # b2
            pl.BlockSpec(memory_space=pl.ANY),                # w3 (stays in HBM)
            pl.BlockSpec((1, HP), lambda i: (0, 0)),          # b3
            pl.BlockSpec((1, HP), lambda i: (0, 0)),          # w4
            pl.BlockSpec((1, 1), lambda i: (0, 0)),           # b4
        ],
        out_specs=pl.BlockSpec((B, 1), lambda i: (0, 0)),
        scratch_shapes=[
            pltpu.VMEM((FLAT, HP), jnp.bfloat16),      # w3 landing buffer
            pltpu.VMEM((B * P2, K2), jnp.bfloat16),    # conv2 im2col patches
            pltpu.VMEM((B, FLAT), jnp.bfloat16),       # flattened activations
            pltpu.SemaphoreType.DMA,                   # w3 DMA completion
        ],
        compiler_params=pltpu.CompilerParams(
            dimension_semantics=("arbitrary",)),
    )(patches1, params["w1f"], params["b1"], params["w2f"], params["b2"],
      params["w3f"], params["b3"], params["w4"], params["b4"])


# ------------------------------ parameters ----------------------------------
def init_params(key, image_x, image_y, image_c, k=3, c1=16, c2=32, hidden=64):
    """Parameters in PyTorch layout (as nn.Conv2d / nn.Linear hold them)."""
    oh2, ow2 = image_x - 2 * (k - 1), image_y - 2 * (k - 1)
    flat = c2 * oh2 * ow2
    ks = jax.random.split(key, 8)

    def rnd(kk, shape, fan_in):
        return (jax.random.normal(kk, shape, jnp.float32)
                / jnp.sqrt(jnp.float32(fan_in)))

    return {
        "w1": rnd(ks[0], (c1, image_c, k, k), k * k * image_c),
        "b1": rnd(ks[1], (c1,), k * k * image_c),
        "w2": rnd(ks[2], (c2, c1, k, k), k * k * c1),
        "b2": rnd(ks[3], (c2,), k * k * c1),
        "w3": rnd(ks[4], (hidden, flat), flat),     # torch Linear: (out, in)
        "b3": rnd(ks[5], (hidden,), flat),
        "w4": rnd(ks[6], (1, hidden), hidden),
        "b4": rnd(ks[7], (1,), hidden),
    }


def prepare_params(p, lane_pad=LANE_PAD):
    """One-time re-layout so the fused kernel needs no runtime weight shuffles.

    - conv weights -> im2col form (KH*KW*Cin, Cout), bf16.
    - fc1 weight   -> (flat_in, hidden): plain transpose of torch's (out, in);
      the kernel assembles the flat activation vector in torch's NCHW
      (c, oh, ow) order, so no row permutation is needed.  Zero-padded to 128
      output lanes, stored bf16 (f32 accumulation in-kernel).
    - fc2 weight folded in as a zero-padded row vector.  The padded lanes of
      b3/w4 MUST stay zero: tanh(0) = 0 and w4_pad = 0 keep the padded hidden
      lanes from contributing to the critic value.
    """
    c1, cin, k, _ = p["w1"].shape
    c2 = p["w2"].shape[0]
    hidden, flat = p["w3"].shape

    w1f = jnp.transpose(p["w1"], (2, 3, 1, 0)).reshape(k * k * cin, c1)
    w2f = jnp.transpose(p["w2"], (2, 3, 1, 0)).reshape(k * k * c1, c2)
    w3f = jnp.pad(p["w3"].T, ((0, 0), (0, lane_pad - hidden)))
    b3 = jnp.pad(p["b3"].reshape(1, hidden), ((0, 0), (0, lane_pad - hidden)))
    w4 = jnp.pad(p["w4"].reshape(1, hidden), ((0, 0), (0, lane_pad - hidden)))
    return {
        "w1f": w1f.astype(jnp.bfloat16), "b1": p["b1"].reshape(1, c1),
        "w2f": w2f.astype(jnp.bfloat16), "b2": p["b2"].reshape(1, c2),
        "w3f": w3f.astype(jnp.bfloat16), "b3": b3,
        "w4": w4, "b4": p["b4"].reshape(1, 1),
    }


# ----------------------------- pure-JAX reference ----------------------------
def critic_reference(p, x_nchw):
    """f32 reference for the assumed torch CNN (parity check)."""
    dn = ("NCHW", "OIHW", "NCHW")
    h = jnp.tanh(lax.conv_general_dilated(x_nchw.astype(jnp.float32), p["w1"],
                                          (1, 1), "VALID", dimension_numbers=dn)
                 + p["b1"][None, :, None, None])
    h = jnp.tanh(lax.conv_general_dilated(h, p["w2"], (1, 1), "VALID",
                                          dimension_numbers=dn)
                 + p["b2"][None, :, None, None])
    f = h.reshape(h.shape[0], -1)                      # torch NCHW flatten
    h3 = jnp.tanh(f @ p["w3"].T + p["b3"])
    return h3 @ p["w4"].T + p["b4"]


if __name__ == "__main__":
    key = jax.random.PRNGKey(0)
    k_x, k_p = jax.random.split(key)

    # env.image_x = env.image_y = 16, env.image_c = 4, batch = 2
    B, C, H, W = 2, 4, 16, 16
    x = jax.random.normal(k_x, (B, C, H, W), jnp.float32)
    raw = init_params(k_p, H, W, C)
    params = prepare_params(raw)

    out = jax.block_until_ready(critic_forward(params, x))
    assert out.shape == (B, 1), out.shape
    assert out.dtype == jnp.float32

    ref = critic_reference(raw, x)
    max_err = float(jnp.max(jnp.abs(out - ref)))
    assert max_err < 5e-2, f"kernel vs reference mismatch: max_err={max_err}"
    print("KERNEL_OK")
</pallas_src>

<mosaic_0001>
module attributes {stable_mosaic.version = 11 : i64} {
  func.func @_critic_fused_kernel(%arg0: i32, %arg1: memref<392x36xbf16, #tpu.memory_space<vmem>>, %arg2: memref<36x16xbf16, #tpu.memory_space<vmem>>, %arg3: memref<1x16xf32, #tpu.memory_space<vmem>>, %arg4: memref<144x32xbf16, #tpu.memory_space<vmem>>, %arg5: memref<1x32xf32, #tpu.memory_space<vmem>>, %arg6: memref<4608x128xbf16, #tpu.memory_space<any>>, %arg7: memref<1x128xf32, #tpu.memory_space<vmem>>, %arg8: memref<1x128xf32, #tpu.memory_space<vmem>>, %arg9: memref<1x1xf32, #tpu.memory_space<vmem>>, %arg10: memref<2x1xf32, #tpu.memory_space<vmem>>, %arg11: memref<4608x128xbf16, #tpu.memory_space<vmem>>, %arg12: memref<288x144xbf16, #tpu.memory_space<vmem>>, %arg13: memref<2x4608xbf16, #tpu.memory_space<vmem>>, %arg14: memref<!tpu.dma_semaphore, #tpu.memory_space<semaphore_mem>>) attributes {dimension_semantics = [#tpu.dimension_semantics<arbitrary>], iteration_bounds = array<i64: 1>, scalar_prefetch = 0 : i64, scratch_operands = 4 : i64, tpu.core_type = #tpu.core_type<tc>, window_params = [{pipeline_mode = #tpu.pipeline_mode<synchronous>, transform_indices = @transform_0, window_bounds = array<i64: 392, 36>}, {pipeline_mode = #tpu.pipeline_mode<synchronous>, transform_indices = @transform_1, window_bounds = array<i64: 36, 16>}, {pipeline_mode = #tpu.pipeline_mode<synchronous>, transform_indices = @transform_2, window_bounds = array<i64: 1, 16>}, {pipeline_mode = #tpu.pipeline_mode<synchronous>, transform_indices = @transform_3, window_bounds = array<i64: 144, 32>}, {pipeline_mode = #tpu.pipeline_mode<synchronous>, transform_indices = @transform_4, window_bounds = array<i64: 1, 32>}, {}, {pipeline_mode = #tpu.pipeline_mode<synchronous>, transform_indices = @transform_6, window_bounds = array<i64: 1, 128>}, {pipeline_mode = #tpu.pipeline_mode<synchronous>, transform_indices = @transform_7, window_bounds = array<i64: 1, 128>}, {pipeline_mode = #tpu.pipeline_mode<synchronous>, transform_indices = @transform_8, window_bounds = array<i64: 1, 1>}, {pipeline_mode = #tpu.pipeline_mode<synchronous>, transform_indices = @transform_9, window_bounds = array<i64: 2, 1>}]} {
    tpu.enqueue_dma source(%arg6 : memref<4608x128xbf16, #tpu.memory_space<any>>) target(%arg11 : memref<4608x128xbf16, #tpu.memory_space<vmem>>) target_semaphore(%arg14 : memref<!tpu.dma_semaphore, #tpu.memory_space<semaphore_mem>>)
    %c0 = arith.constant 0 : index
    %c0_0 = arith.constant 0 : index
    %0 = vector.load %arg1[%c0, %c0_0] : memref<392x36xbf16, #tpu.memory_space<vmem>>, vector<392x36xbf16>
    %c0_1 = arith.constant 0 : index
    %c0_2 = arith.constant 0 : index
    %1 = vector.load %arg2[%c0_1, %c0_2] : memref<36x16xbf16, #tpu.memory_space<vmem>>, vector<36x16xbf16>
    %cst = arith.constant dense<0.000000e+00> : vector<392x16xf32>
    %2 = tpu.matmul %0, %1, %cst {dimension_numbers = #tpu.dot_dimension_numbers<[1], [0], [0], [1], [0, 0, 1, 1], [], []>} : vector<392x36xbf16>, vector<36x16xbf16>, vector<392x16xf32> -> vector<392x16xf32>
    %c0_3 = arith.constant 0 : index
    %c0_4 = arith.constant 0 : index
    %3 = vector.load %arg3[%c0_3, %c0_4] : memref<1x16xf32, #tpu.memory_space<vmem>>, vector<1x16xf32>
    %4 = vector.broadcast %3 : vector<1x16xf32> to vector<392x16xf32>
    %5 = arith.addf %2, %4 : vector<392x16xf32>
    %6 = math.tanh %5 : vector<392x16xf32>
    %7 = vector.extract_strided_slice %6 {offsets = [0, 0], sizes = [196, 16], strides = [1, 1]} : vector<392x16xf32> to vector<196x16xf32>
    %8 = vector.shape_cast %7 : vector<196x16xf32> to vector<14x14x16xf32>
    %9 = vector.extract_strided_slice %8 {offsets = [0, 0, 0], sizes = [12, 12, 16], strides = [1, 1, 1]} : vector<14x14x16xf32> to vector<12x12x16xf32>
    %10 = vector.shape_cast %9 : vector<12x12x16xf32> to vector<144x16xf32>
    %11 = arith.truncf %10 : vector<144x16xf32> to vector<144x16xbf16>
    %c0_5 = arith.constant 0 : index
    %c0_6 = arith.constant 0 : index
    %12 = vector.load %arg12[%c0_5, %c0_6] : memref<288x144xbf16, #tpu.memory_space<vmem>>, vector<144x16xbf16>
    tpu.vector_store %arg12[%c0_5, %c0_6], %11 {strides = array<i32>} : memref<288x144xbf16, #tpu.memory_space<vmem>>, vector<144x16xbf16>,
    %13 = vector.extract_strided_slice %8 {offsets = [0, 1, 0], sizes = [12, 12, 16], strides = [1, 1, 1]} : vector<14x14x16xf32> to vector<12x12x16xf32>
    %14 = vector.shape_cast %13 : vector<12x12x16xf32> to vector<144x16xf32>
    %15 = arith.truncf %14 : vector<144x16xf32> to vector<144x16xbf16>
    %c0_7 = arith.constant 0 : index
    %c16 = arith.constant 16 : index
    %16 = vector.load %arg12[%c0_7, %c16] : memref<288x144xbf16, #tpu.memory_space<vmem>>, vector<144x16xbf16>
    tpu.vector_store %arg12[%c0_7, %c16], %15 {strides = array<i32>} : memref<288x144xbf16, #tpu.memory_space<vmem>>, vector<144x16xbf16>,
    %17 = vector.extract_strided_slice %8 {offsets = [0, 2, 0], sizes = [12, 12, 16], strides = [1, 1, 1]} : vector<14x14x16xf32> to vector<12x12x16xf32>
    %18 = vector.shape_cast %17 : vector<12x12x16xf32> to vector<144x16xf32>
    %19 = arith.truncf %18 : vector<144x16xf32> to vector<144x16xbf16>
    %c0_8 = arith.constant 0 : index
    %c32 = arith.constant 32 : index
    %20 = vector.load %arg12[%c0_8, %c32] : memref<288x144xbf16, #tpu.memory_space<vmem>>, vector<144x16xbf16>
    tpu.vector_store %arg12[%c0_8, %c32], %19 {strides = array<i32>} : memref<288x144xbf16, #tpu.memory_space<vmem>>, vector<144x16xbf16>,
    %21 = vector.extract_strided_slice %8 {offsets = [1, 0, 0], sizes = [12, 12, 16], strides = [1, 1, 1]} : vector<14x14x16xf32> to vector<12x12x16xf32>
    %22 = vector.shape_cast %21 : vector<12x12x16xf32> to vector<144x16xf32>
    %23 = arith.truncf %22 : vector<144x16xf32> to vector<144x16xbf16>
    %c0_9 = arith.constant 0 : index
    %c48 = arith.constant 48 : index
    %24 = vector.load %arg12[%c0_9, %c48] : memref<288x144xbf16, #tpu.memory_space<vmem>>, vector<144x16xbf16>
    tpu.vector_store %arg12[%c0_9, %c48], %23 {strides = array<i32>} : memref<288x144xbf16, #tpu.memory_space<vmem>>, vector<144x16xbf16>,
    %25 = vector.extract_strided_slice %8 {offsets = [1, 1, 0], sizes = [12, 12, 16], strides = [1, 1, 1]} : vector<14x14x16xf32> to vector<12x12x16xf32>
    %26 = vector.shape_cast %25 : vector<12x12x16xf32> to vector<144x16xf32>
    %27 = arith.truncf %26 : vector<144x16xf32> to vector<144x16xbf16>
    %c0_10 = arith.constant 0 : index
    %c64 = arith.constant 64 : index
    %28 = vector.load %arg12[%c0_10, %c64] : memref<288x144xbf16, #tpu.memory_space<vmem>>, vector<144x16xbf16>
    tpu.vector_store %arg12[%c0_10, %c64], %27 {strides = array<i32>} : memref<288x144xbf16, #tpu.memory_space<vmem>>, vector<144x16xbf16>,
    %29 = vector.extract_strided_slice %8 {offsets = [1, 2, 0], sizes = [12, 12, 16], strides = [1, 1, 1]} : vector<14x14x16xf32> to vector<12x12x16xf32>
    %30 = vector.shape_cast %29 : vector<12x12x16xf32> to vector<144x16xf32>
    %31 = arith.truncf %30 : vector<144x16xf32> to vector<144x16xbf16>
    %c0_11 = arith.constant 0 : index
    %c80 = arith.constant 80 : index
    %32 = vector.load %arg12[%c0_11, %c80] : memref<288x144xbf16, #tpu.memory_space<vmem>>, vector<144x16xbf16>
    tpu.vector_store %arg12[%c0_11, %c80], %31 {strides = array<i32>} : memref<288x144xbf16, #tpu.memory_space<vmem>>, vector<144x16xbf16>,
    %33 = vector.extract_strided_slice %8 {offsets = [2, 0, 0], sizes = [12, 12, 16], strides = [1, 1, 1]} : vector<14x14x16xf32> to vector<12x12x16xf32>
    %34 = vector.shape_cast %33 : vector<12x12x16xf32> to vector<144x16xf32>
    %35 = arith.truncf %34 : vector<144x16xf32> to vector<144x16xbf16>
    %c0_12 = arith.constant 0 : index
    %c96 = arith.constant 96 : index
    %36 = vector.load %arg12[%c0_12, %c96] : memref<288x144xbf16, #tpu.memory_space<vmem>>, vector<144x16xbf16>
    tpu.vector_store %arg12[%c0_12, %c96], %35 {strides = array<i32>} : memref<288x144xbf16, #tpu.memory_space<vmem>>, vector<144x16xbf16>,
    %37 = vector.extract_strided_slice %8 {offsets = [2, 1, 0], sizes = [12, 12, 16], strides = [1, 1, 1]} : vector<14x14x16xf32> to vector<12x12x16xf32>
    %38 = vector.shape_cast %37 : vector<12x12x16xf32> to vector<144x16xf32>
    %39 = arith.truncf %38 : vector<144x16xf32> to vector<144x16xbf16>
    %c0_13 = arith.constant 0 : index
    %c112 = arith.constant 112 : index
    %40 = vector.load %arg12[%c0_13, %c112] : memref<288x144xbf16, #tpu.memory_space<vmem>>, vector<144x16xbf16>
    tpu.vector_store %arg12[%c0_13, %c112], %39 {strides = array<i32>} : memref<288x144xbf16, #tpu.memory_space<vmem>>, vector<144x16xbf16>,
    %41 = vector.extract_strided_slice %8 {offsets = [2, 2, 0], sizes = [12, 12, 16], strides = [1, 1, 1]} : vector<14x14x16xf32> to vector<12x12x16xf32>
    %42 = vector.shape_cast %41 : vector<12x12x16xf32> to vector<144x16xf32>
    %43 = arith.truncf %42 : vector<144x16xf32> to vector<144x16xbf16>
    %c0_14 = arith.constant 0 : index
    %c128 = arith.constant 128 : index
    %44 = vector.load %arg12[%c0_14, %c128] : memref<288x144xbf16, #tpu.memory_space<vmem>>, vector<144x16xbf16>
    tpu.vector_store %arg12[%c0_14, %c128], %43 {strides = array<i32>} : memref<288x144xbf16, #tpu.memory_space<vmem>>, vector<144x16xbf16>,
    %45 = vector.extract_strided_slice %6 {offsets = [196, 0], sizes = [196, 16], strides = [1, 1]} : vector<392x16xf32> to vector<196x16xf32>
    %46 = vector.shape_cast %45 : vector<196x16xf32> to vector<14x14x16xf32>
    %47 = vector.extract_strided_slice %46 {offsets = [0, 0, 0], sizes = [12, 12, 16], strides = [1, 1, 1]} : vector<14x14x16xf32> to vector<12x12x16xf32>
    %48 = vector.shape_cast %47 : vector<12x12x16xf32> to vector<144x16xf32>
    %49 = arith.truncf %48 : vector<144x16xf32> to vector<144x16xbf16>
    %c144 = arith.constant 144 : index
    %c0_15 = arith.constant 0 : index
    %50 = vector.load %arg12[%c144, %c0_15] : memref<288x144xbf16, #tpu.memory_space<vmem>>, vector<144x16xbf16>
    tpu.vector_store %arg12[%c144, %c0_15], %49 {strides = array<i32>} : memref<288x144xbf16, #tpu.memory_space<vmem>>, vector<144x16xbf16>,
    %51 = vector.extract_strided_slice %46 {offsets = [0, 1, 0], sizes = [12, 12, 16], strides = [1, 1, 1]} : vector<14x14x16xf32> to vector<12x12x16xf32>
    %52 = vector.shape_cast %51 : vector<12x12x16xf32> to vector<144x16xf32>
    %53 = arith.truncf %52 : vector<144x16xf32> to vector<144x16xbf16>
    %c144_16 = arith.constant 144 : index
    %c16_17 = arith.constant 16 : index
    %54 = vector.load %arg12[%c144_16, %c16_17] : memref<288x144xbf16, #tpu.memory_space<vmem>>, vector<144x16xbf16>
    tpu.vector_store %arg12[%c144_16, %c16_17], %53 {strides = array<i32>} : memref<288x144xbf16, #tpu.memory_space<vmem>>, vector<144x16xbf16>,
    %55 = vector.extract_strided_slice %46 {offsets = [0, 2, 0], sizes = [12, 12, 16], strides = [1, 1, 1]} : vector<14x14x16xf32> to vector<12x12x16xf32>
    %56 = vector.shape_cast %55 : vector<12x12x16xf32> to vector<144x16xf32>
    %57 = arith.truncf %56 : vector<144x16xf32> to vector<144x16xbf16>
    %c144_18 = arith.constant 144 : index
    %c32_19 = arith.constant 32 : index
    %58 = vector.load %arg12[%c144_18, %c32_19] : memref<288x144xbf16, #tpu.memory_space<vmem>>, vector<144x16xbf16>
    tpu.vector_store %arg12[%c144_18, %c32_19], %57 {strides = array<i32>} : memref<288x144xbf16, #tpu.memory_space<vmem>>, vector<144x16xbf16>,
    %59 = vector.extract_strided_slice %46 {offsets = [1, 0, 0], sizes = [12, 12, 16], strides = [1, 1, 1]} : vector<14x14x16xf32> to vector<12x12x16xf32>
    %60 = vector.shape_cast %59 : vector<12x12x16xf32> to vector<144x16xf32>
    %61 = arith.truncf %60 : vector<144x16xf32> to vector<144x16xbf16>
    %c144_20 = arith.constant 144 : index
    %c48_21 = arith.constant 48 : index
    %62 = vector.load %arg12[%c144_20, %c48_21] : memref<288x144xbf16, #tpu.memory_space<vmem>>, vector<144x16xbf16>
    tpu.vector_store %arg12[%c144_20, %c48_21], %61 {strides = array<i32>} : memref<288x144xbf16, #tpu.memory_space<vmem>>, vector<144x16xbf16>,
    %63 = vector.extract_strided_slice %46 {offsets = [1, 1, 0], sizes = [12, 12, 16], strides = [1, 1, 1]} : vector<14x14x16xf32> to vector<12x12x16xf32>
    %64 = vector.shape_cast %63 : vector<12x12x16xf32> to vector<144x16xf32>
    %65 = arith.truncf %64 : vector<144x16xf32> to vector<144x16xbf16>
    %c144_22 = arith.constant 144 : index
    %c64_23 = arith.constant 64 : index
    %66 = vector.load %arg12[%c144_22, %c64_23] : memref<288x144xbf16, #tpu.memory_space<vmem>>, vector<144x16xbf16>
    tpu.vector_store %arg12[%c144_22, %c64_23], %65 {strides = array<i32>} : memref<288x144xbf16, #tpu.memory_space<vmem>>, vector<144x16xbf16>,
    %67 = vector.extract_strided_slice %46 {offsets = [1, 2, 0], sizes = [12, 12, 16], strides = [1, 1, 1]} : vector<14x14x16xf32> to vector<12x12x16xf32>
    %68 = vector.shape_cast %67 : vector<12x12x16xf32> to vector<144x16xf32>
    %69 = arith.truncf %68 : vector<144x16xf32> to vector<144x16xbf16>
    %c144_24 = arith.constant 144 : index
    %c80_25 = arith.constant 80 : index
    %70 = vector.load %arg12[%c144_24, %c80_25] : memref<288x144xbf16, #tpu.memory_space<vmem>>, vector<144x16xbf16>
    tpu.vector_store %arg12[%c144_24, %c80_25], %69 {strides = array<i32>} : memref<288x144xbf16, #tpu.memory_space<vmem>>, vector<144x16xbf16>,
    %71 = vector.extract_strided_slice %46 {offsets = [2, 0, 0], sizes = [12, 12, 16], strides = [1, 1, 1]} : vector<14x14x16xf32> to vector<12x12x16xf32>
    %72 = vector.shape_cast %71 : vector<12x12x16xf32> to vector<144x16xf32>
    %73 = arith.truncf %72 : vector<144x16xf32> to vector<144x16xbf16>
    %c144_26 = arith.constant 144 : index
    %c96_27 = arith.constant 96 : index
    %74 = vector.load %arg12[%c144_26, %c96_27] : memref<288x144xbf16, #tpu.memory_space<vmem>>, vector<144x16xbf16>
    tpu.vector_store %arg12[%c144_26, %c96_27], %73 {strides = array<i32>} : memref<288x144xbf16, #tpu.memory_space<vmem>>, vector<144x16xbf16>,
    %75 = vector.extract_strided_slice %46 {offsets = [2, 1, 0], sizes = [12, 12, 16], strides = [1, 1, 1]} : vector<14x14x16xf32> to vector<12x12x16xf32>
    %76 = vector.shape_cast %75 : vector<12x12x16xf32> to vector<144x16xf32>
    %77 = arith.truncf %76 : vector<144x16xf32> to vector<144x16xbf16>
    %c144_28 = arith.constant 144 : index
    %c112_29 = arith.constant 112 : index
    %78 = vector.load %arg12[%c144_28, %c112_29] : memref<288x144xbf16, #tpu.memory_space<vmem>>, vector<144x16xbf16>
    tpu.vector_store %arg12[%c144_28, %c112_29], %77 {strides = array<i32>} : memref<288x144xbf16, #tpu.memory_space<vmem>>, vector<144x16xbf16>,
    %79 = vector.extract_strided_slice %46 {offsets = [2, 2, 0], sizes = [12, 12, 16], strides = [1, 1, 1]} : vector<14x14x16xf32> to vector<12x12x16xf32>
    %80 = vector.shape_cast %79 : vector<12x12x16xf32> to vector<144x16xf32>
    %81 = arith.truncf %80 : vector<144x16xf32> to vector<144x16xbf16>
    %c144_30 = arith.constant 144 : index
    %c128_31 = arith.constant 128 : index
    %82 = vector.load %arg12[%c144_30, %c128_31] : memref<288x144xbf16, #tpu.memory_space<vmem>>, vector<144x16xbf16>
    tpu.vector_store %arg12[%c144_30, %c128_31], %81 {strides = array<i32>} : memref<288x144xbf16, #tpu.memory_space<vmem>>, vector<144x16xbf16>,
    %c0_32 = arith.constant 0 : index
    %c0_33 = arith.constant 0 : index
    %83 = vector.load %arg12[%c0_32, %c0_33] : memref<288x144xbf16, #tpu.memory_space<vmem>>, vector<288x144xbf16>
    %c0_34 = arith.constant 0 : index
    %c0_35 = arith.constant 0 : index
    %84 = vector.load %arg4[%c0_34, %c0_35] : memref<144x32xbf16, #tpu.memory_space<vmem>>, vector<144x32xbf16>
    %cst_36 = arith.constant dense<0.000000e+00> : vector<288x32xf32>
    %85 = tpu.matmul %83, %84, %cst_36 {dimension_numbers = #tpu.dot_dimension_numbers<[1], [0], [0], [1], [0, 0, 1, 1], [], []>} : vector<288x144xbf16>, vector<144x32xbf16>, vector<288x32xf32> -> vector<288x32xf32>
    %c0_37 = arith.constant 0 : index
    %c0_38 = arith.constant 0 : index
    %86 = vector.load %arg5[%c0_37, %c0_38] : memref<1x32xf32, #tpu.memory_space<vmem>>, vector<1x32xf32>
    %87 = vector.broadcast %86 : vector<1x32xf32> to vector<288x32xf32>
    %88 = arith.addf %85, %87 : vector<288x32xf32>
    %89 = math.tanh %88 : vector<288x32xf32>
    %90 = tpu.transpose %89, [1, 0] : vector<288x32xf32> -> vector<32x288xf32>
    %91 = vector.extract_strided_slice %90 {offsets = [0, 0], sizes = [1, 144], strides = [1, 1]} : vector<32x288xf32> to vector<1x144xf32>
    %92 = arith.truncf %91 : vector<1x144xf32> to vector<1x144xbf16>
    %c0_39 = arith.constant 0 : index
    %c0_40 = arith.constant 0 : index
    %93 = vector.load %arg13[%c0_39, %c0_40] : memref<2x4608xbf16, #tpu.memory_space<vmem>>, vector<1x144xbf16>
    tpu.vector_store %arg13[%c0_39, %c0_40], %92 {strides = array<i32>} : memref<2x4608xbf16, #tpu.memory_space<vmem>>, vector<1x144xbf16>,
    %94 = vector.extract_strided_slice %90 {offsets = [1, 0], sizes = [1, 144], strides = [1, 1]} : vector<32x288xf32> to vector<1x144xf32>
    %95 = arith.truncf %94 : vector<1x144xf32> to vector<1x144xbf16>
    %c0_41 = arith.constant 0 : index
    %c144_42 = arith.constant 144 : index
    %96 = vector.load %arg13[%c0_41, %c144_42] : memref<2x4608xbf16, #tpu.memory_space<vmem>>, vector<1x144xbf16>
    tpu.vector_store %arg13[%c0_41, %c144_42], %95 {strides = array<i32>} : memref<2x4608xbf16, #tpu.memory_space<vmem>>, vector<1x144xbf16>,
    %97 = vector.extract_strided_slice %90 {offsets = [2, 0], sizes = [1, 144], strides = [1, 1]} : vector<32x288xf32> to vector<1x144xf32>
    %98 = arith.truncf %97 : vector<1x144xf32> to vector<1x144xbf16>
    %c0_43 = arith.constant 0 : index
    %c288 = arith.constant 288 : index
    %99 = vector.load %arg13[%c0_43, %c288] : memref<2x4608xbf16, #tpu.memory_space<vmem>>, vector<1x144xbf16>
    tpu.vector_store %arg13[%c0_43, %c288], %98 {strides = array<i32>} : memref<2x4608xbf16, #tpu.memory_space<vmem>>, vector<1x144xbf16>,
    %100 = vector.extract_strided_slice %90 {offsets = [3, 0], sizes = [1, 144], strides = [1, 1]} : vector<32x288xf32> to vector<1x144xf32>
    %101 = arith.truncf %100 : vector<1x144xf32> to vector<1x144xbf16>
    %c0_44 = arith.constant 0 : index
    %c432 = arith.constant 432 : index
    %102 = vector.load %arg13[%c0_44, %c432] : memref<2x4608xbf16, #tpu.memory_space<vmem>>, vector<1x144xbf16>
    tpu.vector_store %arg13[%c0_44, %c432], %101 {strides = array<i32>} : memref<2x4608xbf16, #tpu.memory_space<vmem>>, vector<1x144xbf16>,
    %103 = vector.extract_strided_slice %90 {offsets = [4, 0], sizes = [1, 144], strides = [1, 1]} : vector<32x288xf32> to vector<1x144xf32>
    %104 = arith.truncf %103 : vector<1x144xf32> to vector<1x144xbf16>
    %c0_45 = arith.constant 0 : index
    %c576 = arith.constant 576 : index
    %105 = vector.load %arg13[%c0_45, %c576] : memref<2x4608xbf16, #tpu.memory_space<vmem>>, vector<1x144xbf16>
    tpu.vector_store %arg13[%c0_45, %c576], %104 {strides = array<i32>} : memref<2x4608xbf16, #tpu.memory_space<vmem>>, vector<1x144xbf16>,
    %106 = vector.extract_strided_slice %90 {offsets = [5, 0], sizes = [1, 144], strides = [1, 1]} : vector<32x288xf32> to vector<1x144xf32>
    %107 = arith.truncf %106 : vector<1x144xf32> to vector<1x144xbf16>
    %c0_46 = arith.constant 0 : index
    %c720 = arith.constant 720 : index
    %108 = vector.load %arg13[%c0_46, %c720] : memref<2x4608xbf16, #tpu.memory_space<vmem>>, vector<1x144xbf16>
    tpu.vector_store %arg13[%c0_46, %c720], %107 {strides = array<i32>} : memref<2x4608xbf16, #tpu.memory_space<vmem>>, vector<1x144xbf16>,
    %109 = vector.extract_strided_slice %90 {offsets = [6, 0], sizes = [1, 144], strides = [1, 1]} : vector<32x288xf32> to vector<1x144xf32>
    %110 = arith.truncf %109 : vector<1x144xf32> to vector<1x144xbf16>
    %c0_47 = arith.constant 0 : index
    %c864 = arith.constant 864 : index
    %111 = vector.load %arg13[%c0_47, %c864] : memref<2x4608xbf16, #tpu.memory_space<vmem>>, vector<1x144xbf16>
    tpu.vector_store %arg13[%c0_47, %c864], %110 {strides = array<i32>} : memref<2x4608xbf16, #tpu.memory_space<vmem>>, vector<1x144xbf16>,
    %112 = vector.extract_strided_slice %90 {offsets = [7, 0], sizes = [1, 144], strides = [1, 1]} : vector<32x288xf32> to vector<1x144xf32>
    %113 = arith.truncf %112 : vector<1x144xf32> to vector<1x144xbf16>
    %c0_48 = arith.constant 0 : index
    %c1008 = arith.constant 1008 : index
    %114 = vector.load %arg13[%c0_48, %c1008] : memref<2x4608xbf16, #tpu.memory_space<vmem>>, vector<1x144xbf16>
    tpu.vector_store %arg13[%c0_48, %c1008], %113 {strides = array<i32>} : memref<2x4608xbf16, #tpu.memory_space<vmem>>, vector<1x144xbf16>,
    %115 = vector.extract_strided_slice %90 {offsets = [8, 0], sizes = [1, 144], strides = [1, 1]} : vector<32x288xf32> to vector<1x144xf32>
    %116 = arith.truncf %115 : vector<1x144xf32> to vector<1x144xbf16>
    %c0_49 = arith.constant 0 : index
    %c1152 = arith.constant 1152 : index
    %117 = vector.load %arg13[%c0_49, %c1152] : memref<2x4608xbf16, #tpu.memory_space<vmem>>, vector<1x144xbf16>
    tpu.vector_store %arg13[%c0_49, %c1152], %116 {strides = array<i32>} : memref<2x4608xbf16, #tpu.memory_space<vmem>>, vector<1x144xbf16>,
    %118 = vector.extract_strided_slice %90 {offsets = [9, 0], sizes = [1, 144], strides = [1, 1]} : vector<32x288xf32> to vector<1x144xf32>
    %119 = arith.truncf %118 : vector<1x144xf32> to vector<1x144xbf16>
    %c0_50 = arith.constant 0 : index
    %c1296 = arith.constant 1296 : index
    %120 = vector.load %arg13[%c0_50, %c1296] : memref<2x4608xbf16, #tpu.memory_space<vmem>>, vector<1x144xbf16>
    tpu.vector_store %arg13[%c0_50, %c1296], %119 {strides = array<i32>} : memref<2x4608xbf16, #tpu.memory_space<vmem>>, vector<1x144xbf16>,
    %121 = vector.extract_strided_slice %90 {offsets = [10, 0], sizes = [1, 144], strides = [1, 1]} : vector<32x288xf32> to vector<1x144xf32>
    %122 = arith.truncf %121 : vector<1x144xf32> to vector<1x144xbf16>
    %c0_51 = arith.constant 0 : index
    %c1440 = arith.constant 1440 : index
    %123 = vector.load %arg13[%c0_51, %c1440] : memref<2x4608xbf16, #tpu.memory_space<vmem>>, vector<1x144xbf16>
    tpu.vector_store %arg13[%c0_51, %c1440], %122 {strides = array<i32>} : memref<2x4608xbf16, #tpu.memory_space<vmem>>, vector<1x144xbf16>,
    %124 = vector.extract_strided_slice %90 {offsets = [11, 0], sizes = [1, 144], strides = [1, 1]} : vector<32x288xf32> to vector<1x144xf32>
    %125 = arith.truncf %124 : vector<1x144xf32> to vector<1x144xbf16>
    %c0_52 = arith.constant 0 : index
    %c1584 = arith.constant 1584 : index
    %126 = vector.load %arg13[%c0_52, %c1584] : memref<2x4608xbf16, #tpu.memory_space<vmem>>, vector<1x144xbf16>
    tpu.vector_store %arg13[%c0_52, %c1584], %125 {strides = array<i32>} : memref<2x4608xbf16, #tpu.memory_space<vmem>>, vector<1x144xbf16>,
    %127 = vector.extract_strided_slice %90 {offsets = [12, 0], sizes = [1, 144], strides = [1, 1]} : vector<32x288xf32> to vector<1x144xf32>
    %128 = arith.truncf %127 : vector<1x144xf32> to vector<1x144xbf16>
    %c0_53 = arith.constant 0 : index
    %c1728 = arith.constant 1728 : index
    %129 = vector.load %arg13[%c0_53, %c1728] : memref<2x4608xbf16, #tpu.memory_space<vmem>>, vector<1x144xbf16>
    tpu.vector_store %arg13[%c0_53, %c1728], %128 {strides = array<i32>} : memref<2x4608xbf16, #tpu.memory_space<vmem>>, vector<1x144xbf16>,
    %130 = vector.extract_strided_slice %90 {offsets = [13, 0], sizes = [1, 144], strides = [1, 1]} : vector<32x288xf32> to vector<1x144xf32>
    %131 = arith.truncf %130 : vector<1x144xf32> to vector<1x144xbf16>
    %c0_54 = arith.constant 0 : index
    %c1872 = arith.constant 1872 : index
    %132 = vector.load %arg13[%c0_54, %c1872] : memref<2x4608xbf16, #tpu.memory_space<vmem>>, vector<1x144xbf16>
    tpu.vector_store %arg13[%c0_54, %c1872], %131 {strides = array<i32>} : memref<2x4608xbf16, #tpu.memory_space<vmem>>, vector<1x144xbf16>,
    %133 = vector.extract_strided_slice %90 {offsets = [14, 0], sizes = [1, 144], strides = [1, 1]} : vector<32x288xf32> to vector<1x144xf32>
    %134 = arith.truncf %133 : vector<1x144xf32> to vector<1x144xbf16>
    %c0_55 = arith.constant 0 : index
    %c2016 = arith.constant 2016 : index
    %135 = vector.load %arg13[%c0_55, %c2016] : memref<2x4608xbf16, #tpu.memory_space<vmem>>, vector<1x144xbf16>
    tpu.vector_store %arg13[%c0_55, %c2016], %134 {strides = array<i32>} : memref<2x4608xbf16, #tpu.memory_space<vmem>>, vector<1x144xbf16>,
    %136 = vector.extract_strided_slice %90 {offsets = [15, 0], sizes = [1, 144], strides = [1, 1]} : vector<32x288xf32> to vector<1x144xf32>
    %137 = arith.truncf %136 : vector<1x144xf32> to vector<1x144xbf16>
    %c0_56 = arith.constant 0 : index
    %c2160 = arith.constant 2160 : index
    %138 = vector.load %arg13[%c0_56, %c2160] : memref<2x4608xbf16, #tpu.memory_space<vmem>>, vector<1x144xbf16>
    tpu.vector_store %arg13[%c0_56, %c2160], %137 {strides = array<i32>} : memref<2x4608xbf16, #tpu.memory_space<vmem>>, vector<1x144xbf16>,
    %139 = vector.extract_strided_slice %90 {offsets = [16, 0], sizes = [1, 144], strides = [1, 1]} : vector<32x288xf32> to vector<1x144xf32>
    %140 = arith.truncf %139 : vector<1x144xf32> to vector<1x144xbf16>
    %c0_57 = arith.constant 0 : index
    %c2304 = arith.constant 2304 : index
    %141 = vector.load %arg13[%c0_57, %c2304] : memref<2x4608xbf16, #tpu.memory_space<vmem>>, vector<1x144xbf16>
    tpu.vector_store %arg13[%c0_57, %c2304], %140 {strides = array<i32>} : memref<2x4608xbf16, #tpu.memory_space<vmem>>, vector<1x144xbf16>,
    %142 = vector.extract_strided_slice %90 {offsets = [17, 0], sizes = [1, 144], strides = [1, 1]} : vector<32x288xf32> to vector<1x144xf32>
    %143 = arith.truncf %142 : vector<1x144xf32> to vector<1x144xbf16>
    %c0_58 = arith.constant 0 : index
    %c2448 = arith.constant 2448 : index
    %144 = vector.load %arg13[%c0_58, %c2448] : memref<2x4608xbf16, #tpu.memory_space<vmem>>, vector<1x144xbf16>
    tpu.vector_store %arg13[%c0_58, %c2448], %143 {strides = array<i32>} : memref<2x4608xbf16, #tpu.memory_space<vmem>>, vector<1x144xbf16>,
    %145 = vector.extract_strided_slice %90 {offsets = [18, 0], sizes = [1, 144], strides = [1, 1]} : vector<32x288xf32> to vector<1x144xf32>
    %146 = arith.truncf %145 : vector<1x144xf32> to vector<1x144xbf16>
    %c0_59 = arith.constant 0 : index
    %c2592 = arith.constant 2592 : index
    %147 = vector.load %arg13[%c0_59, %c2592] : memref<2x4608xbf16, #tpu.memory_space<vmem>>, vector<1x144xbf16>
    tpu.vector_store %arg13[%c0_59, %c2592], %146 {strides = array<i32>} : memref<2x4608xbf16, #tpu.memory_space<vmem>>, vector<1x144xbf16>,
    %148 = vector.extract_strided_slice %90 {offsets = [19, 0], sizes = [1, 144], strides = [1, 1]} : vector<32x288xf32> to vector<1x144xf32>
    %149 = arith.truncf %148 : vector<1x144xf32> to vector<1x144xbf16>
    %c0_60 = arith.constant 0 : index
    %c2736 = arith.constant 2736 : index
    %150 = vector.load %arg13[%c0_60, %c2736] : memref<2x4608xbf16, #tpu.memory_space<vmem>>, vector<1x144xbf16>
    tpu.vector_store %arg13[%c0_60, %c2736], %149 {strides = array<i32>} : memref<2x4608xbf16, #tpu.memory_space<vmem>>, vector<1x144xbf16>,
    %151 = vector.extract_strided_slice %90 {offsets = [20, 0], sizes = [1, 144], strides = [1, 1]} : vector<32x288xf32> to vector<1x144xf32>
    %152 = arith.truncf %151 : vector<1x144xf32> to vector<1x144xbf16>
    %c0_61 = arith.constant 0 : index
    %c2880 = arith.constant 2880 : index
    %153 = vector.load %arg13[%c0_61, %c2880] : memref<2x4608xbf16, #tpu.memory_space<vmem>>, vector<1x144xbf16>
    tpu.vector_store %arg13[%c0_61, %c2880], %152 {strides = array<i32>} : memref<2x4608xbf16, #tpu.memory_space<vmem>>, vector<1x144xbf16>,
    %154 = vector.extract_strided_slice %90 {offsets = [21, 0], sizes = [1, 144], strides = [1, 1]} : vector<32x288xf32> to vector<1x144xf32>
    %155 = arith.truncf %154 : vector<1x144xf32> to vector<1x144xbf16>
    %c0_62 = arith.constant 0 : index
    %c3024 = arith.constant 3024 : index
    %156 = vector.load %arg13[%c0_62, %c3024] : memref<2x4608xbf16, #tpu.memory_space<vmem>>, vector<1x144xbf16>
    tpu.vector_store %arg13[%c0_62, %c3024], %155 {strides = array<i32>} : memref<2x4608xbf16, #tpu.memory_space<vmem>>, vector<1x144xbf16>,
    %157 = vector.extract_strided_slice %90 {offsets = [22, 0], sizes = [1, 144], strides = [1, 1]} : vector<32x288xf32> to vector<1x144xf32>
    %158 = arith.truncf %157 : vector<1x144xf32> to vector<1x144xbf16>
    %c0_63 = arith.constant 0 : index
    %c3168 = arith.constant 3168 : index
    %159 = vector.load %arg13[%c0_63, %c3168] : memref<2x4608xbf16, #tpu.memory_space<vmem>>, vector<1x144xbf16>
    tpu.vector_store %arg13[%c0_63, %c3168], %158 {strides = array<i32>} : memref<2x4608xbf16, #tpu.memory_space<vmem>>, vector<1x144xbf16>,
    %160 = vector.extract_strided_slice %90 {offsets = [23, 0], sizes = [1, 144], strides = [1, 1]} : vector<32x288xf32> to vector<1x144xf32>
    %161 = arith.truncf %160 : vector<1x144xf32> to vector<1x144xbf16>
    %c0_64 = arith.constant 0 : index
    %c3312 = arith.constant 3312 : index
    %162 = vector.load %arg13[%c0_64, %c3312] : memref<2x4608xbf16, #tpu.memory_space<vmem>>, vector<1x144xbf16>
    tpu.vector_store %arg13[%c0_64, %c3312], %161 {strides = array<i32>} : memref<2x4608xbf16, #tpu.memory_space<vmem>>, vector<1x144xbf16>,
    %163 = vector.extract_strided_slice %90 {offsets = [24, 0], sizes = [1, 144], strides = [1, 1]} : vector<32x288xf32> to vector<1x144xf32>
    %164 = arith.truncf %163 : vector<1x144xf32> to vector<1x144xbf16>
    %c0_65 = arith.constant 0 : index
    %c3456 = arith.constant 3456 : index
    %165 = vector.load %arg13[%c0_65, %c3456] : memref<2x4608xbf16, #tpu.memory_space<vmem>>, vector<1x144xbf16>
    tpu.vector_store %arg13[%c0_65, %c3456], %164 {strides = array<i32>} : memref<2x4608xbf16, #tpu.memory_space<vmem>>, vector<1x144xbf16>,
    %166 = vector.extract_strided_slice %90 {offsets = [25, 0], sizes = [1, 144], strides = [1, 1]} : vector<32x288xf32> to vector<1x144xf32>
    %167 = arith.truncf %166 : vector<1x144xf32> to vector<1x144xbf16>
    %c0_66 = arith.constant 0 : index
    %c3600 = arith.constant 3600 : index
    %168 = vector.load %arg13[%c0_66, %c3600] : memref<2x4608xbf16, #tpu.memory_space<vmem>>, vector<1x144xbf16>
    tpu.vector_store %arg13[%c0_66, %c3600], %167 {strides = array<i32>} : memref<2x4608xbf16, #tpu.memory_space<vmem>>, vector<1x144xbf16>,
    %169 = vector.extract_strided_slice %90 {offsets = [26, 0], sizes = [1, 144], strides = [1, 1]} : vector<32x288xf32> to vector<1x144xf32>
    %170 = arith.truncf %169 : vector<1x144xf32> to vector<1x144xbf16>
    %c0_67 = arith.constant 0 : index
    %c3744 = arith.constant 3744 : index
    %171 = vector.load %arg13[%c0_67, %c3744] : memref<2x4608xbf16, #tpu.memory_space<vmem>>, vector<1x144xbf16>
    tpu.vector_store %arg13[%c0_67, %c3744], %170 {strides = array<i32>} : memref<2x4608xbf16, #tpu.memory_space<vmem>>, vector<1x144xbf16>,
    %172 = vector.extract_strided_slice %90 {offsets = [27, 0], sizes = [1, 144], strides = [1, 1]} : vector<32x288xf32> to vector<1x144xf32>
    %173 = arith.truncf %172 : vector<1x144xf32> to vector<1x144xbf16>
    %c0_68 = arith.constant 0 : index
    %c3888 = arith.constant 3888 : index
    %174 = vector.load %arg13[%c0_68, %c3888] : memref<2x4608xbf16, #tpu.memory_space<vmem>>, vector<1x144xbf16>
    tpu.vector_store %arg13[%c0_68, %c3888], %173 {strides = array<i32>} : memref<2x4608xbf16, #tpu.memory_space<vmem>>, vector<1x144xbf16>,
    %175 = vector.extract_strided_slice %90 {offsets = [28, 0], sizes = [1, 144], strides = [1, 1]} : vector<32x288xf32> to vector<1x144xf32>
    %176 = arith.truncf %175 : vector<1x144xf32> to vector<1x144xbf16>
    %c0_69 = arith.constant 0 : index
    %c4032 = arith.constant 4032 : index
    %177 = vector.load %arg13[%c0_69, %c4032] : memref<2x4608xbf16, #tpu.memory_space<vmem>>, vector<1x144xbf16>
    tpu.vector_store %arg13[%c0_69, %c4032], %176 {strides = array<i32>} : memref<2x4608xbf16, #tpu.memory_space<vmem>>, vector<1x144xbf16>,
    %178 = vector.extract_strided_slice %90 {offsets = [29, 0], sizes = [1, 144], strides = [1, 1]} : vector<32x288xf32> to vector<1x144xf32>
    %179 = arith.truncf %178 : vector<1x144xf32> to vector<1x144xbf16>
    %c0_70 = arith.constant 0 : index
    %c4176 = arith.constant 4176 : index
    %180 = vector.load %arg13[%c0_70, %c4176] : memref<2x4608xbf16, #tpu.memory_space<vmem>>, vector<1x144xbf16>
    tpu.vector_store %arg13[%c0_70, %c4176], %179 {strides = array<i32>} : memref<2x4608xbf16, #tpu.memory_space<vmem>>, vector<1x144xbf16>,
    %181 = vector.extract_strided_slice %90 {offsets = [30, 0], sizes = [1, 144], strides = [1, 1]} : vector<32x288xf32> to vector<1x144xf32>
    %182 = arith.truncf %181 : vector<1x144xf32> to vector<1x144xbf16>
    %c0_71 = arith.constant 0 : index
    %c4320 = arith.constant 4320 : index
    %183 = vector.load %arg13[%c0_71, %c4320] : memref<2x4608xbf16, #tpu.memory_space<vmem>>, vector<1x144xbf16>
    tpu.vector_store %arg13[%c0_71, %c4320], %182 {strides = array<i32>} : memref<2x4608xbf16, #tpu.memory_space<vmem>>, vector<1x144xbf16>,
    %184 = vector.extract_strided_slice %90 {offsets = [31, 0], sizes = [1, 144], strides = [1, 1]} : vector<32x288xf32> to vector<1x144xf32>
    %185 = arith.truncf %184 : vector<1x144xf32> to vector<1x144xbf16>
    %c0_72 = arith.constant 0 : index
    %c4464 = arith.constant 4464 : index
    %186 = vector.load %arg13[%c0_72, %c4464] : memref<2x4608xbf16, #tpu.memory_space<vmem>>, vector<1x144xbf16>
    tpu.vector_store %arg13[%c0_72, %c4464], %185 {strides = array<i32>} : memref<2x4608xbf16, #tpu.memory_space<vmem>>, vector<1x144xbf16>,
    %187 = vector.extract_strided_slice %90 {offsets = [0, 144], sizes = [1, 144], strides = [1, 1]} : vector<32x288xf32> to vector<1x144xf32>
    %188 = arith.truncf %187 : vector<1x144xf32> to vector<1x144xbf16>
    %c1 = arith.constant 1 : index
    %c0_73 = arith.constant 0 : index
    %189 = vector.load %arg13[%c1, %c0_73] : memref<2x4608xbf16, #tpu.memory_space<vmem>>, vector<1x144xbf16>
    tpu.vector_store %arg13[%c1, %c0_73], %188 {strides = array<i32>} : memref<2x4608xbf16, #tpu.memory_space<vmem>>, vector<1x144xbf16>,
    %190 = vector.extract_strided_slice %90 {offsets = [1, 144], sizes = [1, 144], strides = [1, 1]} : vector<32x288xf32> to vector<1x144xf32>
    %191 = arith.truncf %190 : vector<1x144xf32> to vector<1x144xbf16>
    %c1_74 = arith.constant 1 : index
    %c144_75 = arith.constant 144 : index
    %192 = vector.load %arg13[%c1_74, %c144_75] : memref<2x4608xbf16, #tpu.memory_space<vmem>>, vector<1x144xbf16>
    tpu.vector_store %arg13[%c1_74, %c144_75], %191 {strides = array<i32>} : memref<2x4608xbf16, #tpu.memory_space<vmem>>, vector<1x144xbf16>,
    %193 = vector.extract_strided_slice %90 {offsets = [2, 144], sizes = [1, 144], strides = [1, 1]} : vector<32x288xf32> to vector<1x144xf32>
    %194 = arith.truncf %193 : vector<1x144xf32> to vector<1x144xbf16>
    %c1_76 = arith.constant 1 : index
    %c288_77 = arith.constant 288 : index
    %195 = vector.load %arg13[%c1_76, %c288_77] : memref<2x4608xbf16, #tpu.memory_space<vmem>>, vector<1x144xbf16>
    tpu.vector_store %arg13[%c1_76, %c288_77], %194 {strides = array<i32>} : memref<2x4608xbf16, #tpu.memory_space<vmem>>, vector<1x144xbf16>,
    %196 = vector.extract_strided_slice %90 {offsets = [3, 144], sizes = [1, 144], strides = [1, 1]} : vector<32x288xf32> to vector<1x144xf32>
    %197 = arith.truncf %196 : vector<1x144xf32> to vector<1x144xbf16>
    %c1_78 = arith.constant 1 : index
    %c432_79 = arith.constant 432 : index
    %198 = vector.load %arg13[%c1_78, %c432_79] : memref<2x4608xbf16, #tpu.memory_space<vmem>>, vector<1x144xbf16>
    tpu.vector_store %arg13[%c1_78, %c432_79], %197 {strides = array<i32>} : memref<2x4608xbf16, #tpu.memory_space<vmem>>, vector<1x144xbf16>,
    %199 = vector.extract_strided_slice %90 {offsets = [4, 144], sizes = [1, 144], strides = [1, 1]} : vector<32x288xf32> to vector<1x144xf32>
    %200 = arith.truncf %199 : vector<1x144xf32> to vector<1x144xbf16>
    %c1_80 = arith.constant 1 : index
    %c576_81 = arith.constant 576 : index
    %201 = vector.load %arg13[%c1_80, %c576_81] : memref<2x4608xbf16, #tpu.memory_space<vmem>>, vector<1x144xbf16>
    tpu.vector_store %arg13[%c1_80, %c576_81], %200 {strides = array<i32>} : memref<2x4608xbf16, #tpu.memory_space<vmem>>, vector<1x144xbf16>,
    %202 = vector.extract_strided_slice %90 {offsets = [5, 144], sizes = [1, 144], strides = [1, 1]} : vector<32x288xf32> to vector<1x144xf32>
    %203 = arith.truncf %202 : vector<1x144xf32> to vector<1x144xbf16>
    %c1_82 = arith.constant 1 : index
    %c720_83 = arith.constant 720 : index
    %204 = vector.load %arg13[%c1_82, %c720_83] : memref<2x4608xbf16, #tpu.memory_space<vmem>>, vector<1x144xbf16>
    tpu.vector_store %arg13[%c1_82, %c720_83], %203 {strides = array<i32>} : memref<2x4608xbf16, #tpu.memory_space<vmem>>, vector<1x144xbf16>,
    %205 = vector.extract_strided_slice %90 {offsets = [6, 144], sizes = [1, 144], strides = [1, 1]} : vector<32x288xf32> to vector<1x144xf32>
    %206 = arith.truncf %205 : vector<1x144xf32> to vector<1x144xbf16>
    %c1_84 = arith.constant 1 : index
    %c864_85 = arith.constant 864 : index
    %207 = vector.load %arg13[%c1_84, %c864_85] : memref<2x4608xbf16, #tpu.memory_space<vmem>>, vector<1x144xbf16>
    tpu.vector_store %arg13[%c1_84, %c864_85], %206 {strides = array<i32>} : memref<2x4608xbf16, #tpu.memory_space<vmem>>, vector<1x144xbf16>,
    %208 = vector.extract_strided_slice %90 {offsets = [7, 144], sizes = [1, 144], strides = [1, 1]} : vector<32x288xf32> to vector<1x144xf32>
    %209 = arith.truncf %208 : vector<1x144xf32> to vector<1x144xbf16>
    %c1_86 = arith.constant 1 : index
    %c1008_87 = arith.constant 1008 : index
    %210 = vector.load %arg13[%c1_86, %c1008_87] : memref<2x4608xbf16, #tpu.memory_space<vmem>>, vector<1x144xbf16>
    tpu.vector_store %arg13[%c1_86, %c1008_87], %209 {strides = array<i32>} : memref<2x4608xbf16, #tpu.memory_space<vmem>>, vector<1x144xbf16>,
    %211 = vector.extract_strided_slice %90 {offsets = [8, 144], sizes = [1, 144], strides = [1, 1]} : vector<32x288xf32> to vector<1x144xf32>
    %212 = arith.truncf %211 : vector<1x144xf32> to vector<1x144xbf16>
    %c1_88 = arith.constant 1 : index
    %c1152_89 = arith.constant 1152 : index
    %213 = vector.load %arg13[%c1_88, %c1152_89] : memref<2x4608xbf16, #tpu.memory_space<vmem>>, vector<1x144xbf16>
    tpu.vector_store %arg13[%c1_88, %c1152_89], %212 {strides = array<i32>} : memref<2x4608xbf16, #tpu.memory_space<vmem>>, vector<1x144xbf16>,
    %214 = vector.extract_strided_slice %90 {offsets = [9, 144], sizes = [1, 144], strides = [1, 1]} : vector<32x288xf32> to vector<1x144xf32>
    %215 = arith.truncf %214 : vector<1x144xf32> to vector<1x144xbf16>
    %c1_90 = arith.constant 1 : index
    %c1296_91 = arith.constant 1296 : index
    %216 = vector.load %arg13[%c1_90, %c1296_91] : memref<2x4608xbf16, #tpu.memory_space<vmem>>, vector<1x144xbf16>
    tpu.vector_store %arg13[%c1_90, %c1296_91], %215 {strides = array<i32>} : memref<2x4608xbf16, #tpu.memory_space<vmem>>, vector<1x144xbf16>,
    %217 = vector.extract_strided_slice %90 {offsets = [10, 144], sizes = [1, 144], strides = [1, 1]} : vector<32x288xf32> to vector<1x144xf32>
    %218 = arith.truncf %217 : vector<1x144xf32> to vector<1x144xbf16>
    %c1_92 = arith.constant 1 : index
    %c1440_93 = arith.constant 1440 : index
    %219 = vector.load %arg13[%c1_92, %c1440_93] : memref<2x4608xbf16, #tpu.memory_space<vmem>>, vector<1x144xbf16>
    tpu.vector_store %arg13[%c1_92, %c1440_93], %218 {strides = array<i32>} : memref<2x4608xbf16, #tpu.memory_space<vmem>>, vector<1x144xbf16>,
    %220 = vector.extract_strided_slice %90 {offsets = [11, 144], sizes = [1, 144], strides = [1, 1]} : vector<32x288xf32> to vector<1x144xf32>
    %221 = arith.truncf %220 : vector<1x144xf32> to vector<1x144xbf16>
    %c1_94 = arith.constant 1 : index
    %c1584_95 = arith.constant 1584 : index
    %222 = vector.load %arg13[%c1_94, %c1584_95] : memref<2x4608xbf16, #tpu.memory_space<vmem>>, vector<1x144xbf16>
    tpu.vector_store %arg13[%c1_94, %c1584_95], %221 {strides = array<i32>} : memref<2x4608xbf16, #tpu.memory_space<vmem>>, vector<1x144xbf16>,
    %223 = vector.extract_strided_slice %90 {offsets = [12, 144], sizes = [1, 144], strides = [1, 1]} : vector<32x288xf32> to vector<1x144xf32>
    %224 = arith.truncf %223 : vector<1x144xf32> to vector<1x144xbf16>
    %c1_96 = arith.constant 1 : index
    %c1728_97 = arith.constant 1728 : index
    %225 = vector.load %arg13[%c1_96, %c1728_97] : memref<2x4608xbf16, #tpu.memory_space<vmem>>, vector<1x144xbf16>
    tpu.vector_store %arg13[%c1_96, %c1728_97], %224 {strides = array<i32>} : memref<2x4608xbf16, #tpu.memory_space<vmem>>, vector<1x144xbf16>,
    %226 = vector.extract_strided_slice %90 {offsets = [13, 144], sizes = [1, 144], strides = [1, 1]} : vector<32x288xf32> to vector<1x144xf32>
    %227 = arith.truncf %226 : vector<1x144xf32> to vector<1x144xbf16>
    %c1_98 = arith.constant 1 : index
    %c1872_99 = arith.constant 1872 : index
    %228 = vector.load %arg13[%c1_98, %c1872_99] : memref<2x4608xbf16, #tpu.memory_space<vmem>>, vector<1x144xbf16>
    tpu.vector_store %arg13[%c1_98, %c1872_99], %227 {strides = array<i32>} : memref<2x4608xbf16, #tpu.memory_space<vmem>>, vector<1x144xbf16>,
    %229 = vector.extract_strided_slice %90 {offsets = [14, 144], sizes = [1, 144], strides = [1, 1]} : vector<32x288xf32> to vector<1x144xf32>
    %230 = arith.truncf %229 : vector<1x144xf32> to vector<1x144xbf16>
    %c1_100 = arith.constant 1 : index
    %c2016_101 = arith.constant 2016 : index
    %231 = vector.load %arg13[%c1_100, %c2016_101] : memref<2x4608xbf16, #tpu.memory_space<vmem>>, vector<1x144xbf16>
    tpu.vector_store %arg13[%c1_100, %c2016_101], %230 {strides = array<i32>} : memref<2x4608xbf16, #tpu.memory_space<vmem>>, vector<1x144xbf16>,
    %232 = vector.extract_strided_slice %90 {offsets = [15, 144], sizes = [1, 144], strides = [1, 1]} : vector<32x288xf32> to vector<1x144xf32>
    %233 = arith.truncf %232 : vector<1x144xf32> to vector<1x144xbf16>
    %c1_102 = arith.constant 1 : index
    %c2160_103 = arith.constant 2160 : index
    %234 = vector.load %arg13[%c1_102, %c2160_103] : memref<2x4608xbf16, #tpu.memory_space<vmem>>, vector<1x144xbf16>
    tpu.vector_store %arg13[%c1_102, %c2160_103], %233 {strides = array<i32>} : memref<2x4608xbf16, #tpu.memory_space<vmem>>, vector<1x144xbf16>,
    %235 = vector.extract_strided_slice %90 {offsets = [16, 144], sizes = [1, 144], strides = [1, 1]} : vector<32x288xf32> to vector<1x144xf32>
    %236 = arith.truncf %235 : vector<1x144xf32> to vector<1x144xbf16>
    %c1_104 = arith.constant 1 : index
    %c2304_105 = arith.constant 2304 : index
    %237 = vector.load %arg13[%c1_104, %c2304_105] : memref<2x4608xbf16, #tpu.memory_space<vmem>>, vector<1x144xbf16>
    tpu.vector_store %arg13[%c1_104, %c2304_105], %236 {strides = array<i32>} : memref<2x4608xbf16, #tpu.memory_space<vmem>>, vector<1x144xbf16>,
    %238 = vector.extract_strided_slice %90 {offsets = [17, 144], sizes = [1, 144], strides = [1, 1]} : vector<32x288xf32> to vector<1x144xf32>
    %239 = arith.truncf %238 : vector<1x144xf32> to vector<1x144xbf16>
    %c1_106 = arith.constant 1 : index
    %c2448_107 = arith.constant 2448 : index
    %240 = vector.load %arg13[%c1_106, %c2448_107] : memref<2x4608xbf16, #tpu.memory_space<vmem>>, vector<1x144xbf16>
    tpu.vector_store %arg13[%c1_106, %c2448_107], %239 {strides = array<i32>} : memref<2x4608xbf16, #tpu.memory_space<vmem>>, vector<1x144xbf16>,
    %241 = vector.extract_strided_slice %90 {offsets = [18, 144], sizes = [1, 144], strides = [1, 1]} : vector<32x288xf32> to vector<1x144xf32>
    %242 = arith.truncf %241 : vector<1x144xf32> to vector<1x144xbf16>
    %c1_108 = arith.constant 1 : index
    %c2592_109 = arith.constant 2592 : index
    %243 = vector.load %arg13[%c1_108, %c2592_109] : memref<2x4608xbf16, #tpu.memory_space<vmem>>, vector<1x144xbf16>
    tpu.vector_store %arg13[%c1_108, %c2592_109], %242 {strides = array<i32>} : memref<2x4608xbf16, #tpu.memory_space<vmem>>, vector<1x144xbf16>,
    %244 = vector.extract_strided_slice %90 {offsets = [19, 144], sizes = [1, 144], strides = [1, 1]} : vector<32x288xf32> to vector<1x144xf32>
    %245 = arith.truncf %244 : vector<1x144xf32> to vector<1x144xbf16>
    %c1_110 = arith.constant 1 : index
    %c2736_111 = arith.constant 2736 : index
    %246 = vector.load %arg13[%c1_110, %c2736_111] : memref<2x4608xbf16, #tpu.memory_space<vmem>>, vector<1x144xbf16>
    tpu.vector_store %arg13[%c1_110, %c2736_111], %245 {strides = array<i32>} : memref<2x4608xbf16, #tpu.memory_space<vmem>>, vector<1x144xbf16>,
    %247 = vector.extract_strided_slice %90 {offsets = [20, 144], sizes = [1, 144], strides = [1, 1]} : vector<32x288xf32> to vector<1x144xf32>
    %248 = arith.truncf %247 : vector<1x144xf32> to vector<1x144xbf16>
    %c1_112 = arith.constant 1 : index
    %c2880_113 = arith.constant 2880 : index
    %249 = vector.load %arg13[%c1_112, %c2880_113] : memref<2x4608xbf16, #tpu.memory_space<vmem>>, vector<1x144xbf16>
    tpu.vector_store %arg13[%c1_112, %c2880_113], %248 {strides = array<i32>} : memref<2x4608xbf16, #tpu.memory_space<vmem>>, vector<1x144xbf16>,
    %250 = vector.extract_strided_slice %90 {offsets = [21, 144], sizes = [1, 144], strides = [1, 1]} : vector<32x288xf32> to vector<1x144xf32>
    %251 = arith.truncf %250 : vector<1x144xf32> to vector<1x144xbf16>
    %c1_114 = arith.constant 1 : index
    %c3024_115 = arith.constant 3024 : index
    %252 = vector.load %arg13[%c1_114, %c3024_115] : memref<2x4608xbf16, #tpu.memory_space<vmem>>, vector<1x144xbf16>
    tpu.vector_store %arg13[%c1_114, %c3024_115], %251 {strides = array<i32>} : memref<2x4608xbf16, #tpu.memory_space<vmem>>, vector<1x144xbf16>,
    %253 = vector.extract_strided_slice %90 {offsets = [22, 144], sizes = [1, 144], strides = [1, 1]} : vector<32x288xf32> to vector<1x144xf32>
    %254 = arith.truncf %253 : vector<1x144xf32> to vector<1x144xbf16>
    %c1_116 = arith.constant 1 : index
    %c3168_117 = arith.constant 3168 : index
    %255 = vector.load %arg13[%c1_116, %c3168_117] : memref<2x4608xbf16, #tpu.memory_space<vmem>>, vector<1x144xbf16>
    tpu.vector_store %arg13[%c1_116, %c3168_117], %254 {strides = array<i32>} : memref<2x4608xbf16, #tpu.memory_space<vmem>>, vector<1x144xbf16>,
    %256 = vector.extract_strided_slice %90 {offsets = [23, 144], sizes = [1, 144], strides = [1, 1]} : vector<32x288xf32> to vector<1x144xf32>
    %257 = arith.truncf %256 : vector<1x144xf32> to vector<1x144xbf16>
    %c1_118 = arith.constant 1 : index
    %c3312_119 = arith.constant 3312 : index
    %258 = vector.load %arg13[%c1_118, %c3312_119] : memref<2x4608xbf16, #tpu.memory_space<vmem>>, vector<1x144xbf16>
    tpu.vector_store %arg13[%c1_118, %c3312_119], %257 {strides = array<i32>} : memref<2x4608xbf16, #tpu.memory_space<vmem>>, vector<1x144xbf16>,
    %259 = vector.extract_strided_slice %90 {offsets = [24, 144], sizes = [1, 144], strides = [1, 1]} : vector<32x288xf32> to vector<1x144xf32>
    %260 = arith.truncf %259 : vector<1x144xf32> to vector<1x144xbf16>
    %c1_120 = arith.constant 1 : index
    %c3456_121 = arith.constant 3456 : index
    %261 = vector.load %arg13[%c1_120, %c3456_121] : memref<2x4608xbf16, #tpu.memory_space<vmem>>, vector<1x144xbf16>
    tpu.vector_store %arg13[%c1_120, %c3456_121], %260 {strides = array<i32>} : memref<2x4608xbf16, #tpu.memory_space<vmem>>, vector<1x144xbf16>,
    %262 = vector.extract_strided_slice %90 {offsets = [25, 144], sizes = [1, 144], strides = [1, 1]} : vector<32x288xf32> to vector<1x144xf32>
    %263 = arith.truncf %262 : vector<1x144xf32> to vector<1x144xbf16>
    %c1_122 = arith.constant 1 : index
    %c3600_123 = arith.constant 3600 : index
    %264 = vector.load %arg13[%c1_122, %c3600_123] : memref<2x4608xbf16, #tpu.memory_space<vmem>>, vector<1x144xbf16>
    tpu.vector_store %arg13[%c1_122, %c3600_123], %263 {strides = array<i32>} : memref<2x4608xbf16, #tpu.memory_space<vmem>>, vector<1x144xbf16>,
    %265 = vector.extract_strided_slice %90 {offsets = [26, 144], sizes = [1, 144], strides = [1, 1]} : vector<32x288xf32> to vector<1x144xf32>
    %266 = arith.truncf %265 : vector<1x144xf32> to vector<1x144xbf16>
    %c1_124 = arith.constant 1 : index
    %c3744_125 = arith.constant 3744 : index
    %267 = vector.load %arg13[%c1_124, %c3744_125] : memref<2x4608xbf16, #tpu.memory_space<vmem>>, vector<1x144xbf16>
    tpu.vector_store %arg13[%c1_124, %c3744_125], %266 {strides = array<i32>} : memref<2x4608xbf16, #tpu.memory_space<vmem>>, vector<1x144xbf16>,
    %268 = vector.extract_strided_slice %90 {offsets = [27, 144], sizes = [1, 144], strides = [1, 1]} : vector<32x288xf32> to vector<1x144xf32>
    %269 = arith.truncf %268 : vector<1x144xf32> to vector<1x144xbf16>
    %c1_126 = arith.constant 1 : index
    %c3888_127 = arith.constant 3888 : index
    %270 = vector.load %arg13[%c1_126, %c3888_127] : memref<2x4608xbf16, #tpu.memory_space<vmem>>, vector<1x144xbf16>
    tpu.vector_store %arg13[%c1_126, %c3888_127], %269 {strides = array<i32>} : memref<2x4608xbf16, #tpu.memory_space<vmem>>, vector<1x144xbf16>,
    %271 = vector.extract_strided_slice %90 {offsets = [28, 144], sizes = [1, 144], strides = [1, 1]} : vector<32x288xf32> to vector<1x144xf32>
    %272 = arith.truncf %271 : vector<1x144xf32> to vector<1x144xbf16>
    %c1_128 = arith.constant 1 : index
    %c4032_129 = arith.constant 4032 : index
    %273 = vector.load %arg13[%c1_128, %c4032_129] : memref<2x4608xbf16, #tpu.memory_space<vmem>>, vector<1x144xbf16>
    tpu.vector_store %arg13[%c1_128, %c4032_129], %272 {strides = array<i32>} : memref<2x4608xbf16, #tpu.memory_space<vmem>>, vector<1x144xbf16>,
    %274 = vector.extract_strided_slice %90 {offsets = [29, 144], sizes = [1, 144], strides = [1, 1]} : vector<32x288xf32> to vector<1x144xf32>
    %275 = arith.truncf %274 : vector<1x144xf32> to vector<1x144xbf16>
    %c1_130 = arith.constant 1 : index
    %c4176_131 = arith.constant 4176 : index
    %276 = vector.load %arg13[%c1_130, %c4176_131] : memref<2x4608xbf16, #tpu.memory_space<vmem>>, vector<1x144xbf16>
    tpu.vector_store %arg13[%c1_130, %c4176_131], %275 {strides = array<i32>} : memref<2x4608xbf16, #tpu.memory_space<vmem>>, vector<1x144xbf16>,
    %277 = vector.extract_strided_slice %90 {offsets = [30, 144], sizes = [1, 144], strides = [1, 1]} : vector<32x288xf32> to vector<1x144xf32>
    %278 = arith.truncf %277 : vector<1x144xf32> to vector<1x144xbf16>
    %c1_132 = arith.constant 1 : index
    %c4320_133 = arith.constant 4320 : index
    %279 = vector.load %arg13[%c1_132, %c4320_133] : memref<2x4608xbf16, #tpu.memory_space<vmem>>, vector<1x144xbf16>
    tpu.vector_store %arg13[%c1_132, %c4320_133], %278 {strides = array<i32>} : memref<2x4608xbf16, #tpu.memory_space<vmem>>, vector<1x144xbf16>,
    %280 = vector.extract_strided_slice %90 {offsets = [31, 144], sizes = [1, 144], strides = [1, 1]} : vector<32x288xf32> to vector<1x144xf32>
    %281 = arith.truncf %280 : vector<1x144xf32> to vector<1x144xbf16>
    %c1_134 = arith.constant 1 : index
    %c4464_135 = arith.constant 4464 : index
    %282 = vector.load %arg13[%c1_134, %c4464_135] : memref<2x4608xbf16, #tpu.memory_space<vmem>>, vector<1x144xbf16>
    tpu.vector_store %arg13[%c1_134, %c4464_135], %281 {strides = array<i32>} : memref<2x4608xbf16, #tpu.memory_space<vmem>>, vector<1x144xbf16>,
    tpu.wait_dma2 semaphore(%arg14 : memref<!tpu.dma_semaphore, #tpu.memory_space<semaphore_mem>>) src(%arg6 : memref<4608x128xbf16, #tpu.memory_space<any>>) dst(%arg11 : memref<4608x128xbf16, #tpu.memory_space<vmem>>)
    %c0_136 = arith.constant 0 : index
    %c0_137 = arith.constant 0 : index
    %283 = vector.load %arg13[%c0_136, %c0_137] : memref<2x4608xbf16, #tpu.memory_space<vmem>>, vector<2x4608xbf16>
    %c0_138 = arith.constant 0 : index
    %c0_139 = arith.constant 0 : index
    %284 = vector.load %arg11[%c0_138, %c0_139] : memref<4608x128xbf16, #tpu.memory_space<vmem>>, vector<4608x128xbf16>
    %cst_140 = arith.constant dense<0.000000e+00> : vector<2x128xf32>
    %285 = tpu.matmul %283, %284, %cst_140 {dimension_numbers = #tpu.dot_dimension_numbers<[1], [0], [0], [1], [0, 0, 1, 1], [], []>} : vector<2x4608xbf16>, vector<4608x128xbf16>, vector<2x128xf32> -> vector<2x128xf32>
    %c0_141 = arith.constant 0 : index
    %c0_142 = arith.constant 0 : index
    %286 = vector.load %arg7[%c0_141, %c0_142] : memref<1x128xf32, #tpu.memory_space<vmem>>, vector<1x128xf32>
    %287 = vector.broadcast %286 : vector<1x128xf32> to vector<2x128xf32>
    %288 = arith.addf %285, %287 : vector<2x128xf32>
    %289 = math.tanh %288 : vector<2x128xf32>
    %c0_143 = arith.constant 0 : index
    %c0_144 = arith.constant 0 : index
    %290 = vector.load %arg8[%c0_143, %c0_144] : memref<1x128xf32, #tpu.memory_space<vmem>>, vector<1x128xf32>
    %291 = vector.broadcast %290 : vector<1x128xf32> to vector<2x128xf32>
    %292 = arith.mulf %289, %291 : vector<2x128xf32>
    %cst_145 = arith.constant dense<0.000000e+00> : vector<2xf32>
    %293 = vector.multi_reduction <add>, %292, %cst_145 [1] : vector<2x128xf32> to vector<2xf32>
    %294 = vector.shape_cast %293 : vector<2xf32> to vector<2x1xf32>
    %c0_146 = arith.constant 0 : index
    %c0_147 = arith.constant 0 : index
    %295 = vector.load %arg9[%c0_146, %c0_147] : memref<1x1xf32, #tpu.memory_space<vmem>>, vector<1x1xf32>
    %296 = vector.broadcast %295 : vector<1x1xf32> to vector<2x1xf32>
    %297 = arith.addf %294, %296 : vector<2x1xf32>
    %c0_148 = arith.constant 0 : index
    %c0_149 = arith.constant 0 : index
    %298 = vector.load %arg10[%c0_148, %c0_149] : memref<2x1xf32, #tpu.memory_space<vmem>>, vector<2x1xf32>
    tpu.vector_store %arg10[%c0_148, %c0_149], %297 {strides = array<i32>} : memref<2x1xf32, #tpu.memory_space<vmem>>, vector<2x1xf32>,
    return
  }
  func.func @transform_0(%arg0: i32) -> (i32, i32) {
    %c0_i32 = arith.constant 0 : i32
    %c0_i32_0 = arith.constant 0 : i32
    %c0_i32_1 = arith.constant 0 : i32
    return %c0_i32, %c0_i32_0 : i32, i32
  }
  func.func @transform_1(%arg0: i32) -> (i32, i32) {
    %c0_i32 = arith.constant 0 : i32
    %c0_i32_0 = arith.constant 0 : i32
    %c0_i32_1 = arith.constant 0 : i32
    return %c0_i32, %c0_i32_0 : i32, i32
  }
  func.func @transform_2(%arg0: i32) -> (i32, i32) {
    %c0_i32 = arith.constant 0 : i32
    %c0_i32_0 = arith.constant 0 : i32
    %c0_i32_1 = arith.constant 0 : i32
    return %c0_i32, %c0_i32_0 : i32, i32
  }
  func.func @transform_3(%arg0: i32) -> (i32, i32) {
    %c0_i32 = arith.constant 0 : i32
    %c0_i32_0 = arith.constant 0 : i32
    %c0_i32_1 = arith.constant 0 : i32
    return %c0_i32, %c0_i32_0 : i32, i32
  }
  func.func @transform_4(%arg0: i32) -> (i32, i32) {
    %c0_i32 = arith.constant 0 : i32
    %c0_i32_0 = arith.constant 0 : i32
    %c0_i32_1 = arith.constant 0 : i32
    return %c0_i32, %c0_i32_0 : i32, i32
  }
  func.func @transform_6(%arg0: i32) -> (i32, i32) {
    %c0_i32 = arith.constant 0 : i32
    %c0_i32_0 = arith.constant 0 : i32
    %c0_i32_1 = arith.constant 0 : i32
    return %c0_i32, %c0_i32_0 : i32, i32
  }
  func.func @transform_7(%arg0: i32) -> (i32, i32) {
    %c0_i32 = arith.constant 0 : i32
    %c0_i32_0 = arith.constant 0 : i32
    %c0_i32_1 = arith.constant 0 : i32
    return %c0_i32, %c0_i32_0 : i32, i32
  }
  func.func @transform_8(%arg0: i32) -> (i32, i32) {
    %c0_i32 = arith.constant 0 : i32
    %c0_i32_0 = arith.constant 0 : i32
    %c0_i32_1 = arith.constant 0 : i32
    return %c0_i32, %c0_i32_0 : i32, i32
  }
  func.func @transform_9(%arg0: i32) -> (i32, i32) {
    %c0_i32 = arith.constant 0 : i32
    %c0_i32_0 = arith.constant 0 : i32
    %c0_i32_1 = arith.constant 0 : i32
    return %c0_i32, %c0_i32_0 : i32, i32
  }
}

</mosaic_0001>

<llo_original>
// kernel: critic_forward.1
$region0: #{critic_forward.1}
  #allocation0 [shape = 'u32[]', space=smem, size = 0x4, offset = 0x4, fixed_abs, tag = 'smem constant byte address 0x4 - core index']
  #allocation1 [shape = 'u32[144,128]{1,0:T(1,128)}', space=vmem, size = 0x12000, scoped, tag = 'internal scratch']
  #allocation2 [shape = 'bf16[4608,128]{1,0:T(16,128)(2,1)}', space=vmem, size = 0x120000, scoped, tag = 'scratch operand']
  #allocation3 [shape = 'bf16[288,144]{1,0:T(16,128)(2,1)}', space=vmem, size = 0x24000, scoped, tag = 'scratch operand']
  #allocation4 [shape = 'bf16[2,4608]{1,0:T(2,128)(2,1)}', space=vmem, size = 0x4800, scoped, tag = 'scratch operand']
  #allocation5 [shape = 's32[1]{0}', space=sflag, size = 0x4, scoped, tag = 'scratch operand']
  #allocation6 [shape = 'f32[1,1]{1,0:T(1,128)S(1)}', space=vmem, size = 0x200, scoped, tag = 'scoped memory for critic_forward.1']
  #allocation7 [shape = 's32[]', space=sflag, size = 0x4, offset = 0, fixed_abs, tag = 'sflag constant byte address 0x0 - dummy sync flag']
  %s0 = inlined_call_operand.vmem [shape: bf16[392,36], index: 0, kind: input, shape index: {}]
  %s1 = inlined_call_operand.vmem [shape: bf16[36,16], index: 1, kind: input, shape index: {}]
  %s2 = inlined_call_operand.vmem [shape: f32[1,16], index: 2, kind: input, shape index: {}]
  %s3 = inlined_call_operand.vmem [shape: bf16[144,32], index: 3, kind: input, shape index: {}]
  %s4 = inlined_call_operand.vmem [shape: f32[1,32], index: 4, kind: input, shape index: {}]
  %s5 = inlined_call_operand.vmem [shape: bf16[4608,128], index: 5, kind: input, shape index: {}]
  %s6 = inlined_call_operand.vmem [shape: f32[1,128], index: 6, kind: input, shape index: {}]
  %s7 = inlined_call_operand.vmem [shape: f32[1,128], index: 7, kind: input, shape index: {}]
  %s8 = inlined_call_operand.<no memory space> [shape: f32[1,1], index: 8, kind: input, shape index: {}]
  %s9 = inlined_call_operand.vmem [shape: f32[2,1], index: 9, kind: output, shape index: {}]
  %s10 = sld [smem:[#allocation0]]
  $region76: #{critic_forward.1} parent=0
    _
  %s12 = ssub.s32 1, %s10
  %s13 = scalar_select 0, %s12, %s10
  %v14 = vstv %s8
  %15 = vst [vmem:[#allocation6] sm:$0x1] %v14
  // Predicated region
  $region2: #{critic_forward.1} parent=0 // pred_check
    _
  $region3: #{critic_forward.1} parent=0 // pred_check_branch
    %17 = sbr.rel (0) target = $region5
  $region4: #{critic_forward.1} parent=0 // pred_region
    _
  $region5: #{critic_forward.1} parent=0 // pred_fallthru
    _
  // Predicated region
  $region6: #{critic_forward.1} parent=0 // pred_check
    _
  $region7: #{critic_forward.1} parent=0 // pred_check_branch
    %19 = sbr.rel (0) target = $region9
  $region8: #{critic_forward.1} parent=0 // pred_region
    _
  $region9: #{critic_forward.1} parent=0 // pred_fallthru
    _
  // Predicated region
  $region10: #{critic_forward.1} parent=0 // pred_check
    _
  $region11: #{critic_forward.1} parent=0 // pred_check_branch
    %21 = sbr.rel (0) target = $region13
  $region12: #{critic_forward.1} parent=0 // pred_region
    _
  $region13: #{critic_forward.1} parent=0 // pred_fallthru
    _
  // Predicated region
  $region14: #{critic_forward.1} parent=0 // pred_check
    _
  $region15: #{critic_forward.1} parent=0 // pred_check_branch
    %23 = sbr.rel (0) target = $region17
  $region16: #{critic_forward.1} parent=0 // pred_region
    _
  $region17: #{critic_forward.1} parent=0 // pred_fallthru
    _
  // Predicated region
  $region18: #{critic_forward.1} parent=0 // pred_check
    _
  $region19: #{critic_forward.1} parent=0 // pred_check_branch
    %25 = sbr.rel (0) target = $region21
  $region20: #{critic_forward.1} parent=0 // pred_region
    _
  $region21: #{critic_forward.1} parent=0 // pred_fallthru
    _
  // Predicated region
  $region22: #{critic_forward.1} parent=0 // pred_check
    _
  $region23: #{critic_forward.1} parent=0 // pred_check_branch
    %27 = sbr.rel (0) target = $region25
  $region24: #{critic_forward.1} parent=0 // pred_region
    _
  $region25: #{critic_forward.1} parent=0 // pred_fallthru
    _
  // Predicated region
  $region26: #{critic_forward.1} parent=0 // pred_check
    _
  $region27: #{critic_forward.1} parent=0 // pred_check_branch
    %29 = sbr.rel (0) target = $region29
  $region28: #{critic_forward.1} parent=0 // pred_region
    _
  $region29: #{critic_forward.1} parent=0 // pred_fallthru
    _
  // Predicated region
  $region30: #{critic_forward.1} parent=0 // pred_check
    _
  $region31: #{critic_forward.1} parent=0 // pred_check_branch
    %31 = sbr.rel (0) target = $region33
  $region32: #{critic_forward.1} parent=0 // pred_region
    _
  $region33: #{critic_forward.1} parent=0 // pred_fallthru
    _
  %p34 = scmp.lt.u32.totalorder 2304, 8
  %p35 = pneg %p34
  // Predicated region
  $region34: #{critic_forward.1} parent=0 // pred_check
    _
  $region35: #{critic_forward.1} parent=0 // pred_check_branch
    %37 = sbr.rel (%p34) target = $region37
  $region36: #{critic_forward.1} parent=0 // pred_region
    %s52 = sand.u32 2304, 7
    %p53 = scmp.eq.s32.totalorder %s52, 0
    // Predicated region
    $region49: #{critic_forward.1} parent=36 // pred_check
      %p54 = pneg %p53
    $region50: #{critic_forward.1} parent=36 // pred_check_branch
      %56 = sbr.rel (%p54) target = $region52
    $region51: #{critic_forward.1} parent=36 // pred_region
      loop: start=0, step=1, limit=1
      $region53: #{critic_forward.1} parent=51 // loop_pre_header
        _
      $region54: #{critic_forward.1} parent=51 // loop_header
        %s58 = sphi 0, %s62
        %p59 = scmp.ge.s32.totalorder %s58, 1
        %s63 = sphi %s5, %s5
        %s64 = sphi [#allocation2], [#allocation2]
      $region55: #{critic_forward.1} parent=51 // loop_header_branch
        %61 = sbr.rel (%p59) target = $region59
      $region56: #{critic_forward.1} parent=51 // loop_body
        %v65 = vld [vmem:[%s63] sm:$0xff]
        %66 = vst [vmem:[%s64] sm:$0xff] %v65
        %v67 = vld [vmem:[%s63 + $0x8] sm:$0xff]
        %68 = vst [vmem:[%s64 + $0x8] sm:$0xff] %v67
        %v69 = vld [vmem:[%s63 + $0x10] sm:$0xff]
        %70 = vst [vmem:[%s64 + $0x10] sm:$0xff] %v69
        %v71 = vld [vmem:[%s63 + $0x18] sm:$0xff]
        %72 = vst [vmem:[%s64 + $0x18] sm:$0xff] %v71
        %v73 = vld [vmem:[%s63 + $0x20] sm:$0xff]
        %74 = vst [vmem:[%s64 + $0x20] sm:$0xff] %v73
        %v75 = vld [vmem:[%s63 + $0x28] sm:$0xff]
        %76 = vst [vmem:[%s64 + $0x28] sm:$0xff] %v75
        %v77 = vld [vmem:[%s63 + $0x30] sm:$0xff]
        %78 = vst [vmem:[%s64 + $0x30] sm:$0xff] %v77
        %v79 = vld [vmem:[%s63 + $0x38] sm:$0xff]
        %80 = vst [vmem:[%s64 + $0x38] sm:$0xff] %v79
        %v81 = vld [vmem:[%s63 + $0x40] sm:$0xff]
        %82 = vst [vmem:[%s64 + $0x40] sm:$0xff] %v81
        %v83 = vld [vmem:[%s63 + $0x48] sm:$0xff]
        %84 = vst [vmem:[%s64 + $0x48] sm:$0xff] %v83
        %v85 = vld [vmem:[%s63 + $0x50] sm:$0xff]
        %86 = vst [vmem:[%s64 + $0x50] sm:$0xff] %v85
        %v87 = vld [vmem:[%s63 + $0x58] sm:$0xff]
        %88 = vst [vmem:[%s64 + $0x58] sm:$0xff] %v87
        %v89 = vld [vmem:[%s63 + $0x60] sm:$0xff]
        %90 = vst [vmem:[%s64 + $0x60] sm:$0xff] %v89
        %v91 = vld [vmem:[%s63 + $0x68] sm:$0xff]
        %92 = vst [vmem:[%s64 + $0x68] sm:$0xff] %v91
        %v93 = vld [vmem:[%s63 + $0x70] sm:$0xff]
        %94 = vst [vmem:[%s64 + $0x70] sm:$0xff] %v93
        %v95 = vld [vmem:[%s63 + $0x78] sm:$0xff]
        %96 = vst [vmem:[%s64 + $0x78] sm:$0xff] %v95
        %v97 = vld [vmem:[%s63 + $0x80] sm:$0xff]
        %98 = vst [vmem:[%s64 + $0x80] sm:$0xff] %v97
        %v99 = vld [vmem:[%s63 + $0x88] sm:$0xff]
        %100 = vst [vmem:[%s64 + $0x88] sm:$0xff] %v99
        %v101 = vld [vmem:[%s63 + $0x90] sm:$0xff]
        %102 = vst [vmem:[%s64 + $0x90] sm:$0xff] %v101
        %v103 = vld [vmem:[%s63 + $0x98] sm:$0xff]
        %104 = vst [vmem:[%s64 + $0x98] sm:$0xff] %v103
        %v105 = vld [vmem:[%s63 + $0xa0] sm:$0xff]
        %106 = vst [vmem:[%s64 + $0xa0] sm:$0xff] %v105
        %v107 = vld [vmem:[%s63 + $0xa8] sm:$0xff]
        %108 = vst [vmem:[%s64 + $0xa8] sm:$0xff] %v107
        %v109 = vld [vmem:[%s63 + $0xb0] sm:$0xff]
        %110 = vst [vmem:[%s64 + $0xb0] sm:$0xff] %v109
        %v111 = vld [vmem:[%s63 + $0xb8] sm:$0xff]
        %112 = vst [vmem:[%s64 + $0xb8] sm:$0xff] %v111
        %v113 = vld [vmem:[%s63 + $0xc0] sm:$0xff]
        %114 = vst [vmem:[%s64 + $0xc0] sm:$0xff] %v113
        %v115 = vld [vmem:[%s63 + $0xc8] sm:$0xff]
        %116 = vst [vmem:[%s64 + $0xc8] sm:$0xff] %v115
        %v117 = vld [vmem:[%s63 + $0xd0] sm:$0xff]
        %118 = vst [vmem:[%s64 + $0xd0] sm:$0xff] %v117
        %v119 = vld [vmem:[%s63 + $0xd8] sm:$0xff]
        %120 = vst [vmem:[%s64 + $0xd8] sm:$0xff] %v119
        %v121 = vld [vmem:[%s63 + $0xe0] sm:$0xff]
        %122 = vst [vmem:[%s64 + $0xe0] sm:$0xff] %v121
        %v123 = vld [vmem:[%s63 + $0xe8] sm:$0xff]
        %124 = vst [vmem:[%s64 + $0xe8] sm:$0xff] %v123
        %v125 = vld [vmem:[%s63 + $0xf0] sm:$0xff]
        %126 = vst [vmem:[%s64 + $0xf0] sm:$0xff] %v125
        %v127 = vld [vmem:[%s63 + $0xf8] sm:$0xff]
        %128 = vst [vmem:[%s64 + $0xf8] sm:$0xff] %v127
        %v129 = vld [vmem:[%s63 + $0x100] sm:$0xff]
        %130 = vst [vmem:[%s64 + $0x100] sm:$0xff] %v129
        %v131 = vld [vmem:[%s63 + $0x108] sm:$0xff]
        %132 = vst [vmem:[%s64 + $0x108] sm:$0xff] %v131
        %v133 = vld [vmem:[%s63 + $0x110] sm:$0xff]
        %134 = vst [vmem:[%s64 + $0x110] sm:$0xff] %v133
        %v135 = vld [vmem:[%s63 + $0x118] sm:$0xff]
        %136 = vst [vmem:[%s64 + $0x118] sm:$0xff] %v135
        %v137 = vld [vmem:[%s63 + $0x120] sm:$0xff]
        %138 = vst [vmem:[%s64 + $0x120] sm:$0xff] %v137
        %v139 = vld [vmem:[%s63 + $0x128] sm:$0xff]
        %140 = vst [vmem:[%s64 + $0x128] sm:$0xff] %v139
        %v141 = vld [vmem:[%s63 + $0x130] sm:$0xff]
        %142 = vst [vmem:[%s64 + $0x130] sm:$0xff] %v141
        %v143 = vld [vmem:[%s63 + $0x138] sm:$0xff]
        %144 = vst [vmem:[%s64 + $0x138] sm:$0xff] %v143
        %v145 = vld [vmem:[%s63 + $0x140] sm:$0xff]
        %146 = vst [vmem:[%s64 + $0x140] sm:$0xff] %v145
        %v147 = vld [vmem:[%s63 + $0x148] sm:$0xff]
        %148 = vst [vmem:[%s64 + $0x148] sm:$0xff] %v147
        %v149 = vld [vmem:[%s63 + $0x150] sm:$0xff]
        %150 = vst [vmem:[%s64 + $0x150] sm:$0xff] %v149
        %v151 = vld [vmem:[%s63 + $0x158] sm:$0xff]
        %152 = vst [vmem:[%s64 + $0x158] sm:$0xff] %v151
        %v153 = vld [vmem:[%s63 + $0x160] sm:$0xff]
        %154 = vst [vmem:[%s64 + $0x160] sm:$0xff] %v153
        %v155 = vld [vmem:[%s63 + $0x168] sm:$0xff]
        %156 = vst [vmem:[%s64 + $0x168] sm:$0xff] %v155
        %v157 = vld [vmem:[%s63 + $0x170] sm:$0xff]
        %158 = vst [vmem:[%s64 + $0x170] sm:$0xff] %v157
        %v159 = vld [vmem:[%s63 + $0x178] sm:$0xff]
        %160 = vst [vmem:[%s64 + $0x178] sm:$0xff] %v159
        %v161 = vld [vmem:[%s63 + $0x180] sm:$0xff]
        %162 = vst [vmem:[%s64 + $0x180] sm:$0xff] %v161
        %v163 = vld [vmem:[%s63 + $0x188] sm:$0xff]
        %164 = vst [vmem:[%s64 + $0x188] sm:$0xff] %v163
        %v165 = vld [vmem:[%s63 + $0x190] sm:$0xff]
        %166 = vst [vmem:[%s64 + $0x190] sm:$0xff] %v165
        %v167 = vld [vmem:[%s63 + $0x198] sm:$0xff]
        %168 = vst [vmem:[%s64 + $0x198] sm:$0xff] %v167
        %v169 = vld [vmem:[%s63 + $0x1a0] sm:$0xff]
        %170 = vst [vmem:[%s64 + $0x1a0] sm:$0xff] %v169
        %v171 = vld [vmem:[%s63 + $0x1a8] sm:$0xff]
        %172 = vst [vmem:[%s64 + $0x1a8] sm:$0xff] %v171
        %v173 = vld [vmem:[%s63 + $0x1b0] sm:$0xff]
        %174 = vst [vmem:[%s64 + $0x1b0] sm:$0xff] %v173
        %v175 = vld [vmem:[%s63 + $0x1b8] sm:$0xff]
        %176 = vst [vmem:[%s64 + $0x1b8] sm:$0xff] %v175
        %v177 = vld [vmem:[%s63 + $0x1c0] sm:$0xff]
        %178 = vst [vmem:[%s64 + $0x1c0] sm:$0xff] %v177
        %v179 = vld [vmem:[%s63 + $0x1c8] sm:$0xff]
        %180 = vst [vmem:[%s64 + $0x1c8] sm:$0xff] %v179
        %v181 = vld [vmem:[%s63 + $0x1d0] sm:$0xff]
        %182 = vst [vmem:[%s64 + $0x1d0] sm:$0xff] %v181
        %v183 = vld [vmem:[%s63 + $0x1d8] sm:$0xff]
        %184 = vst [vmem:[%s64 + $0x1d8] sm:$0xff] %v183
        %v185 = vld [vmem:[%s63 + $0x1e0] sm:$0xff]
        %186 = vst [vmem:[%s64 + $0x1e0] sm:$0xff] %v185
        %v187 = vld [vmem:[%s63 + $0x1e8] sm:$0xff]
        %188 = vst [vmem:[%s64 + $0x1e8] sm:$0xff] %v187
        %v189 = vld [vmem:[%s63 + $0x1f0] sm:$0xff]
        %190 = vst [vmem:[%s64 + $0x1f0] sm:$0xff] %v189
        %v191 = vld [vmem:[%s63 + $0x1f8] sm:$0xff]
        %192 = vst [vmem:[%s64 + $0x1f8] sm:$0xff] %v191
        %v193 = vld [vmem:[%s63 + $0x200] sm:$0xff]
        %194 = vst [vmem:[%s64 + $0x200] sm:$0xff] %v193
        %v195 = vld [vmem:[%s63 + $0x208] sm:$0xff]
        %196 = vst [vmem:[%s64 + $0x208] sm:$0xff] %v195
        %v197 = vld [vmem:[%s63 + $0x210] sm:$0xff]
        %198 = vst [vmem:[%s64 + $0x210] sm:$0xff] %v197
        %v199 = vld [vmem:[%s63 + $0x218] sm:$0xff]
        %200 = vst [vmem:[%s64 + $0x218] sm:$0xff] %v199
        %v201 = vld [vmem:[%s63 + $0x220] sm:$0xff]
        %202 = vst [vmem:[%s64 + $0x220] sm:$0xff] %v201
        %v203 = vld [vmem:[%s63 + $0x228] sm:$0xff]
        %204 = vst [vmem:[%s64 + $0x228] sm:$0xff] %v203
        %v205 = vld [vmem:[%s63 + $0x230] sm:$0xff]
        %206 = vst [vmem:[%s64 + $0x230] sm:$0xff] %v205
        %v207 = vld [vmem:[%s63 + $0x238] sm:$0xff]
        %208 = vst [vmem:[%s64 + $0x238] sm:$0xff] %v207
        %v209 = vld [vmem:[%s63 + $0x240] sm:$0xff]
        %210 = vst [vmem:[%s64 + $0x240] sm:$0xff] %v209
        %v211 = vld [vmem:[%s63 + $0x248] sm:$0xff]
        %212 = vst [vmem:[%s64 + $0x248] sm:$0xff] %v211
        %v213 = vld [vmem:[%s63 + $0x250] sm:$0xff]
        %214 = vst [vmem:[%s64 + $0x250] sm:$0xff] %v213
        %v215 = vld [vmem:[%s63 + $0x258] sm:$0xff]
        %216 = vst [vmem:[%s64 + $0x258] sm:$0xff] %v215
        %v217 = vld [vmem:[%s63 + $0x260] sm:$0xff]
        %218 = vst [vmem:[%s64 + $0x260] sm:$0xff] %v217
        %v219 = vld [vmem:[%s63 + $0x268] sm:$0xff]
        %220 = vst [vmem:[%s64 + $0x268] sm:$0xff] %v219
        %v221 = vld [vmem:[%s63 + $0x270] sm:$0xff]
        %222 = vst [vmem:[%s64 + $0x270] sm:$0xff] %v221
        %v223 = vld [vmem:[%s63 + $0x278] sm:$0xff]
        %224 = vst [vmem:[%s64 + $0x278] sm:$0xff] %v223
        %v225 = vld [vmem:[%s63 + $0x280] sm:$0xff]
        %226 = vst [vmem:[%s64 + $0x280] sm:$0xff] %v225
        %v227 = vld [vmem:[%s63 + $0x288] sm:$0xff]
        %228 = vst [vmem:[%s64 + $0x288] sm:$0xff] %v227
        %v229 = vld [vmem:[%s63 + $0x290] sm:$0xff]
        %230 = vst [vmem:[%s64 + $0x290] sm:$0xff] %v229
        %v231 = vld [vmem:[%s63 + $0x298] sm:$0xff]
        %232 = vst [vmem:[%s64 + $0x298] sm:$0xff] %v231
        %v233 = vld [vmem:[%s63 + $0x2a0] sm:$0xff]
        %234 = vst [vmem:[%s64 + $0x2a0] sm:$0xff] %v233
        %v235 = vld [vmem:[%s63 + $0x2a8] sm:$0xff]
        %236 = vst [vmem:[%s64 + $0x2a8] sm:$0xff] %v235
        %v237 = vld [vmem:[%s63 + $0x2b0] sm:$0xff]
        %238 = vst [vmem:[%s64 + $0x2b0] sm:$0xff] %v237
        %v239 = vld [vmem:[%s63 + $0x2b8] sm:$0xff]
        %240 = vst [vmem:[%s64 + $0x2b8] sm:$0xff] %v239
        %v241 = vld [vmem:[%s63 + $0x2c0] sm:$0xff]
        %242 = vst [vmem:[%s64 + $0x2c0] sm:$0xff] %v241
        %v243 = vld [vmem:[%s63 + $0x2c8] sm:$0xff]
        %244 = vst [vmem:[%s64 + $0x2c8] sm:$0xff] %v243
        %v245 = vld [vmem:[%s63 + $0x2d0] sm:$0xff]
        %246 = vst [vmem:[%s64 + $0x2d0] sm:$0xff] %v245
        %v247 = vld [vmem:[%s63 + $0x2d8] sm:$0xff]
        %248 = vst [vmem:[%s64 + $0x2d8] sm:$0xff] %v247
        %v249 = vld [vmem:[%s63 + $0x2e0] sm:$0xff]
        %250 = vst [vmem:[%s64 + $0x2e0] sm:$0xff] %v249
        %v251 = vld [vmem:[%s63 + $0x2e8] sm:$0xff]
        %252 = vst [vmem:[%s64 + $0x2e8] sm:$0xff] %v251
        %v253 = vld [vmem:[%s63 + $0x2f0] sm:$0xff]
        %254 = vst [vmem:[%s64 + $0x2f0] sm:$0xff] %v253
        %v255 = vld [vmem:[%s63 + $0x2f8] sm:$0xff]
        %256 = vst [vmem:[%s64 + $0x2f8] sm:$0xff] %v255
        %v257 = vld [vmem:[%s63 + $0x300] sm:$0xff]
        %258 = vst [vmem:[%s64 + $0x300] sm:$0xff] %v257
        %v259 = vld [vmem:[%s63 + $0x308] sm:$0xff]
        %260 = vst [vmem:[%s64 + $0x308] sm:$0xff] %v259
        %v261 = vld [vmem:[%s63 + $0x310] sm:$0xff]
        %262 = vst [vmem:[%s64 + $0x310] sm:$0xff] %v261
        %v263 = vld [vmem:[%s63 + $0x318] sm:$0xff]
        %264 = vst [vmem:[%s64 + $0x318] sm:$0xff] %v263
        %v265 = vld [vmem:[%s63 + $0x320] sm:$0xff]
        %266 = vst [vmem:[%s64 + $0x320] sm:$0xff] %v265
        %v267 = vld [vmem:[%s63 + $0x328] sm:$0xff]
        %268 = vst [vmem:[%s64 + $0x328] sm:$0xff] %v267
        %v269 = vld [vmem:[%s63 + $0x330] sm:$0xff]
        %270 = vst [vmem:[%s64 + $0x330] sm:$0xff] %v269
        %v271 = vld [vmem:[%s63 + $0x338] sm:$0xff]
        %272 = vst [vmem:[%s64 + $0x338] sm:$0xff] %v271
        %v273 = vld [vmem:[%s63 + $0x340] sm:$0xff]
        %274 = vst [vmem:[%s64 + $0x340] sm:$0xff] %v273
        %v275 = vld [vmem:[%s63 + $0x348] sm:$0xff]
        %276 = vst [vmem:[%s64 + $0x348] sm:$0xff] %v275
        %v277 = vld [vmem:[%s63 + $0x350] sm:$0xff]
        %278 = vst [vmem:[%s64 + $0x350] sm:$0xff] %v277
        %v279 = vld [vmem:[%s63 + $0x358] sm:$0xff]
        %280 = vst [vmem:[%s64 + $0x358] sm:$0xff] %v279
        %v281 = vld [vmem:[%s63 + $0x360] sm:$0xff]
        %282 = vst [vmem:[%s64 + $0x360] sm:$0xff] %v281
        %v283 = vld [vmem:[%s63 + $0x368] sm:$0xff]
        %284 = vst [vmem:[%s64 + $0x368] sm:$0xff] %v283
        %v285 = vld [vmem:[%s63 + $0x370] sm:$0xff]
        %286 = vst [vmem:[%s64 + $0x370] sm:$0xff] %v285
        %v287 = vld [vmem:[%s63 + $0x378] sm:$0xff]
        %288 = vst [vmem:[%s64 + $0x378] sm:$0xff] %v287
        %v289 = vld [vmem:[%s63 + $0x380] sm:$0xff]
        %290 = vst [vmem:[%s64 + $0x380] sm:$0xff] %v289
        %v291 = vld [vmem:[%s63 + $0x388] sm:$0xff]
        %292 = vst [vmem:[%s64 + $0x388] sm:$0xff] %v291
        %v293 = vld [vmem:[%s63 + $0x390] sm:$0xff]
        %294 = vst [vmem:[%s64 + $0x390] sm:$0xff] %v293
        %v295 = vld [vmem:[%s63 + $0x398] sm:$0xff]
        %296 = vst [vmem:[%s64 + $0x398] sm:$0xff] %v295
        %v297 = vld [vmem:[%s63 + $0x3a0] sm:$0xff]
        %298 = vst [vmem:[%s64 + $0x3a0] sm:$0xff] %v297
        %v299 = vld [vmem:[%s63 + $0x3a8] sm:$0xff]
        %300 = vst [vmem:[%s64 + $0x3a8] sm:$0xff] %v299
        %v301 = vld [vmem:[%s63 + $0x3b0] sm:$0xff]
        %302 = vst [vmem:[%s64 + $0x3b0] sm:$0xff] %v301
        %v303 = vld [vmem:[%s63 + $0x3b8] sm:$0xff]
        %304 = vst [vmem:[%s64 + $0x3b8] sm:$0xff] %v303
        %v305 = vld [vmem:[%s63 + $0x3c0] sm:$0xff]
        %306 = vst [vmem:[%s64 + $0x3c0] sm:$0xff] %v305
        %v307 = vld [vmem:[%s63 + $0x3c8] sm:$0xff]
        %308 = vst [vmem:[%s64 + $0x3c8] sm:$0xff] %v307
        %v309 = vld [vmem:[%s63 + $0x3d0] sm:$0xff]
        %310 = vst [vmem:[%s64 + $0x3d0] sm:$0xff] %v309
        %v311 = vld [vmem:[%s63 + $0x3d8] sm:$0xff]
        %312 = vst [vmem:[%s64 + $0x3d8] sm:$0xff] %v311
        %v313 = vld [vmem:[%s63 + $0x3e0] sm:$0xff]
        %314 = vst [vmem:[%s64 + $0x3e0] sm:$0xff] %v313
        %v315 = vld [vmem:[%s63 + $0x3e8] sm:$0xff]
        %316 = vst [vmem:[%s64 + $0x3e8] sm:$0xff] %v315
        %v317 = vld [vmem:[%s63 + $0x3f0] sm:$0xff]
        %318 = vst [vmem:[%s64 + $0x3f0] sm:$0xff] %v317
        %v319 = vld [vmem:[%s63 + $0x3f8] sm:$0xff]
        %320 = vst [vmem:[%s64 + $0x3f8] sm:$0xff] %v319
        %v321 = vld [vmem:[%s63 + $0x400] sm:$0xff]
        %322 = vst [vmem:[%s64 + $0x400] sm:$0xff] %v321
        %v323 = vld [vmem:[%s63 + $0x408] sm:$0xff]
        %324 = vst [vmem:[%s64 + $0x408] sm:$0xff] %v323
        %v325 = vld [vmem:[%s63 + $0x410] sm:$0xff]
        %326 = vst [vmem:[%s64 + $0x410] sm:$0xff] %v325
        %v327 = vld [vmem:[%s63 + $0x418] sm:$0xff]
        %328 = vst [vmem:[%s64 + $0x418] sm:$0xff] %v327
        %v329 = vld [vmem:[%s63 + $0x420] sm:$0xff]
        %330 = vst [vmem:[%s64 + $0x420] sm:$0xff] %v329
        %v331 = vld [vmem:[%s63 + $0x428] sm:$0xff]
        %332 = vst [vmem:[%s64 + $0x428] sm:$0xff] %v331
        %v333 = vld [vmem:[%s63 + $0x430] sm:$0xff]
        %334 = vst [vmem:[%s64 + $0x430] sm:$0xff] %v333
        %v335 = vld [vmem:[%s63 + $0x438] sm:$0xff]
        %336 = vst [vmem:[%s64 + $0x438] sm:$0xff] %v335
        %v337 = vld [vmem:[%s63 + $0x440] sm:$0xff]
        %338 = vst [vmem:[%s64 + $0x440] sm:$0xff] %v337
        %v339 = vld [vmem:[%s63 + $0x448] sm:$0xff]
        %340 = vst [vmem:[%s64 + $0x448] sm:$0xff] %v339
        %v341 = vld [vmem:[%s63 + $0x450] sm:$0xff]
        %342 = vst [vmem:[%s64 + $0x450] sm:$0xff] %v341
        %v343 = vld [vmem:[%s63 + $0x458] sm:$0xff]
        %344 = vst [vmem:[%s64 + $0x458] sm:$0xff] %v343
        %v345 = vld [vmem:[%s63 + $0x460] sm:$0xff]
        %346 = vst [vmem:[%s64 + $0x460] sm:$0xff] %v345
        %v347 = vld [vmem:[%s63 + $0x468] sm:$0xff]
        %348 = vst [vmem:[%s64 + $0x468] sm:$0xff] %v347
        %v349 = vld [vmem:[%s63 + $0x470] sm:$0xff]
        %350 = vst [vmem:[%s64 + $0x470] sm:$0xff] %v349
        %v351 = vld [vmem:[%s63 + $0x478] sm:$0xff]
        %352 = vst [vmem:[%s64 + $0x478] sm:$0xff] %v351
        %v353 = vld [vmem:[%s63 + $0x480] sm:$0xff]
        %354 = vst [vmem:[%s64 + $0x480] sm:$0xff] %v353
        %v355 = vld [vmem:[%s63 + $0x488] sm:$0xff]
        %356 = vst [vmem:[%s64 + $0x488] sm:$0xff] %v355
        %v357 = vld [vmem:[%s63 + $0x490] sm:$0xff]
        %358 = vst [vmem:[%s64 + $0x490] sm:$0xff] %v357
        %v359 = vld [vmem:[%s63 + $0x498] sm:$0xff]
        %360 = vst [vmem:[%s64 + $0x498] sm:$0xff] %v359
        %v361 = vld [vmem:[%s63 + $0x4a0] sm:$0xff]
        %362 = vst [vmem:[%s64 + $0x4a0] sm:$0xff] %v361
        %v363 = vld [vmem:[%s63 + $0x4a8] sm:$0xff]
        %364 = vst [vmem:[%s64 + $0x4a8] sm:$0xff] %v363
        %v365 = vld [vmem:[%s63 + $0x4b0] sm:$0xff]
        %366 = vst [vmem:[%s64 + $0x4b0] sm:$0xff] %v365
        %v367 = vld [vmem:[%s63 + $0x4b8] sm:$0xff]
        %368 = vst [vmem:[%s64 + $0x4b8] sm:$0xff] %v367
        %v369 = vld [vmem:[%s63 + $0x4c0] sm:$0xff]
        %370 = vst [vmem:[%s64 + $0x4c0] sm:$0xff] %v369
        %v371 = vld [vmem:[%s63 + $0x4c8] sm:$0xff]
        %372 = vst [vmem:[%s64 + $0x4c8] sm:$0xff] %v371
        %v373 = vld [vmem:[%s63 + $0x4d0] sm:$0xff]
        %374 = vst [vmem:[%s64 + $0x4d0] sm:$0xff] %v373
        %v375 = vld [vmem:[%s63 + $0x4d8] sm:$0xff]
        %376 = vst [vmem:[%s64 + $0x4d8] sm:$0xff] %v375
        %v377 = vld [vmem:[%s63 + $0x4e0] sm:$0xff]
        %378 = vst [vmem:[%s64 + $0x4e0] sm:$0xff] %v377
        %v379 = vld [vmem:[%s63 + $0x4e8] sm:$0xff]
        %380 = vst [vmem:[%s64 + $0x4e8] sm:$0xff] %v379
        %v381 = vld [vmem:[%s63 + $0x4f0] sm:$0xff]
        %382 = vst [vmem:[%s64 + $0x4f0] sm:$0xff] %v381
        %v383 = vld [vmem:[%s63 + $0x4f8] sm:$0xff]
        %384 = vst [vmem:[%s64 + $0x4f8] sm:$0xff] %v383
        %v385 = vld [vmem:[%s63 + $0x500] sm:$0xff]
        %386 = vst [vmem:[%s64 + $0x500] sm:$0xff] %v385
        %v387 = vld [vmem:[%s63 + $0x508] sm:$0xff]
        %388 = vst [vmem:[%s64 + $0x508] sm:$0xff] %v387
        %v389 = vld [vmem:[%s63 + $0x510] sm:$0xff]
        %390 = vst [vmem:[%s64 + $0x510] sm:$0xff] %v389
        %v391 = vld [vmem:[%s63 + $0x518] sm:$0xff]
        %392 = vst [vmem:[%s64 + $0x518] sm:$0xff] %v391
        %v393 = vld [vmem:[%s63 + $0x520] sm:$0xff]
        %394 = vst [vmem:[%s64 + $0x520] sm:$0xff] %v393
        %v395 = vld [vmem:[%s63 + $0x528] sm:$0xff]
        %396 = vst [vmem:[%s64 + $0x528] sm:$0xff] %v395
        %v397 = vld [vmem:[%s63 + $0x530] sm:$0xff]
        %398 = vst [vmem:[%s64 + $0x530] sm:$0xff] %v397
        %v399 = vld [vmem:[%s63 + $0x538] sm:$0xff]
        %400 = vst [vmem:[%s64 + $0x538] sm:$0xff] %v399
        %v401 = vld [vmem:[%s63 + $0x540] sm:$0xff]
        %402 = vst [vmem:[%s64 + $0x540] sm:$0xff] %v401
        %v403 = vld [vmem:[%s63 + $0x548] sm:$0xff]
        %404 = vst [vmem:[%s64 + $0x548] sm:$0xff] %v403
        %v405 = vld [vmem:[%s63 + $0x550] sm:$0xff]
        %406 = vst [vmem:[%s64 + $0x550] sm:$0xff] %v405
        %v407 = vld [vmem:[%s63 + $0x558] sm:$0xff]
        %408 = vst [vmem:[%s64 + $0x558] sm:$0xff] %v407
        %v409 = vld [vmem:[%s63 + $0x560] sm:$0xff]
        %410 = vst [vmem:[%s64 + $0x560] sm:$0xff] %v409
        %v411 = vld [vmem:[%s63 + $0x568] sm:$0xff]
        %412 = vst [vmem:[%s64 + $0x568] sm:$0xff] %v411
        %v413 = vld [vmem:[%s63 + $0x570] sm:$0xff]
        %414 = vst [vmem:[%s64 + $0x570] sm:$0xff] %v413
        %v415 = vld [vmem:[%s63 + $0x578] sm:$0xff]
        %416 = vst [vmem:[%s64 + $0x578] sm:$0xff] %v415
        %v417 = vld [vmem:[%s63 + $0x580] sm:$0xff]
        %418 = vst [vmem:[%s64 + $0x580] sm:$0xff] %v417
        %v419 = vld [vmem:[%s63 + $0x588] sm:$0xff]
        %420 = vst [vmem:[%s64 + $0x588] sm:$0xff] %v419
        %v421 = vld [vmem:[%s63 + $0x590] sm:$0xff]
        %422 = vst [vmem:[%s64 + $0x590] sm:$0xff] %v421
        %v423 = vld [vmem:[%s63 + $0x598] sm:$0xff]
        %424 = vst [vmem:[%s64 + $0x598] sm:$0xff] %v423
        %v425 = vld [vmem:[%s63 + $0x5a0] sm:$0xff]
        %426 = vst [vmem:[%s64 + $0x5a0] sm:$0xff] %v425
        %v427 = vld [vmem:[%s63 + $0x5a8] sm:$0xff]
        %428 = vst [vmem:[%s64 + $0x5a8] sm:$0xff] %v427
        %v429 = vld [vmem:[%s63 + $0x5b0] sm:$0xff]
        %430 = vst [vmem:[%s64 + $0x5b0] sm:$0xff] %v429
        %v431 = vld [vmem:[%s63 + $0x5b8] sm:$0xff]
        %432 = vst [vmem:[%s64 + $0x5b8] sm:$0xff] %v431
        %v433 = vld [vmem:[%s63 + $0x5c0] sm:$0xff]
        %434 = vst [vmem:[%s64 + $0x5c0] sm:$0xff] %v433
        %v435 = vld [vmem:[%s63 + $0x5c8] sm:$0xff]
        %436 = vst [vmem:[%s64 + $0x5c8] sm:$0xff] %v435
        %v437 = vld [vmem:[%s63 + $0x5d0] sm:$0xff]
        %438 = vst [vmem:[%s64 + $0x5d0] sm:$0xff] %v437
        %v439 = vld [vmem:[%s63 + $0x5d8] sm:$0xff]
        %440 = vst [vmem:[%s64 + $0x5d8] sm:$0xff] %v439
        %v441 = vld [vmem:[%s63 + $0x5e0] sm:$0xff]
        %442 = vst [vmem:[%s64 + $0x5e0] sm:$0xff] %v441
        %v443 = vld [vmem:[%s63 + $0x5e8] sm:$0xff]
        %444 = vst [vmem:[%s64 + $0x5e8] sm:$0xff] %v443
        %v445 = vld [vmem:[%s63 + $0x5f0] sm:$0xff]
        %446 = vst [vmem:[%s64 + $0x5f0] sm:$0xff] %v445
        %v447 = vld [vmem:[%s63 + $0x5f8] sm:$0xff]
        %448 = vst [vmem:[%s64 + $0x5f8] sm:$0xff] %v447
        %v449 = vld [vmem:[%s63 + $0x600] sm:$0xff]
        %450 = vst [vmem:[%s64 + $0x600] sm:$0xff] %v449
        %v451 = vld [vmem:[%s63 + $0x608] sm:$0xff]
        %452 = vst [vmem:[%s64 + $0x608] sm:$0xff] %v451
        %v453 = vld [vmem:[%s63 + $0x610] sm:$0xff]
        %454 = vst [vmem:[%s64 + $0x610] sm:$0xff] %v453
        %v455 = vld [vmem:[%s63 + $0x618] sm:$0xff]
        %456 = vst [vmem:[%s64 + $0x618] sm:$0xff] %v455
        %v457 = vld [vmem:[%s63 + $0x620] sm:$0xff]
        %458 = vst [vmem:[%s64 + $0x620] sm:$0xff] %v457
        %v459 = vld [vmem:[%s63 + $0x628] sm:$0xff]
        %460 = vst [vmem:[%s64 + $0x628] sm:$0xff] %v459
        %v461 = vld [vmem:[%s63 + $0x630] sm:$0xff]
        %462 = vst [vmem:[%s64 + $0x630] sm:$0xff] %v461
        %v463 = vld [vmem:[%s63 + $0x638] sm:$0xff]
        %464 = vst [vmem:[%s64 + $0x638] sm:$0xff] %v463
        %v465 = vld [vmem:[%s63 + $0x640] sm:$0xff]
        %466 = vst [vmem:[%s64 + $0x640] sm:$0xff] %v465
        %v467 = vld [vmem:[%s63 + $0x648] sm:$0xff]
        %468 = vst [vmem:[%s64 + $0x648] sm:$0xff] %v467
        %v469 = vld [vmem:[%s63 + $0x650] sm:$0xff]
        %470 = vst [vmem:[%s64 + $0x650] sm:$0xff] %v469
        %v471 = vld [vmem:[%s63 + $0x658] sm:$0xff]
        %472 = vst [vmem:[%s64 + $0x658] sm:$0xff] %v471
        %v473 = vld [vmem:[%s63 + $0x660] sm:$0xff]
        %474 = vst [vmem:[%s64 + $0x660] sm:$0xff] %v473
        %v475 = vld [vmem:[%s63 + $0x668] sm:$0xff]
        %476 = vst [vmem:[%s64 + $0x668] sm:$0xff] %v475
        %v477 = vld [vmem:[%s63 + $0x670] sm:$0xff]
        %478 = vst [vmem:[%s64 + $0x670] sm:$0xff] %v477
        %v479 = vld [vmem:[%s63 + $0x678] sm:$0xff]
        %480 = vst [vmem:[%s64 + $0x678] sm:$0xff] %v479
        %v481 = vld [vmem:[%s63 + $0x680] sm:$0xff]
        %482 = vst [vmem:[%s64 + $0x680] sm:$0xff] %v481
        %v483 = vld [vmem:[%s63 + $0x688] sm:$0xff]
        %484 = vst [vmem:[%s64 + $0x688] sm:$0xff] %v483
        %v485 = vld [vmem:[%s63 + $0x690] sm:$0xff]
        %486 = vst [vmem:[%s64 + $0x690] sm:$0xff] %v485
        %v487 = vld [vmem:[%s63 + $0x698] sm:$0xff]
        %488 = vst [vmem:[%s64 + $0x698] sm:$0xff] %v487
        %v489 = vld [vmem:[%s63 + $0x6a0] sm:$0xff]
        %490 = vst [vmem:[%s64 + $0x6a0] sm:$0xff] %v489
        %v491 = vld [vmem:[%s63 + $0x6a8] sm:$0xff]
        %492 = vst [vmem:[%s64 + $0x6a8] sm:$0xff] %v491
        %v493 = vld [vmem:[%s63 + $0x6b0] sm:$0xff]
        %494 = vst [vmem:[%s64 + $0x6b0] sm:$0xff] %v493
        %v495 = vld [vmem:[%s63 + $0x6b8] sm:$0xff]
        %496 = vst [vmem:[%s64 + $0x6b8] sm:$0xff] %v495
        %v497 = vld [vmem:[%s63 + $0x6c0] sm:$0xff]
        %498 = vst [vmem:[%s64 + $0x6c0] sm:$0xff] %v497
        %v499 = vld [vmem:[%s63 + $0x6c8] sm:$0xff]
        %500 = vst [vmem:[%s64 + $0x6c8] sm:$0xff] %v499
        %v501 = vld [vmem:[%s63 + $0x6d0] sm:$0xff]
        %502 = vst [vmem:[%s64 + $0x6d0] sm:$0xff] %v501
        %v503 = vld [vmem:[%s63 + $0x6d8] sm:$0xff]
        %504 = vst [vmem:[%s64 + $0x6d8] sm:$0xff] %v503
        %v505 = vld [vmem:[%s63 + $0x6e0] sm:$0xff]
        %506 = vst [vmem:[%s64 + $0x6e0] sm:$0xff] %v505
        %v507 = vld [vmem:[%s63 + $0x6e8] sm:$0xff]
        %508 = vst [vmem:[%s64 + $0x6e8] sm:$0xff] %v507
        %v509 = vld [vmem:[%s63 + $0x6f0] sm:$0xff]
        %510 = vst [vmem:[%s64 + $0x6f0] sm:$0xff] %v509
        %v511 = vld [vmem:[%s63 + $0x6f8] sm:$0xff]
        %512 = vst [vmem:[%s64 + $0x6f8] sm:$0xff] %v511
        %v513 = vld [vmem:[%s63 + $0x700] sm:$0xff]
        %514 = vst [vmem:[%s64 + $0x700] sm:$0xff] %v513
        %v515 = vld [vmem:[%s63 + $0x708] sm:$0xff]
        %516 = vst [vmem:[%s64 + $0x708] sm:$0xff] %v515
        %v517 = vld [vmem:[%s63 + $0x710] sm:$0xff]
        %518 = vst [vmem:[%s64 + $0x710] sm:$0xff] %v517
        %v519 = vld [vmem:[%s63 + $0x718] sm:$0xff]
        %520 = vst [vmem:[%s64 + $0x718] sm:$0xff] %v519
        %v521 = vld [vmem:[%s63 + $0x720] sm:$0xff]
        %522 = vst [vmem:[%s64 + $0x720] sm:$0xff] %v521
        %v523 = vld [vmem:[%s63 + $0x728] sm:$0xff]
        %524 = vst [vmem:[%s64 + $0x728] sm:$0xff] %v523
        %v525 = vld [vmem:[%s63 + $0x730] sm:$0xff]
        %526 = vst [vmem:[%s64 + $0x730] sm:$0xff] %v525
        %v527 = vld [vmem:[%s63 + $0x738] sm:$0xff]
        %528 = vst [vmem:[%s64 + $0x738] sm:$0xff] %v527
        %v529 = vld [vmem:[%s63 + $0x740] sm:$0xff]
        %530 = vst [vmem:[%s64 + $0x740] sm:$0xff] %v529
        %v531 = vld [vmem:[%s63 + $0x748] sm:$0xff]
        %532 = vst [vmem:[%s64 + $0x748] sm:$0xff] %v531
        %v533 = vld [vmem:[%s63 + $0x750] sm:$0xff]
        %534 = vst [vmem:[%s64 + $0x750] sm:$0xff] %v533
        %v535 = vld [vmem:[%s63 + $0x758] sm:$0xff]
        %536 = vst [vmem:[%s64 + $0x758] sm:$0xff] %v535
        %v537 = vld [vmem:[%s63 + $0x760] sm:$0xff]
        %538 = vst [vmem:[%s64 + $0x760] sm:$0xff] %v537
        %v539 = vld [vmem:[%s63 + $0x768] sm:$0xff]
        %540 = vst [vmem:[%s64 + $0x768] sm:$0xff] %v539
        %v541 = vld [vmem:[%s63 + $0x770] sm:$0xff]
        %542 = vst [vmem:[%s64 + $0x770] sm:$0xff] %v541
        %v543 = vld [vmem:[%s63 + $0x778] sm:$0xff]
        %544 = vst [vmem:[%s64 + $0x778] sm:$0xff] %v543
        %v545 = vld [vmem:[%s63 + $0x780] sm:$0xff]
        %546 = vst [vmem:[%s64 + $0x780] sm:$0xff] %v545
        %v547 = vld [vmem:[%s63 + $0x788] sm:$0xff]
        %548 = vst [vmem:[%s64 + $0x788] sm:$0xff] %v547
        %v549 = vld [vmem:[%s63 + $0x790] sm:$0xff]
        %550 = vst [vmem:[%s64 + $0x790] sm:$0xff] %v549
        %v551 = vld [vmem:[%s63 + $0x798] sm:$0xff]
        %552 = vst [vmem:[%s64 + $0x798] sm:$0xff] %v551
        %v553 = vld [vmem:[%s63 + $0x7a0] sm:$0xff]
        %554 = vst [vmem:[%s64 + $0x7a0] sm:$0xff] %v553
        %v555 = vld [vmem:[%s63 + $0x7a8] sm:$0xff]
        %556 = vst [vmem:[%s64 + $0x7a8] sm:$0xff] %v555
        %v557 = vld [vmem:[%s63 + $0x7b0] sm:$0xff]
        %558 = vst [vmem:[%s64 + $0x7b0] sm:$0xff] %v557
        %v559 = vld [vmem:[%s63 + $0x7b8] sm:$0xff]
        %560 = vst [vmem:[%s64 + $0x7b8] sm:$0xff] %v559
        %v561 = vld [vmem:[%s63 + $0x7c0] sm:$0xff]
        %562 = vst [vmem:[%s64 + $0x7c0] sm:$0xff] %v561
        %v563 = vld [vmem:[%s63 + $0x7c8] sm:$0xff]
        %564 = vst [vmem:[%s64 + $0x7c8] sm:$0xff] %v563
        %v565 = vld [vmem:[%s63 + $0x7d0] sm:$0xff]
        %566 = vst [vmem:[%s64 + $0x7d0] sm:$0xff] %v565
        %v567 = vld [vmem:[%s63 + $0x7d8] sm:$0xff]
        %568 = vst [vmem:[%s64 + $0x7d8] sm:$0xff] %v567
        %v569 = vld [vmem:[%s63 + $0x7e0] sm:$0xff]
        %570 = vst [vmem:[%s64 + $0x7e0] sm:$0xff] %v569
        %v571 = vld [vmem:[%s63 + $0x7e8] sm:$0xff]
        %572 = vst [vmem:[%s64 + $0x7e8] sm:$0xff] %v571
        %v573 = vld [vmem:[%s63 + $0x7f0] sm:$0xff]
        %574 = vst [vmem:[%s64 + $0x7f0] sm:$0xff] %v573
        %v575 = vld [vmem:[%s63 + $0x7f8] sm:$0xff]
        %576 = vst [vmem:[%s64 + $0x7f8] sm:$0xff] %v575
        %v577 = vld [vmem:[%s63 + $0x800] sm:$0xff]
        %578 = vst [vmem:[%s64 + $0x800] sm:$0xff] %v577
        %v579 = vld [vmem:[%s63 + $0x808] sm:$0xff]
        %580 = vst [vmem:[%s64 + $0x808] sm:$0xff] %v579
        %v581 = vld [vmem:[%s63 + $0x810] sm:$0xff]
        %582 = vst [vmem:[%s64 + $0x810] sm:$0xff] %v581
        %v583 = vld [vmem:[%s63 + $0x818] sm:$0xff]
        %584 = vst [vmem:[%s64 + $0x818] sm:$0xff] %v583
        %v585 = vld [vmem:[%s63 + $0x820] sm:$0xff]
        %586 = vst [vmem:[%s64 + $0x820] sm:$0xff] %v585
        %v587 = vld [vmem:[%s63 + $0x828] sm:$0xff]
        %588 = vst [vmem:[%s64 + $0x828] sm:$0xff] %v587
        %v589 = vld [vmem:[%s63 + $0x830] sm:$0xff]
        %590 = vst [vmem:[%s64 + $0x830] sm:$0xff] %v589
        %v591 = vld [vmem:[%s63 + $0x838] sm:$0xff]
        %592 = vst [vmem:[%s64 + $0x838] sm:$0xff] %v591
        %v593 = vld [vmem:[%s63 + $0x840] sm:$0xff]
        %594 = vst [vmem:[%s64 + $0x840] sm:$0xff] %v593
        %v595 = vld [vmem:[%s63 + $0x848] sm:$0xff]
        %596 = vst [vmem:[%s64 + $0x848] sm:$0xff] %v595
        %v597 = vld [vmem:[%s63 + $0x850] sm:$0xff]
        %598 = vst [vmem:[%s64 + $0x850] sm:$0xff] %v597
        %v599 = vld [vmem:[%s63 + $0x858] sm:$0xff]
        %600 = vst [vmem:[%s64 + $0x858] sm:$0xff] %v599
        %v601 = vld [vmem:[%s63 + $0x860] sm:$0xff]
        %602 = vst [vmem:[%s64 + $0x860] sm:$0xff] %v601
        %v603 = vld [vmem:[%s63 + $0x868] sm:$0xff]
        %604 = vst [vmem:[%s64 + $0x868] sm:$0xff] %v603
        %v605 = vld [vmem:[%s63 + $0x870] sm:$0xff]
        %606 = vst [vmem:[%s64 + $0x870] sm:$0xff] %v605
        %v607 = vld [vmem:[%s63 + $0x878] sm:$0xff]
        %608 = vst [vmem:[%s64 + $0x878] sm:$0xff] %v607
        %v609 = vld [vmem:[%s63 + $0x880] sm:$0xff]
        %610 = vst [vmem:[%s64 + $0x880] sm:$0xff] %v609
        %v611 = vld [vmem:[%s63 + $0x888] sm:$0xff]
        %612 = vst [vmem:[%s64 + $0x888] sm:$0xff] %v611
        %v613 = vld [vmem:[%s63 + $0x890] sm:$0xff]
        %614 = vst [vmem:[%s64 + $0x890] sm:$0xff] %v613
        %v615 = vld [vmem:[%s63 + $0x898] sm:$0xff]
        %616 = vst [vmem:[%s64 + $0x898] sm:$0xff] %v615
        %v617 = vld [vmem:[%s63 + $0x8a0] sm:$0xff]
        %618 = vst [vmem:[%s64 + $0x8a0] sm:$0xff] %v617
        %v619 = vld [vmem:[%s63 + $0x8a8] sm:$0xff]
        %620 = vst [vmem:[%s64 + $0x8a8] sm:$0xff] %v619
        %v621 = vld [vmem:[%s63 + $0x8b0] sm:$0xff]
        %622 = vst [vmem:[%s64 + $0x8b0] sm:$0xff] %v621
        %v623 = vld [vmem:[%s63 + $0x8b8] sm:$0xff]
        %624 = vst [vmem:[%s64 + $0x8b8] sm:$0xff] %v623
        %v625 = vld [vmem:[%s63 + $0x8c0] sm:$0xff]
        %626 = vst [vmem:[%s64 + $0x8c0] sm:$0xff] %v625
        %v627 = vld [vmem:[%s63 + $0x8c8] sm:$0xff]
        %628 = vst [vmem:[%s64 + $0x8c8] sm:$0xff] %v627
        %v629 = vld [vmem:[%s63 + $0x8d0] sm:$0xff]
        %630 = vst [vmem:[%s64 + $0x8d0] sm:$0xff] %v629
        %v631 = vld [vmem:[%s63 + $0x8d8] sm:$0xff]
        %632 = vst [vmem:[%s64 + $0x8d8] sm:$0xff] %v631
        %v633 = vld [vmem:[%s63 + $0x8e0] sm:$0xff]
        %634 = vst [vmem:[%s64 + $0x8e0] sm:$0xff] %v633
        %v635 = vld [vmem:[%s63 + $0x8e8] sm:$0xff]
        %636 = vst [vmem:[%s64 + $0x8e8] sm:$0xff] %v635
        %v637 = vld [vmem:[%s63 + $0x8f0] sm:$0xff]
        %638 = vst [vmem:[%s64 + $0x8f0] sm:$0xff] %v637
        %v639 = vld [vmem:[%s63 + $0x8f8] sm:$0xff]
        %640 = vst [vmem:[%s64 + $0x8f8] sm:$0xff] %v639
      $region57: #{critic_forward.1} parent=51 // loop_footer
        %s62 = sadd.s32 1, %s58
      $region58: #{critic_forward.1} parent=51 // loop_footer_branch
        %57 = sbr.rel target = $region54
      $region59: #{critic_forward.1} parent=51 // loop_exit
        _
    $region52: #{critic_forward.1} parent=36 // pred_fallthru
      _
    %p641 = pneg %p53
    // Predicated region
    $region60: #{critic_forward.1} parent=36 // pred_check
      _
    $region61: #{critic_forward.1} parent=36 // pred_check_branch
      %643 = sbr.rel (%p53) target = $region63
    $region62: #{critic_forward.1} parent=36 // pred_region
      %s644 = sand.u32 2304, 7
    $region63: #{critic_forward.1} parent=36 // pred_fallthru
      _
  $region37: #{critic_forward.1} parent=0 // pred_fallthru
    _
  // Predicated region
  $region38: #{critic_forward.1} parent=0 // pred_check
    %p38 = pneg %p34
  $region39: #{critic_forward.1} parent=0 // pred_check_branch
    %40 = sbr.rel (%p38) target = $region41
  $region40: #{critic_forward.1} parent=0 // pred_region
    %s41 = sshllo.u32 0, 2304
    loop: start=0, step=1, limit=1
    $region42: #{critic_forward.1} parent=40 // loop_pre_header
      _
    $region43: #{critic_forward.1} parent=40 // loop_header
      %s43 = sphi 0, %s47
      %p44 = scmp.ge.s32.totalorder %s43, 1
      %s48 = sphi %s5, %s5
      %s49 = sphi [#allocation2], [#allocation2]
    $region44: #{critic_forward.1} parent=40 // loop_header_branch
      %46 = sbr.rel (%p44) target = $region48
    $region45: #{critic_forward.1} parent=40 // loop_body
      %v50 = vld [vmem:[%s48] sm:%s41]
      %51 = vst [vmem:[%s49] sm:%s41] %v50
    $region46: #{critic_forward.1} parent=40 // loop_footer
      %s47 = sadd.s32 1, %s43
    $region47: #{critic_forward.1} parent=40 // loop_footer_branch
      %42 = sbr.rel target = $region43
    $region48: #{critic_forward.1} parent=40 // loop_exit
      _
  $region41: #{critic_forward.1} parent=0 // pred_fallthru
    _
  // Predicated region
  $region64: #{critic_forward.1} parent=0 // pred_check
    _
  $region65: #{critic_forward.1} parent=0 // pred_check_branch
    %647 = sbr.rel (0) target = $region67
  $region66: #{critic_forward.1} parent=0 // pred_region
    %648 = vsyncadd [#allocation5], 36864
  $region67: #{critic_forward.1} parent=0 // pred_fallthru
    _
  %v649 = vld [vmem:[%s0] sm:$0xf]
  %v650 = vld [vmem:[%s0 + $0x4] sm:$0xf]
  %v651 = vld [vmem:[%s0 + $0x8] sm:$0xf]
  %v652 = vld [vmem:[%s0 + $0xc] sm:$0xf]
  %v653 = vld [vmem:[%s0 + $0x10] sm:$0xf]
  %v654 = vld [vmem:[%s0 + $0x14] sm:$0xf]
  %v655 = vld [vmem:[%s0 + $0x18] sm:$0xf]
  %v656 = vld [vmem:[%s0 + $0x1c] sm:$0xf]
  %v657 = vld [vmem:[%s0 + $0x20] sm:$0xf]
  %v658 = vld [vmem:[%s0 + $0x24] sm:$0xf]
  %v659 = vld [vmem:[%s0 + $0x28] sm:$0xf]
  %v660 = vld [vmem:[%s0 + $0x2c] sm:$0xf]
  %v661 = vld [vmem:[%s0 + $0x30] sm:$0xf]
  %v662 = vld [vmem:[%s0 + $0x34] sm:$0xf]
  %v663 = vld [vmem:[%s0 + $0x38] sm:$0xf]
  %v664 = vld [vmem:[%s0 + $0x3c] sm:$0xf]
  %v665 = vld [vmem:[%s0 + $0x40] sm:$0xf]
  %v666 = vld [vmem:[%s0 + $0x44] sm:$0xf]
  %v667 = vld [vmem:[%s0 + $0x48] sm:$0xf]
  %v668 = vld [vmem:[%s0 + $0x4c] sm:$0xf]
  %v669 = vld [vmem:[%s0 + $0x50] sm:$0xf]
  %v670 = vld [vmem:[%s0 + $0x54] sm:$0xf]
  %v671 = vld [vmem:[%s0 + $0x58] sm:$0xf]
  %v672 = vld [vmem:[%s0 + $0x5c] sm:$0xf]
  %v673 = vld [vmem:[%s0 + $0x60] sm:$0xf]
  %v674 = vld [vmem:[%s0 + $0x64] sm:$0xf]
  %v675 = vld [vmem:[%s0 + $0x68] sm:$0xf]
  %v676 = vld [vmem:[%s0 + $0x6c] sm:$0xf]
  %v677 = vld [vmem:[%s0 + $0x70] sm:$0xf]
  %v678 = vld [vmem:[%s0 + $0x74] sm:$0xf]
  %v679 = vld [vmem:[%s0 + $0x78] sm:$0xf]
  %v680 = vld [vmem:[%s0 + $0x7c] sm:$0xf]
  %v681 = vld [vmem:[%s0 + $0x80] sm:$0xf]
  %v682 = vld [vmem:[%s0 + $0x84] sm:$0xf]
  %v683 = vld [vmem:[%s0 + $0x88] sm:$0xf]
  %v684 = vld [vmem:[%s0 + $0x8c] sm:$0xf]
  %v685 = vld [vmem:[%s0 + $0x90] sm:$0xf]
  %v686 = vld [vmem:[%s0 + $0x94] sm:$0xf]
  %v687 = vld [vmem:[%s0 + $0x98] sm:$0xf]
  %v688 = vld [vmem:[%s0 + $0x9c] sm:$0xf]
  %v689 = vld [vmem:[%s0 + $0xa0] sm:$0xf]
  %v690 = vld [vmem:[%s0 + $0xa4] sm:$0xf]
  %v691 = vld [vmem:[%s0 + $0xa8] sm:$0xf]
  %v692 = vld [vmem:[%s0 + $0xac] sm:$0xf]
  %v693 = vld [vmem:[%s0 + $0xb0] sm:$0xf]
  %v694 = vld [vmem:[%s0 + $0xb4] sm:$0xf]
  %v695 = vld [vmem:[%s0 + $0xb8] sm:$0xf]
  %v696 = vld [vmem:[%s0 + $0xbc] sm:$0xf]
  %v697 = vld [vmem:[%s0 + $0xc0] sm:$0xf]
  %v698 = vld [vmem:[%s1] sm:$0xf]
  %v699 = vld [vmem:[%s1 + $0x4] sm:$0xf]
  %v700 = vld [vmem:[%s1 + $0x8] sm:$0xf]
  %v701 = vld [vmem:[%s1 + $0xc] sm:$0xf]
  %v702 = vld [vmem:[%s1 + $0x10] sm:$0x3]
  %v703 = vld [vmem:[%s2] sm:$0x1]
  %v705 = vlaneseq
  %v706 = vshrl.u32 %v705, 7
  %v707 = vsub.s32 0, %v706
  %v708 = vrot.slane %v703, %v707
  %v759 = vunpack.c.l.b16 %v649
  %v760 = vunpack.c.l.b16 %v650
  %v761 = vunpack.c.l.b16 %v651
  %v762 = vunpack.c.l.b16 %v652
  %v763 = vunpack.c.l.b16 %v653
  %v764 = vunpack.c.l.b16 %v654
  %v765 = vunpack.c.l.b16 %v655
  %v766 = vunpack.c.l.b16 %v656
  %v767 = vunpack.c.l.b16 %v657
  %v768 = vunpack.c.l.b16 %v658
  %v769 = vunpack.c.l.b16 %v659
  %v770 = vunpack.c.l.b16 %v660
  %v771 = vunpack.c.l.b16 %v661
  %v772 = vunpack.c.l.b16 %v662
  %v773 = vunpack.c.l.b16 %v663
  %v774 = vunpack.c.l.b16 %v664
  %v775 = vunpack.c.l.b16 %v665
  %v776 = vunpack.c.l.b16 %v666
  %v777 = vunpack.c.l.b16 %v667
  %v778 = vunpack.c.l.b16 %v668
  %v779 = vunpack.c.l.b16 %v669
  %v780 = vunpack.c.l.b16 %v670
  %v781 = vunpack.c.l.b16 %v671
  %v782 = vunpack.c.l.b16 %v672
  %v783 = vunpack.c.l.b16 %v673
  %v784 = vunpack.c.l.b16 %v674
  %v785 = vunpack.c.l.b16 %v675
  %v786 = vunpack.c.l.b16 %v676
  %v787 = vunpack.c.l.b16 %v677
  %v788 = vunpack.c.l.b16 %v678
  %v789 = vunpack.c.l.b16 %v679
  %v790 = vunpack.c.l.b16 %v680
  %v791 = vunpack.c.l.b16 %v681
  %v792 = vunpack.c.l.b16 %v682
  %v793 = vunpack.c.l.b16 %v683
  %v794 = vunpack.c.l.b16 %v684
  %v795 = vunpack.c.l.b16 %v685
  %v796 = vunpack.c.l.b16 %v686
  %v797 = vunpack.c.l.b16 %v687
  %v798 = vunpack.c.l.b16 %v688
  %v799 = vunpack.c.l.b16 %v689
  %v800 = vunpack.c.l.b16 %v690
  %v801 = vunpack.c.l.b16 %v691
  %v802 = vunpack.c.l.b16 %v692
  %v803 = vunpack.c.l.b16 %v693
  %v804 = vunpack.c.l.b16 %v694
  %v805 = vunpack.c.l.b16 %v695
  %v806 = vunpack.c.l.b16 %v696
  %v807 = vunpack.c.l.b16 %v697
  %v808 = vpack.c.b16 %v760, %v759
  %v809 = vpack.c.b16 %v762, %v761
  %v810 = vpack.c.b16 %v764, %v763
  %v811 = vpack.c.b16 %v766, %v765
  %v812 = vpack.c.b16 %v768, %v767
  %v813 = vpack.c.b16 %v770, %v769
  %v814 = vpack.c.b16 %v772, %v771
  %v815 = vpack.c.b16 %v774, %v773
  %v816 = vpack.c.b16 %v776, %v775
  %v817 = vpack.c.b16 %v778, %v777
  %v818 = vpack.c.b16 %v780, %v779
  %v819 = vpack.c.b16 %v782, %v781
  %v820 = vpack.c.b16 %v784, %v783
  %v821 = vpack.c.b16 %v786, %v785
  %v822 = vpack.c.b16 %v788, %v787
  %v823 = vpack.c.b16 %v790, %v789
  %v824 = vpack.c.b16 %v792, %v791
  %v825 = vpack.c.b16 %v794, %v793
  %v826 = vpack.c.b16 %v796, %v795
  %v827 = vpack.c.b16 %v798, %v797
  %v828 = vpack.c.b16 %v800, %v799
  %v829 = vpack.c.b16 %v802, %v801
  %v830 = vpack.c.b16 %v804, %v803
  %v831 = vpack.c.b16 %v806, %v805
  %v832 = vpack.c.b16 %v807, %v807
  %v838 = vunpack.c.l.b16 %v698
  %v839 = vunpack.c.l.b16 %v699
  %v840 = vunpack.c.l.b16 %v700
  %v841 = vunpack.c.l.b16 %v701
  %v842 = vunpack.c.l.b16 %v702
  %v843 = vpack.c.b16 %v839, %v838
  %v844 = vpack.c.b16 %v841, %v840
  %v845 = vpack.c.b16 %v842, %v842
  %vm848 = vcmask 293888
  %v850 = vsel %vm848, %v808, 0
  %v853 = vsel %vm848, %v809, 0
  %v856 = vsel %vm848, %v810, 0
  %v859 = vsel %vm848, %v811, 0
  %v862 = vsel %vm848, %v812, 0
  %v865 = vsel %vm848, %v813, 0
  %v868 = vsel %vm848, %v814, 0
  %v871 = vsel %vm848, %v815, 0
  %v874 = vsel %vm848, %v816, 0
  %v877 = vsel %vm848, %v817, 0
  %v880 = vsel %vm848, %v818, 0
  %v883 = vsel %vm848, %v819, 0
  %v886 = vsel %vm848, %v820, 0
  %v889 = vsel %vm848, %v821, 0
  %v892 = vsel %vm848, %v822, 0
  %v895 = vsel %vm848, %v823, 0
  %v898 = vsel %vm848, %v824, 0
  %v901 = vsel %vm848, %v825, 0
  %v904 = vsel %vm848, %v826, 0
  %v907 = vsel %vm848, %v827, 0
  %v910 = vsel %vm848, %v828, 0
  %v913 = vsel %vm848, %v829, 0
  %v916 = vsel %vm848, %v830, 0
  %v919 = vsel %vm848, %v831, 0
  %v922 = vsel %vm848, %v832, 0
  %vm924 = vcmask 1041408
  %v926 = vsel %vm924, %v845, 0
  %928 = vmatprep.subr.bf16.mxu0 0
  %929 = vmatpush1.bf16.msra.mxu0 %v843
  %930 = vmatprep.subr.bf16.mxu0 0
  %931 = vmatpush1.bf16.msra.mxu0 %v844
  %932 = vmatprep.subr.bf16.mxu0 0
  %933 = vmatpush1.bf16.msra.mxu0 %v926
  %934 = vmatprep.subr.bf16.mxu0 0
  %935 = vmatpush1.bf16.msra.mxu0 0
  %936 = vmatprep.subr.bf16.mxu0 0
  %937 = vmatpush1.bf16.msra.mxu0 0
  %938 = vmatprep.subr.bf16.mxu0 0
  %939 = vmatpush1.bf16.msra.mxu0 0
  %940 = vmatprep.subr.bf16.mxu0 0
  %941 = vmatpush1.bf16.msra.mxu0 0
  %942 = vmatprep.subr.bf16.mxu0 0
  %943 = vmatpush1.bf16.msra.mxu0 0
  %944 = vmatprep.subr.bf16.mxu0 0
  %945 = vmatpush1.bf16.msra.mxu0 0
  %946 = vmatprep.subr.bf16.mxu0 0
  %947 = vmatpush1.bf16.msra.mxu0 0
  %948 = vmatprep.subr.bf16.mxu0 0
  %949 = vmatpush1.bf16.msra.mxu0 0
  %950 = vmatprep.subr.bf16.mxu0 0
  %951 = vmatpush1.bf16.msra.mxu0 0
  %952 = vmatprep.subr.bf16.mxu0 0
  %953 = vmatpush1.bf16.msra.mxu0 0
  %954 = vmatprep.subr.bf16.mxu0 0
  %955 = vmatpush1.bf16.msra.mxu0 0
  %956 = vmatprep.subr.bf16.mxu0 0
  %957 = vmatpush1.bf16.msra.mxu0 0
  %958 = vmatprep.subr.bf16.mxu0 0
  %959 = vmatpush1.bf16.msra.mxu0 0
  %960 = vmatprep.mubr.bf16.mxu0 0
  %961 = vmatmul.mubr.bf16.gmra.mrb[0].mxu0 %v850
  %v962 = vpop.f32.mrb[0].mxu0
  %v963 = vadd.f32 %v708, %v962
  %v964 = vpop.f32.mrb[0].mxu0
  %v965 = vpop.f32.mrb[0].mxu0
  %v966 = vadd.f32 %v708, %v965
  %v967 = vpop.f32.mrb[0].mxu0
  %968 = vmatprep.mubr.bf16.mxu0 0
  %969 = vmatmul.mubr.bf16.gmra.mrb[0].mxu0 %v853
  %v970 = vpop.f32.mrb[0].mxu0
  %v971 = vadd.f32 %v708, %v970
  %v972 = vpop.f32.mrb[0].mxu0
  %v973 = vpop.f32.mrb[0].mxu0
  %v974 = vadd.f32 %v708, %v973
  %v975 = vpop.f32.mrb[0].mxu0
  %976 = vmatprep.mubr.bf16.mxu0 0
  %977 = vmatmul.mubr.bf16.gmra.mrb[0].mxu0 %v856
  %v978 = vpop.f32.mrb[0].mxu0
  %v979 = vadd.f32 %v708, %v978
  %v980 = vpop.f32.mrb[0].mxu0
  %v981 = vpop.f32.mrb[0].mxu0
  %v982 = vadd.f32 %v708, %v981
  %v983 = vpop.f32.mrb[0].mxu0
  %984 = vmatprep.mubr.bf16.mxu0 0
  %985 = vmatmul.mubr.bf16.gmra.mrb[0].mxu0 %v859
  %v986 = vpop.f32.mrb[0].mxu0
  %v987 = vadd.f32 %v708, %v986
  %v988 = vpop.f32.mrb[0].mxu0
  %v989 = vpop.f32.mrb[0].mxu0
  %v990 = vadd.f32 %v708, %v989
  %v991 = vpop.f32.mrb[0].mxu0
  %992 = vmatprep.mubr.bf16.mxu0 0
  %993 = vmatmul.mubr.bf16.gmra.mrb[0].mxu0 %v862
  %v994 = vpop.f32.mrb[0].mxu0
  %v995 = vadd.f32 %v708, %v994
  %v996 = vpop.f32.mrb[0].mxu0
  %v997 = vpop.f32.mrb[0].mxu0
  %v998 = vadd.f32 %v708, %v997
  %v999 = vpop.f32.mrb[0].mxu0
  %1000 = vmatprep.mubr.bf16.mxu0 0
  %1001 = vmatmul.mubr.bf16.gmra.mrb[0].mxu0 %v865
  %v1002 = vpop.f32.mrb[0].mxu0
  %v1003 = vadd.f32 %v708, %v1002
  %v1004 = vpop.f32.mrb[0].mxu0
  %v1005 = vpop.f32.mrb[0].mxu0
  %v1006 = vadd.f32 %v708, %v1005
  %v1007 = vpop.f32.mrb[0].mxu0
  %1008 = vmatprep.mubr.bf16.mxu0 0
  %1009 = vmatmul.mubr.bf16.gmra.mrb[0].mxu0 %v868
  %v1010 = vpop.f32.mrb[0].mxu0
  %v1011 = vadd.f32 %v708, %v1010
  %v1012 = vpop.f32.mrb[0].mxu0
  %v1013 = vpop.f32.mrb[0].mxu0
  %v1014 = vadd.f32 %v708, %v1013
  %v1015 = vpop.f32.mrb[0].mxu0
  %1016 = vmatprep.mubr.bf16.mxu0 0
  %1017 = vmatmul.mubr.bf16.gmra.mrb[0].mxu0 %v871
  %v1018 = vpop.f32.mrb[0].mxu0
  %v1019 = vadd.f32 %v708, %v1018
  %v1020 = vpop.f32.mrb[0].mxu0
  %v1021 = vpop.f32.mrb[0].mxu0
  %v1022 = vadd.f32 %v708, %v1021
  %v1023 = vpop.f32.mrb[0].mxu0
  %1024 = vmatprep.mubr.bf16.mxu0 0
  %1025 = vmatmul.mubr.bf16.gmra.mrb[0].mxu0 %v874
  %v1026 = vpop.f32.mrb[0].mxu0
  %v1027 = vadd.f32 %v708, %v1026
  %v1028 = vpop.f32.mrb[0].mxu0
  %v1029 = vpop.f32.mrb[0].mxu0
  %v1030 = vadd.f32 %v708, %v1029
  %v1031 = vpop.f32.mrb[0].mxu0
  %1032 = vmatprep.mubr.bf16.mxu0 0
  %1033 = vmatmul.mubr.bf16.gmra.mrb[0].mxu0 %v877
  %v1034 = vpop.f32.mrb[0].mxu0
  %v1035 = vadd.f32 %v708, %v1034
  %v1036 = vpop.f32.mrb[0].mxu0
  %v1037 = vpop.f32.mrb[0].mxu0
  %v1038 = vadd.f32 %v708, %v1037
  %v1039 = vpop.f32.mrb[0].mxu0
  %1040 = vmatprep.mubr.bf16.mxu0 0
  %1041 = vmatmul.mubr.bf16.gmra.mrb[0].mxu0 %v880
  %v1042 = vpop.f32.mrb[0].mxu0
  %v1043 = vadd.f32 %v708, %v1042
  %v1044 = vpop.f32.mrb[0].mxu0
  %v1045 = vpop.f32.mrb[0].mxu0
  %v1046 = vadd.f32 %v708, %v1045
  %v1047 = vpop.f32.mrb[0].mxu0
  %1048 = vmatprep.mubr.bf16.mxu0 0
  %1049 = vmatmul.mubr.bf16.gmra.mrb[0].mxu0 %v883
  %v1050 = vpop.f32.mrb[0].mxu0
  %v1051 = vadd.f32 %v708, %v1050
  %v1052 = vpop.f32.mrb[0].mxu0
  %v1053 = vpop.f32.mrb[0].mxu0
  %v1054 = vadd.f32 %v708, %v1053
  %v1055 = vpop.f32.mrb[0].mxu0
  %1056 = vmatprep.mubr.bf16.mxu0 0
  %1057 = vmatmul.mubr.bf16.gmra.mrb[0].mxu0 %v886
  %v1058 = vpop.f32.mrb[0].mxu0
  %v1059 = vadd.f32 %v708, %v1058
  %v1060 = vpop.f32.mrb[0].mxu0
  %v1061 = vpop.f32.mrb[0].mxu0
  %v1062 = vadd.f32 %v708, %v1061
  %v1063 = vpop.f32.mrb[0].mxu0
  %1064 = vmatprep.mubr.bf16.mxu0 0
  %1065 = vmatmul.mubr.bf16.gmra.mrb[0].mxu0 %v889
  %v1066 = vpop.f32.mrb[0].mxu0
  %v1067 = vadd.f32 %v708, %v1066
  %v1068 = vpop.f32.mrb[0].mxu0
  %v1069 = vpop.f32.mrb[0].mxu0
  %v1070 = vadd.f32 %v708, %v1069
  %v1071 = vpop.f32.mrb[0].mxu0
  %1072 = vmatprep.mubr.bf16.mxu0 0
  %1073 = vmatmul.mubr.bf16.gmra.mrb[0].mxu0 %v892
  %v1074 = vpop.f32.mrb[0].mxu0
  %v1075 = vadd.f32 %v708, %v1074
  %v1076 = vpop.f32.mrb[0].mxu0
  %v1077 = vpop.f32.mrb[0].mxu0
  %v1078 = vadd.f32 %v708, %v1077
  %v1079 = vpop.f32.mrb[0].mxu0
  %1080 = vmatprep.mubr.bf16.mxu0 0
  %1081 = vmatmul.mubr.bf16.gmra.mrb[0].mxu0 %v895
  %v1082 = vpop.f32.mrb[0].mxu0
  %v1083 = vadd.f32 %v708, %v1082
  %v1084 = vpop.f32.mrb[0].mxu0
  %v1085 = vpop.f32.mrb[0].mxu0
  %v1086 = vadd.f32 %v708, %v1085
  %v1087 = vpop.f32.mrb[0].mxu0
  %1088 = vmatprep.mubr.bf16.mxu0 0
  %1089 = vmatmul.mubr.bf16.gmra.mrb[0].mxu0 %v898
  %v1090 = vpop.f32.mrb[0].mxu0
  %v1091 = vadd.f32 %v708, %v1090
  %v1092 = vpop.f32.mrb[0].mxu0
  %v1093 = vpop.f32.mrb[0].mxu0
  %v1094 = vadd.f32 %v708, %v1093
  %v1095 = vpop.f32.mrb[0].mxu0
  %1096 = vmatprep.mubr.bf16.mxu0 0
  %1097 = vmatmul.mubr.bf16.gmra.mrb[0].mxu0 %v901
  %v1098 = vpop.f32.mrb[0].mxu0
  %v1099 = vadd.f32 %v708, %v1098
  %v1100 = vpop.f32.mrb[0].mxu0
  %v1101 = vpop.f32.mrb[0].mxu0
  %v1102 = vadd.f32 %v708, %v1101
  %v1103 = vpop.f32.mrb[0].mxu0
  %1104 = vmatprep.mubr.bf16.mxu0 0
  %1105 = vmatmul.mubr.bf16.gmra.mrb[0].mxu0 %v904
  %v1106 = vpop.f32.mrb[0].mxu0
  %v1107 = vadd.f32 %v708, %v1106
  %v1108 = vpop.f32.mrb[0].mxu0
  %v1109 = vpop.f32.mrb[0].mxu0
  %v1110 = vadd.f32 %v708, %v1109
  %v1111 = vpop.f32.mrb[0].mxu0
  %1112 = vmatprep.mubr.bf16.mxu0 0
  %1113 = vmatmul.mubr.bf16.gmra.mrb[0].mxu0 %v907
  %v1114 = vpop.f32.mrb[0].mxu0
  %v1115 = vadd.f32 %v708, %v1114
  %v1116 = vpop.f32.mrb[0].mxu0
  %v1117 = vpop.f32.mrb[0].mxu0
  %v1118 = vadd.f32 %v708, %v1117
  %v1119 = vpop.f32.mrb[0].mxu0
  %1120 = vmatprep.mubr.bf16.mxu0 0
  %1121 = vmatmul.mubr.bf16.gmra.mrb[0].mxu0 %v910
  %v1122 = vpop.f32.mrb[0].mxu0
  %v1123 = vadd.f32 %v708, %v1122
  %v1124 = vpop.f32.mrb[0].mxu0
  %v1125 = vpop.f32.mrb[0].mxu0
  %v1126 = vadd.f32 %v708, %v1125
  %v1127 = vpop.f32.mrb[0].mxu0
  %1128 = vmatprep.mubr.bf16.mxu0 0
  %1129 = vmatmul.mubr.bf16.gmra.mrb[0].mxu0 %v913
  %v1130 = vpop.f32.mrb[0].mxu0
  %v1131 = vadd.f32 %v708, %v1130
  %v1132 = vpop.f32.mrb[0].mxu0
  %v1133 = vpop.f32.mrb[0].mxu0
  %v1134 = vadd.f32 %v708, %v1133
  %v1135 = vpop.f32.mrb[0].mxu0
  %1136 = vmatprep.mubr.bf16.mxu0 0
  %1137 = vmatmul.mubr.bf16.gmra.mrb[0].mxu0 %v916
  %v1138 = vpop.f32.mrb[0].mxu0
  %v1139 = vadd.f32 %v708, %v1138
  %v1140 = vpop.f32.mrb[0].mxu0
  %v1141 = vpop.f32.mrb[0].mxu0
  %v1142 = vadd.f32 %v708, %v1141
  %v1143 = vpop.f32.mrb[0].mxu0
  %1144 = vmatprep.mubr.bf16.mxu0 0
  %1145 = vmatmul.mubr.bf16.gmra.mrb[0].mxu0 %v919
  %v1146 = vpop.f32.mrb[0].mxu0
  %v1147 = vadd.f32 %v708, %v1146
  %v1148 = vpop.f32.mrb[0].mxu0
  %v1149 = vpop.f32.mrb[0].mxu0
  %v1150 = vadd.f32 %v708, %v1149
  %v1151 = vpop.f32.mrb[0].mxu0
  %1152 = vmatprep.mubr.bf16.mxu0 0
  %1153 = vmatmul.mubr.bf16.gmra.mrb[0].mxu0 %v922
  %v1154 = vpop.f32.mrb[0].mxu0
  %v1155 = vadd.f32 %v708, %v1154
  %v1156 = vpop.f32.mrb[0].mxu0
  %v1157 = vpop.f32.mrb[0].mxu0
  %v1158 = vpop.f32.mrb[0].mxu0
  %1159 = vdwg.mxu0
  %v1160 = vtanh.pop %v963
  %v1161 = vtanh.pop %v966
  %v1162 = vtanh.pop %v971
  %v1163 = vtanh.pop %v974
  %v1164 = vtanh.pop %v979
  %v1165 = vtanh.pop %v982
  %v1166 = vtanh.pop %v987
  %v1167 = vtanh.pop %v990
  %v1168 = vtanh.pop %v995
  %v1169 = vtanh.pop %v998
  %v1170 = vtanh.pop %v1003
  %v1171 = vtanh.pop %v1006
  %v1172 = vtanh.pop %v1011
  %v1173 = vtanh.pop %v1014
  %v1174 = vtanh.pop %v1019
  %v1175 = vtanh.pop %v1022
  %v1176 = vtanh.pop %v1027
  %v1177 = vtanh.pop %v1030
  %v1178 = vtanh.pop %v1035
  %v1179 = vtanh.pop %v1038
  %v1180 = vtanh.pop %v1043
  %v1181 = vtanh.pop %v1046
  %v1182 = vtanh.pop %v1051
  %v1183 = vtanh.pop %v1054
  %v1184 = vtanh.pop %v1059
  %v1185 = vtanh.pop %v1062
  %v1186 = vtanh.pop %v1067
  %v1187 = vtanh.pop %v1070
  %v1188 = vtanh.pop %v1075
  %v1189 = vtanh.pop %v1078
  %v1190 = vtanh.pop %v1083
  %v1191 = vtanh.pop %v1086
  %v1192 = vtanh.pop %v1091
  %v1193 = vtanh.pop %v1094
  %v1194 = vtanh.pop %v1099
  %v1195 = vtanh.pop %v1102
  %v1196 = vtanh.pop %v1107
  %v1197 = vtanh.pop %v1110
  %v1198 = vtanh.pop %v1115
  %v1199 = vtanh.pop %v1118
  %v1200 = vtanh.pop %v1123
  %v1201 = vtanh.pop %v1126
  %v1202 = vtanh.pop %v1131
  %v1203 = vtanh.pop %v1134
  %v1204 = vtanh.pop %v1139
  %v1205 = vtanh.pop %v1142
  %v1206 = vtanh.pop %v1147
  %v1207 = vtanh.pop %v1150
  %v1208 = vtanh.pop %v1155
  %v1234 = vcombine.high %v1160, %v1160
  %v1236 = vunpack.c.l.s4 1983009808
  %v1237 = vunpack.c.0.s8 %v1236
  %v1238 = vlaneseq
  %v1239 = vshrl.u32 %v1238, 7
  %v1240 = vsub.s32 %v1237, %v1239
  %v1241 = vrot.slane %v1160, %v1240
  %v1243 = vunpack.c.l.s4 1983009808
  %v1244 = vunpack.c.0.s8 %v1243
  %v1245 = vlaneseq
  %v1246 = vshrl.u32 %v1245, 7
  %v1247 = vsub.s32 %v1244, %v1246
  %v1248 = vrot.slane %v1234, %v1247
  %v1249 = vcombine.high %v1241, %v1241
  %v1250 = vcombine.high %v1248, %v1248
  %v1251 = vcombine.high %v1161, %v1161
  %v1253 = vunpack.c.l.s4 1983009808
  %v1254 = vunpack.c.0.s8 %v1253
  %v1255 = vlaneseq
  %v1256 = vshrl.u32 %v1255, 7
  %v1257 = vsub.s32 %v1254, %v1256
  %v1258 = vrot.slane %v1161, %v1257
  %v1260 = vunpack.c.l.s4 1983009808
  %v1261 = vunpack.c.0.s8 %v1260
  %v1262 = vlaneseq
  %v1263 = vshrl.u32 %v1262, 7
  %v1264 = vsub.s32 %v1261, %v1263
  %v1265 = vrot.slane %v1251, %v1264
  %v1266 = vcombine.high %v1258, %v1258
  %v1267 = vcombine.high %v1265, %v1265
  %v1268 = vcombine.high %v1162, %v1162
  %v1270 = vunpack.c.l.s4 1983009808
  %v1271 = vunpack.c.0.s8 %v1270
  %v1272 = vlaneseq
  %v1273 = vshrl.u32 %v1272, 7
  %v1274 = vsub.s32 %v1271, %v1273
  %v1275 = vrot.slane %v1162, %v1274
  %v1277 = vunpack.c.l.s4 1983009808
  %v1278 = vunpack.c.0.s8 %v1277
  %v1279 = vlaneseq
  %v1280 = vshrl.u32 %v1279, 7
  %v1281 = vsub.s32 %v1278, %v1280
  %v1282 = vrot.slane %v1268, %v1281
  %v1283 = vcombine.high %v1275, %v1275
  %v1284 = vcombine.high %v1282, %v1282
  %v1285 = vcombine.high %v1163, %v1163
  %v1287 = vunpack.c.l.s4 1983009808
  %v1288 = vunpack.c.0.s8 %v1287
  %v1289 = vlaneseq
  %v1290 = vshrl.u32 %v1289, 7
  %v1291 = vsub.s32 %v1288, %v1290
  %v1292 = vrot.slane %v1163, %v1291
  %v1294 = vunpack.c.l.s4 1983009808
  %v1295 = vunpack.c.0.s8 %v1294
  %v1296 = vlaneseq
  %v1297 = vshrl.u32 %v1296, 7
  %v1298 = vsub.s32 %v1295, %v1297
  %v1299 = vrot.slane %v1285, %v1298
  %v1300 = vcombine.high %v1292, %v1292
  %v1301 = vcombine.high %v1299, %v1299
  %v1302 = vcombine.high %v1164, %v1164
  %v1304 = vunpack.c.l.s4 1983009808
  %v1305 = vunpack.c.0.s8 %v1304
  %v1306 = vlaneseq
  %v1307 = vshrl.u32 %v1306, 7
  %v1308 = vsub.s32 %v1305, %v1307
  %v1309 = vrot.slane %v1164, %v1308
  %v1311 = vunpack.c.l.s4 1983009808
  %v1312 = vunpack.c.0.s8 %v1311
  %v1313 = vlaneseq
  %v1314 = vshrl.u32 %v1313, 7
  %v1315 = vsub.s32 %v1312, %v1314
  %v1316 = vrot.slane %v1302, %v1315
  %v1317 = vcombine.high %v1309, %v1309
  %v1318 = vcombine.high %v1316, %v1316
  %v1319 = vcombine.high %v1165, %v1165
  %v1321 = vunpack.c.l.s4 1983009808
  %v1322 = vunpack.c.0.s8 %v1321
  %v1323 = vlaneseq
  %v1324 = vshrl.u32 %v1323, 7
  %v1325 = vsub.s32 %v1322, %v1324
  %v1326 = vrot.slane %v1165, %v1325
  %v1328 = vunpack.c.l.s4 1983009808
  %v1329 = vunpack.c.0.s8 %v1328
  %v1330 = vlaneseq
  %v1331 = vshrl.u32 %v1330, 7
  %v1332 = vsub.s32 %v1329, %v1331
  %v1333 = vrot.slane %v1319, %v1332
  %v1334 = vcombine.high %v1326, %v1326
  %v1335 = vcombine.high %v1333, %v1333
  %v1336 = vcombine.high %v1166, %v1166
  %v1338 = vunpack.c.l.s4 1983009808
  %v1339 = vunpack.c.0.s8 %v1338
  %v1340 = vlaneseq
  %v1341 = vshrl.u32 %v1340, 7
  %v1342 = vsub.s32 %v1339, %v1341
  %v1343 = vrot.slane %v1166, %v1342
  %v1345 = vunpack.c.l.s4 1983009808
  %v1346 = vunpack.c.0.s8 %v1345
  %v1347 = vlaneseq
  %v1348 = vshrl.u32 %v1347, 7
  %v1349 = vsub.s32 %v1346, %v1348
  %v1350 = vrot.slane %v1336, %v1349
  %v1351 = vcombine.high %v1343, %v1343
  %v1352 = vcombine.high %v1350, %v1350
  %v1353 = vcombine.high %v1167, %v1167
  %v1355 = vunpack.c.l.s4 1983009808
  %v1356 = vunpack.c.0.s8 %v1355
  %v1357 = vlaneseq
  %v1358 = vshrl.u32 %v1357, 7
  %v1359 = vsub.s32 %v1356, %v1358
  %v1360 = vrot.slane %v1167, %v1359
  %v1362 = vunpack.c.l.s4 1983009808
  %v1363 = vunpack.c.0.s8 %v1362
  %v1364 = vlaneseq
  %v1365 = vshrl.u32 %v1364, 7
  %v1366 = vsub.s32 %v1363, %v1365
  %v1367 = vrot.slane %v1353, %v1366
  %v1368 = vcombine.high %v1360, %v1360
  %v1369 = vcombine.high %v1367, %v1367
  %v1370 = vcombine.high %v1168, %v1168
  %v1372 = vunpack.c.l.s4 1983009808
  %v1373 = vunpack.c.0.s8 %v1372
  %v1374 = vlaneseq
  %v1375 = vshrl.u32 %v1374, 7
  %v1376 = vsub.s32 %v1373, %v1375
  %v1377 = vrot.slane %v1168, %v1376
  %v1379 = vunpack.c.l.s4 1983009808
  %v1380 = vunpack.c.0.s8 %v1379
  %v1381 = vlaneseq
  %v1382 = vshrl.u32 %v1381, 7
  %v1383 = vsub.s32 %v1380, %v1382
  %v1384 = vrot.slane %v1370, %v1383
  %v1385 = vcombine.high %v1377, %v1377
  %v1386 = vcombine.high %v1384, %v1384
  %v1387 = vcombine.high %v1169, %v1169
  %v1389 = vunpack.c.l.s4 1983009808
  %v1390 = vunpack.c.0.s8 %v1389
  %v1391 = vlaneseq
  %v1392 = vshrl.u32 %v1391, 7
  %v1393 = vsub.s32 %v1390, %v1392
  %v1394 = vrot.slane %v1169, %v1393
  %v1396 = vunpack.c.l.s4 1983009808
  %v1397 = vunpack.c.0.s8 %v1396
  %v1398 = vlaneseq
  %v1399 = vshrl.u32 %v1398, 7
  %v1400 = vsub.s32 %v1397, %v1399
  %v1401 = vrot.slane %v1387, %v1400
  %v1402 = vcombine.high %v1394, %v1394
  %v1403 = vcombine.high %v1401, %v1401
  %v1404 = vcombine.high %v1170, %v1170
  %v1406 = vunpack.c.l.s4 1983009808
  %v1407 = vunpack.c.0.s8 %v1406
  %v1408 = vlaneseq
  %v1409 = vshrl.u32 %v1408, 7
  %v1410 = vsub.s32 %v1407, %v1409
  %v1411 = vrot.slane %v1170, %v1410
  %v1413 = vunpack.c.l.s4 1983009808
  %v1414 = vunpack.c.0.s8 %v1413
  %v1415 = vlaneseq
  %v1416 = vshrl.u32 %v1415, 7
  %v1417 = vsub.s32 %v1414, %v1416
  %v1418 = vrot.slane %v1404, %v1417
  %v1419 = vcombine.high %v1411, %v1411
  %v1420 = vcombine.high %v1418, %v1418
  %v1421 = vcombine.high %v1171, %v1171
  %v1423 = vunpack.c.l.s4 1983009808
  %v1424 = vunpack.c.0.s8 %v1423
  %v1425 = vlaneseq
  %v1426 = vshrl.u32 %v1425, 7
  %v1427 = vsub.s32 %v1424, %v1426
  %v1428 = vrot.slane %v1171, %v1427
  %v1430 = vunpack.c.l.s4 1983009808
  %v1431 = vunpack.c.0.s8 %v1430
  %v1432 = vlaneseq
  %v1433 = vshrl.u32 %v1432, 7
  %v1434 = vsub.s32 %v1431, %v1433
  %v1435 = vrot.slane %v1421, %v1434
  %v1436 = vcombine.high %v1428, %v1428
  %v1437 = vcombine.high %v1435, %v1435
  %v1438 = vcombine.high %v1172, %v1172
  %v1440 = vunpack.c.l.s4 1983009808
  %v1441 = vunpack.c.0.s8 %v1440
  %v1442 = vlaneseq
  %v1443 = vshrl.u32 %v1442, 7
  %v1444 = vsub.s32 %v1441, %v1443
  %v1445 = vrot.slane %v1172, %v1444
  %v1447 = vunpack.c.l.s4 1983009808
  %v1448 = vunpack.c.0.s8 %v1447
  %v1449 = vlaneseq
  %v1450 = vshrl.u32 %v1449, 7
  %v1451 = vsub.s32 %v1448, %v1450
  %v1452 = vrot.slane %v1438, %v1451
  %v1453 = vcombine.high %v1445, %v1445
  %v1454 = vcombine.high %v1452, %v1452
  %v1455 = vcombine.high %v1173, %v1173
  %v1457 = vunpack.c.l.s4 1983009808
  %v1458 = vunpack.c.0.s8 %v1457
  %v1459 = vlaneseq
  %v1460 = vshrl.u32 %v1459, 7
  %v1461 = vsub.s32 %v1458, %v1460
  %v1462 = vrot.slane %v1173, %v1461
  %v1464 = vunpack.c.l.s4 1983009808
  %v1465 = vunpack.c.0.s8 %v1464
  %v1466 = vlaneseq
  %v1467 = vshrl.u32 %v1466, 7
  %v1468 = vsub.s32 %v1465, %v1467
  %v1469 = vrot.slane %v1455, %v1468
  %v1470 = vcombine.high %v1462, %v1462
  %v1471 = vcombine.high %v1469, %v1469
  %v1472 = vcombine.high %v1174, %v1174
  %v1474 = vunpack.c.l.s4 1983009808
  %v1475 = vunpack.c.0.s8 %v1474
  %v1476 = vlaneseq
  %v1477 = vshrl.u32 %v1476, 7
  %v1478 = vsub.s32 %v1475, %v1477
  %v1479 = vrot.slane %v1174, %v1478
  %v1481 = vunpack.c.l.s4 1983009808
  %v1482 = vunpack.c.0.s8 %v1481
  %v1483 = vlaneseq
  %v1484 = vshrl.u32 %v1483, 7
  %v1485 = vsub.s32 %v1482, %v1484
  %v1486 = vrot.slane %v1472, %v1485
  %v1487 = vcombine.high %v1479, %v1479
  %v1488 = vcombine.high %v1486, %v1486
  %v1489 = vcombine.high %v1175, %v1175
  %v1491 = vunpack.c.l.s4 1983009808
  %v1492 = vunpack.c.0.s8 %v1491
  %v1493 = vlaneseq
  %v1494 = vshrl.u32 %v1493, 7
  %v1495 = vsub.s32 %v1492, %v1494
  %v1496 = vrot.slane %v1175, %v1495
  %v1498 = vunpack.c.l.s4 1983009808
  %v1499 = vunpack.c.0.s8 %v1498
  %v1500 = vlaneseq
  %v1501 = vshrl.u32 %v1500, 7
  %v1502 = vsub.s32 %v1499, %v1501
  %v1503 = vrot.slane %v1489, %v1502
  %v1504 = vcombine.high %v1496, %v1496
  %v1505 = vcombine.high %v1503, %v1503
  %v1506 = vcombine.high %v1176, %v1176
  %v1508 = vunpack.c.l.s4 1983009808
  %v1509 = vunpack.c.0.s8 %v1508
  %v1510 = vlaneseq
  %v1511 = vshrl.u32 %v1510, 7
  %v1512 = vsub.s32 %v1509, %v1511
  %v1513 = vrot.slane %v1176, %v1512
  %v1515 = vunpack.c.l.s4 1983009808
  %v1516 = vunpack.c.0.s8 %v1515
  %v1517 = vlaneseq
  %v1518 = vshrl.u32 %v1517, 7
  %v1519 = vsub.s32 %v1516, %v1518
  %v1520 = vrot.slane %v1506, %v1519
  %v1521 = vcombine.high %v1513, %v1513
  %v1522 = vcombine.high %v1520, %v1520
  %v1523 = vcombine.high %v1177, %v1177
  %v1525 = vunpack.c.l.s4 1983009808
  %v1526 = vunpack.c.0.s8 %v1525
  %v1527 = vlaneseq
  %v1528 = vshrl.u32 %v1527, 7
  %v1529 = vsub.s32 %v1526, %v1528
  %v1530 = vrot.slane %v1177, %v1529
  %v1532 = vunpack.c.l.s4 1983009808
  %v1533 = vunpack.c.0.s8 %v1532
  %v1534 = vlaneseq
  %v1535 = vshrl.u32 %v1534, 7
  %v1536 = vsub.s32 %v1533, %v1535
  %v1537 = vrot.slane %v1523, %v1536
  %v1538 = vcombine.high %v1530, %v1530
  %v1539 = vcombine.high %v1537, %v1537
  %v1540 = vcombine.high %v1178, %v1178
  %v1542 = vunpack.c.l.s4 1983009808
  %v1543 = vunpack.c.0.s8 %v1542
  %v1544 = vlaneseq
  %v1545 = vshrl.u32 %v1544, 7
  %v1546 = vsub.s32 %v1543, %v1545
  %v1547 = vrot.slane %v1178, %v1546
  %v1549 = vunpack.c.l.s4 1983009808
  %v1550 = vunpack.c.0.s8 %v1549
  %v1551 = vlaneseq
  %v1552 = vshrl.u32 %v1551, 7
  %v1553 = vsub.s32 %v1550, %v1552
  %v1554 = vrot.slane %v1540, %v1553
  %v1555 = vcombine.high %v1547, %v1547
  %v1556 = vcombine.high %v1554, %v1554
  %v1557 = vcombine.high %v1179, %v1179
  %v1559 = vunpack.c.l.s4 1983009808
  %v1560 = vunpack.c.0.s8 %v1559
  %v1561 = vlaneseq
  %v1562 = vshrl.u32 %v1561, 7
  %v1563 = vsub.s32 %v1560, %v1562
  %v1564 = vrot.slane %v1179, %v1563
  %v1566 = vunpack.c.l.s4 1983009808
  %v1567 = vunpack.c.0.s8 %v1566
  %v1568 = vlaneseq
  %v1569 = vshrl.u32 %v1568, 7
  %v1570 = vsub.s32 %v1567, %v1569
  %v1571 = vrot.slane %v1557, %v1570
  %v1572 = vcombine.high %v1564, %v1564
  %v1573 = vcombine.high %v1571, %v1571
  %v1574 = vcombine.high %v1180, %v1180
  %v1576 = vunpack.c.l.s4 1983009808
  %v1577 = vunpack.c.0.s8 %v1576
  %v1578 = vlaneseq
  %v1579 = vshrl.u32 %v1578, 7
  %v1580 = vsub.s32 %v1577, %v1579
  %v1581 = vrot.slane %v1180, %v1580
  %v1583 = vunpack.c.l.s4 1983009808
  %v1584 = vunpack.c.0.s8 %v1583
  %v1585 = vlaneseq
  %v1586 = vshrl.u32 %v1585, 7
  %v1587 = vsub.s32 %v1584, %v1586
  %v1588 = vrot.slane %v1574, %v1587
  %v1589 = vcombine.high %v1581, %v1581
  %v1590 = vcombine.high %v1588, %v1588
  %v1591 = vcombine.high %v1181, %v1181
  %v1593 = vunpack.c.l.s4 1983009808
  %v1594 = vunpack.c.0.s8 %v1593
  %v1595 = vlaneseq
  %v1596 = vshrl.u32 %v1595, 7
  %v1597 = vsub.s32 %v1594, %v1596
  %v1598 = vrot.slane %v1181, %v1597
  %v1600 = vunpack.c.l.s4 1983009808
  %v1601 = vunpack.c.0.s8 %v1600
  %v1602 = vlaneseq
  %v1603 = vshrl.u32 %v1602, 7
  %v1604 = vsub.s32 %v1601, %v1603
  %v1605 = vrot.slane %v1591, %v1604
  %v1606 = vcombine.high %v1598, %v1598
  %v1607 = vcombine.high %v1605, %v1605
  %v1608 = vcombine.high %v1182, %v1182
  %v1610 = vunpack.c.l.s4 1983009808
  %v1611 = vunpack.c.0.s8 %v1610
  %v1612 = vlaneseq
  %v1613 = vshrl.u32 %v1612, 7
  %v1614 = vsub.s32 %v1611, %v1613
  %v1615 = vrot.slane %v1182, %v1614
  %v1617 = vunpack.c.l.s4 1983009808
  %v1618 = vunpack.c.0.s8 %v1617
  %v1619 = vlaneseq
  %v1620 = vshrl.u32 %v1619, 7
  %v1621 = vsub.s32 %v1618, %v1620
  %v1622 = vrot.slane %v1608, %v1621
  %v1623 = vcombine.high %v1615, %v1615
  %v1624 = vcombine.high %v1622, %v1622
  %v1625 = vcombine.high %v1183, %v1183
  %v1627 = vunpack.c.l.s4 1983009808
  %v1628 = vunpack.c.0.s8 %v1627
  %v1629 = vlaneseq
  %v1630 = vshrl.u32 %v1629, 7
  %v1631 = vsub.s32 %v1628, %v1630
  %v1632 = vrot.slane %v1183, %v1631
  %v1634 = vunpack.c.l.s4 1983009808
  %v1635 = vunpack.c.0.s8 %v1634
  %v1636 = vlaneseq
  %v1637 = vshrl.u32 %v1636, 7
  %v1638 = vsub.s32 %v1635, %v1637
  %v1639 = vrot.slane %v1625, %v1638
  %v1640 = vcombine.high %v1632, %v1632
  %v1641 = vcombine.high %v1639, %v1639
  %v1643 = vunpack.c.l.s4 1983009808
  %v1644 = vunpack.c.0.s8 %v1643
  %v1645 = vlaneseq
  %v1646 = vshrl.u32 %v1645, 7
  %v1647 = vsub.s32 %v1644, %v1646
  %v1648 = vrot.slane %v1184, %v1647
  %v1649 = vcombine.high %v1648, %v1648
  %v1650 = vcombine.low %v1241, %v1249
  %v1651 = vcombine.low %v1248, %v1250
  %v1653 = vunpack.c.l.s4 1983009808
  %v1654 = vunpack.c.0.s8 %v1653
  %v1655 = vlaneseq
  %v1656 = vshrl.u32 %v1655, 7
  %v1657 = vsub.s32 %v1654, %v1656
  %v1658 = vrot.slane %v1650, %v1657
  %v1660 = vunpack.c.l.s4 1983009808
  %v1661 = vunpack.c.0.s8 %v1660
  %v1662 = vlaneseq
  %v1663 = vshrl.u32 %v1662, 7
  %v1664 = vsub.s32 %v1661, %v1663
  %v1665 = vrot.slane %v1651, %v1664
  %v1666 = vcombine.low %v1658, %v1665
  %v1667 = vcombine.low %v1258, %v1266
  %v1668 = vcombine.low %v1267, %v1275
  %v1670 = vunpack.c.l.s4 1983009808
  %v1671 = vunpack.c.0.s8 %v1670
  %v1672 = vlaneseq
  %v1673 = vshrl.u32 %v1672, 7
  %v1674 = vsub.s32 %v1671, %v1673
  %v1675 = vrot.slane %v1667, %v1674
  %v1677 = vunpack.c.l.s4 1983009808
  %v1678 = vunpack.c.0.s8 %v1677
  %v1679 = vlaneseq
  %v1680 = vshrl.u32 %v1679, 7
  %v1681 = vsub.s32 %v1678, %v1680
  %v1682 = vrot.slane %v1668, %v1681
  %v1683 = vcombine.low %v1675, %v1682
  %v1684 = vcombine.low %v1283, %v1282
  %v1685 = vcombine.low %v1284, %v1292
  %v1687 = vunpack.c.l.s4 1983009808
  %v1688 = vunpack.c.0.s8 %v1687
  %v1689 = vlaneseq
  %v1690 = vshrl.u32 %v1689, 7
  %v1691 = vsub.s32 %v1688, %v1690
  %v1692 = vrot.slane %v1684, %v1691
  %v1694 = vunpack.c.l.s4 1983009808
  %v1695 = vunpack.c.0.s8 %v1694
  %v1696 = vlaneseq
  %v1697 = vshrl.u32 %v1696, 7
  %v1698 = vsub.s32 %v1695, %v1697
  %v1699 = vrot.slane %v1685, %v1698
  %v1700 = vcombine.low %v1692, %v1699
  %v1701 = vcombine.low %v1299, %v1301
  %v1702 = vcombine.low %v1309, %v1317
  %v1704 = vunpack.c.l.s4 1983009808
  %v1705 = vunpack.c.0.s8 %v1704
  %v1706 = vlaneseq
  %v1707 = vshrl.u32 %v1706, 7
  %v1708 = vsub.s32 %v1705, %v1707
  %v1709 = vrot.slane %v1701, %v1708
  %v1711 = vunpack.c.l.s4 1983009808
  %v1712 = vunpack.c.0.s8 %v1711
  %v1713 = vlaneseq
  %v1714 = vshrl.u32 %v1713, 7
  %v1715 = vsub.s32 %v1712, %v1714
  %v1716 = vrot.slane %v1702, %v1715
  %v1717 = vcombine.low %v1709, %v1716
  %v1718 = vcombine.low %v1316, %v1318
  %v1719 = vcombine.low %v1334, %v1333
  %v1721 = vunpack.c.l.s4 1983009808
  %v1722 = vunpack.c.0.s8 %v1721
  %v1723 = vlaneseq
  %v1724 = vshrl.u32 %v1723, 7
  %v1725 = vsub.s32 %v1722, %v1724
  %v1726 = vrot.slane %v1718, %v1725
  %v1728 = vunpack.c.l.s4 1983009808
  %v1729 = vunpack.c.0.s8 %v1728
  %v1730 = vlaneseq
  %v1731 = vshrl.u32 %v1730, 7
  %v1732 = vsub.s32 %v1729, %v1731
  %v1733 = vrot.slane %v1719, %v1732
  %v1734 = vcombine.low %v1726, %v1733
  %v1735 = vcombine.low %v1335, %v1343
  %v1736 = vcombine.low %v1351, %v1350
  %v1738 = vunpack.c.l.s4 1983009808
  %v1739 = vunpack.c.0.s8 %v1738
  %v1740 = vlaneseq
  %v1741 = vshrl.u32 %v1740, 7
  %v1742 = vsub.s32 %v1739, %v1741
  %v1743 = vrot.slane %v1735, %v1742
  %v1745 = vunpack.c.l.s4 1983009808
  %v1746 = vunpack.c.0.s8 %v1745
  %v1747 = vlaneseq
  %v1748 = vshrl.u32 %v1747, 7
  %v1749 = vsub.s32 %v1746, %v1748
  %v1750 = vrot.slane %v1736, %v1749
  %v1751 = vcombine.low %v1743, %v1750
  %v1752 = vcombine.low %v1360, %v1368
  %v1753 = vcombine.low %v1367, %v1369
  %v1755 = vunpack.c.l.s4 1983009808
  %v1756 = vunpack.c.0.s8 %v1755
  %v1757 = vlaneseq
  %v1758 = vshrl.u32 %v1757, 7
  %v1759 = vsub.s32 %v1756, %v1758
  %v1760 = vrot.slane %v1752, %v1759
  %v1762 = vunpack.c.l.s4 1983009808
  %v1763 = vunpack.c.0.s8 %v1762
  %v1764 = vlaneseq
  %v1765 = vshrl.u32 %v1764, 7
  %v1766 = vsub.s32 %v1763, %v1765
  %v1767 = vrot.slane %v1753, %v1766
  %v1768 = vcombine.low %v1760, %v1767
  %v1769 = vcombine.low %v1377, %v1385
  %v1770 = vcombine.low %v1386, %v1394
  %v1772 = vunpack.c.l.s4 1983009808
  %v1773 = vunpack.c.0.s8 %v1772
  %v1774 = vlaneseq
  %v1775 = vshrl.u32 %v1774, 7
  %v1776 = vsub.s32 %v1773, %v1775
  %v1777 = vrot.slane %v1769, %v1776
  %v1779 = vunpack.c.l.s4 1983009808
  %v1780 = vunpack.c.0.s8 %v1779
  %v1781 = vlaneseq
  %v1782 = vshrl.u32 %v1781, 7
  %v1783 = vsub.s32 %v1780, %v1782
  %v1784 = vrot.slane %v1770, %v1783
  %v1785 = vcombine.low %v1777, %v1784
  %v1786 = vcombine.low %v1402, %v1401
  %v1787 = vcombine.low %v1403, %v1411
  %v1789 = vunpack.c.l.s4 1983009808
  %v1790 = vunpack.c.0.s8 %v1789
  %v1791 = vlaneseq
  %v1792 = vshrl.u32 %v1791, 7
  %v1793 = vsub.s32 %v1790, %v1792
  %v1794 = vrot.slane %v1786, %v1793
  %v1796 = vunpack.c.l.s4 1983009808
  %v1797 = vunpack.c.0.s8 %v1796
  %v1798 = vlaneseq
  %v1799 = vshrl.u32 %v1798, 7
  %v1800 = vsub.s32 %v1797, %v1799
  %v1801 = vrot.slane %v1787, %v1800
  %v1802 = vcombine.low %v1794, %v1801
  %v1803 = vcombine.low %v1418, %v1420
  %v1804 = vcombine.low %v1428, %v1436
  %v1806 = vunpack.c.l.s4 1983009808
  %v1807 = vunpack.c.0.s8 %v1806
  %v1808 = vlaneseq
  %v1809 = vshrl.u32 %v1808, 7
  %v1810 = vsub.s32 %v1807, %v1809
  %v1811 = vrot.slane %v1803, %v1810
  %v1813 = vunpack.c.l.s4 1983009808
  %v1814 = vunpack.c.0.s8 %v1813
  %v1815 = vlaneseq
  %v1816 = vshrl.u32 %v1815, 7
  %v1817 = vsub.s32 %v1814, %v1816
  %v1818 = vrot.slane %v1804, %v1817
  %v1819 = vcombine.low %v1811, %v1818
  %v1820 = vcombine.low %v1435, %v1437
  %v1821 = vcombine.low %v1453, %v1452
  %v1823 = vunpack.c.l.s4 1983009808
  %v1824 = vunpack.c.0.s8 %v1823
  %v1825 = vlaneseq
  %v1826 = vshrl.u32 %v1825, 7
  %v1827 = vsub.s32 %v1824, %v1826
  %v1828 = vrot.slane %v1820, %v1827
  %v1830 = vunpack.c.l.s4 1983009808
  %v1831 = vunpack.c.0.s8 %v1830
  %v1832 = vlaneseq
  %v1833 = vshrl.u32 %v1832, 7
  %v1834 = vsub.s32 %v1831, %v1833
  %v1835 = vrot.slane %v1821, %v1834
  %v1836 = vcombine.low %v1828, %v1835
  %v1837 = vcombine.low %v1454, %v1462
  %v1838 = vcombine.low %v1470, %v1469
  %v1840 = vunpack.c.l.s4 1983009808
  %v1841 = vunpack.c.0.s8 %v1840
  %v1842 = vlaneseq
  %v1843 = vshrl.u32 %v1842, 7
  %v1844 = vsub.s32 %v1841, %v1843
  %v1845 = vrot.slane %v1837, %v1844
  %v1847 = vunpack.c.l.s4 1983009808
  %v1848 = vunpack.c.0.s8 %v1847
  %v1849 = vlaneseq
  %v1850 = vshrl.u32 %v1849, 7
  %v1851 = vsub.s32 %v1848, %v1850
  %v1852 = vrot.slane %v1838, %v1851
  %v1853 = vcombine.low %v1845, %v1852
  %v1854 = vcombine.low %v1479, %v1487
  %v1855 = vcombine.low %v1486, %v1488
  %v1857 = vunpack.c.l.s4 1983009808
  %v1858 = vunpack.c.0.s8 %v1857
  %v1859 = vlaneseq
  %v1860 = vshrl.u32 %v1859, 7
  %v1861 = vsub.s32 %v1858, %v1860
  %v1862 = vrot.slane %v1854, %v1861
  %v1864 = vunpack.c.l.s4 1983009808
  %v1865 = vunpack.c.0.s8 %v1864
  %v1866 = vlaneseq
  %v1867 = vshrl.u32 %v1866, 7
  %v1868 = vsub.s32 %v1865, %v1867
  %v1869 = vrot.slane %v1855, %v1868
  %v1870 = vcombine.low %v1862, %v1869
  %v1871 = vcombine.low %v1496, %v1504
  %v1872 = vcombine.low %v1505, %v1513
  %v1874 = vunpack.c.l.s4 1983009808
  %v1875 = vunpack.c.0.s8 %v1874
  %v1876 = vlaneseq
  %v1877 = vshrl.u32 %v1876, 7
  %v1878 = vsub.s32 %v1875, %v1877
  %v1879 = vrot.slane %v1871, %v1878
  %v1881 = vunpack.c.l.s4 1983009808
  %v1882 = vunpack.c.0.s8 %v1881
  %v1883 = vlaneseq
  %v1884 = vshrl.u32 %v1883, 7
  %v1885 = vsub.s32 %v1882, %v1884
  %v1886 = vrot.slane %v1872, %v1885
  %v1887 = vcombine.low %v1879, %v1886
  %v1888 = vcombine.low %v1521, %v1520
  %v1889 = vcombine.low %v1522, %v1530
  %v1891 = vunpack.c.l.s4 1983009808
  %v1892 = vunpack.c.0.s8 %v1891
  %v1893 = vlaneseq
  %v1894 = vshrl.u32 %v1893, 7
  %v1895 = vsub.s32 %v1892, %v1894
  %v1896 = vrot.slane %v1888, %v1895
  %v1898 = vunpack.c.l.s4 1983009808
  %v1899 = vunpack.c.0.s8 %v1898
  %v1900 = vlaneseq
  %v1901 = vshrl.u32 %v1900, 7
  %v1902 = vsub.s32 %v1899, %v1901
  %v1903 = vrot.slane %v1889, %v1902
  %v1904 = vcombine.low %v1896, %v1903
  %v1905 = vcombine.low %v1537, %v1539
  %v1906 = vcombine.low %v1547, %v1555
  %v1908 = vunpack.c.l.s4 1983009808
  %v1909 = vunpack.c.0.s8 %v1908
  %v1910 = vlaneseq
  %v1911 = vshrl.u32 %v1910, 7
  %v1912 = vsub.s32 %v1909, %v1911
  %v1913 = vrot.slane %v1905, %v1912
  %v1915 = vunpack.c.l.s4 1983009808
  %v1916 = vunpack.c.0.s8 %v1915
  %v1917 = vlaneseq
  %v1918 = vshrl.u32 %v1917, 7
  %v1919 = vsub.s32 %v1916, %v1918
  %v1920 = vrot.slane %v1906, %v1919
  %v1921 = vcombine.low %v1913, %v1920
  %v1922 = vcombine.low %v1554, %v1556
  %v1923 = vcombine.low %v1572, %v1571
  %v1925 = vunpack.c.l.s4 1983009808
  %v1926 = vunpack.c.0.s8 %v1925
  %v1927 = vlaneseq
  %v1928 = vshrl.u32 %v1927, 7
  %v1929 = vsub.s32 %v1926, %v1928
  %v1930 = vrot.slane %v1922, %v1929
  %v1932 = vunpack.c.l.s4 1983009808
  %v1933 = vunpack.c.0.s8 %v1932
  %v1934 = vlaneseq
  %v1935 = vshrl.u32 %v1934, 7
  %v1936 = vsub.s32 %v1933, %v1935
  %v1937 = vrot.slane %v1923, %v1936
  %v1938 = vcombine.low %v1930, %v1937
  %v1939 = vcombine.low %v1573, %v1581
  %v1940 = vcombine.low %v1589, %v1588
  %v1942 = vunpack.c.l.s4 1983009808
  %v1943 = vunpack.c.0.s8 %v1942
  %v1944 = vlaneseq
  %v1945 = vshrl.u32 %v1944, 7
  %v1946 = vsub.s32 %v1943, %v1945
  %v1947 = vrot.slane %v1939, %v1946
  %v1949 = vunpack.c.l.s4 1983009808
  %v1950 = vunpack.c.0.s8 %v1949
  %v1951 = vlaneseq
  %v1952 = vshrl.u32 %v1951, 7
  %v1953 = vsub.s32 %v1950, %v1952
  %v1954 = vrot.slane %v1940, %v1953
  %v1955 = vcombine.low %v1947, %v1954
  %v1974 = vpack.c.bf16 %v1683, %v1666
  %v1975 = vpack.c.bf16 %v1717, %v1700
  %v1976 = vpack.c.bf16 %v1751, %v1734
  %v1977 = vpack.c.bf16 %v1785, %v1768
  %v1978 = vpack.c.bf16 %v1819, %v1802
  %v1979 = vpack.c.bf16 %v1853, %v1836
  %v1980 = vpack.c.bf16 %v1887, %v1870
  %v1981 = vpack.c.bf16 %v1921, %v1904
  %v1982 = vpack.c.bf16 %v1955, %v1938
  %vm1983 = vcmask 130048
  %1984 = vst.msk [vmem:[#allocation3] sm:$0xff] %vm1983, %v1974
  %1985 = vst.msk [vmem:[#allocation3 + $0x10] sm:$0xff] %vm1983, %v1975
  %1986 = vst.msk [vmem:[#allocation3 + $0x20] sm:$0xff] %vm1983, %v1976
  %1987 = vst.msk [vmem:[#allocation3 + $0x30] sm:$0xff] %vm1983, %v1977
  %1988 = vst.msk [vmem:[#allocation3 + $0x40] sm:$0xff] %vm1983, %v1978
  %1989 = vst.msk [vmem:[#allocation3 + $0x50] sm:$0xff] %vm1983, %v1979
  %1990 = vst.msk [vmem:[#allocation3 + $0x60] sm:$0xff] %vm1983, %v1980
  %1991 = vst.msk [vmem:[#allocation3 + $0x70] sm:$0xff] %vm1983, %v1981
  %1992 = vst.msk [vmem:[#allocation3 + $0x80] sm:$0xff] %vm1983, %v1982
  %vm1993 = vcmask 1040384
  %vm1994 = vcmask 1042434
  %vm1995 = vmor %vm1993, %vm1994
  %vm1996 = vcmask 1044484
  %vm1997 = vmor %vm1995, %vm1996
  %vm1998 = vcmask 1046534
  %vm1999 = vmor %vm1997, %vm1998
  %v2000 = vrot.slane %v1241, 7
  %v2001 = vrot.slane %v2000, 2
  %v2002 = vrot.slane %v1249, 7
  %v2003 = vsel %vm1999, %v2001, %v2002
  %v2004 = vrot.slane %v2002, 2
  %v2005 = vrot.slane %v1248, 7
  %v2006 = vsel %vm1999, %v2004, %v2005
  %v2007 = vrot.slane %v2005, 2
  %v2008 = vrot.slane %v1250, 7
  %v2009 = vsel %vm1999, %v2007, %v2008
  %v2010 = vrot.slane %v2008, 2
  %v2011 = vrot.slane %v1258, 7
  %v2012 = vsel %vm1999, %v2010, %v2011
  %v2013 = vrot.slane %v2011, 2
  %v2014 = vrot.slane %v1266, 7
  %v2015 = vsel %vm1999, %v2013, %v2014
  %v2016 = vrot.slane %v2014, 2
  %v2017 = vrot.slane %v1265, 7
  %v2018 = vsel %vm1999, %v2016, %v2017
  %v2019 = vrot.slane %v1267, 7
  %v2020 = vrot.slane %v2019, 2
  %v2021 = vrot.slane %v1275, 7
  %v2022 = vsel %vm1999, %v2020, %v2021
  %v2023 = vrot.slane %v2021, 2
  %v2024 = vrot.slane %v1283, 7
  %v2025 = vsel %vm1999, %v2023, %v2024
  %v2026 = vrot.slane %v2024, 2
  %v2027 = vrot.slane %v1282, 7
  %v2028 = vsel %vm1999, %v2026, %v2027
  %v2029 = vrot.slane %v2027, 2
  %v2030 = vrot.slane %v1284, 7
  %v2031 = vsel %vm1999, %v2029, %v2030
  %v2032 = vrot.slane %v2030, 2
  %v2033 = vrot.slane %v1292, 7
  %v2034 = vsel %vm1999, %v2032, %v2033
  %v2035 = vrot.slane %v2033, 2
  %v2036 = vrot.slane %v1300, 7
  %v2037 = vsel %vm1999, %v2035, %v2036
  %v2038 = vrot.slane %v1299, 7
  %v2039 = vrot.slane %v2038, 2
  %v2040 = vrot.slane %v1301, 7
  %v2041 = vsel %vm1999, %v2039, %v2040
  %v2042 = vrot.slane %v2040, 2
  %v2043 = vrot.slane %v1309, 7
  %v2044 = vsel %vm1999, %v2042, %v2043
  %v2045 = vrot.slane %v2043, 2
  %v2046 = vrot.slane %v1317, 7
  %v2047 = vsel %vm1999, %v2045, %v2046
  %v2048 = vrot.slane %v2046, 2
  %v2049 = vrot.slane %v1316, 7
  %v2050 = vsel %vm1999, %v2048, %v2049
  %v2051 = vrot.slane %v2049, 2
  %v2052 = vrot.slane %v1318, 7
  %v2053 = vsel %vm1999, %v2051, %v2052
  %v2054 = vrot.slane %v2052, 2
  %v2055 = vrot.slane %v1326, 7
  %v2056 = vsel %vm1999, %v2054, %v2055
  %v2057 = vrot.slane %v1334, 7
  %v2058 = vrot.slane %v2057, 2
  %v2059 = vrot.slane %v1333, 7
  %v2060 = vsel %vm1999, %v2058, %v2059
  %v2061 = vrot.slane %v2059, 2
  %v2062 = vrot.slane %v1335, 7
  %v2063 = vsel %vm1999, %v2061, %v2062
  %v2064 = vrot.slane %v2062, 2
  %v2065 = vrot.slane %v1343, 7
  %v2066 = vsel %vm1999, %v2064, %v2065
  %v2067 = vrot.slane %v2065, 2
  %v2068 = vrot.slane %v1351, 7
  %v2069 = vsel %vm1999, %v2067, %v2068
  %v2070 = vrot.slane %v2068, 2
  %v2071 = vrot.slane %v1350, 7
  %v2072 = vsel %vm1999, %v2070, %v2071
  %v2073 = vrot.slane %v2071, 2
  %v2074 = vrot.slane %v1352, 7
  %v2075 = vsel %vm1999, %v2073, %v2074
  %v2076 = vrot.slane %v1360, 7
  %v2077 = vrot.slane %v2076, 2
  %v2078 = vrot.slane %v1368, 7
  %v2079 = vsel %vm1999, %v2077, %v2078
  %v2080 = vrot.slane %v2078, 2
  %v2081 = vrot.slane %v1367, 7
  %v2082 = vsel %vm1999, %v2080, %v2081
  %v2083 = vrot.slane %v2081, 2
  %v2084 = vrot.slane %v1369, 7
  %v2085 = vsel %vm1999, %v2083, %v2084
  %v2086 = vrot.slane %v2084, 2
  %v2087 = vrot.slane %v1377, 7
  %v2088 = vsel %vm1999, %v2086, %v2087
  %v2089 = vrot.slane %v2087, 2
  %v2090 = vrot.slane %v1385, 7
  %v2091 = vsel %vm1999, %v2089, %v2090
  %v2092 = vrot.slane %v2090, 2
  %v2093 = vrot.slane %v1384, 7
  %v2094 = vsel %vm1999, %v2092, %v2093
  %v2095 = vrot.slane %v1386, 7
  %v2096 = vrot.slane %v2095, 2
  %v2097 = vrot.slane %v1394, 7
  %v2098 = vsel %vm1999, %v2096, %v2097
  %v2099 = vrot.slane %v2097, 2
  %v2100 = vrot.slane %v1402, 7
  %v2101 = vsel %vm1999, %v2099, %v2100
  %v2102 = vrot.slane %v2100, 2
  %v2103 = vrot.slane %v1401, 7
  %v2104 = vsel %vm1999, %v2102, %v2103
  %v2105 = vrot.slane %v2103, 2
  %v2106 = vrot.slane %v1403, 7
  %v2107 = vsel %vm1999, %v2105, %v2106
  %v2108 = vrot.slane %v2106, 2
  %v2109 = vrot.slane %v1411, 7
  %v2110 = vsel %vm1999, %v2108, %v2109
  %v2111 = vrot.slane %v2109, 2
  %v2112 = vrot.slane %v1419, 7
  %v2113 = vsel %vm1999, %v2111, %v2112
  %v2114 = vrot.slane %v1418, 7
  %v2115 = vrot.slane %v2114, 2
  %v2116 = vrot.slane %v1420, 7
  %v2117 = vsel %vm1999, %v2115, %v2116
  %v2118 = vrot.slane %v2116, 2
  %v2119 = vrot.slane %v1428, 7
  %v2120 = vsel %vm1999, %v2118, %v2119
  %v2121 = vrot.slane %v2119, 2
  %v2122 = vrot.slane %v1436, 7
  %v2123 = vsel %vm1999, %v2121, %v2122
  %v2124 = vrot.slane %v2122, 2
  %v2125 = vrot.slane %v1435, 7
  %v2126 = vsel %vm1999, %v2124, %v2125
  %v2127 = vrot.slane %v2125, 2
  %v2128 = vrot.slane %v1437, 7
  %v2129 = vsel %vm1999, %v2127, %v2128
  %v2130 = vrot.slane %v2128, 2
  %v2131 = vrot.slane %v1445, 7
  %v2132 = vsel %vm1999, %v2130, %v2131
  %v2133 = vrot.slane %v1453, 7
  %v2134 = vrot.slane %v2133, 2
  %v2135 = vrot.slane %v1452, 7
  %v2136 = vsel %vm1999, %v2134, %v2135
  %v2137 = vrot.slane %v2135, 2
  %v2138 = vrot.slane %v1454, 7
  %v2139 = vsel %vm1999, %v2137, %v2138
  %v2140 = vrot.slane %v2138, 2
  %v2141 = vrot.slane %v1462, 7
  %v2142 = vsel %vm1999, %v2140, %v2141
  %v2143 = vrot.slane %v2141, 2
  %v2144 = vrot.slane %v1470, 7
  %v2145 = vsel %vm1999, %v2143, %v2144
  %v2146 = vrot.slane %v2144, 2
  %v2147 = vrot.slane %v1469, 7
  %v2148 = vsel %vm1999, %v2146, %v2147
  %v2149 = vrot.slane %v2147, 2
  %v2150 = vrot.slane %v1471, 7
  %v2151 = vsel %vm1999, %v2149, %v2150
  %v2152 = vrot.slane %v1479, 7
  %v2153 = vrot.slane %v2152, 2
  %v2154 = vrot.slane %v1487, 7
  %v2155 = vsel %vm1999, %v2153, %v2154
  %v2156 = vrot.slane %v2154, 2
  %v2157 = vrot.slane %v1486, 7
  %v2158 = vsel %vm1999, %v2156, %v2157
  %v2159 = vrot.slane %v2157, 2
  %v2160 = vrot.slane %v1488, 7
  %v2161 = vsel %vm1999, %v2159, %v2160
  %v2162 = vrot.slane %v2160, 2
  %v2163 = vrot.slane %v1496, 7
  %v2164 = vsel %vm1999, %v2162, %v2163
  %v2165 = vrot.slane %v2163, 2
  %v2166 = vrot.slane %v1504, 7
  %v2167 = vsel %vm1999, %v2165, %v2166
  %v2168 = vrot.slane %v2166, 2
  %v2169 = vrot.slane %v1503, 7
  %v2170 = vsel %vm1999, %v2168, %v2169
  %v2171 = vrot.slane %v1505, 7
  %v2172 = vrot.slane %v2171, 2
  %v2173 = vrot.slane %v1513, 7
  %v2174 = vsel %vm1999, %v2172, %v2173
  %v2175 = vrot.slane %v2173, 2
  %v2176 = vrot.slane %v1521, 7
  %v2177 = vsel %vm1999, %v2175, %v2176
  %v2178 = vrot.slane %v2176, 2
  %v2179 = vrot.slane %v1520, 7
  %v2180 = vsel %vm1999, %v2178, %v2179
  %v2181 = vrot.slane %v2179, 2
  %v2182 = vrot.slane %v1522, 7
  %v2183 = vsel %vm1999, %v2181, %v2182
  %v2184 = vrot.slane %v2182, 2
  %v2185 = vrot.slane %v1530, 7
  %v2186 = vsel %vm1999, %v2184, %v2185
  %v2187 = vrot.slane %v2185, 2
  %v2188 = vrot.slane %v1538, 7
  %v2189 = vsel %vm1999, %v2187, %v2188
  %v2190 = vrot.slane %v1537, 7
  %v2191 = vrot.slane %v2190, 2
  %v2192 = vrot.slane %v1539, 7
  %v2193 = vsel %vm1999, %v2191, %v2192
  %v2194 = vrot.slane %v2192, 2
  %v2195 = vrot.slane %v1547, 7
  %v2196 = vsel %vm1999, %v2194, %v2195
  %v2197 = vrot.slane %v2195, 2
  %v2198 = vrot.slane %v1555, 7
  %v2199 = vsel %vm1999, %v2197, %v2198
  %v2200 = vrot.slane %v2198, 2
  %v2201 = vrot.slane %v1554, 7
  %v2202 = vsel %vm1999, %v2200, %v2201
  %v2203 = vrot.slane %v2201, 2
  %v2204 = vrot.slane %v1556, 7
  %v2205 = vsel %vm1999, %v2203, %v2204
  %v2206 = vrot.slane %v2204, 2
  %v2207 = vrot.slane %v1564, 7
  %v2208 = vsel %vm1999, %v2206, %v2207
  %v2209 = vrot.slane %v1572, 7
  %v2210 = vrot.slane %v2209, 2
  %v2211 = vrot.slane %v1571, 7
  %v2212 = vsel %vm1999, %v2210, %v2211
  %v2213 = vrot.slane %v2211, 2
  %v2214 = vrot.slane %v1573, 7
  %v2215 = vsel %vm1999, %v2213, %v2214
  %v2216 = vrot.slane %v2214, 2
  %v2217 = vrot.slane %v1581, 7
  %v2218 = vsel %vm1999, %v2216, %v2217
  %v2219 = vrot.slane %v2217, 2
  %v2220 = vrot.slane %v1589, 7
  %v2221 = vsel %vm1999, %v2219, %v2220
  %v2222 = vrot.slane %v2220, 2
  %v2223 = vrot.slane %v1588, 7
  %v2224 = vsel %vm1999, %v2222, %v2223
  %v2225 = vrot.slane %v2223, 2
  %v2226 = vrot.slane %v1590, 7
  %v2227 = vsel %vm1999, %v2225, %v2226
  %v2228 = vcombine.low %v2003, %v2006
  %v2229 = vcombine.low %v2009, %v2012
  %v2231 = vunpack.c.l.s4 1983009808
  %v2232 = vunpack.c.0.s8 %v2231
  %v2233 = vlaneseq
  %v2234 = vshrl.u32 %v2233, 7
  %v2235 = vsub.s32 %v2232, %v2234
  %v2236 = vrot.slane %v2228, %v2235
  %v2238 = vunpack.c.l.s4 1983009808
  %v2239 = vunpack.c.0.s8 %v2238
  %v2240 = vlaneseq
  %v2241 = vshrl.u32 %v2240, 7
  %v2242 = vsub.s32 %v2239, %v2241
  %v2243 = vrot.slane %v2229, %v2242
  %v2244 = vcombine.low %v2236, %v2243
  %v2245 = vcombine.low %v2015, %v2018
  %v2246 = vcombine.low %v2022, %v2025
  %v2248 = vunpack.c.l.s4 1983009808
  %v2249 = vunpack.c.0.s8 %v2248
  %v2250 = vlaneseq
  %v2251 = vshrl.u32 %v2250, 7
  %v2252 = vsub.s32 %v2249, %v2251
  %v2253 = vrot.slane %v2245, %v2252
  %v2255 = vunpack.c.l.s4 1983009808
  %v2256 = vunpack.c.0.s8 %v2255
  %v2257 = vlaneseq
  %v2258 = vshrl.u32 %v2257, 7
  %v2259 = vsub.s32 %v2256, %v2258
  %v2260 = vrot.slane %v2246, %v2259
  %v2261 = vcombine.low %v2253, %v2260
  %v2262 = vcombine.low %v2028, %v2031
  %v2263 = vcombine.low %v2034, %v2037
  %v2265 = vunpack.c.l.s4 1983009808
  %v2266 = vunpack.c.0.s8 %v2265
  %v2267 = vlaneseq
  %v2268 = vshrl.u32 %v2267, 7
  %v2269 = vsub.s32 %v2266, %v2268
  %v2270 = vrot.slane %v2262, %v2269
  %v2272 = vunpack.c.l.s4 1983009808
  %v2273 = vunpack.c.0.s8 %v2272
  %v2274 = vlaneseq
  %v2275 = vshrl.u32 %v2274, 7
  %v2276 = vsub.s32 %v2273, %v2275
  %v2277 = vrot.slane %v2263, %v2276
  %v2278 = vcombine.low %v2270, %v2277
  %v2279 = vcombine.low %v2041, %v2044
  %v2280 = vcombine.low %v2047, %v2050
  %v2282 = vunpack.c.l.s4 1983009808
  %v2283 = vunpack.c.0.s8 %v2282
  %v2284 = vlaneseq
  %v2285 = vshrl.u32 %v2284, 7
  %v2286 = vsub.s32 %v2283, %v2285
  %v2287 = vrot.slane %v2279, %v2286
  %v2289 = vunpack.c.l.s4 1983009808
  %v2290 = vunpack.c.0.s8 %v2289
  %v2291 = vlaneseq
  %v2292 = vshrl.u32 %v2291, 7
  %v2293 = vsub.s32 %v2290, %v2292
  %v2294 = vrot.slane %v2280, %v2293
  %v2295 = vcombine.low %v2287, %v2294
  %v2296 = vcombine.low %v2053, %v2056
  %v2297 = vcombine.low %v2060, %v2063
  %v2299 = vunpack.c.l.s4 1983009808
  %v2300 = vunpack.c.0.s8 %v2299
  %v2301 = vlaneseq
  %v2302 = vshrl.u32 %v2301, 7
  %v2303 = vsub.s32 %v2300, %v2302
  %v2304 = vrot.slane %v2296, %v2303
  %v2306 = vunpack.c.l.s4 1983009808
  %v2307 = vunpack.c.0.s8 %v2306
  %v2308 = vlaneseq
  %v2309 = vshrl.u32 %v2308, 7
  %v2310 = vsub.s32 %v2307, %v2309
  %v2311 = vrot.slane %v2297, %v2310
  %v2312 = vcombine.low %v2304, %v2311
  %v2313 = vcombine.low %v2066, %v2069
  %v2314 = vcombine.low %v2072, %v2075
  %v2316 = vunpack.c.l.s4 1983009808
  %v2317 = vunpack.c.0.s8 %v2316
  %v2318 = vlaneseq
  %v2319 = vshrl.u32 %v2318, 7
  %v2320 = vsub.s32 %v2317, %v2319
  %v2321 = vrot.slane %v2313, %v2320
  %v2323 = vunpack.c.l.s4 1983009808
  %v2324 = vunpack.c.0.s8 %v2323
  %v2325 = vlaneseq
  %v2326 = vshrl.u32 %v2325, 7
  %v2327 = vsub.s32 %v2324, %v2326
  %v2328 = vrot.slane %v2314, %v2327
  %v2329 = vcombine.low %v2321, %v2328
  %v2330 = vcombine.low %v2079, %v2082
  %v2331 = vcombine.low %v2085, %v2088
  %v2333 = vunpack.c.l.s4 1983009808
  %v2334 = vunpack.c.0.s8 %v2333
  %v2335 = vlaneseq
  %v2336 = vshrl.u32 %v2335, 7
  %v2337 = vsub.s32 %v2334, %v2336
  %v2338 = vrot.slane %v2330, %v2337
  %v2340 = vunpack.c.l.s4 1983009808
  %v2341 = vunpack.c.0.s8 %v2340
  %v2342 = vlaneseq
  %v2343 = vshrl.u32 %v2342, 7
  %v2344 = vsub.s32 %v2341, %v2343
  %v2345 = vrot.slane %v2331, %v2344
  %v2346 = vcombine.low %v2338, %v2345
  %v2347 = vcombine.low %v2091, %v2094
  %v2348 = vcombine.low %v2098, %v2101
  %v2350 = vunpack.c.l.s4 1983009808
  %v2351 = vunpack.c.0.s8 %v2350
  %v2352 = vlaneseq
  %v2353 = vshrl.u32 %v2352, 7
  %v2354 = vsub.s32 %v2351, %v2353
  %v2355 = vrot.slane %v2347, %v2354
  %v2357 = vunpack.c.l.s4 1983009808
  %v2358 = vunpack.c.0.s8 %v2357
  %v2359 = vlaneseq
  %v2360 = vshrl.u32 %v2359, 7
  %v2361 = vsub.s32 %v2358, %v2360
  %v2362 = vrot.slane %v2348, %v2361
  %v2363 = vcombine.low %v2355, %v2362
  %v2364 = vcombine.low %v2104, %v2107
  %v2365 = vcombine.low %v2110, %v2113
  %v2367 = vunpack.c.l.s4 1983009808
  %v2368 = vunpack.c.0.s8 %v2367
  %v2369 = vlaneseq
  %v2370 = vshrl.u32 %v2369, 7
  %v2371 = vsub.s32 %v2368, %v2370
  %v2372 = vrot.slane %v2364, %v2371
  %v2374 = vunpack.c.l.s4 1983009808
  %v2375 = vunpack.c.0.s8 %v2374
  %v2376 = vlaneseq
  %v2377 = vshrl.u32 %v2376, 7
  %v2378 = vsub.s32 %v2375, %v2377
  %v2379 = vrot.slane %v2365, %v2378
  %v2380 = vcombine.low %v2372, %v2379
  %v2381 = vcombine.low %v2117, %v2120
  %v2382 = vcombine.low %v2123, %v2126
  %v2384 = vunpack.c.l.s4 1983009808
  %v2385 = vunpack.c.0.s8 %v2384
  %v2386 = vlaneseq
  %v2387 = vshrl.u32 %v2386, 7
  %v2388 = vsub.s32 %v2385, %v2387
  %v2389 = vrot.slane %v2381, %v2388
  %v2391 = vunpack.c.l.s4 1983009808
  %v2392 = vunpack.c.0.s8 %v2391
  %v2393 = vlaneseq
  %v2394 = vshrl.u32 %v2393, 7
  %v2395 = vsub.s32 %v2392, %v2394
  %v2396 = vrot.slane %v2382, %v2395
  %v2397 = vcombine.low %v2389, %v2396
  %v2398 = vcombine.low %v2129, %v2132
  %v2399 = vcombine.low %v2136, %v2139
  %v2401 = vunpack.c.l.s4 1983009808
  %v2402 = vunpack.c.0.s8 %v2401
  %v2403 = vlaneseq
  %v2404 = vshrl.u32 %v2403, 7
  %v2405 = vsub.s32 %v2402, %v2404
  %v2406 = vrot.slane %v2398, %v2405
  %v2408 = vunpack.c.l.s4 1983009808
  %v2409 = vunpack.c.0.s8 %v2408
  %v2410 = vlaneseq
  %v2411 = vshrl.u32 %v2410, 7
  %v2412 = vsub.s32 %v2409, %v2411
  %v2413 = vrot.slane %v2399, %v2412
  %v2414 = vcombine.low %v2406, %v2413
  %v2415 = vcombine.low %v2142, %v2145
  %v2416 = vcombine.low %v2148, %v2151
  %v2418 = vunpack.c.l.s4 1983009808
  %v2419 = vunpack.c.0.s8 %v2418
  %v2420 = vlaneseq
  %v2421 = vshrl.u32 %v2420, 7
  %v2422 = vsub.s32 %v2419, %v2421
  %v2423 = vrot.slane %v2415, %v2422
  %v2425 = vunpack.c.l.s4 1983009808
  %v2426 = vunpack.c.0.s8 %v2425
  %v2427 = vlaneseq
  %v2428 = vshrl.u32 %v2427, 7
  %v2429 = vsub.s32 %v2426, %v2428
  %v2430 = vrot.slane %v2416, %v2429
  %v2431 = vcombine.low %v2423, %v2430
  %v2432 = vcombine.low %v2155, %v2158
  %v2433 = vcombine.low %v2161, %v2164
  %v2435 = vunpack.c.l.s4 1983009808
  %v2436 = vunpack.c.0.s8 %v2435
  %v2437 = vlaneseq
  %v2438 = vshrl.u32 %v2437, 7
  %v2439 = vsub.s32 %v2436, %v2438
  %v2440 = vrot.slane %v2432, %v2439
  %v2442 = vunpack.c.l.s4 1983009808
  %v2443 = vunpack.c.0.s8 %v2442
  %v2444 = vlaneseq
  %v2445 = vshrl.u32 %v2444, 7
  %v2446 = vsub.s32 %v2443, %v2445
  %v2447 = vrot.slane %v2433, %v2446
  %v2448 = vcombine.low %v2440, %v2447
  %v2449 = vcombine.low %v2167, %v2170
  %v2450 = vcombine.low %v2174, %v2177
  %v2452 = vunpack.c.l.s4 1983009808
  %v2453 = vunpack.c.0.s8 %v2452
  %v2454 = vlaneseq
  %v2455 = vshrl.u32 %v2454, 7
  %v2456 = vsub.s32 %v2453, %v2455
  %v2457 = vrot.slane %v2449, %v2456
  %v2459 = vunpack.c.l.s4 1983009808
  %v2460 = vunpack.c.0.s8 %v2459
  %v2461 = vlaneseq
  %v2462 = vshrl.u32 %v2461, 7
  %v2463 = vsub.s32 %v2460, %v2462
  %v2464 = vrot.slane %v2450, %v2463
  %v2465 = vcombine.low %v2457, %v2464
  %v2466 = vcombine.low %v2180, %v2183
  %v2467 = vcombine.low %v2186, %v2189
  %v2469 = vunpack.c.l.s4 1983009808
  %v2470 = vunpack.c.0.s8 %v2469
  %v2471 = vlaneseq
  %v2472 = vshrl.u32 %v2471, 7
  %v2473 = vsub.s32 %v2470, %v2472
  %v2474 = vrot.slane %v2466, %v2473
  %v2476 = vunpack.c.l.s4 1983009808
  %v2477 = vunpack.c.0.s8 %v2476
  %v2478 = vlaneseq
  %v2479 = vshrl.u32 %v2478, 7
  %v2480 = vsub.s32 %v2477, %v2479
  %v2481 = vrot.slane %v2467, %v2480
  %v2482 = vcombine.low %v2474, %v2481
  %v2483 = vcombine.low %v2193, %v2196
  %v2484 = vcombine.low %v2199, %v2202
  %v2486 = vunpack.c.l.s4 1983009808
  %v2487 = vunpack.c.0.s8 %v2486
  %v2488 = vlaneseq
  %v2489 = vshrl.u32 %v2488, 7
  %v2490 = vsub.s32 %v2487, %v2489
  %v2491 = vrot.slane %v2483, %v2490
  %v2493 = vunpack.c.l.s4 1983009808
  %v2494 = vunpack.c.0.s8 %v2493
  %v2495 = vlaneseq
  %v2496 = vshrl.u32 %v2495, 7
  %v2497 = vsub.s32 %v2494, %v2496
  %v2498 = vrot.slane %v2484, %v2497
  %v2499 = vcombine.low %v2491, %v2498
  %v2500 = vcombine.low %v2205, %v2208
  %v2501 = vcombine.low %v2212, %v2215
  %v2503 = vunpack.c.l.s4 1983009808
  %v2504 = vunpack.c.0.s8 %v2503
  %v2505 = vlaneseq
  %v2506 = vshrl.u32 %v2505, 7
  %v2507 = vsub.s32 %v2504, %v2506
  %v2508 = vrot.slane %v2500, %v2507
  %v2510 = vunpack.c.l.s4 1983009808
  %v2511 = vunpack.c.0.s8 %v2510
  %v2512 = vlaneseq
  %v2513 = vshrl.u32 %v2512, 7
  %v2514 = vsub.s32 %v2511, %v2513
  %v2515 = vrot.slane %v2501, %v2514
  %v2516 = vcombine.low %v2508, %v2515
  %v2517 = vcombine.low %v2218, %v2221
  %v2518 = vcombine.low %v2224, %v2227
  %v2520 = vunpack.c.l.s4 1983009808
  %v2521 = vunpack.c.0.s8 %v2520
  %v2522 = vlaneseq
  %v2523 = vshrl.u32 %v2522, 7
  %v2524 = vsub.s32 %v2521, %v2523
  %v2525 = vrot.slane %v2517, %v2524
  %v2527 = vunpack.c.l.s4 1983009808
  %v2528 = vunpack.c.0.s8 %v2527
  %v2529 = vlaneseq
  %v2530 = vshrl.u32 %v2529, 7
  %v2531 = vsub.s32 %v2528, %v2530
  %v2532 = vrot.slane %v2518, %v2531
  %v2533 = vcombine.low %v2525, %v2532
  %v2552 = vpack.c.bf16 %v2261, %v2244
  %v2553 = vpack.c.bf16 %v2295, %v2278
  %v2554 = vpack.c.bf16 %v2329, %v2312
  %v2555 = vpack.c.bf16 %v2363, %v2346
  %v2556 = vpack.c.bf16 %v2397, %v2380
  %v2557 = vpack.c.bf16 %v2431, %v2414
  %v2558 = vpack.c.bf16 %v2465, %v2448
  %v2559 = vpack.c.bf16 %v2499, %v2482
  %v2560 = vpack.c.bf16 %v2533, %v2516
  %2570 = vrot.lane.b32.xlu0 %v2552, 16
  %v2571 = vpop.permute.xlu0 %2570
  %2572 = vrot.lane.b32.xlu0 %v2553, 16
  %v2573 = vpop.permute.xlu0 %2572
  %2574 = vrot.lane.b32.xlu0 %v2554, 16
  %v2575 = vpop.permute.xlu0 %2574
  %2576 = vrot.lane.b32.xlu0 %v2555, 16
  %v2577 = vpop.permute.xlu0 %2576
  %2578 = vrot.lane.b32.xlu0 %v2556, 16
  %v2579 = vpop.permute.xlu0 %2578
  %2580 = vrot.lane.b32.xlu0 %v2557, 16
  %v2581 = vpop.permute.xlu0 %2580
  %2582 = vrot.lane.b32.xlu0 %v2558, 16
  %v2583 = vpop.permute.xlu0 %2582
  %2584 = vrot.lane.b32.xlu0 %v2559, 16
  %v2585 = vpop.permute.xlu0 %2584
  %2586 = vrot.lane.b32.xlu0 %v2560, 16
  %v2587 = vpop.permute.xlu0 %2586
  %vm2597 = vcmask 261248
  %2598 = vst.msk [vmem:[#allocation3] sm:$0xff] %vm2597, %v2571
  %2599 = vst.msk [vmem:[#allocation3 + $0x10] sm:$0xff] %vm2597, %v2573
  %2600 = vst.msk [vmem:[#allocation3 + $0x20] sm:$0xff] %vm2597, %v2575
  %2601 = vst.msk [vmem:[#allocation3 + $0x30] sm:$0xff] %vm2597, %v2577
  %2602 = vst.msk [vmem:[#allocation3 + $0x40] sm:$0xff] %vm2597, %v2579
  %2603 = vst.msk [vmem:[#allocation3 + $0x50] sm:$0xff] %vm2597, %v2581
  %2604 = vst.msk [vmem:[#allocation3 + $0x60] sm:$0xff] %vm2597, %v2583
  %2605 = vst.msk [vmem:[#allocation3 + $0x70] sm:$0xff] %vm2597, %v2585
  %2606 = vst.msk [vmem:[#allocation3 + $0x80] sm:$0xff] %vm2597, %v2587
  %v2607 = vcombine.low %v1249, %v1248
  %v2608 = vcombine.low %v1250, %v1258
  %v2610 = vunpack.c.l.s4 1983009808
  %v2611 = vunpack.c.0.s8 %v2610
  %v2612 = vlaneseq
  %v2613 = vshrl.u32 %v2612, 7
  %v2614 = vsub.s32 %v2611, %v2613
  %v2615 = vrot.slane %v2607, %v2614
  %v2617 = vunpack.c.l.s4 1983009808
  %v2618 = vunpack.c.0.s8 %v2617
  %v2619 = vlaneseq
  %v2620 = vshrl.u32 %v2619, 7
  %v2621 = vsub.s32 %v2618, %v2620
  %v2622 = vrot.slane %v2608, %v2621
  %v2623 = vcombine.low %v2615, %v2622
  %v2624 = vcombine.low %v1266, %v1265
  %v2625 = vcombine.low %v1275, %v1283
  %v2627 = vunpack.c.l.s4 1983009808
  %v2628 = vunpack.c.0.s8 %v2627
  %v2629 = vlaneseq
  %v2630 = vshrl.u32 %v2629, 7
  %v2631 = vsub.s32 %v2628, %v2630
  %v2632 = vrot.slane %v2624, %v2631
  %v2634 = vunpack.c.l.s4 1983009808
  %v2635 = vunpack.c.0.s8 %v2634
  %v2636 = vlaneseq
  %v2637 = vshrl.u32 %v2636, 7
  %v2638 = vsub.s32 %v2635, %v2637
  %v2639 = vrot.slane %v2625, %v2638
  %v2640 = vcombine.low %v2632, %v2639
  %v2641 = vcombine.low %v1282, %v1284
  %v2642 = vcombine.low %v1292, %v1300
  %v2644 = vunpack.c.l.s4 1983009808
  %v2645 = vunpack.c.0.s8 %v2644
  %v2646 = vlaneseq
  %v2647 = vshrl.u32 %v2646, 7
  %v2648 = vsub.s32 %v2645, %v2647
  %v2649 = vrot.slane %v2641, %v2648
  %v2651 = vunpack.c.l.s4 1983009808
  %v2652 = vunpack.c.0.s8 %v2651
  %v2653 = vlaneseq
  %v2654 = vshrl.u32 %v2653, 7
  %v2655 = vsub.s32 %v2652, %v2654
  %v2656 = vrot.slane %v2642, %v2655
  %v2657 = vcombine.low %v2649, %v2656
  %v2658 = vcombine.low %v1301, %v1309
  %v2659 = vcombine.low %v1317, %v1316
  %v2661 = vunpack.c.l.s4 1983009808
  %v2662 = vunpack.c.0.s8 %v2661
  %v2663 = vlaneseq
  %v2664 = vshrl.u32 %v2663, 7
  %v2665 = vsub.s32 %v2662, %v2664
  %v2666 = vrot.slane %v2658, %v2665
  %v2668 = vunpack.c.l.s4 1983009808
  %v2669 = vunpack.c.0.s8 %v2668
  %v2670 = vlaneseq
  %v2671 = vshrl.u32 %v2670, 7
  %v2672 = vsub.s32 %v2669, %v2671
  %v2673 = vrot.slane %v2659, %v2672
  %v2674 = vcombine.low %v2666, %v2673
  %v2675 = vcombine.low %v1318, %v1326
  %v2676 = vcombine.low %v1333, %v1335
  %v2678 = vunpack.c.l.s4 1983009808
  %v2679 = vunpack.c.0.s8 %v2678
  %v2680 = vlaneseq
  %v2681 = vshrl.u32 %v2680, 7
  %v2682 = vsub.s32 %v2679, %v2681
  %v2683 = vrot.slane %v2675, %v2682
  %v2685 = vunpack.c.l.s4 1983009808
  %v2686 = vunpack.c.0.s8 %v2685
  %v2687 = vlaneseq
  %v2688 = vshrl.u32 %v2687, 7
  %v2689 = vsub.s32 %v2686, %v2688
  %v2690 = vrot.slane %v2676, %v2689
  %v2691 = vcombine.low %v2683, %v2690
  %v2692 = vcombine.low %v1343, %v1351
  %v2693 = vcombine.low %v1350, %v1352
  %v2695 = vunpack.c.l.s4 1983009808
  %v2696 = vunpack.c.0.s8 %v2695
  %v2697 = vlaneseq
  %v2698 = vshrl.u32 %v2697, 7
  %v2699 = vsub.s32 %v2696, %v2698
  %v2700 = vrot.slane %v2692, %v2699
  %v2702 = vunpack.c.l.s4 1983009808
  %v2703 = vunpack.c.0.s8 %v2702
  %v2704 = vlaneseq
  %v2705 = vshrl.u32 %v2704, 7
  %v2706 = vsub.s32 %v2703, %v2705
  %v2707 = vrot.slane %v2693, %v2706
  %v2708 = vcombine.low %v2700, %v2707
  %v2709 = vcombine.low %v1368, %v1367
  %v2710 = vcombine.low %v1369, %v1377
  %v2712 = vunpack.c.l.s4 1983009808
  %v2713 = vunpack.c.0.s8 %v2712
  %v2714 = vlaneseq
  %v2715 = vshrl.u32 %v2714, 7
  %v2716 = vsub.s32 %v2713, %v2715
  %v2717 = vrot.slane %v2709, %v2716
  %v2719 = vunpack.c.l.s4 1983009808
  %v2720 = vunpack.c.0.s8 %v2719
  %v2721 = vlaneseq
  %v2722 = vshrl.u32 %v2721, 7
  %v2723 = vsub.s32 %v2720, %v2722
  %v2724 = vrot.slane %v2710, %v2723
  %v2725 = vcombine.low %v2717, %v2724
  %v2726 = vcombine.low %v1385, %v1384
  %v2727 = vcombine.low %v1394, %v1402
  %v2729 = vunpack.c.l.s4 1983009808
  %v2730 = vunpack.c.0.s8 %v2729
  %v2731 = vlaneseq
  %v2732 = vshrl.u32 %v2731, 7
  %v2733 = vsub.s32 %v2730, %v2732
  %v2734 = vrot.slane %v2726, %v2733
  %v2736 = vunpack.c.l.s4 1983009808
  %v2737 = vunpack.c.0.s8 %v2736
  %v2738 = vlaneseq
  %v2739 = vshrl.u32 %v2738, 7
  %v2740 = vsub.s32 %v2737, %v2739
  %v2741 = vrot.slane %v2727, %v2740
  %v2742 = vcombine.low %v2734, %v2741
  %v2743 = vcombine.low %v1401, %v1403
  %v2744 = vcombine.low %v1411, %v1419
  %v2746 = vunpack.c.l.s4 1983009808
  %v2747 = vunpack.c.0.s8 %v2746
  %v2748 = vlaneseq
  %v2749 = vshrl.u32 %v2748, 7
  %v2750 = vsub.s32 %v2747, %v2749
  %v2751 = vrot.slane %v2743, %v2750
  %v2753 = vunpack.c.l.s4 1983009808
  %v2754 = vunpack.c.0.s8 %v2753
  %v2755 = vlaneseq
  %v2756 = vshrl.u32 %v2755, 7
  %v2757 = vsub.s32 %v2754, %v2756
  %v2758 = vrot.slane %v2744, %v2757
  %v2759 = vcombine.low %v2751, %v2758
  %v2760 = vcombine.low %v1420, %v1428
  %v2761 = vcombine.low %v1436, %v1435
  %v2763 = vunpack.c.l.s4 1983009808
  %v2764 = vunpack.c.0.s8 %v2763
  %v2765 = vlaneseq
  %v2766 = vshrl.u32 %v2765, 7
  %v2767 = vsub.s32 %v2764, %v2766
  %v2768 = vrot.slane %v2760, %v2767
  %v2770 = vunpack.c.l.s4 1983009808
  %v2771 = vunpack.c.0.s8 %v2770
  %v2772 = vlaneseq
  %v2773 = vshrl.u32 %v2772, 7
  %v2774 = vsub.s32 %v2771, %v2773
  %v2775 = vrot.slane %v2761, %v2774
  %v2776 = vcombine.low %v2768, %v2775
  %v2777 = vcombine.low %v1437, %v1445
  %v2778 = vcombine.low %v1452, %v1454
  %v2780 = vunpack.c.l.s4 1983009808
  %v2781 = vunpack.c.0.s8 %v2780
  %v2782 = vlaneseq
  %v2783 = vshrl.u32 %v2782, 7
  %v2784 = vsub.s32 %v2781, %v2783
  %v2785 = vrot.slane %v2777, %v2784
  %v2787 = vunpack.c.l.s4 1983009808
  %v2788 = vunpack.c.0.s8 %v2787
  %v2789 = vlaneseq
  %v2790 = vshrl.u32 %v2789, 7
  %v2791 = vsub.s32 %v2788, %v2790
  %v2792 = vrot.slane %v2778, %v2791
  %v2793 = vcombine.low %v2785, %v2792
  %v2794 = vcombine.low %v1462, %v1470
  %v2795 = vcombine.low %v1469, %v1471
  %v2797 = vunpack.c.l.s4 1983009808
  %v2798 = vunpack.c.0.s8 %v2797
  %v2799 = vlaneseq
  %v2800 = vshrl.u32 %v2799, 7
  %v2801 = vsub.s32 %v2798, %v2800
  %v2802 = vrot.slane %v2794, %v2801
  %v2804 = vunpack.c.l.s4 1983009808
  %v2805 = vunpack.c.0.s8 %v2804
  %v2806 = vlaneseq
  %v2807 = vshrl.u32 %v2806, 7
  %v2808 = vsub.s32 %v2805, %v2807
  %v2809 = vrot.slane %v2795, %v2808
  %v2810 = vcombine.low %v2802, %v2809
  %v2811 = vcombine.low %v1487, %v1486
  %v2812 = vcombine.low %v1488, %v1496
  %v2814 = vunpack.c.l.s4 1983009808
  %v2815 = vunpack.c.0.s8 %v2814
  %v2816 = vlaneseq
  %v2817 = vshrl.u32 %v2816, 7
  %v2818 = vsub.s32 %v2815, %v2817
  %v2819 = vrot.slane %v2811, %v2818
  %v2821 = vunpack.c.l.s4 1983009808
  %v2822 = vunpack.c.0.s8 %v2821
  %v2823 = vlaneseq
  %v2824 = vshrl.u32 %v2823, 7
  %v2825 = vsub.s32 %v2822, %v2824
  %v2826 = vrot.slane %v2812, %v2825
  %v2827 = vcombine.low %v2819, %v2826
  %v2828 = vcombine.low %v1504, %v1503
  %v2829 = vcombine.low %v1513, %v1521
  %v2831 = vunpack.c.l.s4 1983009808
  %v2832 = vunpack.c.0.s8 %v2831
  %v2833 = vlaneseq
  %v2834 = vshrl.u32 %v2833, 7
  %v2835 = vsub.s32 %v2832, %v2834
  %v2836 = vrot.slane %v2828, %v2835
  %v2838 = vunpack.c.l.s4 1983009808
  %v2839 = vunpack.c.0.s8 %v2838
  %v2840 = vlaneseq
  %v2841 = vshrl.u32 %v2840, 7
  %v2842 = vsub.s32 %v2839, %v2841
  %v2843 = vrot.slane %v2829, %v2842
  %v2844 = vcombine.low %v2836, %v2843
  %v2845 = vcombine.low %v1520, %v1522
  %v2846 = vcombine.low %v1530, %v1538
  %v2848 = vunpack.c.l.s4 1983009808
  %v2849 = vunpack.c.0.s8 %v2848
  %v2850 = vlaneseq
  %v2851 = vshrl.u32 %v2850, 7
  %v2852 = vsub.s32 %v2849, %v2851
  %v2853 = vrot.slane %v2845, %v2852
  %v2855 = vunpack.c.l.s4 1983009808
  %v2856 = vunpack.c.0.s8 %v2855
  %v2857 = vlaneseq
  %v2858 = vshrl.u32 %v2857, 7
  %v2859 = vsub.s32 %v2856, %v2858
  %v2860 = vrot.slane %v2846, %v2859
  %v2861 = vcombine.low %v2853, %v2860
  %v2862 = vcombine.low %v1539, %v1547
  %v2863 = vcombine.low %v1555, %v1554
  %v2865 = vunpack.c.l.s4 1983009808
  %v2866 = vunpack.c.0.s8 %v2865
  %v2867 = vlaneseq
  %v2868 = vshrl.u32 %v2867, 7
  %v2869 = vsub.s32 %v2866, %v2868
  %v2870 = vrot.slane %v2862, %v2869
  %v2872 = vunpack.c.l.s4 1983009808
  %v2873 = vunpack.c.0.s8 %v2872
  %v2874 = vlaneseq
  %v2875 = vshrl.u32 %v2874, 7
  %v2876 = vsub.s32 %v2873, %v2875
  %v2877 = vrot.slane %v2863, %v2876
  %v2878 = vcombine.low %v2870, %v2877
  %v2879 = vcombine.low %v1556, %v1564
  %v2880 = vcombine.low %v1571, %v1573
  %v2882 = vunpack.c.l.s4 1983009808
  %v2883 = vunpack.c.0.s8 %v2882
  %v2884 = vlaneseq
  %v2885 = vshrl.u32 %v2884, 7
  %v2886 = vsub.s32 %v2883, %v2885
  %v2887 = vrot.slane %v2879, %v2886
  %v2889 = vunpack.c.l.s4 1983009808
  %v2890 = vunpack.c.0.s8 %v2889
  %v2891 = vlaneseq
  %v2892 = vshrl.u32 %v2891, 7
  %v2893 = vsub.s32 %v2890, %v2892
  %v2894 = vrot.slane %v2880, %v2893
  %v2895 = vcombine.low %v2887, %v2894
  %v2896 = vcombine.low %v1581, %v1589
  %v2897 = vcombine.low %v1588, %v1590
  %v2899 = vunpack.c.l.s4 1983009808
  %v2900 = vunpack.c.0.s8 %v2899
  %v2901 = vlaneseq
  %v2902 = vshrl.u32 %v2901, 7
  %v2903 = vsub.s32 %v2900, %v2902
  %v2904 = vrot.slane %v2896, %v2903
  %v2906 = vunpack.c.l.s4 1983009808
  %v2907 = vunpack.c.0.s8 %v2906
  %v2908 = vlaneseq
  %v2909 = vshrl.u32 %v2908, 7
  %v2910 = vsub.s32 %v2907, %v2909
  %v2911 = vrot.slane %v2897, %v2910
  %v2912 = vcombine.low %v2904, %v2911
  %v2931 = vpack.c.bf16 %v2640, %v2623
  %v2932 = vpack.c.bf16 %v2674, %v2657
  %v2933 = vpack.c.bf16 %v2708, %v2691
  %v2934 = vpack.c.bf16 %v2742, %v2725
  %v2935 = vpack.c.bf16 %v2776, %v2759
  %v2936 = vpack.c.bf16 %v2810, %v2793
  %v2937 = vpack.c.bf16 %v2844, %v2827
  %v2938 = vpack.c.bf16 %v2878, %v2861
  %v2939 = vpack.c.bf16 %v2912, %v2895
  %2949 = vrot.lane.b32.xlu0 %v2931, 32
  %v2950 = vpop.permute.xlu0 %2949
  %2951 = vrot.lane.b32.xlu0 %v2932, 32
  %v2952 = vpop.permute.xlu0 %2951
  %2953 = vrot.lane.b32.xlu0 %v2933, 32
  %v2954 = vpop.permute.xlu0 %2953
  %2955 = vrot.lane.b32.xlu0 %v2934, 32
  %v2956 = vpop.permute.xlu0 %2955
  %2957 = vrot.lane.b32.xlu0 %v2935, 32
  %v2958 = vpop.permute.xlu0 %2957
  %2959 = vrot.lane.b32.xlu0 %v2936, 32
  %v2960 = vpop.permute.xlu0 %2959
  %2961 = vrot.lane.b32.xlu0 %v2937, 32
  %v2962 = vpop.permute.xlu0 %2961
  %2963 = vrot.lane.b32.xlu0 %v2938, 32
  %v2964 = vpop.permute.xlu0 %2963
  %2965 = vrot.lane.b32.xlu0 %v2939, 32
  %v2966 = vpop.permute.xlu0 %2965
  %vm2976 = vcmask 392448
  %2977 = vst.msk [vmem:[#allocation3] sm:$0xff] %vm2976, %v2950
  %2978 = vst.msk [vmem:[#allocation3 + $0x10] sm:$0xff] %vm2976, %v2952
  %2979 = vst.msk [vmem:[#allocation3 + $0x20] sm:$0xff] %vm2976, %v2954
  %2980 = vst.msk [vmem:[#allocation3 + $0x30] sm:$0xff] %vm2976, %v2956
  %2981 = vst.msk [vmem:[#allocation3 + $0x40] sm:$0xff] %vm2976, %v2958
  %2982 = vst.msk [vmem:[#allocation3 + $0x50] sm:$0xff] %vm2976, %v2960
  %2983 = vst.msk [vmem:[#allocation3 + $0x60] sm:$0xff] %vm2976, %v2962
  %2984 = vst.msk [vmem:[#allocation3 + $0x70] sm:$0xff] %vm2976, %v2964
  %2985 = vst.msk [vmem:[#allocation3 + $0x80] sm:$0xff] %vm2976, %v2966
  %v2986 = vcombine.low %v1682, %v1692
  %v2987 = vcombine.low %v1699, %v1709
  %v2988 = vcombine.low %v1716, %v1726
  %v2989 = vcombine.low %v1733, %v1743
  %v2990 = vcombine.low %v1750, %v1760
  %v2991 = vcombine.low %v1767, %v1777
  %v2992 = vcombine.low %v1784, %v1794
  %v2993 = vcombine.low %v1801, %v1811
  %v2994 = vcombine.low %v1818, %v1828
  %v2995 = vcombine.low %v1835, %v1845
  %v2996 = vcombine.low %v1852, %v1862
  %v2997 = vcombine.low %v1869, %v1879
  %v2998 = vcombine.low %v1886, %v1896
  %v2999 = vcombine.low %v1903, %v1913
  %v3000 = vcombine.low %v1920, %v1930
  %v3001 = vcombine.low %v1937, %v1947
  %v3002 = vcombine.low %v1598, %v1606
  %v3004 = vunpack.c.l.s4 1983009808
  %v3005 = vunpack.c.0.s8 %v3004
  %v3006 = vlaneseq
  %v3007 = vshrl.u32 %v3006, 7
  %v3008 = vsub.s32 %v3005, %v3007
  %v3009 = vrot.slane %v3002, %v3008
  %v3010 = vcombine.low %v1954, %v3009
  %v3011 = vcombine.low %v1605, %v1607
  %v3012 = vcombine.low %v1615, %v1623
  %v3014 = vunpack.c.l.s4 1983009808
  %v3015 = vunpack.c.0.s8 %v3014
  %v3016 = vlaneseq
  %v3017 = vshrl.u32 %v3016, 7
  %v3018 = vsub.s32 %v3015, %v3017
  %v3019 = vrot.slane %v3011, %v3018
  %v3021 = vunpack.c.l.s4 1983009808
  %v3022 = vunpack.c.0.s8 %v3021
  %v3023 = vlaneseq
  %v3024 = vshrl.u32 %v3023, 7
  %v3025 = vsub.s32 %v3022, %v3024
  %v3026 = vrot.slane %v3012, %v3025
  %v3027 = vcombine.low %v3019, %v3026
  %v3046 = vpack.c.bf16 %v2987, %v2986
  %v3047 = vpack.c.bf16 %v2989, %v2988
  %v3048 = vpack.c.bf16 %v2991, %v2990
  %v3049 = vpack.c.bf16 %v2993, %v2992
  %v3050 = vpack.c.bf16 %v2995, %v2994
  %v3051 = vpack.c.bf16 %v2997, %v2996
  %v3052 = vpack.c.bf16 %v2999, %v2998
  %v3053 = vpack.c.bf16 %v3001, %v3000
  %v3054 = vpack.c.bf16 %v3027, %v3010
  %3064 = vrot.lane.b32.xlu0 %v3046, 48
  %v3065 = vpop.permute.xlu0 %3064
  %3066 = vrot.lane.b32.xlu0 %v3047, 48
  %v3067 = vpop.permute.xlu0 %3066
  %3068 = vrot.lane.b32.xlu0 %v3048, 48
  %v3069 = vpop.permute.xlu0 %3068
  %3070 = vrot.lane.b32.xlu0 %v3049, 48
  %v3071 = vpop.permute.xlu0 %3070
  %3072 = vrot.lane.b32.xlu0 %v3050, 48
  %v3073 = vpop.permute.xlu0 %3072
  %3074 = vrot.lane.b32.xlu0 %v3051, 48
  %v3075 = vpop.permute.xlu0 %3074
  %3076 = vrot.lane.b32.xlu0 %v3052, 48
  %v3077 = vpop.permute.xlu0 %3076
  %3078 = vrot.lane.b32.xlu0 %v3053, 48
  %v3079 = vpop.permute.xlu0 %3078
  %3080 = vrot.lane.b32.xlu0 %v3054, 48
  %v3081 = vpop.permute.xlu0 %3080
  %vm3091 = vcmask 523648
  %3092 = vst.msk [vmem:[#allocation3] sm:$0xff] %vm3091, %v3065
  %3093 = vst.msk [vmem:[#allocation3 + $0x10] sm:$0xff] %vm3091, %v3067
  %3094 = vst.msk [vmem:[#allocation3 + $0x20] sm:$0xff] %vm3091, %v3069
  %3095 = vst.msk [vmem:[#allocation3 + $0x30] sm:$0xff] %vm3091, %v3071
  %3096 = vst.msk [vmem:[#allocation3 + $0x40] sm:$0xff] %vm3091, %v3073
  %3097 = vst.msk [vmem:[#allocation3 + $0x50] sm:$0xff] %vm3091, %v3075
  %3098 = vst.msk [vmem:[#allocation3 + $0x60] sm:$0xff] %vm3091, %v3077
  %3099 = vst.msk [vmem:[#allocation3 + $0x70] sm:$0xff] %vm3091, %v3079
  %3100 = vst.msk [vmem:[#allocation3 + $0x80] sm:$0xff] %vm3091, %v3081
  %v3101 = vrot.slane %v1598, 7
  %v3102 = vrot.slane %v3101, 2
  %v3103 = vrot.slane %v1606, 7
  %v3104 = vsel %vm1999, %v3102, %v3103
  %v3105 = vrot.slane %v3103, 2
  %v3106 = vrot.slane %v1605, 7
  %v3107 = vsel %vm1999, %v3105, %v3106
  %v3108 = vrot.slane %v3106, 2
  %v3109 = vrot.slane %v1607, 7
  %v3110 = vsel %vm1999, %v3108, %v3109
  %v3111 = vrot.slane %v3109, 2
  %v3112 = vrot.slane %v1615, 7
  %v3113 = vsel %vm1999, %v3111, %v3112
  %v3114 = vrot.slane %v3112, 2
  %v3115 = vrot.slane %v1623, 7
  %v3116 = vsel %vm1999, %v3114, %v3115
  %v3117 = vrot.slane %v3115, 2
  %v3118 = vrot.slane %v1622, 7
  %v3119 = vsel %vm1999, %v3117, %v3118
  %v3120 = vcombine.low %v2260, %v2270
  %v3121 = vcombine.low %v2277, %v2287
  %v3122 = vcombine.low %v2294, %v2304
  %v3123 = vcombine.low %v2311, %v2321
  %v3124 = vcombine.low %v2328, %v2338
  %v3125 = vcombine.low %v2345, %v2355
  %v3126 = vcombine.low %v2362, %v2372
  %v3127 = vcombine.low %v2379, %v2389
  %v3128 = vcombine.low %v2396, %v2406
  %v3129 = vcombine.low %v2413, %v2423
  %v3130 = vcombine.low %v2430, %v2440
  %v3131 = vcombine.low %v2447, %v2457
  %v3132 = vcombine.low %v2464, %v2474
  %v3133 = vcombine.low %v2481, %v2491
  %v3134 = vcombine.low %v2498, %v2508
  %v3135 = vcombine.low %v2515, %v2525
  %v3136 = vcombine.low %v3104, %v3107
  %v3138 = vunpack.c.l.s4 1983009808
  %v3139 = vunpack.c.0.s8 %v3138
  %v3140 = vlaneseq
  %v3141 = vshrl.u32 %v3140, 7
  %v3142 = vsub.s32 %v3139, %v3141
  %v3143 = vrot.slane %v3136, %v3142
  %v3144 = vcombine.low %v2532, %v3143
  %v3145 = vcombine.low %v3110, %v3113
  %v3146 = vcombine.low %v3116, %v3119
  %v3148 = vunpack.c.l.s4 1983009808
  %v3149 = vunpack.c.0.s8 %v3148
  %v3150 = vlaneseq
  %v3151 = vshrl.u32 %v3150, 7
  %v3152 = vsub.s32 %v3149, %v3151
  %v3153 = vrot.slane %v3145, %v3152
  %v3155 = vunpack.c.l.s4 1983009808
  %v3156 = vunpack.c.0.s8 %v3155
  %v3157 = vlaneseq
  %v3158 = vshrl.u32 %v3157, 7
  %v3159 = vsub.s32 %v3156, %v3158
  %v3160 = vrot.slane %v3146, %v3159
  %v3161 = vcombine.low %v3153, %v3160
  %v3180 = vpack.c.bf16 %v3121, %v3120
  %v3181 = vpack.c.bf16 %v3123, %v3122
  %v3182 = vpack.c.bf16 %v3125, %v3124
  %v3183 = vpack.c.bf16 %v3127, %v3126
  %v3184 = vpack.c.bf16 %v3129, %v3128
  %v3185 = vpack.c.bf16 %v3131, %v3130
  %v3186 = vpack.c.bf16 %v3133, %v3132
  %v3187 = vpack.c.bf16 %v3135, %v3134
  %v3188 = vpack.c.bf16 %v3161, %v3144
  %3198 = vrot.lane.b32.xlu0 %v3180, 64
  %v3199 = vpop.permute.xlu0 %3198
  %3200 = vrot.lane.b32.xlu0 %v3181, 64
  %v3201 = vpop.permute.xlu0 %3200
  %3202 = vrot.lane.b32.xlu0 %v3182, 64
  %v3203 = vpop.permute.xlu0 %3202
  %3204 = vrot.lane.b32.xlu0 %v3183, 64
  %v3205 = vpop.permute.xlu0 %3204
  %3206 = vrot.lane.b32.xlu0 %v3184, 64
  %v3207 = vpop.permute.xlu0 %3206
  %3208 = vrot.lane.b32.xlu0 %v3185, 64
  %v3209 = vpop.permute.xlu0 %3208
  %3210 = vrot.lane.b32.xlu0 %v3186, 64
  %v3211 = vpop.permute.xlu0 %3210
  %3212 = vrot.lane.b32.xlu0 %v3187, 64
  %v3213 = vpop.permute.xlu0 %3212
  %3214 = vrot.lane.b32.xlu0 %v3188, 64
  %v3215 = vpop.permute.xlu0 %3214
  %vm3225 = vcmask 654848
  %3226 = vst.msk [vmem:[#allocation3] sm:$0xff] %vm3225, %v3199
  %3227 = vst.msk [vmem:[#allocation3 + $0x10] sm:$0xff] %vm3225, %v3201
  %3228 = vst.msk [vmem:[#allocation3 + $0x20] sm:$0xff] %vm3225, %v3203
  %3229 = vst.msk [vmem:[#allocation3 + $0x30] sm:$0xff] %vm3225, %v3205
  %3230 = vst.msk [vmem:[#allocation3 + $0x40] sm:$0xff] %vm3225, %v3207
  %3231 = vst.msk [vmem:[#allocation3 + $0x50] sm:$0xff] %vm3225, %v3209
  %3232 = vst.msk [vmem:[#allocation3 + $0x60] sm:$0xff] %vm3225, %v3211
  %3233 = vst.msk [vmem:[#allocation3 + $0x70] sm:$0xff] %vm3225, %v3213
  %3234 = vst.msk [vmem:[#allocation3 + $0x80] sm:$0xff] %vm3225, %v3215
  %v3235 = vcombine.low %v2639, %v2649
  %v3236 = vcombine.low %v2656, %v2666
  %v3237 = vcombine.low %v2673, %v2683
  %v3238 = vcombine.low %v2690, %v2700
  %v3239 = vcombine.low %v2707, %v2717
  %v3240 = vcombine.low %v2724, %v2734
  %v3241 = vcombine.low %v2741, %v2751
  %v3242 = vcombine.low %v2758, %v2768
  %v3243 = vcombine.low %v2775, %v2785
  %v3244 = vcombine.low %v2792, %v2802
  %v3245 = vcombine.low %v2809, %v2819
  %v3246 = vcombine.low %v2826, %v2836
  %v3247 = vcombine.low %v2843, %v2853
  %v3248 = vcombine.low %v2860, %v2870
  %v3249 = vcombine.low %v2877, %v2887
  %v3250 = vcombine.low %v2894, %v2904
  %v3251 = vcombine.low %v1606, %v1605
  %v3253 = vunpack.c.l.s4 1983009808
  %v3254 = vunpack.c.0.s8 %v3253
  %v3255 = vlaneseq
  %v3256 = vshrl.u32 %v3255, 7
  %v3257 = vsub.s32 %v3254, %v3256
  %v3258 = vrot.slane %v3251, %v3257
  %v3259 = vcombine.low %v2911, %v3258
  %v3260 = vcombine.low %v1607, %v1615
  %v3261 = vcombine.low %v1623, %v1622
  %v3263 = vunpack.c.l.s4 1983009808
  %v3264 = vunpack.c.0.s8 %v3263
  %v3265 = vlaneseq
  %v3266 = vshrl.u32 %v3265, 7
  %v3267 = vsub.s32 %v3264, %v3266
  %v3268 = vrot.slane %v3260, %v3267
  %v3270 = vunpack.c.l.s4 1983009808
  %v3271 = vunpack.c.0.s8 %v3270
  %v3272 = vlaneseq
  %v3273 = vshrl.u32 %v3272, 7
  %v3274 = vsub.s32 %v3271, %v3273
  %v3275 = vrot.slane %v3261, %v3274
  %v3276 = vcombine.low %v3268, %v3275
  %v3295 = vpack.c.bf16 %v3236, %v3235
  %v3296 = vpack.c.bf16 %v3238, %v3237
  %v3297 = vpack.c.bf16 %v3240, %v3239
  %v3298 = vpack.c.bf16 %v3242, %v3241
  %v3299 = vpack.c.bf16 %v3244, %v3243
  %v3300 = vpack.c.bf16 %v3246, %v3245
  %v3301 = vpack.c.bf16 %v3248, %v3247
  %v3302 = vpack.c.bf16 %v3250, %v3249
  %v3303 = vpack.c.bf16 %v3276, %v3259
  %3313 = vrot.lane.b32.xlu0 %v3295, 80
  %v3314 = vpop.permute.xlu0 %3313
  %3315 = vrot.lane.b32.xlu0 %v3296, 80
  %v3316 = vpop.permute.xlu0 %3315
  %3317 = vrot.lane.b32.xlu0 %v3297, 80
  %v3318 = vpop.permute.xlu0 %3317
  %3319 = vrot.lane.b32.xlu0 %v3298, 80
  %v3320 = vpop.permute.xlu0 %3319
  %3321 = vrot.lane.b32.xlu0 %v3299, 80
  %v3322 = vpop.permute.xlu0 %3321
  %3323 = vrot.lane.b32.xlu0 %v3300, 80
  %v3324 = vpop.permute.xlu0 %3323
  %3325 = vrot.lane.b32.xlu0 %v3301, 80
  %v3326 = vpop.permute.xlu0 %3325
  %3327 = vrot.lane.b32.xlu0 %v3302, 80
  %v3328 = vpop.permute.xlu0 %3327
  %3329 = vrot.lane.b32.xlu0 %v3303, 80
  %v3330 = vpop.permute.xlu0 %3329
  %vm3340 = vcmask 786048
  %3341 = vst.msk [vmem:[#allocation3] sm:$0xff] %vm3340, %v3314
  %3342 = vst.msk [vmem:[#allocation3 + $0x10] sm:$0xff] %vm3340, %v3316
  %3343 = vst.msk [vmem:[#allocation3 + $0x20] sm:$0xff] %vm3340, %v3318
  %3344 = vst.msk [vmem:[#allocation3 + $0x30] sm:$0xff] %vm3340, %v3320
  %3345 = vst.msk [vmem:[#allocation3 + $0x40] sm:$0xff] %vm3340, %v3322
  %3346 = vst.msk [vmem:[#allocation3 + $0x50] sm:$0xff] %vm3340, %v3324
  %3347 = vst.msk [vmem:[#allocation3 + $0x60] sm:$0xff] %vm3340, %v3326
  %3348 = vst.msk [vmem:[#allocation3 + $0x70] sm:$0xff] %vm3340, %v3328
  %3349 = vst.msk [vmem:[#allocation3 + $0x80] sm:$0xff] %vm3340, %v3330
  %v3350 = vcombine.low %v3009, %v3019
  %v3351 = vcombine.low %v1624, %v1632
  %v3353 = vunpack.c.l.s4 1983009808
  %v3354 = vunpack.c.0.s8 %v3353
  %v3355 = vlaneseq
  %v3356 = vshrl.u32 %v3355, 7
  %v3357 = vsub.s32 %v3354, %v3356
  %v3358 = vrot.slane %v3351, %v3357
  %v3359 = vcombine.low %v3026, %v3358
  %v3360 = vcombine.low %v1640, %v1639
  %v3361 = vcombine.low %v1641, %v1648
  %v3363 = vunpack.c.l.s4 1983009808
  %v3364 = vunpack.c.0.s8 %v3363
  %v3365 = vlaneseq
  %v3366 = vshrl.u32 %v3365, 7
  %v3367 = vsub.s32 %v3364, %v3366
  %v3368 = vrot.slane %v3360, %v3367
  %v3370 = vunpack.c.l.s4 1983009808
  %v3371 = vunpack.c.0.s8 %v3370
  %v3372 = vlaneseq
  %v3373 = vshrl.u32 %v3372, 7
  %v3374 = vsub.s32 %v3371, %v3373
  %v3375 = vrot.slane %v3361, %v3374
  %v3376 = vcombine.low %v3368, %v3375
  %v3380 = vpack.c.bf16 %v1734, %v1717
  %v3381 = vpack.c.bf16 %v1768, %v1751
  %v3382 = vpack.c.bf16 %v1802, %v1785
  %v3383 = vpack.c.bf16 %v1836, %v1819
  %v3384 = vpack.c.bf16 %v1870, %v1853
  %v3385 = vpack.c.bf16 %v1904, %v1887
  %v3386 = vpack.c.bf16 %v1938, %v1921
  %v3387 = vpack.c.bf16 %v3350, %v1955
  %v3388 = vpack.c.bf16 %v3376, %v3359
  %3398 = vrot.lane.b32.xlu0 %v3380, 96
  %v3399 = vpop.permute.xlu0 %3398
  %3400 = vrot.lane.b32.xlu0 %v3381, 96
  %v3401 = vpop.permute.xlu0 %3400
  %3402 = vrot.lane.b32.xlu0 %v3382, 96
  %v3403 = vpop.permute.xlu0 %3402
  %3404 = vrot.lane.b32.xlu0 %v3383, 96
  %v3405 = vpop.permute.xlu0 %3404
  %3406 = vrot.lane.b32.xlu0 %v3384, 96
  %v3407 = vpop.permute.xlu0 %3406
  %3408 = vrot.lane.b32.xlu0 %v3385, 96
  %v3409 = vpop.permute.xlu0 %3408
  %3410 = vrot.lane.b32.xlu0 %v3386, 96
  %v3411 = vpop.permute.xlu0 %3410
  %3412 = vrot.lane.b32.xlu0 %v3387, 96
  %v3413 = vpop.permute.xlu0 %3412
  %3414 = vrot.lane.b32.xlu0 %v3388, 96
  %v3415 = vpop.permute.xlu0 %3414
  %vm3425 = vcmask 917248
  %3426 = vst.msk [vmem:[#allocation3] sm:$0xff] %vm3425, %v3399
  %3427 = vst.msk [vmem:[#allocation3 + $0x10] sm:$0xff] %vm3425, %v3401
  %3428 = vst.msk [vmem:[#allocation3 + $0x20] sm:$0xff] %vm3425, %v3403
  %3429 = vst.msk [vmem:[#allocation3 + $0x30] sm:$0xff] %vm3425, %v3405
  %3430 = vst.msk [vmem:[#allocation3 + $0x40] sm:$0xff] %vm3425, %v3407
  %3431 = vst.msk [vmem:[#allocation3 + $0x50] sm:$0xff] %vm3425, %v3409
  %3432 = vst.msk [vmem:[#allocation3 + $0x60] sm:$0xff] %vm3425, %v3411
  %3433 = vst.msk [vmem:[#allocation3 + $0x70] sm:$0xff] %vm3425, %v3413
  %3434 = vst.msk [vmem:[#allocation3 + $0x80] sm:$0xff] %vm3425, %v3415
  %v3435 = vrot.slane %v1624, 7
  %v3436 = vrot.slane %v3435, 2
  %v3437 = vrot.slane %v1632, 7
  %v3438 = vsel %vm1999, %v3436, %v3437
  %v3439 = vrot.slane %v3437, 2
  %v3440 = vrot.slane %v1640, 7
  %v3441 = vsel %vm1999, %v3439, %v3440
  %v3442 = vrot.slane %v3440, 2
  %v3443 = vrot.slane %v1639, 7
  %v3444 = vsel %vm1999, %v3442, %v3443
  %v3445 = vrot.slane %v3443, 2
  %v3446 = vrot.slane %v1641, 7
  %v3447 = vsel %vm1999, %v3445, %v3446
  %v3448 = vrot.slane %v3446, 2
  %v3449 = vrot.slane %v1648, 7
  %v3450 = vsel %vm1999, %v3448, %v3449
  %v3451 = vrot.slane %v3449, 2
  %v3452 = vrot.slane %v1649, 7
  %v3453 = vsel %vm1999, %v3451, %v3452
  %v3454 = vcombine.low %v3143, %v3153
  %v3455 = vcombine.low %v3438, %v3441
  %v3457 = vunpack.c.l.s4 1983009808
  %v3458 = vunpack.c.0.s8 %v3457
  %v3459 = vlaneseq
  %v3460 = vshrl.u32 %v3459, 7
  %v3461 = vsub.s32 %v3458, %v3460
  %v3462 = vrot.slane %v3455, %v3461
  %v3463 = vcombine.low %v3160, %v3462
  %v3464 = vcombine.low %v3444, %v3447
  %v3465 = vcombine.low %v3450, %v3453
  %v3467 = vunpack.c.l.s4 1983009808
  %v3468 = vunpack.c.0.s8 %v3467
  %v3469 = vlaneseq
  %v3470 = vshrl.u32 %v3469, 7
  %v3471 = vsub.s32 %v3468, %v3470
  %v3472 = vrot.slane %v3464, %v3471
  %v3474 = vunpack.c.l.s4 1983009808
  %v3475 = vunpack.c.0.s8 %v3474
  %v3476 = vlaneseq
  %v3477 = vshrl.u32 %v3476, 7
  %v3478 = vsub.s32 %v3475, %v3477
  %v3479 = vrot.slane %v3465, %v3478
  %v3480 = vcombine.low %v3472, %v3479
  %v3484 = vpack.c.bf16 %v2312, %v2295
  %v3485 = vpack.c.bf16 %v2346, %v2329
  %v3486 = vpack.c.bf16 %v2380, %v2363
  %v3487 = vpack.c.bf16 %v2414, %v2397
  %v3488 = vpack.c.bf16 %v2448, %v2431
  %v3489 = vpack.c.bf16 %v2482, %v2465
  %v3490 = vpack.c.bf16 %v2516, %v2499
  %v3491 = vpack.c.bf16 %v3454, %v2533
  %v3492 = vpack.c.bf16 %v3480, %v3463
  %3502 = vrot.lane.b32.xlu0 %v3484, 112
  %v3503 = vpop.permute.xlu0 %3502
  %3504 = vrot.lane.b32.xlu0 %v3485, 112
  %v3505 = vpop.permute.xlu0 %3504
  %3506 = vrot.lane.b32.xlu0 %v3486, 112
  %v3507 = vpop.permute.xlu0 %3506
  %3508 = vrot.lane.b32.xlu0 %v3487, 112
  %v3509 = vpop.permute.xlu0 %3508
  %3510 = vrot.lane.b32.xlu0 %v3488, 112
  %v3511 = vpop.permute.xlu0 %3510
  %3512 = vrot.lane.b32.xlu0 %v3489, 112
  %v3513 = vpop.permute.xlu0 %3512
  %3514 = vrot.lane.b32.xlu0 %v3490, 112
  %v3515 = vpop.permute.xlu0 %3514
  %3516 = vrot.lane.b32.xlu0 %v3491, 112
  %v3517 = vpop.permute.xlu0 %3516
  %3518 = vrot.lane.b32.xlu0 %v3492, 112
  %v3519 = vpop.permute.xlu0 %3518
  %vm3529 = vcmask 1048448
  %3530 = vst.msk [vmem:[#allocation3] sm:$0xff] %vm3529, %v3503
  %3531 = vst.msk [vmem:[#allocation3 + $0x10] sm:$0xff] %vm3529, %v3505
  %3532 = vst.msk [vmem:[#allocation3 + $0x20] sm:$0xff] %vm3529, %v3507
  %3533 = vst.msk [vmem:[#allocation3 + $0x30] sm:$0xff] %vm3529, %v3509
  %3534 = vst.msk [vmem:[#allocation3 + $0x40] sm:$0xff] %vm3529, %v3511
  %3535 = vst.msk [vmem:[#allocation3 + $0x50] sm:$0xff] %vm3529, %v3513
  %3536 = vst.msk [vmem:[#allocation3 + $0x60] sm:$0xff] %vm3529, %v3515
  %3537 = vst.msk [vmem:[#allocation3 + $0x70] sm:$0xff] %vm3529, %v3517
  %3538 = vst.msk [vmem:[#allocation3 + $0x80] sm:$0xff] %vm3529, %v3519
  %v3539 = vcombine.low %v3258, %v3268
  %v3540 = vcombine.low %v1632, %v1640
  %v3542 = vunpack.c.l.s4 1983009808
  %v3543 = vunpack.c.0.s8 %v3542
  %v3544 = vlaneseq
  %v3545 = vshrl.u32 %v3544, 7
  %v3546 = vsub.s32 %v3543, %v3545
  %v3547 = vrot.slane %v3540, %v3546
  %v3548 = vcombine.low %v3275, %v3547
  %v3549 = vcombine.low %v1639, %v1641
  %v3550 = vcombine.low %v1648, %v1649
  %v3552 = vunpack.c.l.s4 1983009808
  %v3553 = vunpack.c.0.s8 %v3552
  %v3554 = vlaneseq
  %v3555 = vshrl.u32 %v3554, 7
  %v3556 = vsub.s32 %v3553, %v3555
  %v3557 = vrot.slane %v3549, %v3556
  %v3559 = vunpack.c.l.s4 1983009808
  %v3560 = vunpack.c.0.s8 %v3559
  %v3561 = vlaneseq
  %v3562 = vshrl.u32 %v3561, 7
  %v3563 = vsub.s32 %v3560, %v3562
  %v3564 = vrot.slane %v3550, %v3563
  %v3565 = vcombine.low %v3557, %v3564
  %v3569 = vpack.c.bf16 %v2691, %v2674
  %v3570 = vpack.c.bf16 %v2725, %v2708
  %v3571 = vpack.c.bf16 %v2759, %v2742
  %v3572 = vpack.c.bf16 %v2793, %v2776
  %v3573 = vpack.c.bf16 %v2827, %v2810
  %v3574 = vpack.c.bf16 %v2861, %v2844
  %v3575 = vpack.c.bf16 %v2895, %v2878
  %v3576 = vpack.c.bf16 %v3539, %v2912
  %v3577 = vpack.c.bf16 %v3565, %v3548
  %3578 = vst.msk [vmem:[#allocation3 + $0x8] sm:$0xff] %vm1983, %v3569
  %3579 = vst.msk [vmem:[#allocation3 + $0x18] sm:$0xff] %vm1983, %v3570
  %3580 = vst.msk [vmem:[#allocation3 + $0x28] sm:$0xff] %vm1983, %v3571
  %3581 = vst.msk [vmem:[#allocation3 + $0x38] sm:$0xff] %vm1983, %v3572
  %3582 = vst.msk [vmem:[#allocation3 + $0x48] sm:$0xff] %vm1983, %v3573
  %3583 = vst.msk [vmem:[#allocation3 + $0x58] sm:$0xff] %vm1983, %v3574
  %3584 = vst.msk [vmem:[#allocation3 + $0x68] sm:$0xff] %vm1983, %v3575
  %3585 = vst.msk [vmem:[#allocation3 + $0x78] sm:$0xff] %vm1983, %v3576
  %3586 = vst.msk [vmem:[#allocation3 + $0x88] sm:$0xff] %vm1983, %v3577
  %v3611 = vcombine.high %v1184, %v1184
  %v3613 = vunpack.c.l.s4 1983009808
  %v3614 = vunpack.c.0.s8 %v3613
  %v3615 = vlaneseq
  %v3616 = vshrl.u32 %v3615, 7
  %v3617 = vsub.s32 %v3614, %v3616
  %v3618 = vrot.slane %v3611, %v3617
  %v3619 = vcombine.high %v3618, %v3618
  %v3620 = vcombine.high %v1185, %v1185
  %v3622 = vunpack.c.l.s4 1983009808
  %v3623 = vunpack.c.0.s8 %v3622
  %v3624 = vlaneseq
  %v3625 = vshrl.u32 %v3624, 7
  %v3626 = vsub.s32 %v3623, %v3625
  %v3627 = vrot.slane %v1185, %v3626
  %v3629 = vunpack.c.l.s4 1983009808
  %v3630 = vunpack.c.0.s8 %v3629
  %v3631 = vlaneseq
  %v3632 = vshrl.u32 %v3631, 7
  %v3633 = vsub.s32 %v3630, %v3632
  %v3634 = vrot.slane %v3620, %v3633
  %v3635 = vcombine.high %v3627, %v3627
  %v3636 = vcombine.high %v3634, %v3634
  %v3637 = vcombine.high %v1186, %v1186
  %v3639 = vunpack.c.l.s4 1983009808
  %v3640 = vunpack.c.0.s8 %v3639
  %v3641 = vlaneseq
  %v3642 = vshrl.u32 %v3641, 7
  %v3643 = vsub.s32 %v3640, %v3642
  %v3644 = vrot.slane %v1186, %v3643
  %v3646 = vunpack.c.l.s4 1983009808
  %v3647 = vunpack.c.0.s8 %v3646
  %v3648 = vlaneseq
  %v3649 = vshrl.u32 %v3648, 7
  %v3650 = vsub.s32 %v3647, %v3649
  %v3651 = vrot.slane %v3637, %v3650
  %v3652 = vcombine.high %v3644, %v3644
  %v3653 = vcombine.high %v3651, %v3651
  %v3654 = vcombine.high %v1187, %v1187
  %v3656 = vunpack.c.l.s4 1983009808
  %v3657 = vunpack.c.0.s8 %v3656
  %v3658 = vlaneseq
  %v3659 = vshrl.u32 %v3658, 7
  %v3660 = vsub.s32 %v3657, %v3659
  %v3661 = vrot.slane %v1187, %v3660
  %v3663 = vunpack.c.l.s4 1983009808
  %v3664 = vunpack.c.0.s8 %v3663
  %v3665 = vlaneseq
  %v3666 = vshrl.u32 %v3665, 7
  %v3667 = vsub.s32 %v3664, %v3666
  %v3668 = vrot.slane %v3654, %v3667
  %v3669 = vcombine.high %v3661, %v3661
  %v3670 = vcombine.high %v3668, %v3668
  %v3671 = vcombine.high %v1188, %v1188
  %v3673 = vunpack.c.l.s4 1983009808
  %v3674 = vunpack.c.0.s8 %v3673
  %v3675 = vlaneseq
  %v3676 = vshrl.u32 %v3675, 7
  %v3677 = vsub.s32 %v3674, %v3676
  %v3678 = vrot.slane %v1188, %v3677
  %v3680 = vunpack.c.l.s4 1983009808
  %v3681 = vunpack.c.0.s8 %v3680
  %v3682 = vlaneseq
  %v3683 = vshrl.u32 %v3682, 7
  %v3684 = vsub.s32 %v3681, %v3683
  %v3685 = vrot.slane %v3671, %v3684
  %v3686 = vcombine.high %v3678, %v3678
  %v3687 = vcombine.high %v3685, %v3685
  %v3688 = vcombine.high %v1189, %v1189
  %v3690 = vunpack.c.l.s4 1983009808
  %v3691 = vunpack.c.0.s8 %v3690
  %v3692 = vlaneseq
  %v3693 = vshrl.u32 %v3692, 7
  %v3694 = vsub.s32 %v3691, %v3693
  %v3695 = vrot.slane %v1189, %v3694
  %v3697 = vunpack.c.l.s4 1983009808
  %v3698 = vunpack.c.0.s8 %v3697
  %v3699 = vlaneseq
  %v3700 = vshrl.u32 %v3699, 7
  %v3701 = vsub.s32 %v3698, %v3700
  %v3702 = vrot.slane %v3688, %v3701
  %v3703 = vcombine.high %v3695, %v3695
  %v3704 = vcombine.high %v3702, %v3702
  %v3705 = vcombine.high %v1190, %v1190
  %v3707 = vunpack.c.l.s4 1983009808
  %v3708 = vunpack.c.0.s8 %v3707
  %v3709 = vlaneseq
  %v3710 = vshrl.u32 %v3709, 7
  %v3711 = vsub.s32 %v3708, %v3710
  %v3712 = vrot.slane %v1190, %v3711
  %v3714 = vunpack.c.l.s4 1983009808
  %v3715 = vunpack.c.0.s8 %v3714
  %v3716 = vlaneseq
  %v3717 = vshrl.u32 %v3716, 7
  %v3718 = vsub.s32 %v3715, %v3717
  %v3719 = vrot.slane %v3705, %v3718
  %v3720 = vcombine.high %v3712, %v3712
  %v3721 = vcombine.high %v3719, %v3719
  %v3722 = vcombine.high %v1191, %v1191
  %v3724 = vunpack.c.l.s4 1983009808
  %v3725 = vunpack.c.0.s8 %v3724
  %v3726 = vlaneseq
  %v3727 = vshrl.u32 %v3726, 7
  %v3728 = vsub.s32 %v3725, %v3727
  %v3729 = vrot.slane %v1191, %v3728
  %v3731 = vunpack.c.l.s4 1983009808
  %v3732 = vunpack.c.0.s8 %v3731
  %v3733 = vlaneseq
  %v3734 = vshrl.u32 %v3733, 7
  %v3735 = vsub.s32 %v3732, %v3734
  %v3736 = vrot.slane %v3722, %v3735
  %v3737 = vcombine.high %v3729, %v3729
  %v3738 = vcombine.high %v3736, %v3736
  %v3739 = vcombine.high %v1192, %v1192
  %v3741 = vunpack.c.l.s4 1983009808
  %v3742 = vunpack.c.0.s8 %v3741
  %v3743 = vlaneseq
  %v3744 = vshrl.u32 %v3743, 7
  %v3745 = vsub.s32 %v3742, %v3744
  %v3746 = vrot.slane %v1192, %v3745
  %v3748 = vunpack.c.l.s4 1983009808
  %v3749 = vunpack.c.0.s8 %v3748
  %v3750 = vlaneseq
  %v3751 = vshrl.u32 %v3750, 7
  %v3752 = vsub.s32 %v3749, %v3751
  %v3753 = vrot.slane %v3739, %v3752
  %v3754 = vcombine.high %v3746, %v3746
  %v3755 = vcombine.high %v3753, %v3753
  %v3756 = vcombine.high %v1193, %v1193
  %v3758 = vunpack.c.l.s4 1983009808
  %v3759 = vunpack.c.0.s8 %v3758
  %v3760 = vlaneseq
  %v3761 = vshrl.u32 %v3760, 7
  %v3762 = vsub.s32 %v3759, %v3761
  %v3763 = vrot.slane %v1193, %v3762
  %v3765 = vunpack.c.l.s4 1983009808
  %v3766 = vunpack.c.0.s8 %v3765
  %v3767 = vlaneseq
  %v3768 = vshrl.u32 %v3767, 7
  %v3769 = vsub.s32 %v3766, %v3768
  %v3770 = vrot.slane %v3756, %v3769
  %v3771 = vcombine.high %v3763, %v3763
  %v3772 = vcombine.high %v3770, %v3770
  %v3773 = vcombine.high %v1194, %v1194
  %v3775 = vunpack.c.l.s4 1983009808
  %v3776 = vunpack.c.0.s8 %v3775
  %v3777 = vlaneseq
  %v3778 = vshrl.u32 %v3777, 7
  %v3779 = vsub.s32 %v3776, %v3778
  %v3780 = vrot.slane %v1194, %v3779
  %v3782 = vunpack.c.l.s4 1983009808
  %v3783 = vunpack.c.0.s8 %v3782
  %v3784 = vlaneseq
  %v3785 = vshrl.u32 %v3784, 7
  %v3786 = vsub.s32 %v3783, %v3785
  %v3787 = vrot.slane %v3773, %v3786
  %v3788 = vcombine.high %v3780, %v3780
  %v3789 = vcombine.high %v3787, %v3787
  %v3790 = vcombine.high %v1195, %v1195
  %v3792 = vunpack.c.l.s4 1983009808
  %v3793 = vunpack.c.0.s8 %v3792
  %v3794 = vlaneseq
  %v3795 = vshrl.u32 %v3794, 7
  %v3796 = vsub.s32 %v3793, %v3795
  %v3797 = vrot.slane %v1195, %v3796
  %v3799 = vunpack.c.l.s4 1983009808
  %v3800 = vunpack.c.0.s8 %v3799
  %v3801 = vlaneseq
  %v3802 = vshrl.u32 %v3801, 7
  %v3803 = vsub.s32 %v3800, %v3802
  %v3804 = vrot.slane %v3790, %v3803
  %v3805 = vcombine.high %v3797, %v3797
  %v3806 = vcombine.high %v3804, %v3804
  %v3807 = vcombine.high %v1196, %v1196
  %v3809 = vunpack.c.l.s4 1983009808
  %v3810 = vunpack.c.0.s8 %v3809
  %v3811 = vlaneseq
  %v3812 = vshrl.u32 %v3811, 7
  %v3813 = vsub.s32 %v3810, %v3812
  %v3814 = vrot.slane %v1196, %v3813
  %v3816 = vunpack.c.l.s4 1983009808
  %v3817 = vunpack.c.0.s8 %v3816
  %v3818 = vlaneseq
  %v3819 = vshrl.u32 %v3818, 7
  %v3820 = vsub.s32 %v3817, %v3819
  %v3821 = vrot.slane %v3807, %v3820
  %v3822 = vcombine.high %v3814, %v3814
  %v3823 = vcombine.high %v3821, %v3821
  %v3824 = vcombine.high %v1197, %v1197
  %v3826 = vunpack.c.l.s4 1983009808
  %v3827 = vunpack.c.0.s8 %v3826
  %v3828 = vlaneseq
  %v3829 = vshrl.u32 %v3828, 7
  %v3830 = vsub.s32 %v3827, %v3829
  %v3831 = vrot.slane %v1197, %v3830
  %v3833 = vunpack.c.l.s4 1983009808
  %v3834 = vunpack.c.0.s8 %v3833
  %v3835 = vlaneseq
  %v3836 = vshrl.u32 %v3835, 7
  %v3837 = vsub.s32 %v3834, %v3836
  %v3838 = vrot.slane %v3824, %v3837
  %v3839 = vcombine.high %v3831, %v3831
  %v3840 = vcombine.high %v3838, %v3838
  %v3841 = vcombine.high %v1198, %v1198
  %v3843 = vunpack.c.l.s4 1983009808
  %v3844 = vunpack.c.0.s8 %v3843
  %v3845 = vlaneseq
  %v3846 = vshrl.u32 %v3845, 7
  %v3847 = vsub.s32 %v3844, %v3846
  %v3848 = vrot.slane %v1198, %v3847
  %v3850 = vunpack.c.l.s4 1983009808
  %v3851 = vunpack.c.0.s8 %v3850
  %v3852 = vlaneseq
  %v3853 = vshrl.u32 %v3852, 7
  %v3854 = vsub.s32 %v3851, %v3853
  %v3855 = vrot.slane %v3841, %v3854
  %v3856 = vcombine.high %v3848, %v3848
  %v3857 = vcombine.high %v3855, %v3855
  %v3858 = vcombine.high %v1199, %v1199
  %v3860 = vunpack.c.l.s4 1983009808
  %v3861 = vunpack.c.0.s8 %v3860
  %v3862 = vlaneseq
  %v3863 = vshrl.u32 %v3862, 7
  %v3864 = vsub.s32 %v3861, %v3863
  %v3865 = vrot.slane %v1199, %v3864
  %v3867 = vunpack.c.l.s4 1983009808
  %v3868 = vunpack.c.0.s8 %v3867
  %v3869 = vlaneseq
  %v3870 = vshrl.u32 %v3869, 7
  %v3871 = vsub.s32 %v3868, %v3870
  %v3872 = vrot.slane %v3858, %v3871
  %v3873 = vcombine.high %v3865, %v3865
  %v3874 = vcombine.high %v3872, %v3872
  %v3875 = vcombine.high %v1200, %v1200
  %v3877 = vunpack.c.l.s4 1983009808
  %v3878 = vunpack.c.0.s8 %v3877
  %v3879 = vlaneseq
  %v3880 = vshrl.u32 %v3879, 7
  %v3881 = vsub.s32 %v3878, %v3880
  %v3882 = vrot.slane %v1200, %v3881
  %v3884 = vunpack.c.l.s4 1983009808
  %v3885 = vunpack.c.0.s8 %v3884
  %v3886 = vlaneseq
  %v3887 = vshrl.u32 %v3886, 7
  %v3888 = vsub.s32 %v3885, %v3887
  %v3889 = vrot.slane %v3875, %v3888
  %v3890 = vcombine.high %v3882, %v3882
  %v3891 = vcombine.high %v3889, %v3889
  %v3892 = vcombine.high %v1201, %v1201
  %v3894 = vunpack.c.l.s4 1983009808
  %v3895 = vunpack.c.0.s8 %v3894
  %v3896 = vlaneseq
  %v3897 = vshrl.u32 %v3896, 7
  %v3898 = vsub.s32 %v3895, %v3897
  %v3899 = vrot.slane %v1201, %v3898
  %v3901 = vunpack.c.l.s4 1983009808
  %v3902 = vunpack.c.0.s8 %v3901
  %v3903 = vlaneseq
  %v3904 = vshrl.u32 %v3903, 7
  %v3905 = vsub.s32 %v3902, %v3904
  %v3906 = vrot.slane %v3892, %v3905
  %v3907 = vcombine.high %v3899, %v3899
  %v3908 = vcombine.high %v3906, %v3906
  %v3909 = vcombine.high %v1202, %v1202
  %v3911 = vunpack.c.l.s4 1983009808
  %v3912 = vunpack.c.0.s8 %v3911
  %v3913 = vlaneseq
  %v3914 = vshrl.u32 %v3913, 7
  %v3915 = vsub.s32 %v3912, %v3914
  %v3916 = vrot.slane %v1202, %v3915
  %v3918 = vunpack.c.l.s4 1983009808
  %v3919 = vunpack.c.0.s8 %v3918
  %v3920 = vlaneseq
  %v3921 = vshrl.u32 %v3920, 7
  %v3922 = vsub.s32 %v3919, %v3921
  %v3923 = vrot.slane %v3909, %v3922
  %v3924 = vcombine.high %v3916, %v3916
  %v3925 = vcombine.high %v3923, %v3923
  %v3926 = vcombine.high %v1203, %v1203
  %v3928 = vunpack.c.l.s4 1983009808
  %v3929 = vunpack.c.0.s8 %v3928
  %v3930 = vlaneseq
  %v3931 = vshrl.u32 %v3930, 7
  %v3932 = vsub.s32 %v3929, %v3931
  %v3933 = vrot.slane %v1203, %v3932
  %v3935 = vunpack.c.l.s4 1983009808
  %v3936 = vunpack.c.0.s8 %v3935
  %v3937 = vlaneseq
  %v3938 = vshrl.u32 %v3937, 7
  %v3939 = vsub.s32 %v3936, %v3938
  %v3940 = vrot.slane %v3926, %v3939
  %v3941 = vcombine.high %v3933, %v3933
  %v3942 = vcombine.high %v3940, %v3940
  %v3943 = vcombine.high %v1204, %v1204
  %v3945 = vunpack.c.l.s4 1983009808
  %v3946 = vunpack.c.0.s8 %v3945
  %v3947 = vlaneseq
  %v3948 = vshrl.u32 %v3947, 7
  %v3949 = vsub.s32 %v3946, %v3948
  %v3950 = vrot.slane %v1204, %v3949
  %v3952 = vunpack.c.l.s4 1983009808
  %v3953 = vunpack.c.0.s8 %v3952
  %v3954 = vlaneseq
  %v3955 = vshrl.u32 %v3954, 7
  %v3956 = vsub.s32 %v3953, %v3955
  %v3957 = vrot.slane %v3943, %v3956
  %v3958 = vcombine.high %v3950, %v3950
  %v3959 = vcombine.high %v3957, %v3957
  %v3960 = vcombine.high %v1205, %v1205
  %v3962 = vunpack.c.l.s4 1983009808
  %v3963 = vunpack.c.0.s8 %v3962
  %v3964 = vlaneseq
  %v3965 = vshrl.u32 %v3964, 7
  %v3966 = vsub.s32 %v3963, %v3965
  %v3967 = vrot.slane %v1205, %v3966
  %v3969 = vunpack.c.l.s4 1983009808
  %v3970 = vunpack.c.0.s8 %v3969
  %v3971 = vlaneseq
  %v3972 = vshrl.u32 %v3971, 7
  %v3973 = vsub.s32 %v3970, %v3972
  %v3974 = vrot.slane %v3960, %v3973
  %v3975 = vcombine.high %v3967, %v3967
  %v3976 = vcombine.high %v3974, %v3974
  %v3977 = vcombine.high %v1206, %v1206
  %v3979 = vunpack.c.l.s4 1983009808
  %v3980 = vunpack.c.0.s8 %v3979
  %v3981 = vlaneseq
  %v3982 = vshrl.u32 %v3981, 7
  %v3983 = vsub.s32 %v3980, %v3982
  %v3984 = vrot.slane %v1206, %v3983
  %v3986 = vunpack.c.l.s4 1983009808
  %v3987 = vunpack.c.0.s8 %v3986
  %v3988 = vlaneseq
  %v3989 = vshrl.u32 %v3988, 7
  %v3990 = vsub.s32 %v3987, %v3989
  %v3991 = vrot.slane %v3977, %v3990
  %v3992 = vcombine.high %v3984, %v3984
  %v3993 = vcombine.high %v3991, %v3991
  %v3994 = vcombine.high %v1207, %v1207
  %v3996 = vunpack.c.l.s4 1983009808
  %v3997 = vunpack.c.0.s8 %v3996
  %v3998 = vlaneseq
  %v3999 = vshrl.u32 %v3998, 7
  %v4000 = vsub.s32 %v3997, %v3999
  %v4001 = vrot.slane %v1207, %v4000
  %v4003 = vunpack.c.l.s4 1983009808
  %v4004 = vunpack.c.0.s8 %v4003
  %v4005 = vlaneseq
  %v4006 = vshrl.u32 %v4005, 7
  %v4007 = vsub.s32 %v4004, %v4006
  %v4008 = vrot.slane %v3994, %v4007
  %v4009 = vcombine.high %v4001, %v4001
  %v4010 = vcombine.high %v4008, %v4008
  %v4011 = vcombine.high %v1208, %v1208
  %v4013 = vunpack.c.l.s4 1983009808
  %v4014 = vunpack.c.0.s8 %v4013
  %v4015 = vlaneseq
  %v4016 = vshrl.u32 %v4015, 7
  %v4017 = vsub.s32 %v4014, %v4016
  %v4018 = vrot.slane %v1208, %v4017
  %v4020 = vunpack.c.l.s4 1983009808
  %v4021 = vunpack.c.0.s8 %v4020
  %v4022 = vlaneseq
  %v4023 = vshrl.u32 %v4022, 7
  %v4024 = vsub.s32 %v4021, %v4023
  %v4025 = vrot.slane %v4011, %v4024
  %v4026 = vcombine.high %v4018, %v4018
  %v4027 = vcombine.high %v4025, %v4025
  %v4028 = vcombine.low %v3618, %v3619
  %v4029 = vcombine.low %v3627, %v3635
  %v4031 = vunpack.c.l.s4 1983009808
  %v4032 = vunpack.c.0.s8 %v4031
  %v4033 = vlaneseq
  %v4034 = vshrl.u32 %v4033, 7
  %v4035 = vsub.s32 %v4032, %v4034
  %v4036 = vrot.slane %v4028, %v4035
  %v4038 = vunpack.c.l.s4 1983009808
  %v4039 = vunpack.c.0.s8 %v4038
  %v4040 = vlaneseq
  %v4041 = vshrl.u32 %v4040, 7
  %v4042 = vsub.s32 %v4039, %v4041
  %v4043 = vrot.slane %v4029, %v4042
  %v4044 = vcombine.low %v4036, %v4043
  %v4045 = vcombine.low %v3634, %v3636
  %v4046 = vcombine.low %v3652, %v3651
  %v4048 = vunpack.c.l.s4 1983009808
  %v4049 = vunpack.c.0.s8 %v4048
  %v4050 = vlaneseq
  %v4051 = vshrl.u32 %v4050, 7
  %v4052 = vsub.s32 %v4049, %v4051
  %v4053 = vrot.slane %v4045, %v4052
  %v4055 = vunpack.c.l.s4 1983009808
  %v4056 = vunpack.c.0.s8 %v4055
  %v4057 = vlaneseq
  %v4058 = vshrl.u32 %v4057, 7
  %v4059 = vsub.s32 %v4056, %v4058
  %v4060 = vrot.slane %v4046, %v4059
  %v4061 = vcombine.low %v4053, %v4060
  %v4062 = vcombine.low %v3653, %v3661
  %v4063 = vcombine.low %v3669, %v3668
  %v4065 = vunpack.c.l.s4 1983009808
  %v4066 = vunpack.c.0.s8 %v4065
  %v4067 = vlaneseq
  %v4068 = vshrl.u32 %v4067, 7
  %v4069 = vsub.s32 %v4066, %v4068
  %v4070 = vrot.slane %v4062, %v4069
  %v4072 = vunpack.c.l.s4 1983009808
  %v4073 = vunpack.c.0.s8 %v4072
  %v4074 = vlaneseq
  %v4075 = vshrl.u32 %v4074, 7
  %v4076 = vsub.s32 %v4073, %v4075
  %v4077 = vrot.slane %v4063, %v4076
  %v4078 = vcombine.low %v4070, %v4077
  %v4079 = vcombine.low %v3678, %v3686
  %v4080 = vcombine.low %v3685, %v3687
  %v4082 = vunpack.c.l.s4 1983009808
  %v4083 = vunpack.c.0.s8 %v4082
  %v4084 = vlaneseq
  %v4085 = vshrl.u32 %v4084, 7
  %v4086 = vsub.s32 %v4083, %v4085
  %v4087 = vrot.slane %v4079, %v4086
  %v4089 = vunpack.c.l.s4 1983009808
  %v4090 = vunpack.c.0.s8 %v4089
  %v4091 = vlaneseq
  %v4092 = vshrl.u32 %v4091, 7
  %v4093 = vsub.s32 %v4090, %v4092
  %v4094 = vrot.slane %v4080, %v4093
  %v4095 = vcombine.low %v4087, %v4094
  %v4096 = vcombine.low %v3695, %v3703
  %v4097 = vcombine.low %v3704, %v3712
  %v4099 = vunpack.c.l.s4 1983009808
  %v4100 = vunpack.c.0.s8 %v4099
  %v4101 = vlaneseq
  %v4102 = vshrl.u32 %v4101, 7
  %v4103 = vsub.s32 %v4100, %v4102
  %v4104 = vrot.slane %v4096, %v4103
  %v4106 = vunpack.c.l.s4 1983009808
  %v4107 = vunpack.c.0.s8 %v4106
  %v4108 = vlaneseq
  %v4109 = vshrl.u32 %v4108, 7
  %v4110 = vsub.s32 %v4107, %v4109
  %v4111 = vrot.slane %v4097, %v4110
  %v4112 = vcombine.low %v4104, %v4111
  %v4113 = vcombine.low %v3720, %v3719
  %v4114 = vcombine.low %v3721, %v3729
  %v4116 = vunpack.c.l.s4 1983009808
  %v4117 = vunpack.c.0.s8 %v4116
  %v4118 = vlaneseq
  %v4119 = vshrl.u32 %v4118, 7
  %v4120 = vsub.s32 %v4117, %v4119
  %v4121 = vrot.slane %v4113, %v4120
  %v4123 = vunpack.c.l.s4 1983009808
  %v4124 = vunpack.c.0.s8 %v4123
  %v4125 = vlaneseq
  %v4126 = vshrl.u32 %v4125, 7
  %v4127 = vsub.s32 %v4124, %v4126
  %v4128 = vrot.slane %v4114, %v4127
  %v4129 = vcombine.low %v4121, %v4128
  %v4130 = vcombine.low %v3736, %v3738
  %v4131 = vcombine.low %v3746, %v3754
  %v4133 = vunpack.c.l.s4 1983009808
  %v4134 = vunpack.c.0.s8 %v4133
  %v4135 = vlaneseq
  %v4136 = vshrl.u32 %v4135, 7
  %v4137 = vsub.s32 %v4134, %v4136
  %v4138 = vrot.slane %v4130, %v4137
  %v4140 = vunpack.c.l.s4 1983009808
  %v4141 = vunpack.c.0.s8 %v4140
  %v4142 = vlaneseq
  %v4143 = vshrl.u32 %v4142, 7
  %v4144 = vsub.s32 %v4141, %v4143
  %v4145 = vrot.slane %v4131, %v4144
  %v4146 = vcombine.low %v4138, %v4145
  %v4147 = vcombine.low %v3753, %v3755
  %v4148 = vcombine.low %v3771, %v3770
  %v4150 = vunpack.c.l.s4 1983009808
  %v4151 = vunpack.c.0.s8 %v4150
  %v4152 = vlaneseq
  %v4153 = vshrl.u32 %v4152, 7
  %v4154 = vsub.s32 %v4151, %v4153
  %v4155 = vrot.slane %v4147, %v4154
  %v4157 = vunpack.c.l.s4 1983009808
  %v4158 = vunpack.c.0.s8 %v4157
  %v4159 = vlaneseq
  %v4160 = vshrl.u32 %v4159, 7
  %v4161 = vsub.s32 %v4158, %v4160
  %v4162 = vrot.slane %v4148, %v4161
  %v4163 = vcombine.low %v4155, %v4162
  %v4164 = vcombine.low %v3772, %v3780
  %v4165 = vcombine.low %v3788, %v3787
  %v4167 = vunpack.c.l.s4 1983009808
  %v4168 = vunpack.c.0.s8 %v4167
  %v4169 = vlaneseq
  %v4170 = vshrl.u32 %v4169, 7
  %v4171 = vsub.s32 %v4168, %v4170
  %v4172 = vrot.slane %v4164, %v4171
  %v4174 = vunpack.c.l.s4 1983009808
  %v4175 = vunpack.c.0.s8 %v4174
  %v4176 = vlaneseq
  %v4177 = vshrl.u32 %v4176, 7
  %v4178 = vsub.s32 %v4175, %v4177
  %v4179 = vrot.slane %v4165, %v4178
  %v4180 = vcombine.low %v4172, %v4179
  %v4181 = vcombine.low %v3797, %v3805
  %v4182 = vcombine.low %v3804, %v3806
  %v4184 = vunpack.c.l.s4 1983009808
  %v4185 = vunpack.c.0.s8 %v4184
  %v4186 = vlaneseq
  %v4187 = vshrl.u32 %v4186, 7
  %v4188 = vsub.s32 %v4185, %v4187
  %v4189 = vrot.slane %v4181, %v4188
  %v4191 = vunpack.c.l.s4 1983009808
  %v4192 = vunpack.c.0.s8 %v4191
  %v4193 = vlaneseq
  %v4194 = vshrl.u32 %v4193, 7
  %v4195 = vsub.s32 %v4192, %v4194
  %v4196 = vrot.slane %v4182, %v4195
  %v4197 = vcombine.low %v4189, %v4196
  %v4198 = vcombine.low %v3814, %v3822
  %v4199 = vcombine.low %v3823, %v3831
  %v4201 = vunpack.c.l.s4 1983009808
  %v4202 = vunpack.c.0.s8 %v4201
  %v4203 = vlaneseq
  %v4204 = vshrl.u32 %v4203, 7
  %v4205 = vsub.s32 %v4202, %v4204
  %v4206 = vrot.slane %v4198, %v4205
  %v4208 = vunpack.c.l.s4 1983009808
  %v4209 = vunpack.c.0.s8 %v4208
  %v4210 = vlaneseq
  %v4211 = vshrl.u32 %v4210, 7
  %v4212 = vsub.s32 %v4209, %v4211
  %v4213 = vrot.slane %v4199, %v4212
  %v4214 = vcombine.low %v4206, %v4213
  %v4215 = vcombine.low %v3839, %v3838
  %v4216 = vcombine.low %v3840, %v3848
  %v4218 = vunpack.c.l.s4 1983009808
  %v4219 = vunpack.c.0.s8 %v4218
  %v4220 = vlaneseq
  %v4221 = vshrl.u32 %v4220, 7
  %v4222 = vsub.s32 %v4219, %v4221
  %v4223 = vrot.slane %v4215, %v4222
  %v4225 = vunpack.c.l.s4 1983009808
  %v4226 = vunpack.c.0.s8 %v4225
  %v4227 = vlaneseq
  %v4228 = vshrl.u32 %v4227, 7
  %v4229 = vsub.s32 %v4226, %v4228
  %v4230 = vrot.slane %v4216, %v4229
  %v4231 = vcombine.low %v4223, %v4230
  %v4232 = vcombine.low %v3855, %v3857
  %v4233 = vcombine.low %v3865, %v3873
  %v4235 = vunpack.c.l.s4 1983009808
  %v4236 = vunpack.c.0.s8 %v4235
  %v4237 = vlaneseq
  %v4238 = vshrl.u32 %v4237, 7
  %v4239 = vsub.s32 %v4236, %v4238
  %v4240 = vrot.slane %v4232, %v4239
  %v4242 = vunpack.c.l.s4 1983009808
  %v4243 = vunpack.c.0.s8 %v4242
  %v4244 = vlaneseq
  %v4245 = vshrl.u32 %v4244, 7
  %v4246 = vsub.s32 %v4243, %v4245
  %v4247 = vrot.slane %v4233, %v4246
  %v4248 = vcombine.low %v4240, %v4247
  %v4249 = vcombine.low %v3872, %v3874
  %v4250 = vcombine.low %v3890, %v3889
  %v4252 = vunpack.c.l.s4 1983009808
  %v4253 = vunpack.c.0.s8 %v4252
  %v4254 = vlaneseq
  %v4255 = vshrl.u32 %v4254, 7
  %v4256 = vsub.s32 %v4253, %v4255
  %v4257 = vrot.slane %v4249, %v4256
  %v4259 = vunpack.c.l.s4 1983009808
  %v4260 = vunpack.c.0.s8 %v4259
  %v4261 = vlaneseq
  %v4262 = vshrl.u32 %v4261, 7
  %v4263 = vsub.s32 %v4260, %v4262
  %v4264 = vrot.slane %v4250, %v4263
  %v4265 = vcombine.low %v4257, %v4264
  %v4266 = vcombine.low %v3891, %v3899
  %v4267 = vcombine.low %v3907, %v3906
  %v4269 = vunpack.c.l.s4 1983009808
  %v4270 = vunpack.c.0.s8 %v4269
  %v4271 = vlaneseq
  %v4272 = vshrl.u32 %v4271, 7
  %v4273 = vsub.s32 %v4270, %v4272
  %v4274 = vrot.slane %v4266, %v4273
  %v4276 = vunpack.c.l.s4 1983009808
  %v4277 = vunpack.c.0.s8 %v4276
  %v4278 = vlaneseq
  %v4279 = vshrl.u32 %v4278, 7
  %v4280 = vsub.s32 %v4277, %v4279
  %v4281 = vrot.slane %v4267, %v4280
  %v4282 = vcombine.low %v4274, %v4281
  %v4283 = vcombine.low %v3916, %v3924
  %v4284 = vcombine.low %v3923, %v3925
  %v4286 = vunpack.c.l.s4 1983009808
  %v4287 = vunpack.c.0.s8 %v4286
  %v4288 = vlaneseq
  %v4289 = vshrl.u32 %v4288, 7
  %v4290 = vsub.s32 %v4287, %v4289
  %v4291 = vrot.slane %v4283, %v4290
  %v4293 = vunpack.c.l.s4 1983009808
  %v4294 = vunpack.c.0.s8 %v4293
  %v4295 = vlaneseq
  %v4296 = vshrl.u32 %v4295, 7
  %v4297 = vsub.s32 %v4294, %v4296
  %v4298 = vrot.slane %v4284, %v4297
  %v4299 = vcombine.low %v4291, %v4298
  %v4300 = vcombine.low %v3933, %v3941
  %v4301 = vcombine.low %v3942, %v3950
  %v4303 = vunpack.c.l.s4 1983009808
  %v4304 = vunpack.c.0.s8 %v4303
  %v4305 = vlaneseq
  %v4306 = vshrl.u32 %v4305, 7
  %v4307 = vsub.s32 %v4304, %v4306
  %v4308 = vrot.slane %v4300, %v4307
  %v4310 = vunpack.c.l.s4 1983009808
  %v4311 = vunpack.c.0.s8 %v4310
  %v4312 = vlaneseq
  %v4313 = vshrl.u32 %v4312, 7
  %v4314 = vsub.s32 %v4311, %v4313
  %v4315 = vrot.slane %v4301, %v4314
  %v4316 = vcombine.low %v4308, %v4315
  %v4317 = vcombine.low %v3958, %v3957
  %v4318 = vcombine.low %v3959, %v3967
  %v4320 = vunpack.c.l.s4 1983009808
  %v4321 = vunpack.c.0.s8 %v4320
  %v4322 = vlaneseq
  %v4323 = vshrl.u32 %v4322, 7
  %v4324 = vsub.s32 %v4321, %v4323
  %v4325 = vrot.slane %v4317, %v4324
  %v4327 = vunpack.c.l.s4 1983009808
  %v4328 = vunpack.c.0.s8 %v4327
  %v4329 = vlaneseq
  %v4330 = vshrl.u32 %v4329, 7
  %v4331 = vsub.s32 %v4328, %v4330
  %v4332 = vrot.slane %v4318, %v4331
  %v4333 = vcombine.low %v4325, %v4332
  %v4352 = vpack.c.bf16 %v4061, %v4044
  %v4353 = vpack.c.bf16 %v4095, %v4078
  %v4354 = vpack.c.bf16 %v4129, %v4112
  %v4355 = vpack.c.bf16 %v4163, %v4146
  %v4356 = vpack.c.bf16 %v4197, %v4180
  %v4357 = vpack.c.bf16 %v4231, %v4214
  %v4358 = vpack.c.bf16 %v4265, %v4248
  %v4359 = vpack.c.bf16 %v4299, %v4282
  %v4360 = vpack.c.bf16 %v4333, %v4316
  %4361 = vst.msk [vmem:[#allocation3 + $0x90] sm:$0xff] %vm1983, %v4352
  %4362 = vst.msk [vmem:[#allocation3 + $0xa0] sm:$0xff] %vm1983, %v4353
  %4363 = vst.msk [vmem:[#allocation3 + $0xb0] sm:$0xff] %vm1983, %v4354
  %4364 = vst.msk [vmem:[#allocation3 + $0xc0] sm:$0xff] %vm1983, %v4355
  %4365 = vst.msk [vmem:[#allocation3 + $0xd0] sm:$0xff] %vm1983, %v4356
  %4366 = vst.msk [vmem:[#allocation3 + $0xe0] sm:$0xff] %vm1983, %v4357
  %4367 = vst.msk [vmem:[#allocation3 + $0xf0] sm:$0xff] %vm1983, %v4358
  %4368 = vst.msk [vmem:[#allocation3 + $0x100] sm:$0xff] %vm1983, %v4359
  %4369 = vst.msk [vmem:[#allocation3 + $0x110] sm:$0xff] %vm1983, %v4360
  %v4370 = vrot.slane %v3618, 7
  %v4371 = vrot.slane %v4370, 2
  %v4372 = vrot.slane %v3619, 7
  %v4373 = vsel %vm1999, %v4371, %v4372
  %v4374 = vrot.slane %v4372, 2
  %v4375 = vrot.slane %v3627, 7
  %v4376 = vsel %vm1999, %v4374, %v4375
  %v4377 = vrot.slane %v4375, 2
  %v4378 = vrot.slane %v3635, 7
  %v4379 = vsel %vm1999, %v4377, %v4378
  %v4380 = vrot.slane %v4378, 2
  %v4381 = vrot.slane %v3634, 7
  %v4382 = vsel %vm1999, %v4380, %v4381
  %v4383 = vrot.slane %v4381, 2
  %v4384 = vrot.slane %v3636, 7
  %v4385 = vsel %vm1999, %v4383, %v4384
  %v4386 = vrot.slane %v4384, 2
  %v4387 = vrot.slane %v3644, 7
  %v4388 = vsel %vm1999, %v4386, %v4387
  %v4389 = vrot.slane %v3652, 7
  %v4390 = vrot.slane %v4389, 2
  %v4391 = vrot.slane %v3651, 7
  %v4392 = vsel %vm1999, %v4390, %v4391
  %v4393 = vrot.slane %v4391, 2
  %v4394 = vrot.slane %v3653, 7
  %v4395 = vsel %vm1999, %v4393, %v4394
  %v4396 = vrot.slane %v4394, 2
  %v4397 = vrot.slane %v3661, 7
  %v4398 = vsel %vm1999, %v4396, %v4397
  %v4399 = vrot.slane %v4397, 2
  %v4400 = vrot.slane %v3669, 7
  %v4401 = vsel %vm1999, %v4399, %v4400
  %v4402 = vrot.slane %v4400, 2
  %v4403 = vrot.slane %v3668, 7
  %v4404 = vsel %vm1999, %v4402, %v4403
  %v4405 = vrot.slane %v4403, 2
  %v4406 = vrot.slane %v3670, 7
  %v4407 = vsel %vm1999, %v4405, %v4406
  %v4408 = vrot.slane %v3678, 7
  %v4409 = vrot.slane %v4408, 2
  %v4410 = vrot.slane %v3686, 7
  %v4411 = vsel %vm1999, %v4409, %v4410
  %v4412 = vrot.slane %v4410, 2
  %v4413 = vrot.slane %v3685, 7
  %v4414 = vsel %vm1999, %v4412, %v4413
  %v4415 = vrot.slane %v4413, 2
  %v4416 = vrot.slane %v3687, 7
  %v4417 = vsel %vm1999, %v4415, %v4416
  %v4418 = vrot.slane %v4416, 2
  %v4419 = vrot.slane %v3695, 7
  %v4420 = vsel %vm1999, %v4418, %v4419
  %v4421 = vrot.slane %v4419, 2
  %v4422 = vrot.slane %v3703, 7
  %v4423 = vsel %vm1999, %v4421, %v4422
  %v4424 = vrot.slane %v4422, 2
  %v4425 = vrot.slane %v3702, 7
  %v4426 = vsel %vm1999, %v4424, %v4425
  %v4427 = vrot.slane %v3704, 7
  %v4428 = vrot.slane %v4427, 2
  %v4429 = vrot.slane %v3712, 7
  %v4430 = vsel %vm1999, %v4428, %v4429
  %v4431 = vrot.slane %v4429, 2
  %v4432 = vrot.slane %v3720, 7
  %v4433 = vsel %vm1999, %v4431, %v4432
  %v4434 = vrot.slane %v4432, 2
  %v4435 = vrot.slane %v3719, 7
  %v4436 = vsel %vm1999, %v4434, %v4435
  %v4437 = vrot.slane %v4435, 2
  %v4438 = vrot.slane %v3721, 7
  %v4439 = vsel %vm1999, %v4437, %v4438
  %v4440 = vrot.slane %v4438, 2
  %v4441 = vrot.slane %v3729, 7
  %v4442 = vsel %vm1999, %v4440, %v4441
  %v4443 = vrot.slane %v4441, 2
  %v4444 = vrot.slane %v3737, 7
  %v4445 = vsel %vm1999, %v4443, %v4444
  %v4446 = vrot.slane %v3736, 7
  %v4447 = vrot.slane %v4446, 2
  %v4448 = vrot.slane %v3738, 7
  %v4449 = vsel %vm1999, %v4447, %v4448
  %v4450 = vrot.slane %v4448, 2
  %v4451 = vrot.slane %v3746, 7
  %v4452 = vsel %vm1999, %v4450, %v4451
  %v4453 = vrot.slane %v4451, 2
  %v4454 = vrot.slane %v3754, 7
  %v4455 = vsel %vm1999, %v4453, %v4454
  %v4456 = vrot.slane %v4454, 2
  %v4457 = vrot.slane %v3753, 7
  %v4458 = vsel %vm1999, %v4456, %v4457
  %v4459 = vrot.slane %v4457, 2
  %v4460 = vrot.slane %v3755, 7
  %v4461 = vsel %vm1999, %v4459, %v4460
  %v4462 = vrot.slane %v4460, 2
  %v4463 = vrot.slane %v3763, 7
  %v4464 = vsel %vm1999, %v4462, %v4463
  %v4465 = vrot.slane %v3771, 7
  %v4466 = vrot.slane %v4465, 2
  %v4467 = vrot.slane %v3770, 7
  %v4468 = vsel %vm1999, %v4466, %v4467
  %v4469 = vrot.slane %v4467, 2
  %v4470 = vrot.slane %v3772, 7
  %v4471 = vsel %vm1999, %v4469, %v4470
  %v4472 = vrot.slane %v4470, 2
  %v4473 = vrot.slane %v3780, 7
  %v4474 = vsel %vm1999, %v4472, %v4473
  %v4475 = vrot.slane %v4473, 2
  %v4476 = vrot.slane %v3788, 7
  %v4477 = vsel %vm1999, %v4475, %v4476
  %v4478 = vrot.slane %v4476, 2
  %v4479 = vrot.slane %v3787, 7
  %v4480 = vsel %vm1999, %v4478, %v4479
  %v4481 = vrot.slane %v4479, 2
  %v4482 = vrot.slane %v3789, 7
  %v4483 = vsel %vm1999, %v4481, %v4482
  %v4484 = vrot.slane %v3797, 7
  %v4485 = vrot.slane %v4484, 2
  %v4486 = vrot.slane %v3805, 7
  %v4487 = vsel %vm1999, %v4485, %v4486
  %v4488 = vrot.slane %v4486, 2
  %v4489 = vrot.slane %v3804, 7
  %v4490 = vsel %vm1999, %v4488, %v4489
  %v4491 = vrot.slane %v4489, 2
  %v4492 = vrot.slane %v3806, 7
  %v4493 = vsel %vm1999, %v4491, %v4492
  %v4494 = vrot.slane %v4492, 2
  %v4495 = vrot.slane %v3814, 7
  %v4496 = vsel %vm1999, %v4494, %v4495
  %v4497 = vrot.slane %v4495, 2
  %v4498 = vrot.slane %v3822, 7
  %v4499 = vsel %vm1999, %v4497, %v4498
  %v4500 = vrot.slane %v4498, 2
  %v4501 = vrot.slane %v3821, 7
  %v4502 = vsel %vm1999, %v4500, %v4501
  %v4503 = vrot.slane %v3823, 7
  %v4504 = vrot.slane %v4503, 2
  %v4505 = vrot.slane %v3831, 7
  %v4506 = vsel %vm1999, %v4504, %v4505
  %v4507 = vrot.slane %v4505, 2
  %v4508 = vrot.slane %v3839, 7
  %v4509 = vsel %vm1999, %v4507, %v4508
  %v4510 = vrot.slane %v4508, 2
  %v4511 = vrot.slane %v3838, 7
  %v4512 = vsel %vm1999, %v4510, %v4511
  %v4513 = vrot.slane %v4511, 2
  %v4514 = vrot.slane %v3840, 7
  %v4515 = vsel %vm1999, %v4513, %v4514
  %v4516 = vrot.slane %v4514, 2
  %v4517 = vrot.slane %v3848, 7
  %v4518 = vsel %vm1999, %v4516, %v4517
  %v4519 = vrot.slane %v4517, 2
  %v4520 = vrot.slane %v3856, 7
  %v4521 = vsel %vm1999, %v4519, %v4520
  %v4522 = vrot.slane %v3855, 7
  %v4523 = vrot.slane %v4522, 2
  %v4524 = vrot.slane %v3857, 7
  %v4525 = vsel %vm1999, %v4523, %v4524
  %v4526 = vrot.slane %v4524, 2
  %v4527 = vrot.slane %v3865, 7
  %v4528 = vsel %vm1999, %v4526, %v4527
  %v4529 = vrot.slane %v4527, 2
  %v4530 = vrot.slane %v3873, 7
  %v4531 = vsel %vm1999, %v4529, %v4530
  %v4532 = vrot.slane %v4530, 2
  %v4533 = vrot.slane %v3872, 7
  %v4534 = vsel %vm1999, %v4532, %v4533
  %v4535 = vrot.slane %v4533, 2
  %v4536 = vrot.slane %v3874, 7
  %v4537 = vsel %vm1999, %v4535, %v4536
  %v4538 = vrot.slane %v4536, 2
  %v4539 = vrot.slane %v3882, 7
  %v4540 = vsel %vm1999, %v4538, %v4539
  %v4541 = vrot.slane %v3890, 7
  %v4542 = vrot.slane %v4541, 2
  %v4543 = vrot.slane %v3889, 7
  %v4544 = vsel %vm1999, %v4542, %v4543
  %v4545 = vrot.slane %v4543, 2
  %v4546 = vrot.slane %v3891, 7
  %v4547 = vsel %vm1999, %v4545, %v4546
  %v4548 = vrot.slane %v4546, 2
  %v4549 = vrot.slane %v3899, 7
  %v4550 = vsel %vm1999, %v4548, %v4549
  %v4551 = vrot.slane %v4549, 2
  %v4552 = vrot.slane %v3907, 7
  %v4553 = vsel %vm1999, %v4551, %v4552
  %v4554 = vrot.slane %v4552, 2
  %v4555 = vrot.slane %v3906, 7
  %v4556 = vsel %vm1999, %v4554, %v4555
  %v4557 = vrot.slane %v4555, 2
  %v4558 = vrot.slane %v3908, 7
  %v4559 = vsel %vm1999, %v4557, %v4558
  %v4560 = vrot.slane %v3916, 7
  %v4561 = vrot.slane %v4560, 2
  %v4562 = vrot.slane %v3924, 7
  %v4563 = vsel %vm1999, %v4561, %v4562
  %v4564 = vrot.slane %v4562, 2
  %v4565 = vrot.slane %v3923, 7
  %v4566 = vsel %vm1999, %v4564, %v4565
  %v4567 = vrot.slane %v4565, 2
  %v4568 = vrot.slane %v3925, 7
  %v4569 = vsel %vm1999, %v4567, %v4568
  %v4570 = vrot.slane %v4568, 2
  %v4571 = vrot.slane %v3933, 7
  %v4572 = vsel %vm1999, %v4570, %v4571
  %v4573 = vrot.slane %v4571, 2
  %v4574 = vrot.slane %v3941, 7
  %v4575 = vsel %vm1999, %v4573, %v4574
  %v4576 = vrot.slane %v4574, 2
  %v4577 = vrot.slane %v3940, 7
  %v4578 = vsel %vm1999, %v4576, %v4577
  %v4579 = vrot.slane %v3942, 7
  %v4580 = vrot.slane %v4579, 2
  %v4581 = vrot.slane %v3950, 7
  %v4582 = vsel %vm1999, %v4580, %v4581
  %v4583 = vrot.slane %v4581, 2
  %v4584 = vrot.slane %v3958, 7
  %v4585 = vsel %vm1999, %v4583, %v4584
  %v4586 = vrot.slane %v4584, 2
  %v4587 = vrot.slane %v3957, 7
  %v4588 = vsel %vm1999, %v4586, %v4587
  %v4589 = vrot.slane %v4587, 2
  %v4590 = vrot.slane %v3959, 7
  %v4591 = vsel %vm1999, %v4589, %v4590
  %v4592 = vrot.slane %v4590, 2
  %v4593 = vrot.slane %v3967, 7
  %v4594 = vsel %vm1999, %v4592, %v4593
  %v4595 = vrot.slane %v4593, 2
  %v4596 = vrot.slane %v3975, 7
  %v4597 = vsel %vm1999, %v4595, %v4596
  %v4598 = vcombine.low %v4373, %v4376
  %v4599 = vcombine.low %v4379, %v4382
  %v4601 = vunpack.c.l.s4 1983009808
  %v4602 = vunpack.c.0.s8 %v4601
  %v4603 = vlaneseq
  %v4604 = vshrl.u32 %v4603, 7
  %v4605 = vsub.s32 %v4602, %v4604
  %v4606 = vrot.slane %v4598, %v4605
  %v4608 = vunpack.c.l.s4 1983009808
  %v4609 = vunpack.c.0.s8 %v4608
  %v4610 = vlaneseq
  %v4611 = vshrl.u32 %v4610, 7
  %v4612 = vsub.s32 %v4609, %v4611
  %v4613 = vrot.slane %v4599, %v4612
  %v4614 = vcombine.low %v4606, %v4613
  %v4615 = vcombine.low %v4385, %v4388
  %v4616 = vcombine.low %v4392, %v4395
  %v4618 = vunpack.c.l.s4 1983009808
  %v4619 = vunpack.c.0.s8 %v4618
  %v4620 = vlaneseq
  %v4621 = vshrl.u32 %v4620, 7
  %v4622 = vsub.s32 %v4619, %v4621
  %v4623 = vrot.slane %v4615, %v4622
  %v4625 = vunpack.c.l.s4 1983009808
  %v4626 = vunpack.c.0.s8 %v4625
  %v4627 = vlaneseq
  %v4628 = vshrl.u32 %v4627, 7
  %v4629 = vsub.s32 %v4626, %v4628
  %v4630 = vrot.slane %v4616, %v4629
  %v4631 = vcombine.low %v4623, %v4630
  %v4632 = vcombine.low %v4398, %v4401
  %v4633 = vcombine.low %v4404, %v4407
  %v4635 = vunpack.c.l.s4 1983009808
  %v4636 = vunpack.c.0.s8 %v4635
  %v4637 = vlaneseq
  %v4638 = vshrl.u32 %v4637, 7
  %v4639 = vsub.s32 %v4636, %v4638
  %v4640 = vrot.slane %v4632, %v4639
  %v4642 = vunpack.c.l.s4 1983009808
  %v4643 = vunpack.c.0.s8 %v4642
  %v4644 = vlaneseq
  %v4645 = vshrl.u32 %v4644, 7
  %v4646 = vsub.s32 %v4643, %v4645
  %v4647 = vrot.slane %v4633, %v4646
  %v4648 = vcombine.low %v4640, %v4647
  %v4649 = vcombine.low %v4411, %v4414
  %v4650 = vcombine.low %v4417, %v4420
  %v4652 = vunpack.c.l.s4 1983009808
  %v4653 = vunpack.c.0.s8 %v4652
  %v4654 = vlaneseq
  %v4655 = vshrl.u32 %v4654, 7
  %v4656 = vsub.s32 %v4653, %v4655
  %v4657 = vrot.slane %v4649, %v4656
  %v4659 = vunpack.c.l.s4 1983009808
  %v4660 = vunpack.c.0.s8 %v4659
  %v4661 = vlaneseq
  %v4662 = vshrl.u32 %v4661, 7
  %v4663 = vsub.s32 %v4660, %v4662
  %v4664 = vrot.slane %v4650, %v4663
  %v4665 = vcombine.low %v4657, %v4664
  %v4666 = vcombine.low %v4423, %v4426
  %v4667 = vcombine.low %v4430, %v4433
  %v4669 = vunpack.c.l.s4 1983009808
  %v4670 = vunpack.c.0.s8 %v4669
  %v4671 = vlaneseq
  %v4672 = vshrl.u32 %v4671, 7
  %v4673 = vsub.s32 %v4670, %v4672
  %v4674 = vrot.slane %v4666, %v4673
  %v4676 = vunpack.c.l.s4 1983009808
  %v4677 = vunpack.c.0.s8 %v4676
  %v4678 = vlaneseq
  %v4679 = vshrl.u32 %v4678, 7
  %v4680 = vsub.s32 %v4677, %v4679
  %v4681 = vrot.slane %v4667, %v4680
  %v4682 = vcombine.low %v4674, %v4681
  %v4683 = vcombine.low %v4436, %v4439
  %v4684 = vcombine.low %v4442, %v4445
  %v4686 = vunpack.c.l.s4 1983009808
  %v4687 = vunpack.c.0.s8 %v4686
  %v4688 = vlaneseq
  %v4689 = vshrl.u32 %v4688, 7
  %v4690 = vsub.s32 %v4687, %v4689
  %v4691 = vrot.slane %v4683, %v4690
  %v4693 = vunpack.c.l.s4 1983009808
  %v4694 = vunpack.c.0.s8 %v4693
  %v4695 = vlaneseq
  %v4696 = vshrl.u32 %v4695, 7
  %v4697 = vsub.s32 %v4694, %v4696
  %v4698 = vrot.slane %v4684, %v4697
  %v4699 = vcombine.low %v4691, %v4698
  %v4700 = vcombine.low %v4449, %v4452
  %v4701 = vcombine.low %v4455, %v4458
  %v4703 = vunpack.c.l.s4 1983009808
  %v4704 = vunpack.c.0.s8 %v4703
  %v4705 = vlaneseq
  %v4706 = vshrl.u32 %v4705, 7
  %v4707 = vsub.s32 %v4704, %v4706
  %v4708 = vrot.slane %v4700, %v4707
  %v4710 = vunpack.c.l.s4 1983009808
  %v4711 = vunpack.c.0.s8 %v4710
  %v4712 = vlaneseq
  %v4713 = vshrl.u32 %v4712, 7
  %v4714 = vsub.s32 %v4711, %v4713
  %v4715 = vrot.slane %v4701, %v4714
  %v4716 = vcombine.low %v4708, %v4715
  %v4717 = vcombine.low %v4461, %v4464
  %v4718 = vcombine.low %v4468, %v4471
  %v4720 = vunpack.c.l.s4 1983009808
  %v4721 = vunpack.c.0.s8 %v4720
  %v4722 = vlaneseq
  %v4723 = vshrl.u32 %v4722, 7
  %v4724 = vsub.s32 %v4721, %v4723
  %v4725 = vrot.slane %v4717, %v4724
  %v4727 = vunpack.c.l.s4 1983009808
  %v4728 = vunpack.c.0.s8 %v4727
  %v4729 = vlaneseq
  %v4730 = vshrl.u32 %v4729, 7
  %v4731 = vsub.s32 %v4728, %v4730
  %v4732 = vrot.slane %v4718, %v4731
  %v4733 = vcombine.low %v4725, %v4732
  %v4734 = vcombine.low %v4474, %v4477
  %v4735 = vcombine.low %v4480, %v4483
  %v4737 = vunpack.c.l.s4 1983009808
  %v4738 = vunpack.c.0.s8 %v4737
  %v4739 = vlaneseq
  %v4740 = vshrl.u32 %v4739, 7
  %v4741 = vsub.s32 %v4738, %v4740
  %v4742 = vrot.slane %v4734, %v4741
  %v4744 = vunpack.c.l.s4 1983009808
  %v4745 = vunpack.c.0.s8 %v4744
  %v4746 = vlaneseq
  %v4747 = vshrl.u32 %v4746, 7
  %v4748 = vsub.s32 %v4745, %v4747
  %v4749 = vrot.slane %v4735, %v4748
  %v4750 = vcombine.low %v4742, %v4749
  %v4751 = vcombine.low %v4487, %v4490
  %v4752 = vcombine.low %v4493, %v4496
  %v4754 = vunpack.c.l.s4 1983009808
  %v4755 = vunpack.c.0.s8 %v4754
  %v4756 = vlaneseq
  %v4757 = vshrl.u32 %v4756, 7
  %v4758 = vsub.s32 %v4755, %v4757
  %v4759 = vrot.slane %v4751, %v4758
  %v4761 = vunpack.c.l.s4 1983009808
  %v4762 = vunpack.c.0.s8 %v4761
  %v4763 = vlaneseq
  %v4764 = vshrl.u32 %v4763, 7
  %v4765 = vsub.s32 %v4762, %v4764
  %v4766 = vrot.slane %v4752, %v4765
  %v4767 = vcombine.low %v4759, %v4766
  %v4768 = vcombine.low %v4499, %v4502
  %v4769 = vcombine.low %v4506, %v4509
  %v4771 = vunpack.c.l.s4 1983009808
  %v4772 = vunpack.c.0.s8 %v4771
  %v4773 = vlaneseq
  %v4774 = vshrl.u32 %v4773, 7
  %v4775 = vsub.s32 %v4772, %v4774
  %v4776 = vrot.slane %v4768, %v4775
  %v4778 = vunpack.c.l.s4 1983009808
  %v4779 = vunpack.c.0.s8 %v4778
  %v4780 = vlaneseq
  %v4781 = vshrl.u32 %v4780, 7
  %v4782 = vsub.s32 %v4779, %v4781
  %v4783 = vrot.slane %v4769, %v4782
  %v4784 = vcombine.low %v4776, %v4783
  %v4785 = vcombine.low %v4512, %v4515
  %v4786 = vcombine.low %v4518, %v4521
  %v4788 = vunpack.c.l.s4 1983009808
  %v4789 = vunpack.c.0.s8 %v4788
  %v4790 = vlaneseq
  %v4791 = vshrl.u32 %v4790, 7
  %v4792 = vsub.s32 %v4789, %v4791
  %v4793 = vrot.slane %v4785, %v4792
  %v4795 = vunpack.c.l.s4 1983009808
  %v4796 = vunpack.c.0.s8 %v4795
  %v4797 = vlaneseq
  %v4798 = vshrl.u32 %v4797, 7
  %v4799 = vsub.s32 %v4796, %v4798
  %v4800 = vrot.slane %v4786, %v4799
  %v4801 = vcombine.low %v4793, %v4800
  %v4802 = vcombine.low %v4525, %v4528
  %v4803 = vcombine.low %v4531, %v4534
  %v4805 = vunpack.c.l.s4 1983009808
  %v4806 = vunpack.c.0.s8 %v4805
  %v4807 = vlaneseq
  %v4808 = vshrl.u32 %v4807, 7
  %v4809 = vsub.s32 %v4806, %v4808
  %v4810 = vrot.slane %v4802, %v4809
  %v4812 = vunpack.c.l.s4 1983009808
  %v4813 = vunpack.c.0.s8 %v4812
  %v4814 = vlaneseq
  %v4815 = vshrl.u32 %v4814, 7
  %v4816 = vsub.s32 %v4813, %v4815
  %v4817 = vrot.slane %v4803, %v4816
  %v4818 = vcombine.low %v4810, %v4817
  %v4819 = vcombine.low %v4537, %v4540
  %v4820 = vcombine.low %v4544, %v4547
  %v4822 = vunpack.c.l.s4 1983009808
  %v4823 = vunpack.c.0.s8 %v4822
  %v4824 = vlaneseq
  %v4825 = vshrl.u32 %v4824, 7
  %v4826 = vsub.s32 %v4823, %v4825
  %v4827 = vrot.slane %v4819, %v4826
  %v4829 = vunpack.c.l.s4 1983009808
  %v4830 = vunpack.c.0.s8 %v4829
  %v4831 = vlaneseq
  %v4832 = vshrl.u32 %v4831, 7
  %v4833 = vsub.s32 %v4830, %v4832
  %v4834 = vrot.slane %v4820, %v4833
  %v4835 = vcombine.low %v4827, %v4834
  %v4836 = vcombine.low %v4550, %v4553
  %v4837 = vcombine.low %v4556, %v4559
  %v4839 = vunpack.c.l.s4 1983009808
  %v4840 = vunpack.c.0.s8 %v4839
  %v4841 = vlaneseq
  %v4842 = vshrl.u32 %v4841, 7
  %v4843 = vsub.s32 %v4840, %v4842
  %v4844 = vrot.slane %v4836, %v4843
  %v4846 = vunpack.c.l.s4 1983009808
  %v4847 = vunpack.c.0.s8 %v4846
  %v4848 = vlaneseq
  %v4849 = vshrl.u32 %v4848, 7
  %v4850 = vsub.s32 %v4847, %v4849
  %v4851 = vrot.slane %v4837, %v4850
  %v4852 = vcombine.low %v4844, %v4851
  %v4853 = vcombine.low %v4563, %v4566
  %v4854 = vcombine.low %v4569, %v4572
  %v4856 = vunpack.c.l.s4 1983009808
  %v4857 = vunpack.c.0.s8 %v4856
  %v4858 = vlaneseq
  %v4859 = vshrl.u32 %v4858, 7
  %v4860 = vsub.s32 %v4857, %v4859
  %v4861 = vrot.slane %v4853, %v4860
  %v4863 = vunpack.c.l.s4 1983009808
  %v4864 = vunpack.c.0.s8 %v4863
  %v4865 = vlaneseq
  %v4866 = vshrl.u32 %v4865, 7
  %v4867 = vsub.s32 %v4864, %v4866
  %v4868 = vrot.slane %v4854, %v4867
  %v4869 = vcombine.low %v4861, %v4868
  %v4870 = vcombine.low %v4575, %v4578
  %v4871 = vcombine.low %v4582, %v4585
  %v4873 = vunpack.c.l.s4 1983009808
  %v4874 = vunpack.c.0.s8 %v4873
  %v4875 = vlaneseq
  %v4876 = vshrl.u32 %v4875, 7
  %v4877 = vsub.s32 %v4874, %v4876
  %v4878 = vrot.slane %v4870, %v4877
  %v4880 = vunpack.c.l.s4 1983009808
  %v4881 = vunpack.c.0.s8 %v4880
  %v4882 = vlaneseq
  %v4883 = vshrl.u32 %v4882, 7
  %v4884 = vsub.s32 %v4881, %v4883
  %v4885 = vrot.slane %v4871, %v4884
  %v4886 = vcombine.low %v4878, %v4885
  %v4887 = vcombine.low %v4588, %v4591
  %v4888 = vcombine.low %v4594, %v4597
  %v4890 = vunpack.c.l.s4 1983009808
  %v4891 = vunpack.c.0.s8 %v4890
  %v4892 = vlaneseq
  %v4893 = vshrl.u32 %v4892, 7
  %v4894 = vsub.s32 %v4891, %v4893
  %v4895 = vrot.slane %v4887, %v4894
  %v4897 = vunpack.c.l.s4 1983009808
  %v4898 = vunpack.c.0.s8 %v4897
  %v4899 = vlaneseq
  %v4900 = vshrl.u32 %v4899, 7
  %v4901 = vsub.s32 %v4898, %v4900
  %v4902 = vrot.slane %v4888, %v4901
  %v4903 = vcombine.low %v4895, %v4902
  %v4922 = vpack.c.bf16 %v4631, %v4614
  %v4923 = vpack.c.bf16 %v4665, %v4648
  %v4924 = vpack.c.bf16 %v4699, %v4682
  %v4925 = vpack.c.bf16 %v4733, %v4716
  %v4926 = vpack.c.bf16 %v4767, %v4750
  %v4927 = vpack.c.bf16 %v4801, %v4784
  %v4928 = vpack.c.bf16 %v4835, %v4818
  %v4929 = vpack.c.bf16 %v4869, %v4852
  %v4930 = vpack.c.bf16 %v4903, %v4886
  %4940 = vrot.lane.b32.xlu0 %v4922, 16
  %v4941 = vpop.permute.xlu0 %4940
  %4942 = vrot.lane.b32.xlu0 %v4923, 16
  %v4943 = vpop.permute.xlu0 %4942
  %4944 = vrot.lane.b32.xlu0 %v4924, 16
  %v4945 = vpop.permute.xlu0 %4944
  %4946 = vrot.lane.b32.xlu0 %v4925, 16
  %v4947 = vpop.permute.xlu0 %4946
  %4948 = vrot.lane.b32.xlu0 %v4926, 16
  %v4949 = vpop.permute.xlu0 %4948
  %4950 = vrot.lane.b32.xlu0 %v4927, 16
  %v4951 = vpop.permute.xlu0 %4950
  %4952 = vrot.lane.b32.xlu0 %v4928, 16
  %v4953 = vpop.permute.xlu0 %4952
  %4954 = vrot.lane.b32.xlu0 %v4929, 16
  %v4955 = vpop.permute.xlu0 %4954
  %4956 = vrot.lane.b32.xlu0 %v4930, 16
  %v4957 = vpop.permute.xlu0 %4956
  %4967 = vst.msk [vmem:[#allocation3 + $0x90] sm:$0xff] %vm2597, %v4941
  %4968 = vst.msk [vmem:[#allocation3 + $0xa0] sm:$0xff] %vm2597, %v4943
  %4969 = vst.msk [vmem:[#allocation3 + $0xb0] sm:$0xff] %vm2597, %v4945
  %4970 = vst.msk [vmem:[#allocation3 + $0xc0] sm:$0xff] %vm2597, %v4947
  %4971 = vst.msk [vmem:[#allocation3 + $0xd0] sm:$0xff] %vm2597, %v4949
  %4972 = vst.msk [vmem:[#allocation3 + $0xe0] sm:$0xff] %vm2597, %v4951
  %4973 = vst.msk [vmem:[#allocation3 + $0xf0] sm:$0xff] %vm2597, %v4953
  %4974 = vst.msk [vmem:[#allocation3 + $0x100] sm:$0xff] %vm2597, %v4955
  %4975 = vst.msk [vmem:[#allocation3 + $0x110] sm:$0xff] %vm2597, %v4957
  %v4976 = vcombine.low %v3619, %v3627
  %v4977 = vcombine.low %v3635, %v3634
  %v4979 = vunpack.c.l.s4 1983009808
  %v4980 = vunpack.c.0.s8 %v4979
  %v4981 = vlaneseq
  %v4982 = vshrl.u32 %v4981, 7
  %v4983 = vsub.s32 %v4980, %v4982
  %v4984 = vrot.slane %v4976, %v4983
  %v4986 = vunpack.c.l.s4 1983009808
  %v4987 = vunpack.c.0.s8 %v4986
  %v4988 = vlaneseq
  %v4989 = vshrl.u32 %v4988, 7
  %v4990 = vsub.s32 %v4987, %v4989
  %v4991 = vrot.slane %v4977, %v4990
  %v4992 = vcombine.low %v4984, %v4991
  %v4993 = vcombine.low %v3636, %v3644
  %v4994 = vcombine.low %v3651, %v3653
  %v4996 = vunpack.c.l.s4 1983009808
  %v4997 = vunpack.c.0.s8 %v4996
  %v4998 = vlaneseq
  %v4999 = vshrl.u32 %v4998, 7
  %v5000 = vsub.s32 %v4997, %v4999
  %v5001 = vrot.slane %v4993, %v5000
  %v5003 = vunpack.c.l.s4 1983009808
  %v5004 = vunpack.c.0.s8 %v5003
  %v5005 = vlaneseq
  %v5006 = vshrl.u32 %v5005, 7
  %v5007 = vsub.s32 %v5004, %v5006
  %v5008 = vrot.slane %v4994, %v5007
  %v5009 = vcombine.low %v5001, %v5008
  %v5010 = vcombine.low %v3661, %v3669
  %v5011 = vcombine.low %v3668, %v3670
  %v5013 = vunpack.c.l.s4 1983009808
  %v5014 = vunpack.c.0.s8 %v5013
  %v5015 = vlaneseq
  %v5016 = vshrl.u32 %v5015, 7
  %v5017 = vsub.s32 %v5014, %v5016
  %v5018 = vrot.slane %v5010, %v5017
  %v5020 = vunpack.c.l.s4 1983009808
  %v5021 = vunpack.c.0.s8 %v5020
  %v5022 = vlaneseq
  %v5023 = vshrl.u32 %v5022, 7
  %v5024 = vsub.s32 %v5021, %v5023
  %v5025 = vrot.slane %v5011, %v5024
  %v5026 = vcombine.low %v5018, %v5025
  %v5027 = vcombine.low %v3686, %v3685
  %v5028 = vcombine.low %v3687, %v3695
  %v5030 = vunpack.c.l.s4 1983009808
  %v5031 = vunpack.c.0.s8 %v5030
  %v5032 = vlaneseq
  %v5033 = vshrl.u32 %v5032, 7
  %v5034 = vsub.s32 %v5031, %v5033
  %v5035 = vrot.slane %v5027, %v5034
  %v5037 = vunpack.c.l.s4 1983009808
  %v5038 = vunpack.c.0.s8 %v5037
  %v5039 = vlaneseq
  %v5040 = vshrl.u32 %v5039, 7
  %v5041 = vsub.s32 %v5038, %v5040
  %v5042 = vrot.slane %v5028, %v5041
  %v5043 = vcombine.low %v5035, %v5042
  %v5044 = vcombine.low %v3703, %v3702
  %v5045 = vcombine.low %v3712, %v3720
  %v5047 = vunpack.c.l.s4 1983009808
  %v5048 = vunpack.c.0.s8 %v5047
  %v5049 = vlaneseq
  %v5050 = vshrl.u32 %v5049, 7
  %v5051 = vsub.s32 %v5048, %v5050
  %v5052 = vrot.slane %v5044, %v5051
  %v5054 = vunpack.c.l.s4 1983009808
  %v5055 = vunpack.c.0.s8 %v5054
  %v5056 = vlaneseq
  %v5057 = vshrl.u32 %v5056, 7
  %v5058 = vsub.s32 %v5055, %v5057
  %v5059 = vrot.slane %v5045, %v5058
  %v5060 = vcombine.low %v5052, %v5059
  %v5061 = vcombine.low %v3719, %v3721
  %v5062 = vcombine.low %v3729, %v3737
  %v5064 = vunpack.c.l.s4 1983009808
  %v5065 = vunpack.c.0.s8 %v5064
  %v5066 = vlaneseq
  %v5067 = vshrl.u32 %v5066, 7
  %v5068 = vsub.s32 %v5065, %v5067
  %v5069 = vrot.slane %v5061, %v5068
  %v5071 = vunpack.c.l.s4 1983009808
  %v5072 = vunpack.c.0.s8 %v5071
  %v5073 = vlaneseq
  %v5074 = vshrl.u32 %v5073, 7
  %v5075 = vsub.s32 %v5072, %v5074
  %v5076 = vrot.slane %v5062, %v5075
  %v5077 = vcombine.low %v5069, %v5076
  %v5078 = vcombine.low %v3738, %v3746
  %v5079 = vcombine.low %v3754, %v3753
  %v5081 = vunpack.c.l.s4 1983009808
  %v5082 = vunpack.c.0.s8 %v5081
  %v5083 = vlaneseq
  %v5084 = vshrl.u32 %v5083, 7
  %v5085 = vsub.s32 %v5082, %v5084
  %v5086 = vrot.slane %v5078, %v5085
  %v5088 = vunpack.c.l.s4 1983009808
  %v5089 = vunpack.c.0.s8 %v5088
  %v5090 = vlaneseq
  %v5091 = vshrl.u32 %v5090, 7
  %v5092 = vsub.s32 %v5089, %v5091
  %v5093 = vrot.slane %v5079, %v5092
  %v5094 = vcombine.low %v5086, %v5093
  %v5095 = vcombine.low %v3755, %v3763
  %v5096 = vcombine.low %v3770, %v3772
  %v5098 = vunpack.c.l.s4 1983009808
  %v5099 = vunpack.c.0.s8 %v5098
  %v5100 = vlaneseq
  %v5101 = vshrl.u32 %v5100, 7
  %v5102 = vsub.s32 %v5099, %v5101
  %v5103 = vrot.slane %v5095, %v5102
  %v5105 = vunpack.c.l.s4 1983009808
  %v5106 = vunpack.c.0.s8 %v5105
  %v5107 = vlaneseq
  %v5108 = vshrl.u32 %v5107, 7
  %v5109 = vsub.s32 %v5106, %v5108
  %v5110 = vrot.slane %v5096, %v5109
  %v5111 = vcombine.low %v5103, %v5110
  %v5112 = vcombine.low %v3780, %v3788
  %v5113 = vcombine.low %v3787, %v3789
  %v5115 = vunpack.c.l.s4 1983009808
  %v5116 = vunpack.c.0.s8 %v5115
  %v5117 = vlaneseq
  %v5118 = vshrl.u32 %v5117, 7
  %v5119 = vsub.s32 %v5116, %v5118
  %v5120 = vrot.slane %v5112, %v5119
  %v5122 = vunpack.c.l.s4 1983009808
  %v5123 = vunpack.c.0.s8 %v5122
  %v5124 = vlaneseq
  %v5125 = vshrl.u32 %v5124, 7
  %v5126 = vsub.s32 %v5123, %v5125
  %v5127 = vrot.slane %v5113, %v5126
  %v5128 = vcombine.low %v5120, %v5127
  %v5129 = vcombine.low %v3805, %v3804
  %v5130 = vcombine.low %v3806, %v3814
  %v5132 = vunpack.c.l.s4 1983009808
  %v5133 = vunpack.c.0.s8 %v5132
  %v5134 = vlaneseq
  %v5135 = vshrl.u32 %v5134, 7
  %v5136 = vsub.s32 %v5133, %v5135
  %v5137 = vrot.slane %v5129, %v5136
  %v5139 = vunpack.c.l.s4 1983009808
  %v5140 = vunpack.c.0.s8 %v5139
  %v5141 = vlaneseq
  %v5142 = vshrl.u32 %v5141, 7
  %v5143 = vsub.s32 %v5140, %v5142
  %v5144 = vrot.slane %v5130, %v5143
  %v5145 = vcombine.low %v5137, %v5144
  %v5146 = vcombine.low %v3822, %v3821
  %v5147 = vcombine.low %v3831, %v3839
  %v5149 = vunpack.c.l.s4 1983009808
  %v5150 = vunpack.c.0.s8 %v5149
  %v5151 = vlaneseq
  %v5152 = vshrl.u32 %v5151, 7
  %v5153 = vsub.s32 %v5150, %v5152
  %v5154 = vrot.slane %v5146, %v5153
  %v5156 = vunpack.c.l.s4 1983009808
  %v5157 = vunpack.c.0.s8 %v5156
  %v5158 = vlaneseq
  %v5159 = vshrl.u32 %v5158, 7
  %v5160 = vsub.s32 %v5157, %v5159
  %v5161 = vrot.slane %v5147, %v5160
  %v5162 = vcombine.low %v5154, %v5161
  %v5163 = vcombine.low %v3838, %v3840
  %v5164 = vcombine.low %v3848, %v3856
  %v5166 = vunpack.c.l.s4 1983009808
  %v5167 = vunpack.c.0.s8 %v5166
  %v5168 = vlaneseq
  %v5169 = vshrl.u32 %v5168, 7
  %v5170 = vsub.s32 %v5167, %v5169
  %v5171 = vrot.slane %v5163, %v5170
  %v5173 = vunpack.c.l.s4 1983009808
  %v5174 = vunpack.c.0.s8 %v5173
  %v5175 = vlaneseq
  %v5176 = vshrl.u32 %v5175, 7
  %v5177 = vsub.s32 %v5174, %v5176
  %v5178 = vrot.slane %v5164, %v5177
  %v5179 = vcombine.low %v5171, %v5178
  %v5180 = vcombine.low %v3857, %v3865
  %v5181 = vcombine.low %v3873, %v3872
  %v5183 = vunpack.c.l.s4 1983009808
  %v5184 = vunpack.c.0.s8 %v5183
  %v5185 = vlaneseq
  %v5186 = vshrl.u32 %v5185, 7
  %v5187 = vsub.s32 %v5184, %v5186
  %v5188 = vrot.slane %v5180, %v5187
  %v5190 = vunpack.c.l.s4 1983009808
  %v5191 = vunpack.c.0.s8 %v5190
  %v5192 = vlaneseq
  %v5193 = vshrl.u32 %v5192, 7
  %v5194 = vsub.s32 %v5191, %v5193
  %v5195 = vrot.slane %v5181, %v5194
  %v5196 = vcombine.low %v5188, %v5195
  %v5197 = vcombine.low %v3874, %v3882
  %v5198 = vcombine.low %v3889, %v3891
  %v5200 = vunpack.c.l.s4 1983009808
  %v5201 = vunpack.c.0.s8 %v5200
  %v5202 = vlaneseq
  %v5203 = vshrl.u32 %v5202, 7
  %v5204 = vsub.s32 %v5201, %v5203
  %v5205 = vrot.slane %v5197, %v5204
  %v5207 = vunpack.c.l.s4 1983009808
  %v5208 = vunpack.c.0.s8 %v5207
  %v5209 = vlaneseq
  %v5210 = vshrl.u32 %v5209, 7
  %v5211 = vsub.s32 %v5208, %v5210
  %v5212 = vrot.slane %v5198, %v5211
  %v5213 = vcombine.low %v5205, %v5212
  %v5214 = vcombine.low %v3899, %v3907
  %v5215 = vcombine.low %v3906, %v3908
  %v5217 = vunpack.c.l.s4 1983009808
  %v5218 = vunpack.c.0.s8 %v5217
  %v5219 = vlaneseq
  %v5220 = vshrl.u32 %v5219, 7
  %v5221 = vsub.s32 %v5218, %v5220
  %v5222 = vrot.slane %v5214, %v5221
  %v5224 = vunpack.c.l.s4 1983009808
  %v5225 = vunpack.c.0.s8 %v5224
  %v5226 = vlaneseq
  %v5227 = vshrl.u32 %v5226, 7
  %v5228 = vsub.s32 %v5225, %v5227
  %v5229 = vrot.slane %v5215, %v5228
  %v5230 = vcombine.low %v5222, %v5229
  %v5231 = vcombine.low %v3924, %v3923
  %v5232 = vcombine.low %v3925, %v3933
  %v5234 = vunpack.c.l.s4 1983009808
  %v5235 = vunpack.c.0.s8 %v5234
  %v5236 = vlaneseq
  %v5237 = vshrl.u32 %v5236, 7
  %v5238 = vsub.s32 %v5235, %v5237
  %v5239 = vrot.slane %v5231, %v5238
  %v5241 = vunpack.c.l.s4 1983009808
  %v5242 = vunpack.c.0.s8 %v5241
  %v5243 = vlaneseq
  %v5244 = vshrl.u32 %v5243, 7
  %v5245 = vsub.s32 %v5242, %v5244
  %v5246 = vrot.slane %v5232, %v5245
  %v5247 = vcombine.low %v5239, %v5246
  %v5248 = vcombine.low %v3941, %v3940
  %v5249 = vcombine.low %v3950, %v3958
  %v5251 = vunpack.c.l.s4 1983009808
  %v5252 = vunpack.c.0.s8 %v5251
  %v5253 = vlaneseq
  %v5254 = vshrl.u32 %v5253, 7
  %v5255 = vsub.s32 %v5252, %v5254
  %v5256 = vrot.slane %v5248, %v5255
  %v5258 = vunpack.c.l.s4 1983009808
  %v5259 = vunpack.c.0.s8 %v5258
  %v5260 = vlaneseq
  %v5261 = vshrl.u32 %v5260, 7
  %v5262 = vsub.s32 %v5259, %v5261
  %v5263 = vrot.slane %v5249, %v5262
  %v5264 = vcombine.low %v5256, %v5263
  %v5265 = vcombine.low %v3957, %v3959
  %v5266 = vcombine.low %v3967, %v3975
  %v5268 = vunpack.c.l.s4 1983009808
  %v5269 = vunpack.c.0.s8 %v5268
  %v5270 = vlaneseq
  %v5271 = vshrl.u32 %v5270, 7
  %v5272 = vsub.s32 %v5269, %v5271
  %v5273 = vrot.slane %v5265, %v5272
  %v5275 = vunpack.c.l.s4 1983009808
  %v5276 = vunpack.c.0.s8 %v5275
  %v5277 = vlaneseq
  %v5278 = vshrl.u32 %v5277, 7
  %v5279 = vsub.s32 %v5276, %v5278
  %v5280 = vrot.slane %v5266, %v5279
  %v5281 = vcombine.low %v5273, %v5280
  %v5300 = vpack.c.bf16 %v5009, %v4992
  %v5301 = vpack.c.bf16 %v5043, %v5026
  %v5302 = vpack.c.bf16 %v5077, %v5060
  %v5303 = vpack.c.bf16 %v5111, %v5094
  %v5304 = vpack.c.bf16 %v5145, %v5128
  %v5305 = vpack.c.bf16 %v5179, %v5162
  %v5306 = vpack.c.bf16 %v5213, %v5196
  %v5307 = vpack.c.bf16 %v5247, %v5230
  %v5308 = vpack.c.bf16 %v5281, %v5264
  %5318 = vrot.lane.b32.xlu0 %v5300, 32
  %v5319 = vpop.permute.xlu0 %5318
  %5320 = vrot.lane.b32.xlu0 %v5301, 32
  %v5321 = vpop.permute.xlu0 %5320
  %5322 = vrot.lane.b32.xlu0 %v5302, 32
  %v5323 = vpop.permute.xlu0 %5322
  %5324 = vrot.lane.b32.xlu0 %v5303, 32
  %v5325 = vpop.permute.xlu0 %5324
  %5326 = vrot.lane.b32.xlu0 %v5304, 32
  %v5327 = vpop.permute.xlu0 %5326
  %5328 = vrot.lane.b32.xlu0 %v5305, 32
  %v5329 = vpop.permute.xlu0 %5328
  %5330 = vrot.lane.b32.xlu0 %v5306, 32
  %v5331 = vpop.permute.xlu0 %5330
  %5332 = vrot.lane.b32.xlu0 %v5307, 32
  %v5333 = vpop.permute.xlu0 %5332
  %5334 = vrot.lane.b32.xlu0 %v5308, 32
  %v5335 = vpop.permute.xlu0 %5334
  %5345 = vst.msk [vmem:[#allocation3 + $0x90] sm:$0xff] %vm2976, %v5319
  %5346 = vst.msk [vmem:[#allocation3 + $0xa0] sm:$0xff] %vm2976, %v5321
  %5347 = vst.msk [vmem:[#allocation3 + $0xb0] sm:$0xff] %vm2976, %v5323
  %5348 = vst.msk [vmem:[#allocation3 + $0xc0] sm:$0xff] %vm2976, %v5325
  %5349 = vst.msk [vmem:[#allocation3 + $0xd0] sm:$0xff] %vm2976, %v5327
  %5350 = vst.msk [vmem:[#allocation3 + $0xe0] sm:$0xff] %vm2976, %v5329
  %5351 = vst.msk [vmem:[#allocation3 + $0xf0] sm:$0xff] %vm2976, %v5331
  %5352 = vst.msk [vmem:[#allocation3 + $0x100] sm:$0xff] %vm2976, %v5333
  %5353 = vst.msk [vmem:[#allocation3 + $0x110] sm:$0xff] %vm2976, %v5335
  %v5354 = vcombine.low %v4060, %v4070
  %v5355 = vcombine.low %v4077, %v4087
  %v5356 = vcombine.low %v4094, %v4104
  %v5357 = vcombine.low %v4111, %v4121
  %v5358 = vcombine.low %v4128, %v4138
  %v5359 = vcombine.low %v4145, %v4155
  %v5360 = vcombine.low %v4162, %v4172
  %v5361 = vcombine.low %v4179, %v4189
  %v5362 = vcombine.low %v4196, %v4206
  %v5363 = vcombine.low %v4213, %v4223
  %v5364 = vcombine.low %v4230, %v4240
  %v5365 = vcombine.low %v4247, %v4257
  %v5366 = vcombine.low %v4264, %v4274
  %v5367 = vcombine.low %v4281, %v4291
  %v5368 = vcombine.low %v4298, %v4308
  %v5369 = vcombine.low %v4315, %v4325
  %v5370 = vcombine.low %v3974, %v3976
  %v5372 = vunpack.c.l.s4 1983009808
  %v5373 = vunpack.c.0.s8 %v5372
  %v5374 = vlaneseq
  %v5375 = vshrl.u32 %v5374, 7
  %v5376 = vsub.s32 %v5373, %v5375
  %v5377 = vrot.slane %v5370, %v5376
  %v5378 = vcombine.low %v4332, %v5377
  %v5379 = vcombine.low %v3984, %v3992
  %v5380 = vcombine.low %v3991, %v3993
  %v5382 = vunpack.c.l.s4 1983009808
  %v5383 = vunpack.c.0.s8 %v5382
  %v5384 = vlaneseq
  %v5385 = vshrl.u32 %v5384, 7
  %v5386 = vsub.s32 %v5383, %v5385
  %v5387 = vrot.slane %v5379, %v5386
  %v5389 = vunpack.c.l.s4 1983009808
  %v5390 = vunpack.c.0.s8 %v5389
  %v5391 = vlaneseq
  %v5392 = vshrl.u32 %v5391, 7
  %v5393 = vsub.s32 %v5390, %v5392
  %v5394 = vrot.slane %v5380, %v5393
  %v5395 = vcombine.low %v5387, %v5394
  %v5414 = vpack.c.bf16 %v5355, %v5354
  %v5415 = vpack.c.bf16 %v5357, %v5356
  %v5416 = vpack.c.bf16 %v5359, %v5358
  %v5417 = vpack.c.bf16 %v5361, %v5360
  %v5418 = vpack.c.bf16 %v5363, %v5362
  %v5419 = vpack.c.bf16 %v5365, %v5364
  %v5420 = vpack.c.bf16 %v5367, %v5366
  %v5421 = vpack.c.bf16 %v5369, %v5368
  %v5422 = vpack.c.bf16 %v5395, %v5378
  %5432 = vrot.lane.b32.xlu0 %v5414, 48
  %v5433 = vpop.permute.xlu0 %5432
  %5434 = vrot.lane.b32.xlu0 %v5415, 48
  %v5435 = vpop.permute.xlu0 %5434
  %5436 = vrot.lane.b32.xlu0 %v5416, 48
  %v5437 = vpop.permute.xlu0 %5436
  %5438 = vrot.lane.b32.xlu0 %v5417, 48
  %v5439 = vpop.permute.xlu0 %5438
  %5440 = vrot.lane.b32.xlu0 %v5418, 48
  %v5441 = vpop.permute.xlu0 %5440
  %5442 = vrot.lane.b32.xlu0 %v5419, 48
  %v5443 = vpop.permute.xlu0 %5442
  %5444 = vrot.lane.b32.xlu0 %v5420, 48
  %v5445 = vpop.permute.xlu0 %5444
  %5446 = vrot.lane.b32.xlu0 %v5421, 48
  %v5447 = vpop.permute.xlu0 %5446
  %5448 = vrot.lane.b32.xlu0 %v5422, 48
  %v5449 = vpop.permute.xlu0 %5448
  %5459 = vst.msk [vmem:[#allocation3 + $0x90] sm:$0xff] %vm3091, %v5433
  %5460 = vst.msk [vmem:[#allocation3 + $0xa0] sm:$0xff] %vm3091, %v5435
  %5461 = vst.msk [vmem:[#allocation3 + $0xb0] sm:$0xff] %vm3091, %v5437
  %5462 = vst.msk [vmem:[#allocation3 + $0xc0] sm:$0xff] %vm3091, %v5439
  %5463 = vst.msk [vmem:[#allocation3 + $0xd0] sm:$0xff] %vm3091, %v5441
  %5464 = vst.msk [vmem:[#allocation3 + $0xe0] sm:$0xff] %vm3091, %v5443
  %5465 = vst.msk [vmem:[#allocation3 + $0xf0] sm:$0xff] %vm3091, %v5445
  %5466 = vst.msk [vmem:[#allocation3 + $0x100] sm:$0xff] %vm3091, %v5447
  %5467 = vst.msk [vmem:[#allocation3 + $0x110] sm:$0xff] %vm3091, %v5449
  %v5468 = vrot.slane %v3974, 7
  %v5469 = vrot.slane %v5468, 2
  %v5470 = vrot.slane %v3976, 7
  %v5471 = vsel %vm1999, %v5469, %v5470
  %v5472 = vrot.slane %v5470, 2
  %v5473 = vrot.slane %v3984, 7
  %v5474 = vsel %vm1999, %v5472, %v5473
  %v5475 = vrot.slane %v5473, 2
  %v5476 = vrot.slane %v3992, 7
  %v5477 = vsel %vm1999, %v5475, %v5476
  %v5478 = vrot.slane %v5476, 2
  %v5479 = vrot.slane %v3991, 7
  %v5480 = vsel %vm1999, %v5478, %v5479
  %v5481 = vrot.slane %v5479, 2
  %v5482 = vrot.slane %v3993, 7
  %v5483 = vsel %vm1999, %v5481, %v5482
  %v5484 = vrot.slane %v5482, 2
  %v5485 = vrot.slane %v4001, 7
  %v5486 = vsel %vm1999, %v5484, %v5485
  %v5487 = vcombine.low %v4630, %v4640
  %v5488 = vcombine.low %v4647, %v4657
  %v5489 = vcombine.low %v4664, %v4674
  %v5490 = vcombine.low %v4681, %v4691
  %v5491 = vcombine.low %v4698, %v4708
  %v5492 = vcombine.low %v4715, %v4725
  %v5493 = vcombine.low %v4732, %v4742
  %v5494 = vcombine.low %v4749, %v4759
  %v5495 = vcombine.low %v4766, %v4776
  %v5496 = vcombine.low %v4783, %v4793
  %v5497 = vcombine.low %v4800, %v4810
  %v5498 = vcombine.low %v4817, %v4827
  %v5499 = vcombine.low %v4834, %v4844
  %v5500 = vcombine.low %v4851, %v4861
  %v5501 = vcombine.low %v4868, %v4878
  %v5502 = vcombine.low %v4885, %v4895
  %v5503 = vcombine.low %v5471, %v5474
  %v5505 = vunpack.c.l.s4 1983009808
  %v5506 = vunpack.c.0.s8 %v5505
  %v5507 = vlaneseq
  %v5508 = vshrl.u32 %v5507, 7
  %v5509 = vsub.s32 %v5506, %v5508
  %v5510 = vrot.slane %v5503, %v5509
  %v5511 = vcombine.low %v4902, %v5510
  %v5512 = vcombine.low %v5477, %v5480
  %v5513 = vcombine.low %v5483, %v5486
  %v5515 = vunpack.c.l.s4 1983009808
  %v5516 = vunpack.c.0.s8 %v5515
  %v5517 = vlaneseq
  %v5518 = vshrl.u32 %v5517, 7
  %v5519 = vsub.s32 %v5516, %v5518
  %v5520 = vrot.slane %v5512, %v5519
  %v5522 = vunpack.c.l.s4 1983009808
  %v5523 = vunpack.c.0.s8 %v5522
  %v5524 = vlaneseq
  %v5525 = vshrl.u32 %v5524, 7
  %v5526 = vsub.s32 %v5523, %v5525
  %v5527 = vrot.slane %v5513, %v5526
  %v5528 = vcombine.low %v5520, %v5527
  %v5547 = vpack.c.bf16 %v5488, %v5487
  %v5548 = vpack.c.bf16 %v5490, %v5489
  %v5549 = vpack.c.bf16 %v5492, %v5491
  %v5550 = vpack.c.bf16 %v5494, %v5493
  %v5551 = vpack.c.bf16 %v5496, %v5495
  %v5552 = vpack.c.bf16 %v5498, %v5497
  %v5553 = vpack.c.bf16 %v5500, %v5499
  %v5554 = vpack.c.bf16 %v5502, %v5501
  %v5555 = vpack.c.bf16 %v5528, %v5511
  %5565 = vrot.lane.b32.xlu0 %v5547, 64
  %v5566 = vpop.permute.xlu0 %5565
  %5567 = vrot.lane.b32.xlu0 %v5548, 64
  %v5568 = vpop.permute.xlu0 %5567
  %5569 = vrot.lane.b32.xlu0 %v5549, 64
  %v5570 = vpop.permute.xlu0 %5569
  %5571 = vrot.lane.b32.xlu0 %v5550, 64
  %v5572 = vpop.permute.xlu0 %5571
  %5573 = vrot.lane.b32.xlu0 %v5551, 64
  %v5574 = vpop.permute.xlu0 %5573
  %5575 = vrot.lane.b32.xlu0 %v5552, 64
  %v5576 = vpop.permute.xlu0 %5575
  %5577 = vrot.lane.b32.xlu0 %v5553, 64
  %v5578 = vpop.permute.xlu0 %5577
  %5579 = vrot.lane.b32.xlu0 %v5554, 64
  %v5580 = vpop.permute.xlu0 %5579
  %5581 = vrot.lane.b32.xlu0 %v5555, 64
  %v5582 = vpop.permute.xlu0 %5581
  %5592 = vst.msk [vmem:[#allocation3 + $0x90] sm:$0xff] %vm3225, %v5566
  %5593 = vst.msk [vmem:[#allocation3 + $0xa0] sm:$0xff] %vm3225, %v5568
  %5594 = vst.msk [vmem:[#allocation3 + $0xb0] sm:$0xff] %vm3225, %v5570
  %5595 = vst.msk [vmem:[#allocation3 + $0xc0] sm:$0xff] %vm3225, %v5572
  %5596 = vst.msk [vmem:[#allocation3 + $0xd0] sm:$0xff] %vm3225, %v5574
  %5597 = vst.msk [vmem:[#allocation3 + $0xe0] sm:$0xff] %vm3225, %v5576
  %5598 = vst.msk [vmem:[#allocation3 + $0xf0] sm:$0xff] %vm3225, %v5578
  %5599 = vst.msk [vmem:[#allocation3 + $0x100] sm:$0xff] %vm3225, %v5580
  %5600 = vst.msk [vmem:[#allocation3 + $0x110] sm:$0xff] %vm3225, %v5582
  %v5601 = vcombine.low %v5008, %v5018
  %v5602 = vcombine.low %v5025, %v5035
  %v5603 = vcombine.low %v5042, %v5052
  %v5604 = vcombine.low %v5059, %v5069
  %v5605 = vcombine.low %v5076, %v5086
  %v5606 = vcombine.low %v5093, %v5103
  %v5607 = vcombine.low %v5110, %v5120
  %v5608 = vcombine.low %v5127, %v5137
  %v5609 = vcombine.low %v5144, %v5154
  %v5610 = vcombine.low %v5161, %v5171
  %v5611 = vcombine.low %v5178, %v5188
  %v5612 = vcombine.low %v5195, %v5205
  %v5613 = vcombine.low %v5212, %v5222
  %v5614 = vcombine.low %v5229, %v5239
  %v5615 = vcombine.low %v5246, %v5256
  %v5616 = vcombine.low %v5263, %v5273
  %v5617 = vcombine.low %v3976, %v3984
  %v5619 = vunpack.c.l.s4 1983009808
  %v5620 = vunpack.c.0.s8 %v5619
  %v5621 = vlaneseq
  %v5622 = vshrl.u32 %v5621, 7
  %v5623 = vsub.s32 %v5620, %v5622
  %v5624 = vrot.slane %v5617, %v5623
  %v5625 = vcombine.low %v5280, %v5624
  %v5626 = vcombine.low %v3992, %v3991
  %v5627 = vcombine.low %v3993, %v4001
  %v5629 = vunpack.c.l.s4 1983009808
  %v5630 = vunpack.c.0.s8 %v5629
  %v5631 = vlaneseq
  %v5632 = vshrl.u32 %v5631, 7
  %v5633 = vsub.s32 %v5630, %v5632
  %v5634 = vrot.slane %v5626, %v5633
  %v5636 = vunpack.c.l.s4 1983009808
  %v5637 = vunpack.c.0.s8 %v5636
  %v5638 = vlaneseq
  %v5639 = vshrl.u32 %v5638, 7
  %v5640 = vsub.s32 %v5637, %v5639
  %v5641 = vrot.slane %v5627, %v5640
  %v5642 = vcombine.low %v5634, %v5641
  %v5661 = vpack.c.bf16 %v5602, %v5601
  %v5662 = vpack.c.bf16 %v5604, %v5603
  %v5663 = vpack.c.bf16 %v5606, %v5605
  %v5664 = vpack.c.bf16 %v5608, %v5607
  %v5665 = vpack.c.bf16 %v5610, %v5609
  %v5666 = vpack.c.bf16 %v5612, %v5611
  %v5667 = vpack.c.bf16 %v5614, %v5613
  %v5668 = vpack.c.bf16 %v5616, %v5615
  %v5669 = vpack.c.bf16 %v5642, %v5625
  %5679 = vrot.lane.b32.xlu0 %v5661, 80
  %v5680 = vpop.permute.xlu0 %5679
  %5681 = vrot.lane.b32.xlu0 %v5662, 80
  %v5682 = vpop.permute.xlu0 %5681
  %5683 = vrot.lane.b32.xlu0 %v5663, 80
  %v5684 = vpop.permute.xlu0 %5683
  %5685 = vrot.lane.b32.xlu0 %v5664, 80
  %v5686 = vpop.permute.xlu0 %5685
  %5687 = vrot.lane.b32.xlu0 %v5665, 80
  %v5688 = vpop.permute.xlu0 %5687
  %5689 = vrot.lane.b32.xlu0 %v5666, 80
  %v5690 = vpop.permute.xlu0 %5689
  %5691 = vrot.lane.b32.xlu0 %v5667, 80
  %v5692 = vpop.permute.xlu0 %5691
  %5693 = vrot.lane.b32.xlu0 %v5668, 80
  %v5694 = vpop.permute.xlu0 %5693
  %5695 = vrot.lane.b32.xlu0 %v5669, 80
  %v5696 = vpop.permute.xlu0 %5695
  %5706 = vst.msk [vmem:[#allocation3 + $0x90] sm:$0xff] %vm3340, %v5680
  %5707 = vst.msk [vmem:[#allocation3 + $0xa0] sm:$0xff] %vm3340, %v5682
  %5708 = vst.msk [vmem:[#allocation3 + $0xb0] sm:$0xff] %vm3340, %v5684
  %5709 = vst.msk [vmem:[#allocation3 + $0xc0] sm:$0xff] %vm3340, %v5686
  %5710 = vst.msk [vmem:[#allocation3 + $0xd0] sm:$0xff] %vm3340, %v5688
  %5711 = vst.msk [vmem:[#allocation3 + $0xe0] sm:$0xff] %vm3340, %v5690
  %5712 = vst.msk [vmem:[#allocation3 + $0xf0] sm:$0xff] %vm3340, %v5692
  %5713 = vst.msk [vmem:[#allocation3 + $0x100] sm:$0xff] %vm3340, %v5694
  %5714 = vst.msk [vmem:[#allocation3 + $0x110] sm:$0xff] %vm3340, %v5696
  %v5715 = vcombine.low %v5377, %v5387
  %v5716 = vcombine.low %v4009, %v4008
  %v5718 = vunpack.c.l.s4 1983009808
  %v5719 = vunpack.c.0.s8 %v5718
  %v5720 = vlaneseq
  %v5721 = vshrl.u32 %v5720, 7
  %v5722 = vsub.s32 %v5719, %v5721
  %v5723 = vrot.slane %v5716, %v5722
  %v5724 = vcombine.low %v5394, %v5723
  %v5725 = vcombine.low %v4010, %v4018
  %v5726 = vcombine.low %v4026, %v4025
  %v5728 = vunpack.c.l.s4 1983009808
  %v5729 = vunpack.c.0.s8 %v5728
  %v5730 = vlaneseq
  %v5731 = vshrl.u32 %v5730, 7
  %v5732 = vsub.s32 %v5729, %v5731
  %v5733 = vrot.slane %v5725, %v5732
  %v5735 = vunpack.c.l.s4 1983009808
  %v5736 = vunpack.c.0.s8 %v5735
  %v5737 = vlaneseq
  %v5738 = vshrl.u32 %v5737, 7
  %v5739 = vsub.s32 %v5736, %v5738
  %v5740 = vrot.slane %v5726, %v5739
  %v5741 = vcombine.low %v5733, %v5740
  %v5745 = vpack.c.bf16 %v4112, %v4095
  %v5746 = vpack.c.bf16 %v4146, %v4129
  %v5747 = vpack.c.bf16 %v4180, %v4163
  %v5748 = vpack.c.bf16 %v4214, %v4197
  %v5749 = vpack.c.bf16 %v4248, %v4231
  %v5750 = vpack.c.bf16 %v4282, %v4265
  %v5751 = vpack.c.bf16 %v4316, %v4299
  %v5752 = vpack.c.bf16 %v5715, %v4333
  %v5753 = vpack.c.bf16 %v5741, %v5724
  %5763 = vrot.lane.b32.xlu0 %v5745, 96
  %v5764 = vpop.permute.xlu0 %5763
  %5765 = vrot.lane.b32.xlu0 %v5746, 96
  %v5766 = vpop.permute.xlu0 %5765
  %5767 = vrot.lane.b32.xlu0 %v5747, 96
  %v5768 = vpop.permute.xlu0 %5767
  %5769 = vrot.lane.b32.xlu0 %v5748, 96
  %v5770 = vpop.permute.xlu0 %5769
  %5771 = vrot.lane.b32.xlu0 %v5749, 96
  %v5772 = vpop.permute.xlu0 %5771
  %5773 = vrot.lane.b32.xlu0 %v5750, 96
  %v5774 = vpop.permute.xlu0 %5773
  %5775 = vrot.lane.b32.xlu0 %v5751, 96
  %v5776 = vpop.permute.xlu0 %5775
  %5777 = vrot.lane.b32.xlu0 %v5752, 96
  %v5778 = vpop.permute.xlu0 %5777
  %5779 = vrot.lane.b32.xlu0 %v5753, 96
  %v5780 = vpop.permute.xlu0 %5779
  %5790 = vst.msk [vmem:[#allocation3 + $0x90] sm:$0xff] %vm3425, %v5764
  %5791 = vst.msk [vmem:[#allocation3 + $0xa0] sm:$0xff] %vm3425, %v5766
  %5792 = vst.msk [vmem:[#allocation3 + $0xb0] sm:$0xff] %vm3425, %v5768
  %5793 = vst.msk [vmem:[#allocation3 + $0xc0] sm:$0xff] %vm3425, %v5770
  %5794 = vst.msk [vmem:[#allocation3 + $0xd0] sm:$0xff] %vm3425, %v5772
  %5795 = vst.msk [vmem:[#allocation3 + $0xe0] sm:$0xff] %vm3425, %v5774
  %5796 = vst.msk [vmem:[#allocation3 + $0xf0] sm:$0xff] %vm3425, %v5776
  %5797 = vst.msk [vmem:[#allocation3 + $0x100] sm:$0xff] %vm3425, %v5778
  %5798 = vst.msk [vmem:[#allocation3 + $0x110] sm:$0xff] %vm3425, %v5780
  %v5799 = vrot.slane %v4009, 7
  %v5800 = vrot.slane %v5799, 2
  %v5801 = vrot.slane %v4008, 7
  %v5802 = vsel %vm1999, %v5800, %v5801
  %v5803 = vrot.slane %v5801, 2
  %v5804 = vrot.slane %v4010, 7
  %v5805 = vsel %vm1999, %v5803, %v5804
  %v5806 = vrot.slane %v5804, 2
  %v5807 = vrot.slane %v4018, 7
  %v5808 = vsel %vm1999, %v5806, %v5807
  %v5809 = vrot.slane %v5807, 2
  %v5810 = vrot.slane %v4026, 7
  %v5811 = vsel %vm1999, %v5809, %v5810
  %v5812 = vrot.slane %v5810, 2
  %v5813 = vrot.slane %v4025, 7
  %v5814 = vsel %vm1999, %v5812, %v5813
  %v5815 = vrot.slane %v5813, 2
  %v5816 = vrot.slane %v4027, 7
  %v5817 = vsel %vm1999, %v5815, %v5816
  %v5818 = vcombine.low %v5510, %v5520
  %v5819 = vcombine.low %v5802, %v5805
  %v5821 = vunpack.c.l.s4 1983009808
  %v5822 = vunpack.c.0.s8 %v5821
  %v5823 = vlaneseq
  %v5824 = vshrl.u32 %v5823, 7
  %v5825 = vsub.s32 %v5822, %v5824
  %v5826 = vrot.slane %v5819, %v5825
  %v5827 = vcombine.low %v5527, %v5826
  %v5828 = vcombine.low %v5808, %v5811
  %v5829 = vcombine.low %v5814, %v5817
  %v5831 = vunpack.c.l.s4 1983009808
  %v5832 = vunpack.c.0.s8 %v5831
  %v5833 = vlaneseq
  %v5834 = vshrl.u32 %v5833, 7
  %v5835 = vsub.s32 %v5832, %v5834
  %v5836 = vrot.slane %v5828, %v5835
  %v5838 = vunpack.c.l.s4 1983009808
  %v5839 = vunpack.c.0.s8 %v5838
  %v5840 = vlaneseq
  %v5841 = vshrl.u32 %v5840, 7
  %v5842 = vsub.s32 %v5839, %v5841
  %v5843 = vrot.slane %v5829, %v5842
  %v5844 = vcombine.low %v5836, %v5843
  %v5848 = vpack.c.bf16 %v4682, %v4665
  %v5849 = vpack.c.bf16 %v4716, %v4699
  %v5850 = vpack.c.bf16 %v4750, %v4733
  %v5851 = vpack.c.bf16 %v4784, %v4767
  %v5852 = vpack.c.bf16 %v4818, %v4801
  %v5853 = vpack.c.bf16 %v4852, %v4835
  %v5854 = vpack.c.bf16 %v4886, %v4869
  %v5855 = vpack.c.bf16 %v5818, %v4903
  %v5856 = vpack.c.bf16 %v5844, %v5827
  %5866 = vrot.lane.b32.xlu0 %v5848, 112
  %v5867 = vpop.permute.xlu0 %5866
  %5868 = vrot.lane.b32.xlu0 %v5849, 112
  %v5869 = vpop.permute.xlu0 %5868
  %5870 = vrot.lane.b32.xlu0 %v5850, 112
  %v5871 = vpop.permute.xlu0 %5870
  %5872 = vrot.lane.b32.xlu0 %v5851, 112
  %v5873 = vpop.permute.xlu0 %5872
  %5874 = vrot.lane.b32.xlu0 %v5852, 112
  %v5875 = vpop.permute.xlu0 %5874
  %5876 = vrot.lane.b32.xlu0 %v5853, 112
  %v5877 = vpop.permute.xlu0 %5876
  %5878 = vrot.lane.b32.xlu0 %v5854, 112
  %v5879 = vpop.permute.xlu0 %5878
  %5880 = vrot.lane.b32.xlu0 %v5855, 112
  %v5881 = vpop.permute.xlu0 %5880
  %5882 = vrot.lane.b32.xlu0 %v5856, 112
  %v5883 = vpop.permute.xlu0 %5882
  %5893 = vst.msk [vmem:[#allocation3 + $0x90] sm:$0xff] %vm3529, %v5867
  %5894 = vst.msk [vmem:[#allocation3 + $0xa0] sm:$0xff] %vm3529, %v5869
  %5895 = vst.msk [vmem:[#allocation3 + $0xb0] sm:$0xff] %vm3529, %v5871
  %5896 = vst.msk [vmem:[#allocation3 + $0xc0] sm:$0xff] %vm3529, %v5873
  %5897 = vst.msk [vmem:[#allocation3 + $0xd0] sm:$0xff] %vm3529, %v5875
  %5898 = vst.msk [vmem:[#allocation3 + $0xe0] sm:$0xff] %vm3529, %v5877
  %5899 = vst.msk [vmem:[#allocation3 + $0xf0] sm:$0xff] %vm3529, %v5879
  %5900 = vst.msk [vmem:[#allocation3 + $0x100] sm:$0xff] %vm3529, %v5881
  %5901 = vst.msk [vmem:[#allocation3 + $0x110] sm:$0xff] %vm3529, %v5883
  %v5902 = vcombine.low %v5624, %v5634
  %v5903 = vcombine.low %v4008, %v4010
  %v5905 = vunpack.c.l.s4 1983009808
  %v5906 = vunpack.c.0.s8 %v5905
  %v5907 = vlaneseq
  %v5908 = vshrl.u32 %v5907, 7
  %v5909 = vsub.s32 %v5906, %v5908
  %v5910 = vrot.slane %v5903, %v5909
  %v5911 = vcombine.low %v5641, %v5910
  %v5912 = vcombine.low %v4018, %v4026
  %v5913 = vcombine.low %v4025, %v4027
  %v5915 = vunpack.c.l.s4 1983009808
  %v5916 = vunpack.c.0.s8 %v5915
  %v5917 = vlaneseq
  %v5918 = vshrl.u32 %v5917, 7
  %v5919 = vsub.s32 %v5916, %v5918
  %v5920 = vrot.slane %v5912, %v5919
  %v5922 = vunpack.c.l.s4 1983009808
  %v5923 = vunpack.c.0.s8 %v5922
  %v5924 = vlaneseq
  %v5925 = vshrl.u32 %v5924, 7
  %v5926 = vsub.s32 %v5923, %v5925
  %v5927 = vrot.slane %v5913, %v5926
  %v5928 = vcombine.low %v5920, %v5927
  %v5932 = vpack.c.bf16 %v5060, %v5043
  %v5933 = vpack.c.bf16 %v5094, %v5077
  %v5934 = vpack.c.bf16 %v5128, %v5111
  %v5935 = vpack.c.bf16 %v5162, %v5145
  %v5936 = vpack.c.bf16 %v5196, %v5179
  %v5937 = vpack.c.bf16 %v5230, %v5213
  %v5938 = vpack.c.bf16 %v5264, %v5247
  %v5939 = vpack.c.bf16 %v5902, %v5281
  %v5940 = vpack.c.bf16 %v5928, %v5911
  %5941 = vst.msk [vmem:[#allocation3 + $0x98] sm:$0xff] %vm1983, %v5932
  %5942 = vst.msk [vmem:[#allocation3 + $0xa8] sm:$0xff] %vm1983, %v5933
  %5943 = vst.msk [vmem:[#allocation3 + $0xb8] sm:$0xff] %vm1983, %v5934
  %5944 = vst.msk [vmem:[#allocation3 + $0xc8] sm:$0xff] %vm1983, %v5935
  %5945 = vst.msk [vmem:[#allocation3 + $0xd8] sm:$0xff] %vm1983, %v5936
  %5946 = vst.msk [vmem:[#allocation3 + $0xe8] sm:$0xff] %vm1983, %v5937
  %5947 = vst.msk [vmem:[#allocation3 + $0xf8] sm:$0xff] %vm1983, %v5938
  %5948 = vst.msk [vmem:[#allocation3 + $0x108] sm:$0xff] %vm1983, %v5939
  %5949 = vst.msk [vmem:[#allocation3 + $0x118] sm:$0xff] %vm1983, %v5940
  %v5950 = vld [vmem:[#allocation3] sm:$0xff]
  %v5951 = vld [vmem:[#allocation3 + $0x8] sm:$0xff]
  %v5952 = vld [vmem:[#allocation3 + $0x10] sm:$0xff]
  %v5953 = vld [vmem:[#allocation3 + $0x18] sm:$0xff]
  %v5954 = vld [vmem:[#allocation3 + $0x20] sm:$0xff]
  %v5955 = vld [vmem:[#allocation3 + $0x28] sm:$0xff]
  %v5956 = vld [vmem:[#allocation3 + $0x30] sm:$0xff]
  %v5957 = vld [vmem:[#allocation3 + $0x38] sm:$0xff]
  %v5958 = vld [vmem:[#allocation3 + $0x40] sm:$0xff]
  %v5959 = vld [vmem:[#allocation3 + $0x48] sm:$0xff]
  %v5960 = vld [vmem:[#allocation3 + $0x50] sm:$0xff]
  %v5961 = vld [vmem:[#allocation3 + $0x58] sm:$0xff]
  %v5962 = vld [vmem:[#allocation3 + $0x60] sm:$0xff]
  %v5963 = vld [vmem:[#allocation3 + $0x68] sm:$0xff]
  %v5964 = vld [vmem:[#allocation3 + $0x70] sm:$0xff]
  %v5965 = vld [vmem:[#allocation3 + $0x78] sm:$0xff]
  %v5966 = vld [vmem:[#allocation3 + $0x80] sm:$0xff]
  %v5967 = vld [vmem:[#allocation3 + $0x88] sm:$0xff]
  %v5968 = vld [vmem:[#allocation3 + $0x90] sm:$0xff]
  %v5969 = vld [vmem:[#allocation3 + $0x98] sm:$0xff]
  %v5970 = vld [vmem:[#allocation3 + $0xa0] sm:$0xff]
  %v5971 = vld [vmem:[#allocation3 + $0xa8] sm:$0xff]
  %v5972 = vld [vmem:[#allocation3 + $0xb0] sm:$0xff]
  %v5973 = vld [vmem:[#allocation3 + $0xb8] sm:$0xff]
  %v5974 = vld [vmem:[#allocation3 + $0xc0] sm:$0xff]
  %v5975 = vld [vmem:[#allocation3 + $0xc8] sm:$0xff]
  %v5976 = vld [vmem:[#allocation3 + $0xd0] sm:$0xff]
  %v5977 = vld [vmem:[#allocation3 + $0xd8] sm:$0xff]
  %v5978 = vld [vmem:[#allocation3 + $0xe0] sm:$0xff]
  %v5979 = vld [vmem:[#allocation3 + $0xe8] sm:$0xff]
  %v5980 = vld [vmem:[#allocation3 + $0xf0] sm:$0xff]
  %v5981 = vld [vmem:[#allocation3 + $0xf8] sm:$0xff]
  %v5982 = vld [vmem:[#allocation3 + $0x100] sm:$0xff]
  %v5983 = vld [vmem:[#allocation3 + $0x108] sm:$0xff]
  %v5984 = vld [vmem:[#allocation3 + $0x110] sm:$0xff]
  %v5985 = vld [vmem:[#allocation3 + $0x118] sm:$0xff]
  %v5986 = vld [vmem:[%s3] sm:$0xf]
  %v5987 = vld [vmem:[%s3 + $0x4] sm:$0xf]
  %v5988 = vld [vmem:[%s3 + $0x8] sm:$0xf]
  %v5989 = vld [vmem:[%s3 + $0xc] sm:$0xf]
  %v5990 = vld [vmem:[%s3 + $0x10] sm:$0xf]
  %v5991 = vld [vmem:[%s3 + $0x14] sm:$0xf]
  %v5992 = vld [vmem:[%s3 + $0x18] sm:$0xf]
  %v5993 = vld [vmem:[%s3 + $0x1c] sm:$0xf]
  %v5994 = vld [vmem:[%s3 + $0x20] sm:$0xf]
  %v5995 = vld [vmem:[%s3 + $0x24] sm:$0xf]
  %v5996 = vld [vmem:[%s3 + $0x28] sm:$0xf]
  %v5997 = vld [vmem:[%s3 + $0x2c] sm:$0xf]
  %v5998 = vld [vmem:[%s3 + $0x30] sm:$0xf]
  %v5999 = vld [vmem:[%s3 + $0x34] sm:$0xf]
  %v6000 = vld [vmem:[%s3 + $0x38] sm:$0xf]
  %v6001 = vld [vmem:[%s3 + $0x3c] sm:$0xf]
  %v6002 = vld [vmem:[%s3 + $0x40] sm:$0xf]
  %v6003 = vld [vmem:[%s3 + $0x44] sm:$0xf]
  %v6004 = vld [vmem:[%s4] sm:$0x1]
  %v6006 = vlaneseq
  %v6007 = vshrl.u32 %v6006, 7
  %v6008 = vsub.s32 0, %v6007
  %v6009 = vrot.slane %v6004, %v6008
  %v6029 = vunpack.c.l.b16 %v5986
  %v6030 = vunpack.c.l.b16 %v5987
  %v6031 = vunpack.c.l.b16 %v5988
  %v6032 = vunpack.c.l.b16 %v5989
  %v6033 = vunpack.c.l.b16 %v5990
  %v6034 = vunpack.c.l.b16 %v5991
  %v6035 = vunpack.c.l.b16 %v5992
  %v6036 = vunpack.c.l.b16 %v5993
  %v6037 = vunpack.c.l.b16 %v5994
  %v6038 = vunpack.c.l.b16 %v5995
  %v6039 = vunpack.c.l.b16 %v5996
  %v6040 = vunpack.c.l.b16 %v5997
  %v6041 = vunpack.c.l.b16 %v5998
  %v6042 = vunpack.c.l.b16 %v5999
  %v6043 = vunpack.c.l.b16 %v6000
  %v6044 = vunpack.c.l.b16 %v6001
  %v6045 = vunpack.c.l.b16 %v6002
  %v6046 = vunpack.c.l.b16 %v6003
  %v6047 = vpack.c.b16 %v6030, %v6029
  %v6048 = vpack.c.b16 %v6032, %v6031
  %v6049 = vpack.c.b16 %v6034, %v6033
  %v6050 = vpack.c.b16 %v6036, %v6035
  %v6051 = vpack.c.b16 %v6038, %v6037
  %v6052 = vpack.c.b16 %v6040, %v6039
  %v6053 = vpack.c.b16 %v6042, %v6041
  %v6054 = vpack.c.b16 %v6044, %v6043
  %v6055 = vpack.c.b16 %v6046, %v6045
  %v6066 = vsel %vm1983, %v5951, 0
  %v6069 = vsel %vm1983, %v5953, 0
  %v6072 = vsel %vm1983, %v5955, 0
  %v6075 = vsel %vm1983, %v5957, 0
  %v6078 = vsel %vm1983, %v5959, 0
  %v6081 = vsel %vm1983, %v5961, 0
  %v6084 = vsel %vm1983, %v5963, 0
  %v6087 = vsel %vm1983, %v5965, 0
  %v6090 = vsel %vm1983, %v5967, 0
  %v6093 = vsel %vm1983, %v5969, 0
  %v6096 = vsel %vm1983, %v5971, 0
  %v6099 = vsel %vm1983, %v5973, 0
  %v6102 = vsel %vm1983, %v5975, 0
  %v6105 = vsel %vm1983, %v5977, 0
  %v6108 = vsel %vm1983, %v5979, 0
  %v6111 = vsel %vm1983, %v5981, 0
  %v6114 = vsel %vm1983, %v5983, 0
  %v6117 = vsel %vm1983, %v5985, 0
  %6119 = vmatprep.subr.bf16.mxu0 0
  %6120 = vmatpush1.bf16.msra.mxu0 %v6047
  %6121 = vmatprep.subr.bf16.mxu0 0
  %6122 = vmatpush1.bf16.msra.mxu0 %v6048
  %6123 = vmatprep.subr.bf16.mxu0 0
  %6124 = vmatpush1.bf16.msra.mxu0 %v6049
  %6125 = vmatprep.subr.bf16.mxu0 0
  %6126 = vmatpush1.bf16.msra.mxu0 %v6050
  %6127 = vmatprep.subr.bf16.mxu0 0
  %6128 = vmatpush1.bf16.msra.mxu0 %v6051
  %6129 = vmatprep.subr.bf16.mxu0 0
  %6130 = vmatpush1.bf16.msra.mxu0 %v6052
  %6131 = vmatprep.subr.bf16.mxu0 0
  %6132 = vmatpush1.bf16.msra.mxu0 %v6053
  %6133 = vmatprep.subr.bf16.mxu0 0
  %6134 = vmatpush1.bf16.msra.mxu0 %v6054
  %6135 = vmatprep.subr.bf16.mxu0 0
  %6136 = vmatpush1.bf16.msra.mxu0 %v6055
  %6137 = vmatprep.subr.bf16.mxu0 0
  %6138 = vmatpush1.bf16.msra.mxu0 0
  %6139 = vmatprep.subr.bf16.mxu0 0
  %6140 = vmatpush1.bf16.msra.mxu0 0
  %6141 = vmatprep.subr.bf16.mxu0 0
  %6142 = vmatpush1.bf16.msra.mxu0 0
  %6143 = vmatprep.subr.bf16.mxu0 0
  %6144 = vmatpush1.bf16.msra.mxu0 0
  %6145 = vmatprep.subr.bf16.mxu0 0
  %6146 = vmatpush1.bf16.msra.mxu0 0
  %6147 = vmatprep.subr.bf16.mxu0 0
  %6148 = vmatpush1.bf16.msra.mxu0 0
  %6149 = vmatprep.subr.bf16.mxu0 0
  %6150 = vmatpush1.bf16.msra.mxu0 0
  %6151 = vmatprep.mubr.bf16.mxu0 %v6066
  %6152 = vmatmul.mubr.bf16.gmra.mrb[0].mxu0 %v5950
  %v6153 = vpop.f32.mrb[0].mxu0
  %v6154 = vadd.f32 %v6009, %v6153
  %v6155 = vpop.f32.mrb[0].mxu0
  %v6156 = vpop.f32.mrb[0].mxu0
  %v6157 = vadd.f32 %v6009, %v6156
  %v6158 = vpop.f32.mrb[0].mxu0
  %6159 = vmatprep.mubr.bf16.mxu0 %v6069
  %6160 = vmatmul.mubr.bf16.gmra.mrb[0].mxu0 %v5952
  %v6161 = vpop.f32.mrb[0].mxu0
  %v6162 = vadd.f32 %v6009, %v6161
  %v6163 = vpop.f32.mrb[0].mxu0
  %v6164 = vpop.f32.mrb[0].mxu0
  %v6165 = vadd.f32 %v6009, %v6164
  %v6166 = vpop.f32.mrb[0].mxu0
  %6167 = vmatprep.mubr.bf16.mxu0 %v6072
  %6168 = vmatmul.mubr.bf16.gmra.mrb[0].mxu0 %v5954
  %v6169 = vpop.f32.mrb[0].mxu0
  %v6170 = vadd.f32 %v6009, %v6169
  %v6171 = vpop.f32.mrb[0].mxu0
  %v6172 = vpop.f32.mrb[0].mxu0
  %v6173 = vadd.f32 %v6009, %v6172
  %v6174 = vpop.f32.mrb[0].mxu0
  %6175 = vmatprep.mubr.bf16.mxu0 %v6075
  %6176 = vmatmul.mubr.bf16.gmra.mrb[0].mxu0 %v5956
  %v6177 = vpop.f32.mrb[0].mxu0
  %v6178 = vadd.f32 %v6009, %v6177
  %v6179 = vpop.f32.mrb[0].mxu0
  %v6180 = vpop.f32.mrb[0].mxu0
  %v6181 = vadd.f32 %v6009, %v6180
  %v6182 = vpop.f32.mrb[0].mxu0
  %6183 = vmatprep.mubr.bf16.mxu0 %v6078
  %6184 = vmatmul.mubr.bf16.gmra.mrb[0].mxu0 %v5958
  %v6185 = vpop.f32.mrb[0].mxu0
  %v6186 = vadd.f32 %v6009, %v6185
  %v6187 = vpop.f32.mrb[0].mxu0
  %v6188 = vpop.f32.mrb[0].mxu0
  %v6189 = vadd.f32 %v6009, %v6188
  %v6190 = vpop.f32.mrb[0].mxu0
  %6191 = vmatprep.mubr.bf16.mxu0 %v6081
  %6192 = vmatmul.mubr.bf16.gmra.mrb[0].mxu0 %v5960
  %v6193 = vpop.f32.mrb[0].mxu0
  %v6194 = vadd.f32 %v6009, %v6193
  %v6195 = vpop.f32.mrb[0].mxu0
  %v6196 = vpop.f32.mrb[0].mxu0
  %v6197 = vadd.f32 %v6009, %v6196
  %v6198 = vpop.f32.mrb[0].mxu0
  %6199 = vmatprep.mubr.bf16.mxu0 %v6084
  %6200 = vmatmul.mubr.bf16.gmra.mrb[0].mxu0 %v5962
  %v6201 = vpop.f32.mrb[0].mxu0
  %v6202 = vadd.f32 %v6009, %v6201
  %v6203 = vpop.f32.mrb[0].mxu0
  %v6204 = vpop.f32.mrb[0].mxu0
  %v6205 = vadd.f32 %v6009, %v6204
  %v6206 = vpop.f32.mrb[0].mxu0
  %6207 = vmatprep.mubr.bf16.mxu0 %v6087
  %6208 = vmatmul.mubr.bf16.gmra.mrb[0].mxu0 %v5964
  %v6209 = vpop.f32.mrb[0].mxu0
  %v6210 = vadd.f32 %v6009, %v6209
  %v6211 = vpop.f32.mrb[0].mxu0
  %v6212 = vpop.f32.mrb[0].mxu0
  %v6213 = vadd.f32 %v6009, %v6212
  %v6214 = vpop.f32.mrb[0].mxu0
  %6215 = vmatprep.mubr.bf16.mxu0 %v6090
  %6216 = vmatmul.mubr.bf16.gmra.mrb[0].mxu0 %v5966
  %v6217 = vpop.f32.mrb[0].mxu0
  %v6218 = vadd.f32 %v6009, %v6217
  %v6219 = vpop.f32.mrb[0].mxu0
  %v6220 = vpop.f32.mrb[0].mxu0
  %v6221 = vadd.f32 %v6009, %v6220
  %v6222 = vpop.f32.mrb[0].mxu0
  %6223 = vmatprep.mubr.bf16.mxu0 %v6093
  %6224 = vmatmul.mubr.bf16.gmra.mrb[0].mxu0 %v5968
  %v6225 = vpop.f32.mrb[0].mxu0
  %v6226 = vadd.f32 %v6009, %v6225
  %v6227 = vpop.f32.mrb[0].mxu0
  %v6228 = vpop.f32.mrb[0].mxu0
  %v6229 = vadd.f32 %v6009, %v6228
  %v6230 = vpop.f32.mrb[0].mxu0
  %6231 = vmatprep.mubr.bf16.mxu0 %v6096
  %6232 = vmatmul.mubr.bf16.gmra.mrb[0].mxu0 %v5970
  %v6233 = vpop.f32.mrb[0].mxu0
  %v6234 = vadd.f32 %v6009, %v6233
  %v6235 = vpop.f32.mrb[0].mxu0
  %v6236 = vpop.f32.mrb[0].mxu0
  %v6237 = vadd.f32 %v6009, %v6236
  %v6238 = vpop.f32.mrb[0].mxu0
  %6239 = vmatprep.mubr.bf16.mxu0 %v6099
  %6240 = vmatmul.mubr.bf16.gmra.mrb[0].mxu0 %v5972
  %v6241 = vpop.f32.mrb[0].mxu0
  %v6242 = vadd.f32 %v6009, %v6241
  %v6243 = vpop.f32.mrb[0].mxu0
  %v6244 = vpop.f32.mrb[0].mxu0
  %v6245 = vadd.f32 %v6009, %v6244
  %v6246 = vpop.f32.mrb[0].mxu0
  %6247 = vmatprep.mubr.bf16.mxu0 %v6102
  %6248 = vmatmul.mubr.bf16.gmra.mrb[0].mxu0 %v5974
  %v6249 = vpop.f32.mrb[0].mxu0
  %v6250 = vadd.f32 %v6009, %v6249
  %v6251 = vpop.f32.mrb[0].mxu0
  %v6252 = vpop.f32.mrb[0].mxu0
  %v6253 = vadd.f32 %v6009, %v6252
  %v6254 = vpop.f32.mrb[0].mxu0
  %6255 = vmatprep.mubr.bf16.mxu0 %v6105
  %6256 = vmatmul.mubr.bf16.gmra.mrb[0].mxu0 %v5976
  %v6257 = vpop.f32.mrb[0].mxu0
  %v6258 = vadd.f32 %v6009, %v6257
  %v6259 = vpop.f32.mrb[0].mxu0
  %v6260 = vpop.f32.mrb[0].mxu0
  %v6261 = vadd.f32 %v6009, %v6260
  %v6262 = vpop.f32.mrb[0].mxu0
  %6263 = vmatprep.mubr.bf16.mxu0 %v6108
  %6264 = vmatmul.mubr.bf16.gmra.mrb[0].mxu0 %v5978
  %v6265 = vpop.f32.mrb[0].mxu0
  %v6266 = vadd.f32 %v6009, %v6265
  %v6267 = vpop.f32.mrb[0].mxu0
  %v6268 = vpop.f32.mrb[0].mxu0
  %v6269 = vadd.f32 %v6009, %v6268
  %v6270 = vpop.f32.mrb[0].mxu0
  %6271 = vmatprep.mubr.bf16.mxu0 %v6111
  %6272 = vmatmul.mubr.bf16.gmra.mrb[0].mxu0 %v5980
  %v6273 = vpop.f32.mrb[0].mxu0
  %v6274 = vadd.f32 %v6009, %v6273
  %v6275 = vpop.f32.mrb[0].mxu0
  %v6276 = vpop.f32.mrb[0].mxu0
  %v6277 = vadd.f32 %v6009, %v6276
  %v6278 = vpop.f32.mrb[0].mxu0
  %6279 = vmatprep.mubr.bf16.mxu0 %v6114
  %6280 = vmatmul.mubr.bf16.gmra.mrb[0].mxu0 %v5982
  %v6281 = vpop.f32.mrb[0].mxu0
  %v6282 = vadd.f32 %v6009, %v6281
  %v6283 = vpop.f32.mrb[0].mxu0
  %v6284 = vpop.f32.mrb[0].mxu0
  %v6285 = vadd.f32 %v6009, %v6284
  %v6286 = vpop.f32.mrb[0].mxu0
  %6287 = vmatprep.mubr.bf16.mxu0 %v6117
  %6288 = vmatmul.mubr.bf16.gmra.mrb[0].mxu0 %v5984
  %v6289 = vpop.f32.mrb[0].mxu0
  %v6290 = vadd.f32 %v6009, %v6289
  %v6291 = vpop.f32.mrb[0].mxu0
  %v6292 = vpop.f32.mrb[0].mxu0
  %v6293 = vadd.f32 %v6009, %v6292
  %v6294 = vpop.f32.mrb[0].mxu0
  %6295 = vdwg.mxu0
  %v6296 = vtanh.pop %v6154
  %v6297 = vtanh.pop %v6157
  %v6298 = vtanh.pop %v6162
  %v6299 = vtanh.pop %v6165
  %v6300 = vtanh.pop %v6170
  %v6301 = vtanh.pop %v6173
  %v6302 = vtanh.pop %v6178
  %v6303 = vtanh.pop %v6181
  %v6304 = vtanh.pop %v6186
  %v6305 = vtanh.pop %v6189
  %v6306 = vtanh.pop %v6194
  %v6307 = vtanh.pop %v6197
  %v6308 = vtanh.pop %v6202
  %v6309 = vtanh.pop %v6205
  %v6310 = vtanh.pop %v6210
  %v6311 = vtanh.pop %v6213
  %v6312 = vtanh.pop %v6218
  %v6313 = vtanh.pop %v6221
  %v6314 = vtanh.pop %v6226
  %v6315 = vtanh.pop %v6229
  %v6316 = vtanh.pop %v6234
  %v6317 = vtanh.pop %v6237
  %v6318 = vtanh.pop %v6242
  %v6319 = vtanh.pop %v6245
  %v6320 = vtanh.pop %v6250
  %v6321 = vtanh.pop %v6253
  %v6322 = vtanh.pop %v6258
  %v6323 = vtanh.pop %v6261
  %v6324 = vtanh.pop %v6266
  %v6325 = vtanh.pop %v6269
  %v6326 = vtanh.pop %v6274
  %v6327 = vtanh.pop %v6277
  %v6328 = vtanh.pop %v6282
  %v6329 = vtanh.pop %v6285
  %v6330 = vtanh.pop %v6290
  %v6331 = vtanh.pop %v6293
  %6332 = vxpose.xlu0.b32.start [1/16] %v6296, 128
  %6333 = vxpose.xlu0.b32.cont [2/16] %v6297, 128
  %6334 = vxpose.xlu0.b32.cont [3/16] %v6298, 128
  %6335 = vxpose.xlu0.b32.cont [4/16] %v6299, 128
  %6336 = vxpose.xlu0.b32.cont [5/16] %v6300, 128
  %6337 = vxpose.xlu0.b32.cont [6/16] %v6301, 128
  %6338 = vxpose.xlu0.b32.cont [7/16] %v6302, 128
  %6339 = vxpose.xlu0.b32.cont [8/16] %v6303, 128
  %6340 = vxpose.xlu0.b32.cont [9/16] %v6304, 128
  %6341 = vxpose.xlu0.b32.cont [10/16] %v6305, 128
  %6342 = vxpose.xlu0.b32.cont [11/16] %v6306, 128
  %6343 = vxpose.xlu0.b32.cont [12/16] %v6307, 128
  %6344 = vxpose.xlu0.b32.cont [13/16] %v6308, 128
  %6345 = vxpose.xlu0.b32.cont [14/16] %v6309, 128
  %6346 = vxpose.xlu0.b32.cont [15/16] %v6310, 128
  %6347 = vxpose.xlu0.b32.end [16/16] %v6311, 128
  %v6348 = vpop.trf.xlu0
  %v6349 = vpop.trf.xlu0
  %v6350 = vpop.trf.xlu0
  %v6351 = vpop.trf.xlu0
  %v6352 = vpop.trf.xlu0
  %v6353 = vpop.trf.xlu0
  %v6354 = vpop.trf.xlu0
  %v6355 = vpop.trf.xlu0
  %v6356 = vpop.trf.xlu0
  %v6357 = vpop.trf.xlu0
  %v6358 = vpop.trf.xlu0
  %v6359 = vpop.trf.xlu0
  %v6360 = vpop.trf.xlu0
  %v6361 = vpop.trf.xlu0
  %v6362 = vpop.trf.xlu0
  %v6363 = vpop.trf.xlu0
  %6364 = vxpose.xlu0.b32.start [1/16] %v6312, 128
  %6365 = vxpose.xlu0.b32.cont [2/16] %v6313, 128
  %6366 = vxpose.xlu0.b32.cont [3/16] %v6314, 128
  %6367 = vxpose.xlu0.b32.cont [4/16] %v6315, 128
  %6368 = vxpose.xlu0.b32.cont [5/16] %v6316, 128
  %6369 = vxpose.xlu0.b32.cont [6/16] %v6317, 128
  %6370 = vxpose.xlu0.b32.cont [7/16] %v6318, 128
  %6371 = vxpose.xlu0.b32.cont [8/16] %v6319, 128
  %6372 = vxpose.xlu0.b32.cont [9/16] %v6320, 128
  %6373 = vxpose.xlu0.b32.cont [10/16] %v6321, 128
  %6374 = vxpose.xlu0.b32.cont [11/16] %v6322, 128
  %6375 = vxpose.xlu0.b32.cont [12/16] %v6323, 128
  %6376 = vxpose.xlu0.b32.cont [13/16] %v6324, 128
  %6377 = vxpose.xlu0.b32.cont [14/16] %v6325, 128
  %6378 = vxpose.xlu0.b32.cont [15/16] %v6326, 128
  %6379 = vxpose.xlu0.b32.end [16/16] %v6327, 128
  %v6380 = vpop.trf.xlu0
  %v6381 = vpop.trf.xlu0
  %v6382 = vpop.trf.xlu0
  %v6383 = vpop.trf.xlu0
  %v6384 = vpop.trf.xlu0
  %v6385 = vpop.trf.xlu0
  %v6386 = vpop.trf.xlu0
  %v6387 = vpop.trf.xlu0
  %v6388 = vpop.trf.xlu0
  %v6389 = vpop.trf.xlu0
  %v6390 = vpop.trf.xlu0
  %v6391 = vpop.trf.xlu0
  %v6392 = vpop.trf.xlu0
  %v6393 = vpop.trf.xlu0
  %v6394 = vpop.trf.xlu0
  %v6395 = vpop.trf.xlu0
  %6396 = vxpose.xlu0.b32.start [1/16] %v6328, 128
  %6397 = vxpose.xlu0.b32.cont [2/16] %v6329, 128
  %6398 = vxpose.xlu0.b32.cont [3/16] %v6330, 128
  %6399 = vxpose.xlu0.b32.cont [4/16] %v6331, 128
  %6400 = vxpose.xlu0.b32.cont [5/16] 0.0, 128
  %6401 = vxpose.xlu0.b32.cont [6/16] 0.0, 128
  %6402 = vxpose.xlu0.b32.cont [7/16] 0.0, 128
  %6403 = vxpose.xlu0.b32.cont [8/16] 0.0, 128
  %6404 = vxpose.xlu0.b32.cont [9/16] 0.0, 128
  %6405 = vxpose.xlu0.b32.cont [10/16] 0.0, 128
  %6406 = vxpose.xlu0.b32.cont [11/16] 0.0, 128
  %6407 = vxpose.xlu0.b32.cont [12/16] 0.0, 128
  %6408 = vxpose.xlu0.b32.cont [13/16] 0.0, 128
  %6409 = vxpose.xlu0.b32.cont [14/16] 0.0, 128
  %6410 = vxpose.xlu0.b32.cont [15/16] 0.0, 128
  %6411 = vxpose.xlu0.b32.end [16/16] 0.0, 128
  %v6412 = vpop.trf.xlu0
  %v6413 = vpop.trf.xlu0
  %v6414 = vpop.trf.xlu0
  %v6415 = vpop.trf.xlu0
  %v6416 = vpop.trf.xlu0
  %v6417 = vpop.trf.xlu0
  %v6418 = vpop.trf.xlu0
  %v6419 = vpop.trf.xlu0
  %v6420 = vpop.trf.xlu0
  %v6421 = vpop.trf.xlu0
  %v6422 = vpop.trf.xlu0
  %v6423 = vpop.trf.xlu0
  %v6424 = vpop.trf.xlu0
  %v6425 = vpop.trf.xlu0
  %v6426 = vpop.trf.xlu0
  %v6427 = vpop.trf.xlu0
  %v6428 = vpack.c.bf16 %v6348, %v6348
  %v6429 = vpack.c.bf16 %v6380, %v6380
  %v6432 = vcombine.low %v6428, %v6429
  %v6434 = vunpack.c.l.s4 1966171168
  %v6435 = vunpack.c.0.s8 %v6434
  %v6436 = vlaneseq
  %v6437 = vshrl.u32 %v6436, 7
  %v6438 = vsub.s32 %v6435, %v6437
  %v6439 = vrot.slane %v6432, %v6438
  %v6441 = vunpack.c.l.s4 1966171168
  %v6442 = vunpack.c.0.s8 %v6441
  %v6443 = vlaneseq
  %v6444 = vshrl.u32 %v6443, 7
  %v6445 = vsub.s32 %v6442, %v6444
  %v6446 = vrot.slane %v6439, %v6445
  %vm6448 = vcmask 1040384
  %vm6449 = vsmask.f32 256
  %vm6450 = vmand %vm6448, %vm6449
  %vm6451 = vcmask 123905
  %vm6452 = vsmask.f32 1280
  %vm6453 = vmand %vm6451, %vm6452
  %vm6454 = vmor %vm6453, %vm6450
  %v6455 = vld [vmem:[#allocation4] sm:$0x3]
  %v6456 = vsel %vm6454, %v6446, %v6455
  %6457 = vst [vmem:[#allocation4] sm:$0x3] %v6456
  %v6459 = vshrl.u32 %v6446, 16
  %v6461 = vrot.slane %v6459, 7
  %v6462 = vrot.slane %v6461, 1
  %6463 = vrot.lane.b32.xlu0 %v6462, 16
  %v6464 = vpop.permute.xlu0 %6463
  %v6465 = vrot.slane %v6464, 7
  %vm6466 = vcmask 130048
  %v6467 = vsel %vm6466, %v6465, %v6464
  %vm6469 = vcmask 1040512
  %vm6470 = vmand %vm6469, %vm6449
  %vm6471 = vcmask 254977
  %vm6472 = vmand %vm6471, %vm6452
  %vm6473 = vmor %vm6472, %vm6470
  %v6474 = vld [vmem:[#allocation4 + $0x1] sm:$0x3]
  %v6475 = vsel %vm6473, %v6467, %v6474
  %6476 = vst [vmem:[#allocation4 + $0x1] sm:$0x3] %v6475
  %v6477 = vcombine.high %v6439, %v6439
  %v6479 = vunpack.c.l.s4 1966171168
  %v6480 = vunpack.c.0.s8 %v6479
  %v6481 = vlaneseq
  %v6482 = vshrl.u32 %v6481, 7
  %v6483 = vsub.s32 %v6480, %v6482
  %v6484 = vrot.slane %v6477, %v6483
  %6485 = vrot.lane.b32.xlu0 %v6484, 32
  %v6486 = vpop.permute.xlu0 %6485
  %v6487 = vrot.slane %v6486, 7
  %vm6488 = vcmask 261120
  %v6489 = vsel %vm6488, %v6487, %v6486
  %vm6491 = vcmask 1040640
  %vm6492 = vmand %vm6491, %vm6449
  %vm6493 = vcmask 386049
  %vm6494 = vmand %vm6493, %vm6452
  %vm6495 = vmor %vm6494, %vm6492
  %v6496 = vld [vmem:[#allocation4 + $0x2] sm:$0x3]
  %v6497 = vsel %vm6495, %v6489, %v6496
  %6498 = vst [vmem:[#allocation4 + $0x2] sm:$0x3] %v6497
  %v6500 = vshrl.u32 %v6484, 16
  %v6502 = vrot.slane %v6500, 7
  %v6503 = vrot.slane %v6502, 1
  %6504 = vrot.lane.b32.xlu0 %v6503, 48
  %v6505 = vpop.permute.xlu0 %6504
  %v6506 = vrot.slane %v6505, 7
  %vm6507 = vcmask 392192
  %v6508 = vsel %vm6507, %v6506, %v6505
  %vm6510 = vcmask 1040768
  %vm6511 = vmand %vm6510, %vm6449
  %vm6512 = vcmask 517121
  %vm6513 = vmand %vm6512, %vm6452
  %vm6514 = vmor %vm6513, %vm6511
  %v6515 = vld [vmem:[#allocation4 + $0x3] sm:$0x3]
  %v6516 = vsel %vm6514, %v6508, %v6515
  %6517 = vst [vmem:[#allocation4 + $0x3] sm:$0x3] %v6516
  %v6518 = vcombine.high %v6446, %v6446
  %6519 = vrot.lane.b32.xlu0 %v6518, 64
  %v6520 = vpop.permute.xlu0 %6519
  %v6521 = vrot.slane %v6520, 7
  %vm6522 = vcmask 523264
  %v6523 = vsel %vm6522, %v6521, %v6520
  %vm6525 = vcmask 1040896
  %vm6526 = vmand %vm6525, %vm6449
  %vm6527 = vcmask 648193
  %vm6528 = vmand %vm6527, %vm6452
  %vm6529 = vmor %vm6528, %vm6526
  %v6530 = vld [vmem:[#allocation4 + $0x4] sm:$0x3]
  %v6531 = vsel %vm6529, %v6523, %v6530
  %6532 = vst [vmem:[#allocation4 + $0x4] sm:$0x3] %v6531
  %v6534 = vshrl.u32 %v6518, 16
  %v6536 = vrot.slane %v6534, 7
  %v6537 = vrot.slane %v6536, 1
  %6538 = vrot.lane.b32.xlu0 %v6537, 80
  %v6539 = vpop.permute.xlu0 %6538
  %v6540 = vrot.slane %v6539, 7
  %vm6541 = vcmask 654336
  %v6542 = vsel %vm6541, %v6540, %v6539
  %vm6544 = vcmask 1041024
  %vm6545 = vmand %vm6544, %vm6449
  %vm6546 = vcmask 779265
  %vm6547 = vmand %vm6546, %vm6452
  %vm6548 = vmor %vm6547, %vm6545
  %v6549 = vld [vmem:[#allocation4 + $0x5] sm:$0x3]
  %v6550 = vsel %vm6548, %v6542, %v6549
  %6551 = vst [vmem:[#allocation4 + $0x5] sm:$0x3] %v6550
  %v6552 = vcombine.high %v6484, %v6484
  %6553 = vrot.lane.b32.xlu0 %v6552, 96
  %v6554 = vpop.permute.xlu0 %6553
  %v6555 = vrot.slane %v6554, 7
  %vm6556 = vcmask 785408
  %v6557 = vsel %vm6556, %v6555, %v6554
  %vm6559 = vcmask 1041152
  %vm6560 = vmand %vm6559, %vm6449
  %vm6561 = vcmask 910337
  %vm6562 = vmand %vm6561, %vm6452
  %vm6563 = vmor %vm6562, %vm6560
  %v6564 = vld [vmem:[#allocation4 + $0x6] sm:$0x3]
  %v6565 = vsel %vm6563, %v6557, %v6564
  %6566 = vst [vmem:[#allocation4 + $0x6] sm:$0x3] %v6565
  %v6568 = vshrl.u32 %v6552, 16
  %v6570 = vrot.slane %v6568, 7
  %v6571 = vrot.slane %v6570, 1
  %6572 = vrot.lane.b32.xlu0 %v6571, 112
  %v6573 = vpop.permute.xlu0 %6572
  %v6574 = vrot.slane %v6573, 7
  %vm6575 = vcmask 916480
  %v6576 = vsel %vm6575, %v6574, %v6573
  %vm6578 = vcmask 1041280
  %vm6579 = vmand %vm6578, %vm6449
  %vm6580 = vcmask 1041409
  %vm6581 = vmand %vm6580, %vm6452
  %vm6582 = vmor %vm6581, %vm6579
  %v6583 = vld [vmem:[#allocation4 + $0x7] sm:$0x3]
  %v6584 = vsel %vm6582, %v6576, %v6583
  %6585 = vst [vmem:[#allocation4 + $0x7] sm:$0x3] %v6584
  %v6586 = vpack.c.bf16 %v6349, %v6349
  %v6587 = vpack.c.bf16 %v6381, %v6381
  %v6590 = vcombine.low %v6586, %v6587
  %v6592 = vunpack.c.l.s4 1966171168
  %v6593 = vunpack.c.0.s8 %v6592
  %v6594 = vlaneseq
  %v6595 = vshrl.u32 %v6594, 7
  %v6596 = vsub.s32 %v6593, %v6595
  %v6597 = vrot.slane %v6590, %v6596
  %v6599 = vunpack.c.l.s4 1966171168
  %v6600 = vunpack.c.0.s8 %v6599
  %v6601 = vlaneseq
  %v6602 = vshrl.u32 %v6601, 7
  %v6603 = vsub.s32 %v6600, %v6602
  %v6604 = vrot.slane %v6597, %v6603
  %v6606 = vld [vmem:[#allocation4 + $0x9] sm:$0x3]
  %v6607 = vsel %vm6454, %v6604, %v6606
  %6608 = vst [vmem:[#allocation4 + $0x9] sm:$0x3] %v6607
  %v6610 = vshrl.u32 %v6604, 16
  %v6612 = vrot.slane %v6610, 7
  %v6613 = vrot.slane %v6612, 1
  %6614 = vrot.lane.b32.xlu0 %v6613, 16
  %v6615 = vpop.permute.xlu0 %6614
  %v6616 = vrot.slane %v6615, 7
  %v6617 = vsel %vm6466, %v6616, %v6615
  %v6619 = vld [vmem:[#allocation4 + $0xa] sm:$0x3]
  %v6620 = vsel %vm6473, %v6617, %v6619
  %6621 = vst [vmem:[#allocation4 + $0xa] sm:$0x3] %v6620
  %v6622 = vcombine.high %v6597, %v6597
  %v6624 = vunpack.c.l.s4 1966171168
  %v6625 = vunpack.c.0.s8 %v6624
  %v6626 = vlaneseq
  %v6627 = vshrl.u32 %v6626, 7
  %v6628 = vsub.s32 %v6625, %v6627
  %v6629 = vrot.slane %v6622, %v6628
  %6630 = vrot.lane.b32.xlu0 %v6629, 32
  %v6631 = vpop.permute.xlu0 %6630
  %v6632 = vrot.slane %v6631, 7
  %v6633 = vsel %vm6488, %v6632, %v6631
  %v6635 = vld [vmem:[#allocation4 + $0xb] sm:$0x3]
  %v6636 = vsel %vm6495, %v6633, %v6635
  %6637 = vst [vmem:[#allocation4 + $0xb] sm:$0x3] %v6636
  %v6639 = vshrl.u32 %v6629, 16
  %v6641 = vrot.slane %v6639, 7
  %v6642 = vrot.slane %v6641, 1
  %6643 = vrot.lane.b32.xlu0 %v6642, 48
  %v6644 = vpop.permute.xlu0 %6643
  %v6645 = vrot.slane %v6644, 7
  %v6646 = vsel %vm6507, %v6645, %v6644
  %v6648 = vld [vmem:[#allocation4 + $0xc] sm:$0x3]
  %v6649 = vsel %vm6514, %v6646, %v6648
  %6650 = vst [vmem:[#allocation4 + $0xc] sm:$0x3] %v6649
  %v6651 = vcombine.high %v6604, %v6604
  %6652 = vrot.lane.b32.xlu0 %v6651, 64
  %v6653 = vpop.permute.xlu0 %6652
  %v6654 = vrot.slane %v6653, 7
  %v6655 = vsel %vm6522, %v6654, %v6653
  %v6657 = vld [vmem:[#allocation4 + $0xd] sm:$0x3]
  %v6658 = vsel %vm6529, %v6655, %v6657
  %6659 = vst [vmem:[#allocation4 + $0xd] sm:$0x3] %v6658
  %v6661 = vshrl.u32 %v6651, 16
  %v6663 = vrot.slane %v6661, 7
  %v6664 = vrot.slane %v6663, 1
  %6665 = vrot.lane.b32.xlu0 %v6664, 80
  %v6666 = vpop.permute.xlu0 %6665
  %v6667 = vrot.slane %v6666, 7
  %v6668 = vsel %vm6541, %v6667, %v6666
  %v6670 = vld [vmem:[#allocation4 + $0xe] sm:$0x3]
  %v6671 = vsel %vm6548, %v6668, %v6670
  %6672 = vst [vmem:[#allocation4 + $0xe] sm:$0x3] %v6671
  %v6673 = vcombine.high %v6629, %v6629
  %6674 = vrot.lane.b32.xlu0 %v6673, 96
  %v6675 = vpop.permute.xlu0 %6674
  %v6676 = vrot.slane %v6675, 7
  %v6677 = vsel %vm6556, %v6676, %v6675
  %v6679 = vld [vmem:[#allocation4 + $0xf] sm:$0x3]
  %v6680 = vsel %vm6563, %v6677, %v6679
  %6681 = vst [vmem:[#allocation4 + $0xf] sm:$0x3] %v6680
  %v6683 = vshrl.u32 %v6673, 16
  %v6685 = vrot.slane %v6683, 7
  %v6686 = vrot.slane %v6685, 1
  %6687 = vrot.lane.b32.xlu0 %v6686, 112
  %v6688 = vpop.permute.xlu0 %6687
  %v6689 = vrot.slane %v6688, 7
  %v6690 = vsel %vm6575, %v6689, %v6688
  %v6692 = vld [vmem:[#allocation4 + $0x10] sm:$0x3]
  %v6693 = vsel %vm6582, %v6690, %v6692
  %6694 = vst [vmem:[#allocation4 + $0x10] sm:$0x3] %v6693
  %v6695 = vpack.c.bf16 %v6350, %v6350
  %v6696 = vpack.c.bf16 %v6382, %v6382
  %v6699 = vcombine.low %v6695, %v6696
  %v6701 = vunpack.c.l.s4 1966171168
  %v6702 = vunpack.c.0.s8 %v6701
  %v6703 = vlaneseq
  %v6704 = vshrl.u32 %v6703, 7
  %v6705 = vsub.s32 %v6702, %v6704
  %v6706 = vrot.slane %v6699, %v6705
  %v6708 = vunpack.c.l.s4 1966171168
  %v6709 = vunpack.c.0.s8 %v6708
  %v6710 = vlaneseq
  %v6711 = vshrl.u32 %v6710, 7
  %v6712 = vsub.s32 %v6709, %v6711
  %v6713 = vrot.slane %v6706, %v6712
  %v6715 = vld [vmem:[#allocation4 + $0x12] sm:$0x3]
  %v6716 = vsel %vm6454, %v6713, %v6715
  %6717 = vst [vmem:[#allocation4 + $0x12] sm:$0x3] %v6716
  %v6719 = vshrl.u32 %v6713, 16
  %v6721 = vrot.slane %v6719, 7
  %v6722 = vrot.slane %v6721, 1
  %6723 = vrot.lane.b32.xlu0 %v6722, 16
  %v6724 = vpop.permute.xlu0 %6723
  %v6725 = vrot.slane %v6724, 7
  %v6726 = vsel %vm6466, %v6725, %v6724
  %v6728 = vld [vmem:[#allocation4 + $0x13] sm:$0x3]
  %v6729 = vsel %vm6473, %v6726, %v6728
  %6730 = vst [vmem:[#allocation4 + $0x13] sm:$0x3] %v6729
  %v6731 = vcombine.high %v6706, %v6706
  %v6733 = vunpack.c.l.s4 1966171168
  %v6734 = vunpack.c.0.s8 %v6733
  %v6735 = vlaneseq
  %v6736 = vshrl.u32 %v6735, 7
  %v6737 = vsub.s32 %v6734, %v6736
  %v6738 = vrot.slane %v6731, %v6737
  %6739 = vrot.lane.b32.xlu0 %v6738, 32
  %v6740 = vpop.permute.xlu0 %6739
  %v6741 = vrot.slane %v6740, 7
  %v6742 = vsel %vm6488, %v6741, %v6740
  %v6744 = vld [vmem:[#allocation4 + $0x14] sm:$0x3]
  %v6745 = vsel %vm6495, %v6742, %v6744
  %6746 = vst [vmem:[#allocation4 + $0x14] sm:$0x3] %v6745
  %v6748 = vshrl.u32 %v6738, 16
  %v6750 = vrot.slane %v6748, 7
  %v6751 = vrot.slane %v6750, 1
  %6752 = vrot.lane.b32.xlu0 %v6751, 48
  %v6753 = vpop.permute.xlu0 %6752
  %v6754 = vrot.slane %v6753, 7
  %v6755 = vsel %vm6507, %v6754, %v6753
  %v6757 = vld [vmem:[#allocation4 + $0x15] sm:$0x3]
  %v6758 = vsel %vm6514, %v6755, %v6757
  %6759 = vst [vmem:[#allocation4 + $0x15] sm:$0x3] %v6758
  %v6760 = vcombine.high %v6713, %v6713
  %6761 = vrot.lane.b32.xlu0 %v6760, 64
  %v6762 = vpop.permute.xlu0 %6761
  %v6763 = vrot.slane %v6762, 7
  %v6764 = vsel %vm6522, %v6763, %v6762
  %v6766 = vld [vmem:[#allocation4 + $0x16] sm:$0x3]
  %v6767 = vsel %vm6529, %v6764, %v6766
  %6768 = vst [vmem:[#allocation4 + $0x16] sm:$0x3] %v6767
  %v6770 = vshrl.u32 %v6760, 16
  %v6772 = vrot.slane %v6770, 7
  %v6773 = vrot.slane %v6772, 1
  %6774 = vrot.lane.b32.xlu0 %v6773, 80
  %v6775 = vpop.permute.xlu0 %6774
  %v6776 = vrot.slane %v6775, 7
  %v6777 = vsel %vm6541, %v6776, %v6775
  %v6779 = vld [vmem:[#allocation4 + $0x17] sm:$0x3]
  %v6780 = vsel %vm6548, %v6777, %v6779
  %6781 = vst [vmem:[#allocation4 + $0x17] sm:$0x3] %v6780
  %v6782 = vcombine.high %v6738, %v6738
  %6783 = vrot.lane.b32.xlu0 %v6782, 96
  %v6784 = vpop.permute.xlu0 %6783
  %v6785 = vrot.slane %v6784, 7
  %v6786 = vsel %vm6556, %v6785, %v6784
  %v6788 = vld [vmem:[#allocation4 + $0x18] sm:$0x3]
  %v6789 = vsel %vm6563, %v6786, %v6788
  %6790 = vst [vmem:[#allocation4 + $0x18] sm:$0x3] %v6789
  %v6792 = vshrl.u32 %v6782, 16
  %v6794 = vrot.slane %v6792, 7
  %v6795 = vrot.slane %v6794, 1
  %6796 = vrot.lane.b32.xlu0 %v6795, 112
  %v6797 = vpop.permute.xlu0 %6796
  %v6798 = vrot.slane %v6797, 7
  %v6799 = vsel %vm6575, %v6798, %v6797
  %v6801 = vld [vmem:[#allocation4 + $0x19] sm:$0x3]
  %v6802 = vsel %vm6582, %v6799, %v6801
  %6803 = vst [vmem:[#allocation4 + $0x19] sm:$0x3] %v6802
  %v6804 = vpack.c.bf16 %v6351, %v6351
  %v6805 = vpack.c.bf16 %v6383, %v6383
  %v6808 = vcombine.low %v6804, %v6805
  %v6810 = vunpack.c.l.s4 1966171168
  %v6811 = vunpack.c.0.s8 %v6810
  %v6812 = vlaneseq
  %v6813 = vshrl.u32 %v6812, 7
  %v6814 = vsub.s32 %v6811, %v6813
  %v6815 = vrot.slane %v6808, %v6814
  %v6817 = vunpack.c.l.s4 1966171168
  %v6818 = vunpack.c.0.s8 %v6817
  %v6819 = vlaneseq
  %v6820 = vshrl.u32 %v6819, 7
  %v6821 = vsub.s32 %v6818, %v6820
  %v6822 = vrot.slane %v6815, %v6821
  %v6824 = vld [vmem:[#allocation4 + $0x1b] sm:$0x3]
  %v6825 = vsel %vm6454, %v6822, %v6824
  %6826 = vst [vmem:[#allocation4 + $0x1b] sm:$0x3] %v6825
  %v6828 = vshrl.u32 %v6822, 16
  %v6830 = vrot.slane %v6828, 7
  %v6831 = vrot.slane %v6830, 1
  %6832 = vrot.lane.b32.xlu0 %v6831, 16
  %v6833 = vpop.permute.xlu0 %6832
  %v6834 = vrot.slane %v6833, 7
  %v6835 = vsel %vm6466, %v6834, %v6833
  %v6837 = vld [vmem:[#allocation4 + $0x1c] sm:$0x3]
  %v6838 = vsel %vm6473, %v6835, %v6837
  %6839 = vst [vmem:[#allocation4 + $0x1c] sm:$0x3] %v6838
  %v6840 = vcombine.high %v6815, %v6815
  %v6842 = vunpack.c.l.s4 1966171168
  %v6843 = vunpack.c.0.s8 %v6842
  %v6844 = vlaneseq
  %v6845 = vshrl.u32 %v6844, 7
  %v6846 = vsub.s32 %v6843, %v6845
  %v6847 = vrot.slane %v6840, %v6846
  %6848 = vrot.lane.b32.xlu0 %v6847, 32
  %v6849 = vpop.permute.xlu0 %6848
  %v6850 = vrot.slane %v6849, 7
  %v6851 = vsel %vm6488, %v6850, %v6849
  %v6853 = vld [vmem:[#allocation4 + $0x1d] sm:$0x3]
  %v6854 = vsel %vm6495, %v6851, %v6853
  %6855 = vst [vmem:[#allocation4 + $0x1d] sm:$0x3] %v6854
  %v6857 = vshrl.u32 %v6847, 16
  %v6859 = vrot.slane %v6857, 7
  %v6860 = vrot.slane %v6859, 1
  %6861 = vrot.lane.b32.xlu0 %v6860, 48
  %v6862 = vpop.permute.xlu0 %6861
  %v6863 = vrot.slane %v6862, 7
  %v6864 = vsel %vm6507, %v6863, %v6862
  %v6866 = vld [vmem:[#allocation4 + $0x1e] sm:$0x3]
  %v6867 = vsel %vm6514, %v6864, %v6866
  %6868 = vst [vmem:[#allocation4 + $0x1e] sm:$0x3] %v6867
  %v6869 = vcombine.high %v6822, %v6822
  %6870 = vrot.lane.b32.xlu0 %v6869, 64
  %v6871 = vpop.permute.xlu0 %6870
  %v6872 = vrot.slane %v6871, 7
  %v6873 = vsel %vm6522, %v6872, %v6871
  %v6875 = vld [vmem:[#allocation4 + $0x1f] sm:$0x3]
  %v6876 = vsel %vm6529, %v6873, %v6875
  %6877 = vst [vmem:[#allocation4 + $0x1f] sm:$0x3] %v6876
  %v6879 = vshrl.u32 %v6869, 16
  %v6881 = vrot.slane %v6879, 7
  %v6882 = vrot.slane %v6881, 1
  %6883 = vrot.lane.b32.xlu0 %v6882, 80
  %v6884 = vpop.permute.xlu0 %6883
  %v6885 = vrot.slane %v6884, 7
  %v6886 = vsel %vm6541, %v6885, %v6884
  %v6888 = vld [vmem:[#allocation4 + $0x20] sm:$0x3]
  %v6889 = vsel %vm6548, %v6886, %v6888
  %6890 = vst [vmem:[#allocation4 + $0x20] sm:$0x3] %v6889
  %v6891 = vcombine.high %v6847, %v6847
  %6892 = vrot.lane.b32.xlu0 %v6891, 96
  %v6893 = vpop.permute.xlu0 %6892
  %v6894 = vrot.slane %v6893, 7
  %v6895 = vsel %vm6556, %v6894, %v6893
  %v6897 = vld [vmem:[#allocation4 + $0x21] sm:$0x3]
  %v6898 = vsel %vm6563, %v6895, %v6897
  %6899 = vst [vmem:[#allocation4 + $0x21] sm:$0x3] %v6898
  %v6901 = vshrl.u32 %v6891, 16
  %v6903 = vrot.slane %v6901, 7
  %v6904 = vrot.slane %v6903, 1
  %6905 = vrot.lane.b32.xlu0 %v6904, 112
  %v6906 = vpop.permute.xlu0 %6905
  %v6907 = vrot.slane %v6906, 7
  %v6908 = vsel %vm6575, %v6907, %v6906
  %v6910 = vld [vmem:[#allocation4 + $0x22] sm:$0x3]
  %v6911 = vsel %vm6582, %v6908, %v6910
  %6912 = vst [vmem:[#allocation4 + $0x22] sm:$0x3] %v6911
  %v6913 = vpack.c.bf16 %v6412, %v6412
  %v6915 = vcombine.low %v6429, %v6913
  %v6917 = vunpack.c.l.s4 1966171168
  %v6918 = vunpack.c.0.s8 %v6917
  %v6919 = vlaneseq
  %v6920 = vshrl.u32 %v6919, 7
  %v6921 = vsub.s32 %v6918, %v6920
  %v6922 = vrot.slane %v6915, %v6921
  %v6924 = vunpack.c.l.s4 1966171168
  %v6925 = vunpack.c.0.s8 %v6924
  %v6926 = vlaneseq
  %v6927 = vshrl.u32 %v6926, 7
  %v6928 = vsub.s32 %v6925, %v6927
  %v6929 = vrot.slane %v6922, %v6928
  %v6931 = vshll.u32 %v6929, 16
  %6933 = vrot.lane.b32.xlu0 %v6931, 112
  %v6934 = vpop.permute.xlu0 %6933
  %v6935 = vrot.slane %v6934, 1
  %v6936 = vsel %vm6575, %v6934, %v6935
  %vm6938 = vsmask.f32 7938
  %vm6939 = vmand %vm6448, %vm6938
  %vm6940 = vsmask.f32 7942
  %vm6941 = vmand %vm6451, %vm6940
  %vm6942 = vmor %vm6941, %vm6939
  %v6943 = vld [vmem:[#allocation4] sm:$0x3]
  %v6944 = vsel %vm6942, %v6936, %v6943
  %6945 = vst [vmem:[#allocation4] sm:$0x3] %v6944
  %vm6947 = vmand %vm6469, %vm6938
  %vm6948 = vmand %vm6471, %vm6940
  %vm6949 = vmor %vm6948, %vm6947
  %v6950 = vld [vmem:[#allocation4 + $0x1] sm:$0x3]
  %v6951 = vsel %vm6949, %v6929, %v6950
  %6952 = vst [vmem:[#allocation4 + $0x1] sm:$0x3] %v6951
  %v6953 = vcombine.high %v6922, %v6922
  %v6955 = vunpack.c.l.s4 1966171168
  %v6956 = vunpack.c.0.s8 %v6955
  %v6957 = vlaneseq
  %v6958 = vshrl.u32 %v6957, 7
  %v6959 = vsub.s32 %v6956, %v6958
  %v6960 = vrot.slane %v6953, %v6959
  %v6962 = vshll.u32 %v6960, 16
  %6964 = vrot.lane.b32.xlu0 %v6962, 16
  %v6965 = vpop.permute.xlu0 %6964
  %v6966 = vrot.slane %v6965, 7
  %v6967 = vsel %vm6466, %v6966, %v6965
  %vm6969 = vmand %vm6491, %vm6938
  %vm6970 = vmand %vm6493, %vm6940
  %vm6971 = vmor %vm6970, %vm6969
  %v6972 = vld [vmem:[#allocation4 + $0x2] sm:$0x3]
  %v6973 = vsel %vm6971, %v6967, %v6972
  %6974 = vst [vmem:[#allocation4 + $0x2] sm:$0x3] %v6973
  %6975 = vrot.lane.b32.xlu0 %v6960, 32
  %v6976 = vpop.permute.xlu0 %6975
  %v6977 = vrot.slane %v6976, 7
  %v6978 = vsel %vm6488, %v6977, %v6976
  %vm6980 = vmand %vm6510, %vm6938
  %vm6981 = vmand %vm6512, %vm6940
  %vm6982 = vmor %vm6981, %vm6980
  %v6983 = vld [vmem:[#allocation4 + $0x3] sm:$0x3]
  %v6984 = vsel %vm6982, %v6978, %v6983
  %6985 = vst [vmem:[#allocation4 + $0x3] sm:$0x3] %v6984
  %v6986 = vcombine.high %v6929, %v6929
  %v6988 = vshll.u32 %v6986, 16
  %6990 = vrot.lane.b32.xlu0 %v6988, 48
  %v6991 = vpop.permute.xlu0 %6990
  %v6992 = vrot.slane %v6991, 7
  %v6993 = vsel %vm6507, %v6992, %v6991
  %vm6995 = vmand %vm6525, %vm6938
  %vm6996 = vmand %vm6527, %vm6940
  %vm6997 = vmor %vm6996, %vm6995
  %v6998 = vld [vmem:[#allocation4 + $0x4] sm:$0x3]
  %v6999 = vsel %vm6997, %v6993, %v6998
  %7000 = vst [vmem:[#allocation4 + $0x4] sm:$0x3] %v6999
  %7001 = vrot.lane.b32.xlu0 %v6986, 64
  %v7002 = vpop.permute.xlu0 %7001
  %v7003 = vrot.slane %v7002, 7
  %v7004 = vsel %vm6522, %v7003, %v7002
  %vm7006 = vmand %vm6544, %vm6938
  %vm7007 = vmand %vm6546, %vm6940
  %vm7008 = vmor %vm7007, %vm7006
  %v7009 = vld [vmem:[#allocation4 + $0x5] sm:$0x3]
  %v7010 = vsel %vm7008, %v7004, %v7009
  %7011 = vst [vmem:[#allocation4 + $0x5] sm:$0x3] %v7010
  %v7012 = vcombine.high %v6960, %v6960
  %v7014 = vshll.u32 %v7012, 16
  %7016 = vrot.lane.b32.xlu0 %v7014, 80
  %v7017 = vpop.permute.xlu0 %7016
  %v7018 = vrot.slane %v7017, 7
  %v7019 = vsel %vm6541, %v7018, %v7017
  %vm7021 = vmand %vm6559, %vm6938
  %vm7022 = vmand %vm6561, %vm6940
  %vm7023 = vmor %vm7022, %vm7021
  %v7024 = vld [vmem:[#allocation4 + $0x6] sm:$0x3]
  %v7025 = vsel %vm7023, %v7019, %v7024
  %7026 = vst [vmem:[#allocation4 + $0x6] sm:$0x3] %v7025
  %7027 = vrot.lane.b32.xlu0 %v7012, 96
  %v7028 = vpop.permute.xlu0 %7027
  %v7029 = vrot.slane %v7028, 7
  %v7030 = vsel %vm6556, %v7029, %v7028
  %vm7032 = vmand %vm6578, %vm6938
  %vm7033 = vmand %vm6580, %vm6940
  %vm7034 = vmor %vm7033, %vm7032
  %v7035 = vld [vmem:[#allocation4 + $0x7] sm:$0x3]
  %v7036 = vsel %vm7034, %v7030, %v7035
  %7037 = vst [vmem:[#allocation4 + $0x7] sm:$0x3] %v7036
  %v7038 = vpack.c.bf16 %v6413, %v6413
  %v7040 = vcombine.low %v6587, %v7038
  %v7042 = vunpack.c.l.s4 1966171168
  %v7043 = vunpack.c.0.s8 %v7042
  %v7044 = vlaneseq
  %v7045 = vshrl.u32 %v7044, 7
  %v7046 = vsub.s32 %v7043, %v7045
  %v7047 = vrot.slane %v7040, %v7046
  %v7049 = vunpack.c.l.s4 1966171168
  %v7050 = vunpack.c.0.s8 %v7049
  %v7051 = vlaneseq
  %v7052 = vshrl.u32 %v7051, 7
  %v7053 = vsub.s32 %v7050, %v7052
  %v7054 = vrot.slane %v7047, %v7053
  %v7056 = vshll.u32 %v7054, 16
  %7058 = vrot.lane.b32.xlu0 %v7056, 112
  %v7059 = vpop.permute.xlu0 %7058
  %v7060 = vrot.slane %v7059, 1
  %v7061 = vsel %vm6575, %v7059, %v7060
  %v7063 = vld [vmem:[#allocation4 + $0x9] sm:$0x3]
  %v7064 = vsel %vm6942, %v7061, %v7063
  %7065 = vst [vmem:[#allocation4 + $0x9] sm:$0x3] %v7064
  %v7067 = vld [vmem:[#allocation4 + $0xa] sm:$0x3]
  %v7068 = vsel %vm6949, %v7054, %v7067
  %7069 = vst [vmem:[#allocation4 + $0xa] sm:$0x3] %v7068
  %v7070 = vcombine.high %v7047, %v7047
  %v7072 = vunpack.c.l.s4 1966171168
  %v7073 = vunpack.c.0.s8 %v7072
  %v7074 = vlaneseq
  %v7075 = vshrl.u32 %v7074, 7
  %v7076 = vsub.s32 %v7073, %v7075
  %v7077 = vrot.slane %v7070, %v7076
  %v7079 = vshll.u32 %v7077, 16
  %7081 = vrot.lane.b32.xlu0 %v7079, 16
  %v7082 = vpop.permute.xlu0 %7081
  %v7083 = vrot.slane %v7082, 7
  %v7084 = vsel %vm6466, %v7083, %v7082
  %v7086 = vld [vmem:[#allocation4 + $0xb] sm:$0x3]
  %v7087 = vsel %vm6971, %v7084, %v7086
  %7088 = vst [vmem:[#allocation4 + $0xb] sm:$0x3] %v7087
  %7089 = vrot.lane.b32.xlu0 %v7077, 32
  %v7090 = vpop.permute.xlu0 %7089
  %v7091 = vrot.slane %v7090, 7
  %v7092 = vsel %vm6488, %v7091, %v7090
  %v7094 = vld [vmem:[#allocation4 + $0xc] sm:$0x3]
  %v7095 = vsel %vm6982, %v7092, %v7094
  %7096 = vst [vmem:[#allocation4 + $0xc] sm:$0x3] %v7095
  %v7097 = vcombine.high %v7054, %v7054
  %v7099 = vshll.u32 %v7097, 16
  %7101 = vrot.lane.b32.xlu0 %v7099, 48
  %v7102 = vpop.permute.xlu0 %7101
  %v7103 = vrot.slane %v7102, 7
  %v7104 = vsel %vm6507, %v7103, %v7102
  %v7106 = vld [vmem:[#allocation4 + $0xd] sm:$0x3]
  %v7107 = vsel %vm6997, %v7104, %v7106
  %7108 = vst [vmem:[#allocation4 + $0xd] sm:$0x3] %v7107
  %7109 = vrot.lane.b32.xlu0 %v7097, 64
  %v7110 = vpop.permute.xlu0 %7109
  %v7111 = vrot.slane %v7110, 7
  %v7112 = vsel %vm6522, %v7111, %v7110
  %v7114 = vld [vmem:[#allocation4 + $0xe] sm:$0x3]
  %v7115 = vsel %vm7008, %v7112, %v7114
  %7116 = vst [vmem:[#allocation4 + $0xe] sm:$0x3] %v7115
  %v7117 = vcombine.high %v7077, %v7077
  %v7119 = vshll.u32 %v7117, 16
  %7121 = vrot.lane.b32.xlu0 %v7119, 80
  %v7122 = vpop.permute.xlu0 %7121
  %v7123 = vrot.slane %v7122, 7
  %v7124 = vsel %vm6541, %v7123, %v7122
  %v7126 = vld [vmem:[#allocation4 + $0xf] sm:$0x3]
  %v7127 = vsel %vm7023, %v7124, %v7126
  %7128 = vst [vmem:[#allocation4 + $0xf] sm:$0x3] %v7127
  %7129 = vrot.lane.b32.xlu0 %v7117, 96
  %v7130 = vpop.permute.xlu0 %7129
  %v7131 = vrot.slane %v7130, 7
  %v7132 = vsel %vm6556, %v7131, %v7130
  %v7134 = vld [vmem:[#allocation4 + $0x10] sm:$0x3]
  %v7135 = vsel %vm7034, %v7132, %v7134
  %7136 = vst [vmem:[#allocation4 + $0x10] sm:$0x3] %v7135
  %v7137 = vpack.c.bf16 %v6414, %v6414
  %v7139 = vcombine.low %v6696, %v7137
  %v7141 = vunpack.c.l.s4 1966171168
  %v7142 = vunpack.c.0.s8 %v7141
  %v7143 = vlaneseq
  %v7144 = vshrl.u32 %v7143, 7
  %v7145 = vsub.s32 %v7142, %v7144
  %v7146 = vrot.slane %v7139, %v7145
  %v7148 = vunpack.c.l.s4 1966171168
  %v7149 = vunpack.c.0.s8 %v7148
  %v7150 = vlaneseq
  %v7151 = vshrl.u32 %v7150, 7
  %v7152 = vsub.s32 %v7149, %v7151
  %v7153 = vrot.slane %v7146, %v7152
  %v7155 = vshll.u32 %v7153, 16
  %7157 = vrot.lane.b32.xlu0 %v7155, 112
  %v7158 = vpop.permute.xlu0 %7157
  %v7159 = vrot.slane %v7158, 1
  %v7160 = vsel %vm6575, %v7158, %v7159
  %v7162 = vld [vmem:[#allocation4 + $0x12] sm:$0x3]
  %v7163 = vsel %vm6942, %v7160, %v7162
  %7164 = vst [vmem:[#allocation4 + $0x12] sm:$0x3] %v7163
  %v7166 = vld [vmem:[#allocation4 + $0x13] sm:$0x3]
  %v7167 = vsel %vm6949, %v7153, %v7166
  %7168 = vst [vmem:[#allocation4 + $0x13] sm:$0x3] %v7167
  %v7169 = vcombine.high %v7146, %v7146
  %v7171 = vunpack.c.l.s4 1966171168
  %v7172 = vunpack.c.0.s8 %v7171
  %v7173 = vlaneseq
  %v7174 = vshrl.u32 %v7173, 7
  %v7175 = vsub.s32 %v7172, %v7174
  %v7176 = vrot.slane %v7169, %v7175
  %v7178 = vshll.u32 %v7176, 16
  %7180 = vrot.lane.b32.xlu0 %v7178, 16
  %v7181 = vpop.permute.xlu0 %7180
  %v7182 = vrot.slane %v7181, 7
  %v7183 = vsel %vm6466, %v7182, %v7181
  %v7185 = vld [vmem:[#allocation4 + $0x14] sm:$0x3]
  %v7186 = vsel %vm6971, %v7183, %v7185
  %7187 = vst [vmem:[#allocation4 + $0x14] sm:$0x3] %v7186
  %7188 = vrot.lane.b32.xlu0 %v7176, 32
  %v7189 = vpop.permute.xlu0 %7188
  %v7190 = vrot.slane %v7189, 7
  %v7191 = vsel %vm6488, %v7190, %v7189
  %v7193 = vld [vmem:[#allocation4 + $0x15] sm:$0x3]
  %v7194 = vsel %vm6982, %v7191, %v7193
  %7195 = vst [vmem:[#allocation4 + $0x15] sm:$0x3] %v7194
  %v7196 = vcombine.high %v7153, %v7153
  %v7198 = vshll.u32 %v7196, 16
  %7200 = vrot.lane.b32.xlu0 %v7198, 48
  %v7201 = vpop.permute.xlu0 %7200
  %v7202 = vrot.slane %v7201, 7
  %v7203 = vsel %vm6507, %v7202, %v7201
  %v7205 = vld [vmem:[#allocation4 + $0x16] sm:$0x3]
  %v7206 = vsel %vm6997, %v7203, %v7205
  %7207 = vst [vmem:[#allocation4 + $0x16] sm:$0x3] %v7206
  %7208 = vrot.lane.b32.xlu0 %v7196, 64
  %v7209 = vpop.permute.xlu0 %7208
  %v7210 = vrot.slane %v7209, 7
  %v7211 = vsel %vm6522, %v7210, %v7209
  %v7213 = vld [vmem:[#allocation4 + $0x17] sm:$0x3]
  %v7214 = vsel %vm7008, %v7211, %v7213
  %7215 = vst [vmem:[#allocation4 + $0x17] sm:$0x3] %v7214
  %v7216 = vcombine.high %v7176, %v7176
  %v7218 = vshll.u32 %v7216, 16
  %7220 = vrot.lane.b32.xlu0 %v7218, 80
  %v7221 = vpop.permute.xlu0 %7220
  %v7222 = vrot.slane %v7221, 7
  %v7223 = vsel %vm6541, %v7222, %v7221
  %v7225 = vld [vmem:[#allocation4 + $0x18] sm:$0x3]
  %v7226 = vsel %vm7023, %v7223, %v7225
  %7227 = vst [vmem:[#allocation4 + $0x18] sm:$0x3] %v7226
  %7228 = vrot.lane.b32.xlu0 %v7216, 96
  %v7229 = vpop.permute.xlu0 %7228
  %v7230 = vrot.slane %v7229, 7
  %v7231 = vsel %vm6556, %v7230, %v7229
  %v7233 = vld [vmem:[#allocation4 + $0x19] sm:$0x3]
  %v7234 = vsel %vm7034, %v7231, %v7233
  %7235 = vst [vmem:[#allocation4 + $0x19] sm:$0x3] %v7234
  %v7236 = vpack.c.bf16 %v6415, %v6415
  %v7238 = vcombine.low %v6805, %v7236
  %v7240 = vunpack.c.l.s4 1966171168
  %v7241 = vunpack.c.0.s8 %v7240
  %v7242 = vlaneseq
  %v7243 = vshrl.u32 %v7242, 7
  %v7244 = vsub.s32 %v7241, %v7243
  %v7245 = vrot.slane %v7238, %v7244
  %v7247 = vunpack.c.l.s4 1966171168
  %v7248 = vunpack.c.0.s8 %v7247
  %v7249 = vlaneseq
  %v7250 = vshrl.u32 %v7249, 7
  %v7251 = vsub.s32 %v7248, %v7250
  %v7252 = vrot.slane %v7245, %v7251
  %v7254 = vshll.u32 %v7252, 16
  %7256 = vrot.lane.b32.xlu0 %v7254, 112
  %v7257 = vpop.permute.xlu0 %7256
  %v7258 = vrot.slane %v7257, 1
  %v7259 = vsel %vm6575, %v7257, %v7258
  %v7261 = vld [vmem:[#allocation4 + $0x1b] sm:$0x3]
  %v7262 = vsel %vm6942, %v7259, %v7261
  %7263 = vst [vmem:[#allocation4 + $0x1b] sm:$0x3] %v7262
  %v7265 = vld [vmem:[#allocation4 + $0x1c] sm:$0x3]
  %v7266 = vsel %vm6949, %v7252, %v7265
  %7267 = vst [vmem:[#allocation4 + $0x1c] sm:$0x3] %v7266
  %v7268 = vcombine.high %v7245, %v7245
  %v7270 = vunpack.c.l.s4 1966171168
  %v7271 = vunpack.c.0.s8 %v7270
  %v7272 = vlaneseq
  %v7273 = vshrl.u32 %v7272, 7
  %v7274 = vsub.s32 %v7271, %v7273
  %v7275 = vrot.slane %v7268, %v7274
  %v7277 = vshll.u32 %v7275, 16
  %7279 = vrot.lane.b32.xlu0 %v7277, 16
  %v7280 = vpop.permute.xlu0 %7279
  %v7281 = vrot.slane %v7280, 7
  %v7282 = vsel %vm6466, %v7281, %v7280
  %v7284 = vld [vmem:[#allocation4 + $0x1d] sm:$0x3]
  %v7285 = vsel %vm6971, %v7282, %v7284
  %7286 = vst [vmem:[#allocation4 + $0x1d] sm:$0x3] %v7285
  %7287 = vrot.lane.b32.xlu0 %v7275, 32
  %v7288 = vpop.permute.xlu0 %7287
  %v7289 = vrot.slane %v7288, 7
  %v7290 = vsel %vm6488, %v7289, %v7288
  %v7292 = vld [vmem:[#allocation4 + $0x1e] sm:$0x3]
  %v7293 = vsel %vm6982, %v7290, %v7292
  %7294 = vst [vmem:[#allocation4 + $0x1e] sm:$0x3] %v7293
  %v7295 = vcombine.high %v7252, %v7252
  %v7297 = vshll.u32 %v7295, 16
  %7299 = vrot.lane.b32.xlu0 %v7297, 48
  %v7300 = vpop.permute.xlu0 %7299
  %v7301 = vrot.slane %v7300, 7
  %v7302 = vsel %vm6507, %v7301, %v7300
  %v7304 = vld [vmem:[#allocation4 + $0x1f] sm:$0x3]
  %v7305 = vsel %vm6997, %v7302, %v7304
  %7306 = vst [vmem:[#allocation4 + $0x1f] sm:$0x3] %v7305
  %7307 = vrot.lane.b32.xlu0 %v7295, 64
  %v7308 = vpop.permute.xlu0 %7307
  %v7309 = vrot.slane %v7308, 7
  %v7310 = vsel %vm6522, %v7309, %v7308
  %v7312 = vld [vmem:[#allocation4 + $0x20] sm:$0x3]
  %v7313 = vsel %vm7008, %v7310, %v7312
  %7314 = vst [vmem:[#allocation4 + $0x20] sm:$0x3] %v7313
  %v7315 = vcombine.high %v7275, %v7275
  %v7317 = vshll.u32 %v7315, 16
  %7319 = vrot.lane.b32.xlu0 %v7317, 80
  %v7320 = vpop.permute.xlu0 %7319
  %v7321 = vrot.slane %v7320, 7
  %v7322 = vsel %vm6541, %v7321, %v7320
  %v7324 = vld [vmem:[#allocation4 + $0x21] sm:$0x3]
  %v7325 = vsel %vm7023, %v7322, %v7324
  %7326 = vst [vmem:[#allocation4 + $0x21] sm:$0x3] %v7325
  %7327 = vrot.lane.b32.xlu0 %v7315, 96
  %v7328 = vpop.permute.xlu0 %7327
  %v7329 = vrot.slane %v7328, 7
  %v7330 = vsel %vm6556, %v7329, %v7328
  %v7332 = vld [vmem:[#allocation4 + $0x22] sm:$0x3]
  %v7333 = vsel %vm7034, %v7330, %v7332
  %7334 = vst [vmem:[#allocation4 + $0x22] sm:$0x3] %v7333
  %s7335 = smul.u32 4, 576
  %s7336 = smul.u32 %s7335, 1
  %s7337 = sshll.u32 %s7336, 4
  %7338 = dma.done [#allocation5], %s7337
  %v7339 = vld [vmem:[#allocation4] sm:$0xff]
  %v7340 = vld [vmem:[#allocation4 + $0x8] sm:$0xff]
  %v7341 = vld [vmem:[#allocation4 + $0x10] sm:$0xff]
  %v7342 = vld [vmem:[#allocation4 + $0x18] sm:$0xff]
  %v7343 = vld [vmem:[#allocation4 + $0x20] sm:$0xf]
  %v7344 = vld [vmem:[#allocation2] sm:$0xff]
  %v7345 = vld [vmem:[#allocation2 + $0x8] sm:$0xff]
  %v7346 = vld [vmem:[#allocation2 + $0x10] sm:$0xff]
  %v7347 = vld [vmem:[#allocation2 + $0x18] sm:$0xff]
  %v7348 = vld [vmem:[#allocation2 + $0x20] sm:$0xff]
  %v7349 = vld [vmem:[#allocation2 + $0x28] sm:$0xff]
  %v7350 = vld [vmem:[#allocation2 + $0x30] sm:$0xff]
  %v7351 = vld [vmem:[#allocation2 + $0x38] sm:$0xff]
  %v7352 = vld [vmem:[#allocation2 + $0x40] sm:$0xff]
  %v7353 = vld [vmem:[#allocation2 + $0x48] sm:$0xff]
  %v7354 = vld [vmem:[#allocation2 + $0x50] sm:$0xff]
  %v7355 = vld [vmem:[#allocation2 + $0x58] sm:$0xff]
  %v7356 = vld [vmem:[#allocation2 + $0x60] sm:$0xff]
  %v7357 = vld [vmem:[#allocation2 + $0x68] sm:$0xff]
  %v7358 = vld [vmem:[#allocation2 + $0x70] sm:$0xff]
  %v7359 = vld [vmem:[#allocation2 + $0x78] sm:$0xff]
  %v7360 = vld [vmem:[#allocation2 + $0x80] sm:$0xff]
  %v7361 = vld [vmem:[#allocation2 + $0x88] sm:$0xff]
  %v7362 = vld [vmem:[#allocation2 + $0x90] sm:$0xff]
  %v7363 = vld [vmem:[#allocation2 + $0x98] sm:$0xff]
  %v7364 = vld [vmem:[#allocation2 + $0xa0] sm:$0xff]
  %v7365 = vld [vmem:[#allocation2 + $0xa8] sm:$0xff]
  %v7366 = vld [vmem:[#allocation2 + $0xb0] sm:$0xff]
  %v7367 = vld [vmem:[#allocation2 + $0xb8] sm:$0xff]
  %v7368 = vld [vmem:[#allocation2 + $0xc0] sm:$0xff]
  %v7369 = vld [vmem:[#allocation2 + $0xc8] sm:$0xff]
  %v7370 = vld [vmem:[#allocation2 + $0xd0] sm:$0xff]
  %v7371 = vld [vmem:[#allocation2 + $0xd8] sm:$0xff]
  %v7372 = vld [vmem:[#allocation2 + $0xe0] sm:$0xff]
  %v7373 = vld [vmem:[#allocation2 + $0xe8] sm:$0xff]
  %v7374 = vld [vmem:[#allocation2 + $0xf0] sm:$0xff]
  %v7375 = vld [vmem:[#allocation2 + $0xf8] sm:$0xff]
  %v7376 = vld [vmem:[#allocation2 + $0x100] sm:$0xff]
  %v7377 = vld [vmem:[#allocation2 + $0x108] sm:$0xff]
  %v7378 = vld [vmem:[#allocation2 + $0x110] sm:$0xff]
  %v7379 = vld [vmem:[#allocation2 + $0x118] sm:$0xff]
  %v7380 = vld [vmem:[#allocation2 + $0x120] sm:$0xff]
  %v7381 = vld [vmem:[#allocation2 + $0x128] sm:$0xff]
  %v7382 = vld [vmem:[#allocation2 + $0x130] sm:$0xff]
  %v7383 = vld [vmem:[#allocation2 + $0x138] sm:$0xff]
  %v7384 = vld [vmem:[#allocation2 + $0x140] sm:$0xff]
  %v7385 = vld [vmem:[#allocation2 + $0x148] sm:$0xff]
  %v7386 = vld [vmem:[#allocation2 + $0x150] sm:$0xff]
  %v7387 = vld [vmem:[#allocation2 + $0x158] sm:$0xff]
  %v7388 = vld [vmem:[#allocation2 + $0x160] sm:$0xff]
  %v7389 = vld [vmem:[#allocation2 + $0x168] sm:$0xff]
  %v7390 = vld [vmem:[#allocation2 + $0x170] sm:$0xff]
  %v7391 = vld [vmem:[#allocation2 + $0x178] sm:$0xff]
  %v7392 = vld [vmem:[#allocation2 + $0x180] sm:$0xff]
  %v7393 = vld [vmem:[#allocation2 + $0x188] sm:$0xff]
  %v7394 = vld [vmem:[#allocation2 + $0x190] sm:$0xff]
  %v7395 = vld [vmem:[#allocation2 + $0x198] sm:$0xff]
  %v7396 = vld [vmem:[#allocation2 + $0x1a0] sm:$0xff]
  %v7397 = vld [vmem:[#allocation2 + $0x1a8] sm:$0xff]
  %v7398 = vld [vmem:[#allocation2 + $0x1b0] sm:$0xff]
  %v7399 = vld [vmem:[#allocation2 + $0x1b8] sm:$0xff]
  %v7400 = vld [vmem:[#allocation2 + $0x1c0] sm:$0xff]
  %v7401 = vld [vmem:[#allocation2 + $0x1c8] sm:$0xff]
  %v7402 = vld [vmem:[#allocation2 + $0x1d0] sm:$0xff]
  %v7403 = vld [vmem:[#allocation2 + $0x1d8] sm:$0xff]
  %v7404 = vld [vmem:[#allocation2 + $0x1e0] sm:$0xff]
  %v7405 = vld [vmem:[#allocation2 + $0x1e8] sm:$0xff]
  %v7406 = vld [vmem:[#allocation2 + $0x1f0] sm:$0xff]
  %v7407 = vld [vmem:[#allocation2 + $0x1f8] sm:$0xff]
  %v7408 = vld [vmem:[#allocation2 + $0x200] sm:$0xff]
  %v7409 = vld [vmem:[#allocation2 + $0x208] sm:$0xff]
  %v7410 = vld [vmem:[#allocation2 + $0x210] sm:$0xff]
  %v7411 = vld [vmem:[#allocation2 + $0x218] sm:$0xff]
  %v7412 = vld [vmem:[#allocation2 + $0x220] sm:$0xff]
  %v7413 = vld [vmem:[#allocation2 + $0x228] sm:$0xff]
  %v7414 = vld [vmem:[#allocation2 + $0x230] sm:$0xff]
  %v7415 = vld [vmem:[#allocation2 + $0x238] sm:$0xff]
  %v7416 = vld [vmem:[#allocation2 + $0x240] sm:$0xff]
  %v7417 = vld [vmem:[#allocation2 + $0x248] sm:$0xff]
  %v7418 = vld [vmem:[#allocation2 + $0x250] sm:$0xff]
  %v7419 = vld [vmem:[#allocation2 + $0x258] sm:$0xff]
  %v7420 = vld [vmem:[#allocation2 + $0x260] sm:$0xff]
  %v7421 = vld [vmem:[#allocation2 + $0x268] sm:$0xff]
  %v7422 = vld [vmem:[#allocation2 + $0x270] sm:$0xff]
  %v7423 = vld [vmem:[#allocation2 + $0x278] sm:$0xff]
  %v7424 = vld [vmem:[#allocation2 + $0x280] sm:$0xff]
  %v7425 = vld [vmem:[#allocation2 + $0x288] sm:$0xff]
  %v7426 = vld [vmem:[#allocation2 + $0x290] sm:$0xff]
  %v7427 = vld [vmem:[#allocation2 + $0x298] sm:$0xff]
  %v7428 = vld [vmem:[#allocation2 + $0x2a0] sm:$0xff]
  %v7429 = vld [vmem:[#allocation2 + $0x2a8] sm:$0xff]
  %v7430 = vld [vmem:[#allocation2 + $0x2b0] sm:$0xff]
  %v7431 = vld [vmem:[#allocation2 + $0x2b8] sm:$0xff]
  %v7432 = vld [vmem:[#allocation2 + $0x2c0] sm:$0xff]
  %v7433 = vld [vmem:[#allocation2 + $0x2c8] sm:$0xff]
  %v7434 = vld [vmem:[#allocation2 + $0x2d0] sm:$0xff]
  %v7435 = vld [vmem:[#allocation2 + $0x2d8] sm:$0xff]
  %v7436 = vld [vmem:[#allocation2 + $0x2e0] sm:$0xff]
  %v7437 = vld [vmem:[#allocation2 + $0x2e8] sm:$0xff]
  %v7438 = vld [vmem:[#allocation2 + $0x2f0] sm:$0xff]
  %v7439 = vld [vmem:[#allocation2 + $0x2f8] sm:$0xff]
  %v7440 = vld [vmem:[#allocation2 + $0x300] sm:$0xff]
  %v7441 = vld [vmem:[#allocation2 + $0x308] sm:$0xff]
  %v7442 = vld [vmem:[#allocation2 + $0x310] sm:$0xff]
  %v7443 = vld [vmem:[#allocation2 + $0x318] sm:$0xff]
  %v7444 = vld [vmem:[#allocation2 + $0x320] sm:$0xff]
  %v7445 = vld [vmem:[#allocation2 + $0x328] sm:$0xff]
  %v7446 = vld [vmem:[#allocation2 + $0x330] sm:$0xff]
  %v7447 = vld [vmem:[#allocation2 + $0x338] sm:$0xff]
  %v7448 = vld [vmem:[#allocation2 + $0x340] sm:$0xff]
  %v7449 = vld [vmem:[#allocation2 + $0x348] sm:$0xff]
  %v7450 = vld [vmem:[#allocation2 + $0x350] sm:$0xff]
  %v7451 = vld [vmem:[#allocation2 + $0x358] sm:$0xff]
  %v7452 = vld [vmem:[#allocation2 + $0x360] sm:$0xff]
  %v7453 = vld [vmem:[#allocation2 + $0x368] sm:$0xff]
  %v7454 = vld [vmem:[#allocation2 + $0x370] sm:$0xff]
  %v7455 = vld [vmem:[#allocation2 + $0x378] sm:$0xff]
  %v7456 = vld [vmem:[#allocation2 + $0x380] sm:$0xff]
  %v7457 = vld [vmem:[#allocation2 + $0x388] sm:$0xff]
  %v7458 = vld [vmem:[#allocation2 + $0x390] sm:$0xff]
  %v7459 = vld [vmem:[#allocation2 + $0x398] sm:$0xff]
  %v7460 = vld [vmem:[#allocation2 + $0x3a0] sm:$0xff]
  %v7461 = vld [vmem:[#allocation2 + $0x3a8] sm:$0xff]
  %v7462 = vld [vmem:[#allocation2 + $0x3b0] sm:$0xff]
  %v7463 = vld [vmem:[#allocation2 + $0x3b8] sm:$0xff]
  %v7464 = vld [vmem:[#allocation2 + $0x3c0] sm:$0xff]
  %v7465 = vld [vmem:[#allocation2 + $0x3c8] sm:$0xff]
  %v7466 = vld [vmem:[#allocation2 + $0x3d0] sm:$0xff]
  %v7467 = vld [vmem:[#allocation2 + $0x3d8] sm:$0xff]
  %v7468 = vld [vmem:[#allocation2 + $0x3e0] sm:$0xff]
  %v7469 = vld [vmem:[#allocation2 + $0x3e8] sm:$0xff]
  %v7470 = vld [vmem:[#allocation2 + $0x3f0] sm:$0xff]
  %v7471 = vld [vmem:[#allocation2 + $0x3f8] sm:$0xff]
  %v7472 = vld [vmem:[#allocation2 + $0x400] sm:$0xff]
  %v7473 = vld [vmem:[#allocation2 + $0x408] sm:$0xff]
  %v7474 = vld [vmem:[#allocation2 + $0x410] sm:$0xff]
  %v7475 = vld [vmem:[#allocation2 + $0x418] sm:$0xff]
  %v7476 = vld [vmem:[#allocation2 + $0x420] sm:$0xff]
  %v7477 = vld [vmem:[#allocation2 + $0x428] sm:$0xff]
  %v7478 = vld [vmem:[#allocation2 + $0x430] sm:$0xff]
  %v7479 = vld [vmem:[#allocation2 + $0x438] sm:$0xff]
  %v7480 = vld [vmem:[#allocation2 + $0x440] sm:$0xff]
  %v7481 = vld [vmem:[#allocation2 + $0x448] sm:$0xff]
  %v7482 = vld [vmem:[#allocation2 + $0x450] sm:$0xff]
  %v7483 = vld [vmem:[#allocation2 + $0x458] sm:$0xff]
  %v7484 = vld [vmem:[#allocation2 + $0x460] sm:$0xff]
  %v7485 = vld [vmem:[#allocation2 + $0x468] sm:$0xff]
  %v7486 = vld [vmem:[#allocation2 + $0x470] sm:$0xff]
  %v7487 = vld [vmem:[#allocation2 + $0x478] sm:$0xff]
  %v7488 = vld [vmem:[#allocation2 + $0x480] sm:$0xff]
  %v7489 = vld [vmem:[#allocation2 + $0x488] sm:$0xff]
  %v7490 = vld [vmem:[#allocation2 + $0x490] sm:$0xff]
  %v7491 = vld [vmem:[#allocation2 + $0x498] sm:$0xff]
  %v7492 = vld [vmem:[#allocation2 + $0x4a0] sm:$0xff]
  %v7493 = vld [vmem:[#allocation2 + $0x4a8] sm:$0xff]
  %v7494 = vld [vmem:[#allocation2 + $0x4b0] sm:$0xff]
  %v7495 = vld [vmem:[#allocation2 + $0x4b8] sm:$0xff]
  %v7496 = vld [vmem:[#allocation2 + $0x4c0] sm:$0xff]
  %v7497 = vld [vmem:[#allocation2 + $0x4c8] sm:$0xff]
  %v7498 = vld [vmem:[#allocation2 + $0x4d0] sm:$0xff]
  %v7499 = vld [vmem:[#allocation2 + $0x4d8] sm:$0xff]
  %v7500 = vld [vmem:[#allocation2 + $0x4e0] sm:$0xff]
  %v7501 = vld [vmem:[#allocation2 + $0x4e8] sm:$0xff]
  %v7502 = vld [vmem:[#allocation2 + $0x4f0] sm:$0xff]
  %v7503 = vld [vmem:[#allocation2 + $0x4f8] sm:$0xff]
  %v7504 = vld [vmem:[#allocation2 + $0x500] sm:$0xff]
  %v7505 = vld [vmem:[#allocation2 + $0x508] sm:$0xff]
  %v7506 = vld [vmem:[#allocation2 + $0x510] sm:$0xff]
  %v7507 = vld [vmem:[#allocation2 + $0x518] sm:$0xff]
  %v7508 = vld [vmem:[#allocation2 + $0x520] sm:$0xff]
  %v7509 = vld [vmem:[#allocation2 + $0x528] sm:$0xff]
  %v7510 = vld [vmem:[#allocation2 + $0x530] sm:$0xff]
  %v7511 = vld [vmem:[#allocation2 + $0x538] sm:$0xff]
  %v7512 = vld [vmem:[#allocation2 + $0x540] sm:$0xff]
  %v7513 = vld [vmem:[#allocation2 + $0x548] sm:$0xff]
  %v7514 = vld [vmem:[#allocation2 + $0x550] sm:$0xff]
  %v7515 = vld [vmem:[#allocation2 + $0x558] sm:$0xff]
  %v7516 = vld [vmem:[#allocation2 + $0x560] sm:$0xff]
  %v7517 = vld [vmem:[#allocation2 + $0x568] sm:$0xff]
  %v7518 = vld [vmem:[#allocation2 + $0x570] sm:$0xff]
  %v7519 = vld [vmem:[#allocation2 + $0x578] sm:$0xff]
  %v7520 = vld [vmem:[#allocation2 + $0x580] sm:$0xff]
  %v7521 = vld [vmem:[#allocation2 + $0x588] sm:$0xff]
  %v7522 = vld [vmem:[#allocation2 + $0x590] sm:$0xff]
  %v7523 = vld [vmem:[#allocation2 + $0x598] sm:$0xff]
  %v7524 = vld [vmem:[#allocation2 + $0x5a0] sm:$0xff]
  %v7525 = vld [vmem:[#allocation2 + $0x5a8] sm:$0xff]
  %v7526 = vld [vmem:[#allocation2 + $0x5b0] sm:$0xff]
  %v7527 = vld [vmem:[#allocation2 + $0x5b8] sm:$0xff]
  %v7528 = vld [vmem:[#allocation2 + $0x5c0] sm:$0xff]
  %v7529 = vld [vmem:[#allocation2 + $0x5c8] sm:$0xff]
  %v7530 = vld [vmem:[#allocation2 + $0x5d0] sm:$0xff]
  %v7531 = vld [vmem:[#allocation2 + $0x5d8] sm:$0xff]
  %v7532 = vld [vmem:[#allocation2 + $0x5e0] sm:$0xff]
  %v7533 = vld [vmem:[#allocation2 + $0x5e8] sm:$0xff]
  %v7534 = vld [vmem:[#allocation2 + $0x5f0] sm:$0xff]
  %v7535 = vld [vmem:[#allocation2 + $0x5f8] sm:$0xff]
  %v7536 = vld [vmem:[#allocation2 + $0x600] sm:$0xff]
  %v7537 = vld [vmem:[#allocation2 + $0x608] sm:$0xff]
  %v7538 = vld [vmem:[#allocation2 + $0x610] sm:$0xff]
  %v7539 = vld [vmem:[#allocation2 + $0x618] sm:$0xff]
  %v7540 = vld [vmem:[#allocation2 + $0x620] sm:$0xff]
  %v7541 = vld [vmem:[#allocation2 + $0x628] sm:$0xff]
  %v7542 = vld [vmem:[#allocation2 + $0x630] sm:$0xff]
  %v7543 = vld [vmem:[#allocation2 + $0x638] sm:$0xff]
  %v7544 = vld [vmem:[#allocation2 + $0x640] sm:$0xff]
  %v7545 = vld [vmem:[#allocation2 + $0x648] sm:$0xff]
  %v7546 = vld [vmem:[#allocation2 + $0x650] sm:$0xff]
  %v7547 = vld [vmem:[#allocation2 + $0x658] sm:$0xff]
  %v7548 = vld [vmem:[#allocation2 + $0x660] sm:$0xff]
  %v7549 = vld [vmem:[#allocation2 + $0x668] sm:$0xff]
  %v7550 = vld [vmem:[#allocation2 + $0x670] sm:$0xff]
  %v7551 = vld [vmem:[#allocation2 + $0x678] sm:$0xff]
  %v7552 = vld [vmem:[#allocation2 + $0x680] sm:$0xff]
  %v7553 = vld [vmem:[#allocation2 + $0x688] sm:$0xff]
  %v7554 = vld [vmem:[#allocation2 + $0x690] sm:$0xff]
  %v7555 = vld [vmem:[#allocation2 + $0x698] sm:$0xff]
  %v7556 = vld [vmem:[#allocation2 + $0x6a0] sm:$0xff]
  %v7557 = vld [vmem:[#allocation2 + $0x6a8] sm:$0xff]
  %v7558 = vld [vmem:[#allocation2 + $0x6b0] sm:$0xff]
  %v7559 = vld [vmem:[#allocation2 + $0x6b8] sm:$0xff]
  %v7560 = vld [vmem:[#allocation2 + $0x6c0] sm:$0xff]
  %v7561 = vld [vmem:[#allocation2 + $0x6c8] sm:$0xff]
  %v7562 = vld [vmem:[#allocation2 + $0x6d0] sm:$0xff]
  %v7563 = vld [vmem:[#allocation2 + $0x6d8] sm:$0xff]
  %v7564 = vld [vmem:[#allocation2 + $0x6e0] sm:$0xff]
  %v7565 = vld [vmem:[#allocation2 + $0x6e8] sm:$0xff]
  %v7566 = vld [vmem:[#allocation2 + $0x6f0] sm:$0xff]
  %v7567 = vld [vmem:[#allocation2 + $0x6f8] sm:$0xff]
  %v7568 = vld [vmem:[#allocation2 + $0x700] sm:$0xff]
  %v7569 = vld [vmem:[#allocation2 + $0x708] sm:$0xff]
  %v7570 = vld [vmem:[#allocation2 + $0x710] sm:$0xff]
  %v7571 = vld [vmem:[#allocation2 + $0x718] sm:$0xff]
  %v7572 = vld [vmem:[#allocation2 + $0x720] sm:$0xff]
  %v7573 = vld [vmem:[#allocation2 + $0x728] sm:$0xff]
  %v7574 = vld [vmem:[#allocation2 + $0x730] sm:$0xff]
  %v7575 = vld [vmem:[#allocation2 + $0x738] sm:$0xff]
  %v7576 = vld [vmem:[#allocation2 + $0x740] sm:$0xff]
  %v7577 = vld [vmem:[#allocation2 + $0x748] sm:$0xff]
  %v7578 = vld [vmem:[#allocation2 + $0x750] sm:$0xff]
  %v7579 = vld [vmem:[#allocation2 + $0x758] sm:$0xff]
  %v7580 = vld [vmem:[#allocation2 + $0x760] sm:$0xff]
  %v7581 = vld [vmem:[#allocation2 + $0x768] sm:$0xff]
  %v7582 = vld [vmem:[#allocation2 + $0x770] sm:$0xff]
  %v7583 = vld [vmem:[#allocation2 + $0x778] sm:$0xff]
  %v7584 = vld [vmem:[#allocation2 + $0x780] sm:$0xff]
  %v7585 = vld [vmem:[#allocation2 + $0x788] sm:$0xff]
  %v7586 = vld [vmem:[#allocation2 + $0x790] sm:$0xff]
  %v7587 = vld [vmem:[#allocation2 + $0x798] sm:$0xff]
  %v7588 = vld [vmem:[#allocation2 + $0x7a0] sm:$0xff]
  %v7589 = vld [vmem:[#allocation2 + $0x7a8] sm:$0xff]
  %v7590 = vld [vmem:[#allocation2 + $0x7b0] sm:$0xff]
  %v7591 = vld [vmem:[#allocation2 + $0x7b8] sm:$0xff]
  %v7592 = vld [vmem:[#allocation2 + $0x7c0] sm:$0xff]
  %v7593 = vld [vmem:[#allocation2 + $0x7c8] sm:$0xff]
  %v7594 = vld [vmem:[#allocation2 + $0x7d0] sm:$0xff]
  %v7595 = vld [vmem:[#allocation2 + $0x7d8] sm:$0xff]
  %v7596 = vld [vmem:[#allocation2 + $0x7e0] sm:$0xff]
  %v7597 = vld [vmem:[#allocation2 + $0x7e8] sm:$0xff]
  %v7598 = vld [vmem:[#allocation2 + $0x7f0] sm:$0xff]
  %v7599 = vld [vmem:[#allocation2 + $0x7f8] sm:$0xff]
  %v7600 = vld [vmem:[#allocation2 + $0x800] sm:$0xff]
  %v7601 = vld [vmem:[#allocation2 + $0x808] sm:$0xff]
  %v7602 = vld [vmem:[#allocation2 + $0x810] sm:$0xff]
  %v7603 = vld [vmem:[#allocation2 + $0x818] sm:$0xff]
  %v7604 = vld [vmem:[#allocation2 + $0x820] sm:$0xff]
  %v7605 = vld [vmem:[#allocation2 + $0x828] sm:$0xff]
  %v7606 = vld [vmem:[#allocation2 + $0x830] sm:$0xff]
  %v7607 = vld [vmem:[#allocation2 + $0x838] sm:$0xff]
  %v7608 = vld [vmem:[#allocation2 + $0x840] sm:$0xff]
  %v7609 = vld [vmem:[#allocation2 + $0x848] sm:$0xff]
  %v7610 = vld [vmem:[#allocation2 + $0x850] sm:$0xff]
  %v7611 = vld [vmem:[#allocation2 + $0x858] sm:$0xff]
  %v7612 = vld [vmem:[#allocation2 + $0x860] sm:$0xff]
  %v7613 = vld [vmem:[#allocation2 + $0x868] sm:$0xff]
  %v7614 = vld [vmem:[#allocation2 + $0x870] sm:$0xff]
  %v7615 = vld [vmem:[#allocation2 + $0x878] sm:$0xff]
  %v7616 = vld [vmem:[#allocation2 + $0x880] sm:$0xff]
  %v7617 = vld [vmem:[#allocation2 + $0x888] sm:$0xff]
  %v7618 = vld [vmem:[#allocation2 + $0x890] sm:$0xff]
  %v7619 = vld [vmem:[#allocation2 + $0x898] sm:$0xff]
  %v7620 = vld [vmem:[#allocation2 + $0x8a0] sm:$0xff]
  %v7621 = vld [vmem:[#allocation2 + $0x8a8] sm:$0xff]
  %v7622 = vld [vmem:[#allocation2 + $0x8b0] sm:$0xff]
  %v7623 = vld [vmem:[#allocation2 + $0x8b8] sm:$0xff]
  %v7624 = vld [vmem:[#allocation2 + $0x8c0] sm:$0xff]
  %v7625 = vld [vmem:[#allocation2 + $0x8c8] sm:$0xff]
  %v7626 = vld [vmem:[#allocation2 + $0x8d0] sm:$0xff]
  %v7627 = vld [vmem:[#allocation2 + $0x8d8] sm:$0xff]
  %v7628 = vld [vmem:[#allocation2 + $0x8e0] sm:$0xff]
  %v7629 = vld [vmem:[#allocation2 + $0x8e8] sm:$0xff]
  %v7630 = vld [vmem:[#allocation2 + $0x8f0] sm:$0xff]
  %v7631 = vld [vmem:[#allocation2 + $0x8f8] sm:$0xff]
  %v7632 = vld [vmem:[%s6] sm:$0x1]
  %v7634 = vlaneseq
  %v7635 = vshrl.u32 %v7634, 7
  %v7636 = vsub.s32 0, %v7635
  %v7637 = vrot.slane %v7632, %v7636
  %v7644 = vcombine.high %v7339, %v7339
  %v7646 = vunpack.c.l.s4 1966171168
  %v7647 = vunpack.c.0.s8 %v7646
  %v7648 = vlaneseq
  %v7649 = vshrl.u32 %v7648, 7
  %v7650 = vsub.s32 %v7647, %v7649
  %v7651 = vrot.slane %v7339, %v7650
  %v7653 = vunpack.c.l.s4 1966171168
  %v7654 = vunpack.c.0.s8 %v7653
  %v7655 = vlaneseq
  %v7656 = vshrl.u32 %v7655, 7
  %v7657 = vsub.s32 %v7654, %v7656
  %v7658 = vrot.slane %v7644, %v7657
  %v7659 = vcombine.high %v7651, %v7651
  %v7660 = vcombine.high %v7658, %v7658
  %v7662 = vunpack.c.l.s4 1966171168
  %v7663 = vunpack.c.0.s8 %v7662
  %v7664 = vlaneseq
  %v7665 = vshrl.u32 %v7664, 7
  %v7666 = vsub.s32 %v7663, %v7665
  %v7667 = vrot.slane %v7651, %v7666
  %v7669 = vunpack.c.l.s4 1966171168
  %v7670 = vunpack.c.0.s8 %v7669
  %v7671 = vlaneseq
  %v7672 = vshrl.u32 %v7671, 7
  %v7673 = vsub.s32 %v7670, %v7672
  %v7674 = vrot.slane %v7658, %v7673
  %v7676 = vunpack.c.l.s4 1966171168
  %v7677 = vunpack.c.0.s8 %v7676
  %v7678 = vlaneseq
  %v7679 = vshrl.u32 %v7678, 7
  %v7680 = vsub.s32 %v7677, %v7679
  %v7681 = vrot.slane %v7659, %v7680
  %v7683 = vunpack.c.l.s4 1966171168
  %v7684 = vunpack.c.0.s8 %v7683
  %v7685 = vlaneseq
  %v7686 = vshrl.u32 %v7685, 7
  %v7687 = vsub.s32 %v7684, %v7686
  %v7688 = vrot.slane %v7660, %v7687
  %v7689 = vcombine.high %v7667, %v7667
  %v7690 = vcombine.high %v7674, %v7674
  %v7691 = vcombine.high %v7681, %v7681
  %v7692 = vcombine.high %v7688, %v7688
  %v7693 = vcombine.high %v7340, %v7340
  %v7695 = vunpack.c.l.s4 1966171168
  %v7696 = vunpack.c.0.s8 %v7695
  %v7697 = vlaneseq
  %v7698 = vshrl.u32 %v7697, 7
  %v7699 = vsub.s32 %v7696, %v7698
  %v7700 = vrot.slane %v7340, %v7699
  %v7702 = vunpack.c.l.s4 1966171168
  %v7703 = vunpack.c.0.s8 %v7702
  %v7704 = vlaneseq
  %v7705 = vshrl.u32 %v7704, 7
  %v7706 = vsub.s32 %v7703, %v7705
  %v7707 = vrot.slane %v7693, %v7706
  %v7708 = vcombine.high %v7700, %v7700
  %v7709 = vcombine.high %v7707, %v7707
  %v7711 = vunpack.c.l.s4 1966171168
  %v7712 = vunpack.c.0.s8 %v7711
  %v7713 = vlaneseq
  %v7714 = vshrl.u32 %v7713, 7
  %v7715 = vsub.s32 %v7712, %v7714
  %v7716 = vrot.slane %v7700, %v7715
  %v7718 = vunpack.c.l.s4 1966171168
  %v7719 = vunpack.c.0.s8 %v7718
  %v7720 = vlaneseq
  %v7721 = vshrl.u32 %v7720, 7
  %v7722 = vsub.s32 %v7719, %v7721
  %v7723 = vrot.slane %v7707, %v7722
  %v7725 = vunpack.c.l.s4 1966171168
  %v7726 = vunpack.c.0.s8 %v7725
  %v7727 = vlaneseq
  %v7728 = vshrl.u32 %v7727, 7
  %v7729 = vsub.s32 %v7726, %v7728
  %v7730 = vrot.slane %v7708, %v7729
  %v7732 = vunpack.c.l.s4 1966171168
  %v7733 = vunpack.c.0.s8 %v7732
  %v7734 = vlaneseq
  %v7735 = vshrl.u32 %v7734, 7
  %v7736 = vsub.s32 %v7733, %v7735
  %v7737 = vrot.slane %v7709, %v7736
  %v7738 = vcombine.high %v7716, %v7716
  %v7739 = vcombine.high %v7723, %v7723
  %v7740 = vcombine.high %v7730, %v7730
  %v7741 = vcombine.high %v7737, %v7737
  %v7742 = vcombine.high %v7341, %v7341
  %v7744 = vunpack.c.l.s4 1966171168
  %v7745 = vunpack.c.0.s8 %v7744
  %v7746 = vlaneseq
  %v7747 = vshrl.u32 %v7746, 7
  %v7748 = vsub.s32 %v7745, %v7747
  %v7749 = vrot.slane %v7341, %v7748
  %v7751 = vunpack.c.l.s4 1966171168
  %v7752 = vunpack.c.0.s8 %v7751
  %v7753 = vlaneseq
  %v7754 = vshrl.u32 %v7753, 7
  %v7755 = vsub.s32 %v7752, %v7754
  %v7756 = vrot.slane %v7742, %v7755
  %v7757 = vcombine.high %v7749, %v7749
  %v7758 = vcombine.high %v7756, %v7756
  %v7760 = vunpack.c.l.s4 1966171168
  %v7761 = vunpack.c.0.s8 %v7760
  %v7762 = vlaneseq
  %v7763 = vshrl.u32 %v7762, 7
  %v7764 = vsub.s32 %v7761, %v7763
  %v7765 = vrot.slane %v7749, %v7764
  %v7767 = vunpack.c.l.s4 1966171168
  %v7768 = vunpack.c.0.s8 %v7767
  %v7769 = vlaneseq
  %v7770 = vshrl.u32 %v7769, 7
  %v7771 = vsub.s32 %v7768, %v7770
  %v7772 = vrot.slane %v7756, %v7771
  %v7774 = vunpack.c.l.s4 1966171168
  %v7775 = vunpack.c.0.s8 %v7774
  %v7776 = vlaneseq
  %v7777 = vshrl.u32 %v7776, 7
  %v7778 = vsub.s32 %v7775, %v7777
  %v7779 = vrot.slane %v7757, %v7778
  %v7781 = vunpack.c.l.s4 1966171168
  %v7782 = vunpack.c.0.s8 %v7781
  %v7783 = vlaneseq
  %v7784 = vshrl.u32 %v7783, 7
  %v7785 = vsub.s32 %v7782, %v7784
  %v7786 = vrot.slane %v7758, %v7785
  %v7787 = vcombine.high %v7765, %v7765
  %v7788 = vcombine.high %v7772, %v7772
  %v7789 = vcombine.high %v7779, %v7779
  %v7790 = vcombine.high %v7786, %v7786
  %v7791 = vcombine.high %v7342, %v7342
  %v7793 = vunpack.c.l.s4 1966171168
  %v7794 = vunpack.c.0.s8 %v7793
  %v7795 = vlaneseq
  %v7796 = vshrl.u32 %v7795, 7
  %v7797 = vsub.s32 %v7794, %v7796
  %v7798 = vrot.slane %v7342, %v7797
  %v7800 = vunpack.c.l.s4 1966171168
  %v7801 = vunpack.c.0.s8 %v7800
  %v7802 = vlaneseq
  %v7803 = vshrl.u32 %v7802, 7
  %v7804 = vsub.s32 %v7801, %v7803
  %v7805 = vrot.slane %v7791, %v7804
  %v7806 = vcombine.high %v7798, %v7798
  %v7807 = vcombine.high %v7805, %v7805
  %v7809 = vunpack.c.l.s4 1966171168
  %v7810 = vunpack.c.0.s8 %v7809
  %v7811 = vlaneseq
  %v7812 = vshrl.u32 %v7811, 7
  %v7813 = vsub.s32 %v7810, %v7812
  %v7814 = vrot.slane %v7798, %v7813
  %v7816 = vunpack.c.l.s4 1966171168
  %v7817 = vunpack.c.0.s8 %v7816
  %v7818 = vlaneseq
  %v7819 = vshrl.u32 %v7818, 7
  %v7820 = vsub.s32 %v7817, %v7819
  %v7821 = vrot.slane %v7805, %v7820
  %v7823 = vunpack.c.l.s4 1966171168
  %v7824 = vunpack.c.0.s8 %v7823
  %v7825 = vlaneseq
  %v7826 = vshrl.u32 %v7825, 7
  %v7827 = vsub.s32 %v7824, %v7826
  %v7828 = vrot.slane %v7806, %v7827
  %v7830 = vunpack.c.l.s4 1966171168
  %v7831 = vunpack.c.0.s8 %v7830
  %v7832 = vlaneseq
  %v7833 = vshrl.u32 %v7832, 7
  %v7834 = vsub.s32 %v7831, %v7833
  %v7835 = vrot.slane %v7807, %v7834
  %v7836 = vcombine.high %v7814, %v7814
  %v7837 = vcombine.high %v7821, %v7821
  %v7838 = vcombine.high %v7828, %v7828
  %v7839 = vcombine.high %v7835, %v7835
  %v7841 = vunpack.c.l.s4 1966171168
  %v7842 = vunpack.c.0.s8 %v7841
  %v7843 = vlaneseq
  %v7844 = vshrl.u32 %v7843, 7
  %v7845 = vsub.s32 %v7842, %v7844
  %v7846 = vrot.slane %v7343, %v7845
  %v7847 = vcombine.high %v7846, %v7846
  %v7849 = vunpack.c.l.s4 1966171168
  %v7850 = vunpack.c.0.s8 %v7849
  %v7851 = vlaneseq
  %v7852 = vshrl.u32 %v7851, 7
  %v7853 = vsub.s32 %v7850, %v7852
  %v7854 = vrot.slane %v7846, %v7853
  %v7856 = vunpack.c.l.s4 1966171168
  %v7857 = vunpack.c.0.s8 %v7856
  %v7858 = vlaneseq
  %v7859 = vshrl.u32 %v7858, 7
  %v7860 = vsub.s32 %v7857, %v7859
  %v7861 = vrot.slane %v7847, %v7860
  %v7862 = vcombine.high %v7854, %v7854
  %v7863 = vcombine.high %v7861, %v7861
  %7900 = vmatprep.subr.bf16.mxu0 0
  %7901 = vmatpush1.bf16.msra.mxu0 %v7344
  %7902 = vmatprep.subr.bf16.mxu0 0
  %7903 = vmatpush1.bf16.msra.mxu0 %v7345
  %7904 = vmatprep.subr.bf16.mxu0 0
  %7905 = vmatpush1.bf16.msra.mxu0 %v7346
  %7906 = vmatprep.subr.bf16.mxu0 0
  %7907 = vmatpush1.bf16.msra.mxu0 %v7347
  %7908 = vmatprep.subr.bf16.mxu0 0
  %7909 = vmatpush1.bf16.msra.mxu0 %v7348
  %7910 = vmatprep.subr.bf16.mxu0 0
  %7911 = vmatpush1.bf16.msra.mxu0 %v7349
  %7912 = vmatprep.subr.bf16.mxu0 0
  %7913 = vmatpush1.bf16.msra.mxu0 %v7350
  %7914 = vmatprep.subr.bf16.mxu0 0
  %7915 = vmatpush1.bf16.msra.mxu0 %v7351
  %7916 = vmatprep.subr.bf16.mxu0 0
  %7917 = vmatpush1.bf16.msra.mxu0 %v7352
  %7918 = vmatprep.subr.bf16.mxu0 0
  %7919 = vmatpush1.bf16.msra.mxu0 %v7353
  %7920 = vmatprep.subr.bf16.mxu0 0
  %7921 = vmatpush1.bf16.msra.mxu0 %v7354
  %7922 = vmatprep.subr.bf16.mxu0 0
  %7923 = vmatpush1.bf16.msra.mxu0 %v7355
  %7924 = vmatprep.subr.bf16.mxu0 0
  %7925 = vmatpush1.bf16.msra.mxu0 %v7356
  %7926 = vmatprep.subr.bf16.mxu0 0
  %7927 = vmatpush1.bf16.msra.mxu0 %v7357
  %7928 = vmatprep.subr.bf16.mxu0 0
  %7929 = vmatpush1.bf16.msra.mxu0 %v7358
  %7930 = vmatprep.subr.bf16.mxu0 0
  %7931 = vmatpush1.bf16.msra.mxu0 %v7359
  %7932 = vmatprep.mubr.bf16.mxu0 %v7681
  %7933 = vmatmul.mubr.bf16.gmra.mrb[0].mxu0 %v7667
  %v7934 = vpop.f32.mrb[0].mxu0
  %v7935 = vadd.f32 %v7637, %v7934
  %v7936 = vpop.f32.mrb[0].mxu0
  %v7937 = vpop.f32.mrb[0].mxu0
  %v7938 = vpop.f32.mrb[0].mxu0
  %7939 = vdwg.mxu0
  %7940 = vmatprep.subr.bf16.mxu0 0
  %7941 = vmatpush1.bf16.msra.mxu0 %v7360
  %7942 = vmatprep.subr.bf16.mxu0 0
  %7943 = vmatpush1.bf16.msra.mxu0 %v7361
  %7944 = vmatprep.subr.bf16.mxu0 0
  %7945 = vmatpush1.bf16.msra.mxu0 %v7362
  %7946 = vmatprep.subr.bf16.mxu0 0
  %7947 = vmatpush1.bf16.msra.mxu0 %v7363
  %7948 = vmatprep.subr.bf16.mxu0 0
  %7949 = vmatpush1.bf16.msra.mxu0 %v7364
  %7950 = vmatprep.subr.bf16.mxu0 0
  %7951 = vmatpush1.bf16.msra.mxu0 %v7365
  %7952 = vmatprep.subr.bf16.mxu0 0
  %7953 = vmatpush1.bf16.msra.mxu0 %v7366
  %7954 = vmatprep.subr.bf16.mxu0 0
  %7955 = vmatpush1.bf16.msra.mxu0 %v7367
  %7956 = vmatprep.subr.bf16.mxu0 0
  %7957 = vmatpush1.bf16.msra.mxu0 %v7368
  %7958 = vmatprep.subr.bf16.mxu0 0
  %7959 = vmatpush1.bf16.msra.mxu0 %v7369
  %7960 = vmatprep.subr.bf16.mxu0 0
  %7961 = vmatpush1.bf16.msra.mxu0 %v7370
  %7962 = vmatprep.subr.bf16.mxu0 0
  %7963 = vmatpush1.bf16.msra.mxu0 %v7371
  %7964 = vmatprep.subr.bf16.mxu0 0
  %7965 = vmatpush1.bf16.msra.mxu0 %v7372
  %7966 = vmatprep.subr.bf16.mxu0 0
  %7967 = vmatpush1.bf16.msra.mxu0 %v7373
  %7968 = vmatprep.subr.bf16.mxu0 0
  %7969 = vmatpush1.bf16.msra.mxu0 %v7374
  %7970 = vmatprep.subr.bf16.mxu0 0
  %7971 = vmatpush1.bf16.msra.mxu0 %v7375
  %7972 = vmatprep.mubr.bf16.mxu0 %v7691
  %7973 = vmatmul.mubr.bf16.gmra.mrb[0].mxu0 %v7689
  %v7974 = vpop.f32.mrb[0].mxu0
  %v7975 = vadd.f32 %v7935, %v7974
  %v7976 = vpop.f32.mrb[0].mxu0
  %v7977 = vpop.f32.mrb[0].mxu0
  %v7978 = vpop.f32.mrb[0].mxu0
  %7979 = vdwg.mxu0
  %7980 = vmatprep.subr.bf16.mxu0 0
  %7981 = vmatpush1.bf16.msra.mxu0 %v7376
  %7982 = vmatprep.subr.bf16.mxu0 0
  %7983 = vmatpush1.bf16.msra.mxu0 %v7377
  %7984 = vmatprep.subr.bf16.mxu0 0
  %7985 = vmatpush1.bf16.msra.mxu0 %v7378
  %7986 = vmatprep.subr.bf16.mxu0 0
  %7987 = vmatpush1.bf16.msra.mxu0 %v7379
  %7988 = vmatprep.subr.bf16.mxu0 0
  %7989 = vmatpush1.bf16.msra.mxu0 %v7380
  %7990 = vmatprep.subr.bf16.mxu0 0
  %7991 = vmatpush1.bf16.msra.mxu0 %v7381
  %7992 = vmatprep.subr.bf16.mxu0 0
  %7993 = vmatpush1.bf16.msra.mxu0 %v7382
  %7994 = vmatprep.subr.bf16.mxu0 0
  %7995 = vmatpush1.bf16.msra.mxu0 %v7383
  %7996 = vmatprep.subr.bf16.mxu0 0
  %7997 = vmatpush1.bf16.msra.mxu0 %v7384
  %7998 = vmatprep.subr.bf16.mxu0 0
  %7999 = vmatpush1.bf16.msra.mxu0 %v7385
  %8000 = vmatprep.subr.bf16.mxu0 0
  %8001 = vmatpush1.bf16.msra.mxu0 %v7386
  %8002 = vmatprep.subr.bf16.mxu0 0
  %8003 = vmatpush1.bf16.msra.mxu0 %v7387
  %8004 = vmatprep.subr.bf16.mxu0 0
  %8005 = vmatpush1.bf16.msra.mxu0 %v7388
  %8006 = vmatprep.subr.bf16.mxu0 0
  %8007 = vmatpush1.bf16.msra.mxu0 %v7389
  %8008 = vmatprep.subr.bf16.mxu0 0
  %8009 = vmatpush1.bf16.msra.mxu0 %v7390
  %8010 = vmatprep.subr.bf16.mxu0 0
  %8011 = vmatpush1.bf16.msra.mxu0 %v7391
  %8012 = vmatprep.mubr.bf16.mxu0 %v7688
  %8013 = vmatmul.mubr.bf16.gmra.mrb[0].mxu0 %v7674
  %v8014 = vpop.f32.mrb[0].mxu0
  %v8015 = vadd.f32 %v7975, %v8014
  %v8016 = vpop.f32.mrb[0].mxu0
  %v8017 = vpop.f32.mrb[0].mxu0
  %v8018 = vpop.f32.mrb[0].mxu0
  %8019 = vdwg.mxu0
  %8020 = vmatprep.subr.bf16.mxu0 0
  %8021 = vmatpush1.bf16.msra.mxu0 %v7392
  %8022 = vmatprep.subr.bf16.mxu0 0
  %8023 = vmatpush1.bf16.msra.mxu0 %v7393
  %8024 = vmatprep.subr.bf16.mxu0 0
  %8025 = vmatpush1.bf16.msra.mxu0 %v7394
  %8026 = vmatprep.subr.bf16.mxu0 0
  %8027 = vmatpush1.bf16.msra.mxu0 %v7395
  %8028 = vmatprep.subr.bf16.mxu0 0
  %8029 = vmatpush1.bf16.msra.mxu0 %v7396
  %8030 = vmatprep.subr.bf16.mxu0 0
  %8031 = vmatpush1.bf16.msra.mxu0 %v7397
  %8032 = vmatprep.subr.bf16.mxu0 0
  %8033 = vmatpush1.bf16.msra.mxu0 %v7398
  %8034 = vmatprep.subr.bf16.mxu0 0
  %8035 = vmatpush1.bf16.msra.mxu0 %v7399
  %8036 = vmatprep.subr.bf16.mxu0 0
  %8037 = vmatpush1.bf16.msra.mxu0 %v7400
  %8038 = vmatprep.subr.bf16.mxu0 0
  %8039 = vmatpush1.bf16.msra.mxu0 %v7401
  %8040 = vmatprep.subr.bf16.mxu0 0
  %8041 = vmatpush1.bf16.msra.mxu0 %v7402
  %8042 = vmatprep.subr.bf16.mxu0 0
  %8043 = vmatpush1.bf16.msra.mxu0 %v7403
  %8044 = vmatprep.subr.bf16.mxu0 0
  %8045 = vmatpush1.bf16.msra.mxu0 %v7404
  %8046 = vmatprep.subr.bf16.mxu0 0
  %8047 = vmatpush1.bf16.msra.mxu0 %v7405
  %8048 = vmatprep.subr.bf16.mxu0 0
  %8049 = vmatpush1.bf16.msra.mxu0 %v7406
  %8050 = vmatprep.subr.bf16.mxu0 0
  %8051 = vmatpush1.bf16.msra.mxu0 %v7407
  %8052 = vmatprep.mubr.bf16.mxu0 %v7692
  %8053 = vmatmul.mubr.bf16.gmra.mrb[0].mxu0 %v7690
  %v8054 = vpop.f32.mrb[0].mxu0
  %v8055 = vadd.f32 %v8015, %v8054
  %v8056 = vpop.f32.mrb[0].mxu0
  %v8057 = vpop.f32.mrb[0].mxu0
  %v8058 = vpop.f32.mrb[0].mxu0
  %8059 = vdwg.mxu0
  %8060 = vmatprep.subr.bf16.mxu0 0
  %8061 = vmatpush1.bf16.msra.mxu0 %v7408
  %8062 = vmatprep.subr.bf16.mxu0 0
  %8063 = vmatpush1.bf16.msra.mxu0 %v7409
  %8064 = vmatprep.subr.bf16.mxu0 0
  %8065 = vmatpush1.bf16.msra.mxu0 %v7410
  %8066 = vmatprep.subr.bf16.mxu0 0
  %8067 = vmatpush1.bf16.msra.mxu0 %v7411
  %8068 = vmatprep.subr.bf16.mxu0 0
  %8069 = vmatpush1.bf16.msra.mxu0 %v7412
  %8070 = vmatprep.subr.bf16.mxu0 0
  %8071 = vmatpush1.bf16.msra.mxu0 %v7413
  %8072 = vmatprep.subr.bf16.mxu0 0
  %8073 = vmatpush1.bf16.msra.mxu0 %v7414
  %8074 = vmatprep.subr.bf16.mxu0 0
  %8075 = vmatpush1.bf16.msra.mxu0 %v7415
  %8076 = vmatprep.subr.bf16.mxu0 0
  %8077 = vmatpush1.bf16.msra.mxu0 %v7416
  %8078 = vmatprep.subr.bf16.mxu0 0
  %8079 = vmatpush1.bf16.msra.mxu0 %v7417
  %8080 = vmatprep.subr.bf16.mxu0 0
  %8081 = vmatpush1.bf16.msra.mxu0 %v7418
  %8082 = vmatprep.subr.bf16.mxu0 0
  %8083 = vmatpush1.bf16.msra.mxu0 %v7419
  %8084 = vmatprep.subr.bf16.mxu0 0
  %8085 = vmatpush1.bf16.msra.mxu0 %v7420
  %8086 = vmatprep.subr.bf16.mxu0 0
  %8087 = vmatpush1.bf16.msra.mxu0 %v7421
  %8088 = vmatprep.subr.bf16.mxu0 0
  %8089 = vmatpush1.bf16.msra.mxu0 %v7422
  %8090 = vmatprep.subr.bf16.mxu0 0
  %8091 = vmatpush1.bf16.msra.mxu0 %v7423
  %8092 = vmatprep.mubr.bf16.mxu0 %v7730
  %8093 = vmatmul.mubr.bf16.gmra.mrb[0].mxu0 %v7716
  %v8094 = vpop.f32.mrb[0].mxu0
  %v8095 = vadd.f32 %v8055, %v8094
  %v8096 = vpop.f32.mrb[0].mxu0
  %v8097 = vpop.f32.mrb[0].mxu0
  %v8098 = vpop.f32.mrb[0].mxu0
  %8099 = vdwg.mxu0
  %8100 = vmatprep.subr.bf16.mxu0 0
  %8101 = vmatpush1.bf16.msra.mxu0 %v7424
  %8102 = vmatprep.subr.bf16.mxu0 0
  %8103 = vmatpush1.bf16.msra.mxu0 %v7425
  %8104 = vmatprep.subr.bf16.mxu0 0
  %8105 = vmatpush1.bf16.msra.mxu0 %v7426
  %8106 = vmatprep.subr.bf16.mxu0 0
  %8107 = vmatpush1.bf16.msra.mxu0 %v7427
  %8108 = vmatprep.subr.bf16.mxu0 0
  %8109 = vmatpush1.bf16.msra.mxu0 %v7428
  %8110 = vmatprep.subr.bf16.mxu0 0
  %8111 = vmatpush1.bf16.msra.mxu0 %v7429
  %8112 = vmatprep.subr.bf16.mxu0 0
  %8113 = vmatpush1.bf16.msra.mxu0 %v7430
  %8114 = vmatprep.subr.bf16.mxu0 0
  %8115 = vmatpush1.bf16.msra.mxu0 %v7431
  %8116 = vmatprep.subr.bf16.mxu0 0
  %8117 = vmatpush1.bf16.msra.mxu0 %v7432
  %8118 = vmatprep.subr.bf16.mxu0 0
  %8119 = vmatpush1.bf16.msra.mxu0 %v7433
  %8120 = vmatprep.subr.bf16.mxu0 0
  %8121 = vmatpush1.bf16.msra.mxu0 %v7434
  %8122 = vmatprep.subr.bf16.mxu0 0
  %8123 = vmatpush1.bf16.msra.mxu0 %v7435
  %8124 = vmatprep.subr.bf16.mxu0 0
  %8125 = vmatpush1.bf16.msra.mxu0 %v7436
  %8126 = vmatprep.subr.bf16.mxu0 0
  %8127 = vmatpush1.bf16.msra.mxu0 %v7437
  %8128 = vmatprep.subr.bf16.mxu0 0
  %8129 = vmatpush1.bf16.msra.mxu0 %v7438
  %8130 = vmatprep.subr.bf16.mxu0 0
  %8131 = vmatpush1.bf16.msra.mxu0 %v7439
  %8132 = vmatprep.mubr.bf16.mxu0 %v7740
  %8133 = vmatmul.mubr.bf16.gmra.mrb[0].mxu0 %v7738
  %v8134 = vpop.f32.mrb[0].mxu0
  %v8135 = vadd.f32 %v8095, %v8134
  %v8136 = vpop.f32.mrb[0].mxu0
  %v8137 = vpop.f32.mrb[0].mxu0
  %v8138 = vpop.f32.mrb[0].mxu0
  %8139 = vdwg.mxu0
  %8140 = vmatprep.subr.bf16.mxu0 0
  %8141 = vmatpush1.bf16.msra.mxu0 %v7440
  %8142 = vmatprep.subr.bf16.mxu0 0
  %8143 = vmatpush1.bf16.msra.mxu0 %v7441
  %8144 = vmatprep.subr.bf16.mxu0 0
  %8145 = vmatpush1.bf16.msra.mxu0 %v7442
  %8146 = vmatprep.subr.bf16.mxu0 0
  %8147 = vmatpush1.bf16.msra.mxu0 %v7443
  %8148 = vmatprep.subr.bf16.mxu0 0
  %8149 = vmatpush1.bf16.msra.mxu0 %v7444
  %8150 = vmatprep.subr.bf16.mxu0 0
  %8151 = vmatpush1.bf16.msra.mxu0 %v7445
  %8152 = vmatprep.subr.bf16.mxu0 0
  %8153 = vmatpush1.bf16.msra.mxu0 %v7446
  %8154 = vmatprep.subr.bf16.mxu0 0
  %8155 = vmatpush1.bf16.msra.mxu0 %v7447
  %8156 = vmatprep.subr.bf16.mxu0 0
  %8157 = vmatpush1.bf16.msra.mxu0 %v7448
  %8158 = vmatprep.subr.bf16.mxu0 0
  %8159 = vmatpush1.bf16.msra.mxu0 %v7449
  %8160 = vmatprep.subr.bf16.mxu0 0
  %8161 = vmatpush1.bf16.msra.mxu0 %v7450
  %8162 = vmatprep.subr.bf16.mxu0 0
  %8163 = vmatpush1.bf16.msra.mxu0 %v7451
  %8164 = vmatprep.subr.bf16.mxu0 0
  %8165 = vmatpush1.bf16.msra.mxu0 %v7452
  %8166 = vmatprep.subr.bf16.mxu0 0
  %8167 = vmatpush1.bf16.msra.mxu0 %v7453
  %8168 = vmatprep.subr.bf16.mxu0 0
  %8169 = vmatpush1.bf16.msra.mxu0 %v7454
  %8170 = vmatprep.subr.bf16.mxu0 0
  %8171 = vmatpush1.bf16.msra.mxu0 %v7455
  %8172 = vmatprep.mubr.bf16.mxu0 %v7737
  %8173 = vmatmul.mubr.bf16.gmra.mrb[0].mxu0 %v7723
  %v8174 = vpop.f32.mrb[0].mxu0
  %v8175 = vadd.f32 %v8135, %v8174
  %v8176 = vpop.f32.mrb[0].mxu0
  %v8177 = vpop.f32.mrb[0].mxu0
  %v8178 = vpop.f32.mrb[0].mxu0
  %8179 = vdwg.mxu0
  %8180 = vmatprep.subr.bf16.mxu0 0
  %8181 = vmatpush1.bf16.msra.mxu0 %v7456
  %8182 = vmatprep.subr.bf16.mxu0 0
  %8183 = vmatpush1.bf16.msra.mxu0 %v7457
  %8184 = vmatprep.subr.bf16.mxu0 0
  %8185 = vmatpush1.bf16.msra.mxu0 %v7458
  %8186 = vmatprep.subr.bf16.mxu0 0
  %8187 = vmatpush1.bf16.msra.mxu0 %v7459
  %8188 = vmatprep.subr.bf16.mxu0 0
  %8189 = vmatpush1.bf16.msra.mxu0 %v7460
  %8190 = vmatprep.subr.bf16.mxu0 0
  %8191 = vmatpush1.bf16.msra.mxu0 %v7461
  %8192 = vmatprep.subr.bf16.mxu0 0
  %8193 = vmatpush1.bf16.msra.mxu0 %v7462
  %8194 = vmatprep.subr.bf16.mxu0 0
  %8195 = vmatpush1.bf16.msra.mxu0 %v7463
  %8196 = vmatprep.subr.bf16.mxu0 0
  %8197 = vmatpush1.bf16.msra.mxu0 %v7464
  %8198 = vmatprep.subr.bf16.mxu0 0
  %8199 = vmatpush1.bf16.msra.mxu0 %v7465
  %8200 = vmatprep.subr.bf16.mxu0 0
  %8201 = vmatpush1.bf16.msra.mxu0 %v7466
  %8202 = vmatprep.subr.bf16.mxu0 0
  %8203 = vmatpush1.bf16.msra.mxu0 %v7467
  %8204 = vmatprep.subr.bf16.mxu0 0
  %8205 = vmatpush1.bf16.msra.mxu0 %v7468
  %8206 = vmatprep.subr.bf16.mxu0 0
  %8207 = vmatpush1.bf16.msra.mxu0 %v7469
  %8208 = vmatprep.subr.bf16.mxu0 0
  %8209 = vmatpush1.bf16.msra.mxu0 %v7470
  %8210 = vmatprep.subr.bf16.mxu0 0
  %8211 = vmatpush1.bf16.msra.mxu0 %v7471
  %8212 = vmatprep.mubr.bf16.mxu0 %v7741
  %8213 = vmatmul.mubr.bf16.gmra.mrb[0].mxu0 %v7739
  %v8214 = vpop.f32.mrb[0].mxu0
  %v8215 = vadd.f32 %v8175, %v8214
  %v8216 = vpop.f32.mrb[0].mxu0
  %v8217 = vpop.f32.mrb[0].mxu0
  %v8218 = vpop.f32.mrb[0].mxu0
  %8219 = vdwg.mxu0
  %8220 = vmatprep.subr.bf16.mxu0 0
  %8221 = vmatpush1.bf16.msra.mxu0 %v7472
  %8222 = vmatprep.subr.bf16.mxu0 0
  %8223 = vmatpush1.bf16.msra.mxu0 %v7473
  %8224 = vmatprep.subr.bf16.mxu0 0
  %8225 = vmatpush1.bf16.msra.mxu0 %v7474
  %8226 = vmatprep.subr.bf16.mxu0 0
  %8227 = vmatpush1.bf16.msra.mxu0 %v7475
  %8228 = vmatprep.subr.bf16.mxu0 0
  %8229 = vmatpush1.bf16.msra.mxu0 %v7476
  %8230 = vmatprep.subr.bf16.mxu0 0
  %8231 = vmatpush1.bf16.msra.mxu0 %v7477
  %8232 = vmatprep.subr.bf16.mxu0 0
  %8233 = vmatpush1.bf16.msra.mxu0 %v7478
  %8234 = vmatprep.subr.bf16.mxu0 0
  %8235 = vmatpush1.bf16.msra.mxu0 %v7479
  %8236 = vmatprep.subr.bf16.mxu0 0
  %8237 = vmatpush1.bf16.msra.mxu0 %v7480
  %8238 = vmatprep.subr.bf16.mxu0 0
  %8239 = vmatpush1.bf16.msra.mxu0 %v7481
  %8240 = vmatprep.subr.bf16.mxu0 0
  %8241 = vmatpush1.bf16.msra.mxu0 %v7482
  %8242 = vmatprep.subr.bf16.mxu0 0
  %8243 = vmatpush1.bf16.msra.mxu0 %v7483
  %8244 = vmatprep.subr.bf16.mxu0 0
  %8245 = vmatpush1.bf16.msra.mxu0 %v7484
  %8246 = vmatprep.subr.bf16.mxu0 0
  %8247 = vmatpush1.bf16.msra.mxu0 %v7485
  %8248 = vmatprep.subr.bf16.mxu0 0
  %8249 = vmatpush1.bf16.msra.mxu0 %v7486
  %8250 = vmatprep.subr.bf16.mxu0 0
  %8251 = vmatpush1.bf16.msra.mxu0 %v7487
  %8252 = vmatprep.mubr.bf16.mxu0 %v7779
  %8253 = vmatmul.mubr.bf16.gmra.mrb[0].mxu0 %v7765
  %v8254 = vpop.f32.mrb[0].mxu0
  %v8255 = vadd.f32 %v8215, %v8254
  %v8256 = vpop.f32.mrb[0].mxu0
  %v8257 = vpop.f32.mrb[0].mxu0
  %v8258 = vpop.f32.mrb[0].mxu0
  %8259 = vdwg.mxu0
  %8260 = vmatprep.subr.bf16.mxu0 0
  %8261 = vmatpush1.bf16.msra.mxu0 %v7488
  %8262 = vmatprep.subr.bf16.mxu0 0
  %8263 = vmatpush1.bf16.msra.mxu0 %v7489
  %8264 = vmatprep.subr.bf16.mxu0 0
  %8265 = vmatpush1.bf16.msra.mxu0 %v7490
  %8266 = vmatprep.subr.bf16.mxu0 0
  %8267 = vmatpush1.bf16.msra.mxu0 %v7491
  %8268 = vmatprep.subr.bf16.mxu0 0
  %8269 = vmatpush1.bf16.msra.mxu0 %v7492
  %8270 = vmatprep.subr.bf16.mxu0 0
  %8271 = vmatpush1.bf16.msra.mxu0 %v7493
  %8272 = vmatprep.subr.bf16.mxu0 0
  %8273 = vmatpush1.bf16.msra.mxu0 %v7494
  %8274 = vmatprep.subr.bf16.mxu0 0
  %8275 = vmatpush1.bf16.msra.mxu0 %v7495
  %8276 = vmatprep.subr.bf16.mxu0 0
  %8277 = vmatpush1.bf16.msra.mxu0 %v7496
  %8278 = vmatprep.subr.bf16.mxu0 0
  %8279 = vmatpush1.bf16.msra.mxu0 %v7497
  %8280 = vmatprep.subr.bf16.mxu0 0
  %8281 = vmatpush1.bf16.msra.mxu0 %v7498
  %8282 = vmatprep.subr.bf16.mxu0 0
  %8283 = vmatpush1.bf16.msra.mxu0 %v7499
  %8284 = vmatprep.subr.bf16.mxu0 0
  %8285 = vmatpush1.bf16.msra.mxu0 %v7500
  %8286 = vmatprep.subr.bf16.mxu0 0
  %8287 = vmatpush1.bf16.msra.mxu0 %v7501
  %8288 = vmatprep.subr.bf16.mxu0 0
  %8289 = vmatpush1.bf16.msra.mxu0 %v7502
  %8290 = vmatprep.subr.bf16.mxu0 0
  %8291 = vmatpush1.bf16.msra.mxu0 %v7503
  %8292 = vmatprep.mubr.bf16.mxu0 %v7789
  %8293 = vmatmul.mubr.bf16.gmra.mrb[0].mxu0 %v7787
  %v8294 = vpop.f32.mrb[0].mxu0
  %v8295 = vadd.f32 %v8255, %v8294
  %v8296 = vpop.f32.mrb[0].mxu0
  %v8297 = vpop.f32.mrb[0].mxu0
  %v8298 = vpop.f32.mrb[0].mxu0
  %8299 = vdwg.mxu0
  %8300 = vmatprep.subr.bf16.mxu0 0
  %8301 = vmatpush1.bf16.msra.mxu0 %v7504
  %8302 = vmatprep.subr.bf16.mxu0 0
  %8303 = vmatpush1.bf16.msra.mxu0 %v7505
  %8304 = vmatprep.subr.bf16.mxu0 0
  %8305 = vmatpush1.bf16.msra.mxu0 %v7506
  %8306 = vmatprep.subr.bf16.mxu0 0
  %8307 = vmatpush1.bf16.msra.mxu0 %v7507
  %8308 = vmatprep.subr.bf16.mxu0 0
  %8309 = vmatpush1.bf16.msra.mxu0 %v7508
  %8310 = vmatprep.subr.bf16.mxu0 0
  %8311 = vmatpush1.bf16.msra.mxu0 %v7509
  %8312 = vmatprep.subr.bf16.mxu0 0
  %8313 = vmatpush1.bf16.msra.mxu0 %v7510
  %8314 = vmatprep.subr.bf16.mxu0 0
  %8315 = vmatpush1.bf16.msra.mxu0 %v7511
  %8316 = vmatprep.subr.bf16.mxu0 0
  %8317 = vmatpush1.bf16.msra.mxu0 %v7512
  %8318 = vmatprep.subr.bf16.mxu0 0
  %8319 = vmatpush1.bf16.msra.mxu0 %v7513
  %8320 = vmatprep.subr.bf16.mxu0 0
  %8321 = vmatpush1.bf16.msra.mxu0 %v7514
  %8322 = vmatprep.subr.bf16.mxu0 0
  %8323 = vmatpush1.bf16.msra.mxu0 %v7515
  %8324 = vmatprep.subr.bf16.mxu0 0
  %8325 = vmatpush1.bf16.msra.mxu0 %v7516
  %8326 = vmatprep.subr.bf16.mxu0 0
  %8327 = vmatpush1.bf16.msra.mxu0 %v7517
  %8328 = vmatprep.subr.bf16.mxu0 0
  %8329 = vmatpush1.bf16.msra.mxu0 %v7518
  %8330 = vmatprep.subr.bf16.mxu0 0
  %8331 = vmatpush1.bf16.msra.mxu0 %v7519
  %8332 = vmatprep.mubr.bf16.mxu0 %v7786
  %8333 = vmatmul.mubr.bf16.gmra.mrb[0].mxu0 %v7772
  %v8334 = vpop.f32.mrb[0].mxu0
  %v8335 = vadd.f32 %v8295, %v8334
  %v8336 = vpop.f32.mrb[0].mxu0
  %v8337 = vpop.f32.mrb[0].mxu0
  %v8338 = vpop.f32.mrb[0].mxu0
  %8339 = vdwg.mxu0
  %8340 = vmatprep.subr.bf16.mxu0 0
  %8341 = vmatpush1.bf16.msra.mxu0 %v7520
  %8342 = vmatprep.subr.bf16.mxu0 0
  %8343 = vmatpush1.bf16.msra.mxu0 %v7521
  %8344 = vmatprep.subr.bf16.mxu0 0
  %8345 = vmatpush1.bf16.msra.mxu0 %v7522
  %8346 = vmatprep.subr.bf16.mxu0 0
  %8347 = vmatpush1.bf16.msra.mxu0 %v7523
  %8348 = vmatprep.subr.bf16.mxu0 0
  %8349 = vmatpush1.bf16.msra.mxu0 %v7524
  %8350 = vmatprep.subr.bf16.mxu0 0
  %8351 = vmatpush1.bf16.msra.mxu0 %v7525
  %8352 = vmatprep.subr.bf16.mxu0 0
  %8353 = vmatpush1.bf16.msra.mxu0 %v7526
  %8354 = vmatprep.subr.bf16.mxu0 0
  %8355 = vmatpush1.bf16.msra.mxu0 %v7527
  %8356 = vmatprep.subr.bf16.mxu0 0
  %8357 = vmatpush1.bf16.msra.mxu0 %v7528
  %8358 = vmatprep.subr.bf16.mxu0 0
  %8359 = vmatpush1.bf16.msra.mxu0 %v7529
  %8360 = vmatprep.subr.bf16.mxu0 0
  %8361 = vmatpush1.bf16.msra.mxu0 %v7530
  %8362 = vmatprep.subr.bf16.mxu0 0
  %8363 = vmatpush1.bf16.msra.mxu0 %v7531
  %8364 = vmatprep.subr.bf16.mxu0 0
  %8365 = vmatpush1.bf16.msra.mxu0 %v7532
  %8366 = vmatprep.subr.bf16.mxu0 0
  %8367 = vmatpush1.bf16.msra.mxu0 %v7533
  %8368 = vmatprep.subr.bf16.mxu0 0
  %8369 = vmatpush1.bf16.msra.mxu0 %v7534
  %8370 = vmatprep.subr.bf16.mxu0 0
  %8371 = vmatpush1.bf16.msra.mxu0 %v7535
  %8372 = vmatprep.mubr.bf16.mxu0 %v7790
  %8373 = vmatmul.mubr.bf16.gmra.mrb[0].mxu0 %v7788
  %v8374 = vpop.f32.mrb[0].mxu0
  %v8375 = vadd.f32 %v8335, %v8374
  %v8376 = vpop.f32.mrb[0].mxu0
  %v8377 = vpop.f32.mrb[0].mxu0
  %v8378 = vpop.f32.mrb[0].mxu0
  %8379 = vdwg.mxu0
  %8380 = vmatprep.subr.bf16.mxu0 0
  %8381 = vmatpush1.bf16.msra.mxu0 %v7536
  %8382 = vmatprep.subr.bf16.mxu0 0
  %8383 = vmatpush1.bf16.msra.mxu0 %v7537
  %8384 = vmatprep.subr.bf16.mxu0 0
  %8385 = vmatpush1.bf16.msra.mxu0 %v7538
  %8386 = vmatprep.subr.bf16.mxu0 0
  %8387 = vmatpush1.bf16.msra.mxu0 %v7539
  %8388 = vmatprep.subr.bf16.mxu0 0
  %8389 = vmatpush1.bf16.msra.mxu0 %v7540
  %8390 = vmatprep.subr.bf16.mxu0 0
  %8391 = vmatpush1.bf16.msra.mxu0 %v7541
  %8392 = vmatprep.subr.bf16.mxu0 0
  %8393 = vmatpush1.bf16.msra.mxu0 %v7542
  %8394 = vmatprep.subr.bf16.mxu0 0
  %8395 = vmatpush1.bf16.msra.mxu0 %v7543
  %8396 = vmatprep.subr.bf16.mxu0 0
  %8397 = vmatpush1.bf16.msra.mxu0 %v7544
  %8398 = vmatprep.subr.bf16.mxu0 0
  %8399 = vmatpush1.bf16.msra.mxu0 %v7545
  %8400 = vmatprep.subr.bf16.mxu0 0
  %8401 = vmatpush1.bf16.msra.mxu0 %v7546
  %8402 = vmatprep.subr.bf16.mxu0 0
  %8403 = vmatpush1.bf16.msra.mxu0 %v7547
  %8404 = vmatprep.subr.bf16.mxu0 0
  %8405 = vmatpush1.bf16.msra.mxu0 %v7548
  %8406 = vmatprep.subr.bf16.mxu0 0
  %8407 = vmatpush1.bf16.msra.mxu0 %v7549
  %8408 = vmatprep.subr.bf16.mxu0 0
  %8409 = vmatpush1.bf16.msra.mxu0 %v7550
  %8410 = vmatprep.subr.bf16.mxu0 0
  %8411 = vmatpush1.bf16.msra.mxu0 %v7551
  %8412 = vmatprep.mubr.bf16.mxu0 %v7828
  %8413 = vmatmul.mubr.bf16.gmra.mrb[0].mxu0 %v7814
  %v8414 = vpop.f32.mrb[0].mxu0
  %v8415 = vadd.f32 %v8375, %v8414
  %v8416 = vpop.f32.mrb[0].mxu0
  %v8417 = vpop.f32.mrb[0].mxu0
  %v8418 = vpop.f32.mrb[0].mxu0
  %8419 = vdwg.mxu0
  %8420 = vmatprep.subr.bf16.mxu0 0
  %8421 = vmatpush1.bf16.msra.mxu0 %v7552
  %8422 = vmatprep.subr.bf16.mxu0 0
  %8423 = vmatpush1.bf16.msra.mxu0 %v7553
  %8424 = vmatprep.subr.bf16.mxu0 0
  %8425 = vmatpush1.bf16.msra.mxu0 %v7554
  %8426 = vmatprep.subr.bf16.mxu0 0
  %8427 = vmatpush1.bf16.msra.mxu0 %v7555
  %8428 = vmatprep.subr.bf16.mxu0 0
  %8429 = vmatpush1.bf16.msra.mxu0 %v7556
  %8430 = vmatprep.subr.bf16.mxu0 0
  %8431 = vmatpush1.bf16.msra.mxu0 %v7557
  %8432 = vmatprep.subr.bf16.mxu0 0
  %8433 = vmatpush1.bf16.msra.mxu0 %v7558
  %8434 = vmatprep.subr.bf16.mxu0 0
  %8435 = vmatpush1.bf16.msra.mxu0 %v7559
  %8436 = vmatprep.subr.bf16.mxu0 0
  %8437 = vmatpush1.bf16.msra.mxu0 %v7560
  %8438 = vmatprep.subr.bf16.mxu0 0
  %8439 = vmatpush1.bf16.msra.mxu0 %v7561
  %8440 = vmatprep.subr.bf16.mxu0 0
  %8441 = vmatpush1.bf16.msra.mxu0 %v7562
  %8442 = vmatprep.subr.bf16.mxu0 0
  %8443 = vmatpush1.bf16.msra.mxu0 %v7563
  %8444 = vmatprep.subr.bf16.mxu0 0
  %8445 = vmatpush1.bf16.msra.mxu0 %v7564
  %8446 = vmatprep.subr.bf16.mxu0 0
  %8447 = vmatpush1.bf16.msra.mxu0 %v7565
  %8448 = vmatprep.subr.bf16.mxu0 0
  %8449 = vmatpush1.bf16.msra.mxu0 %v7566
  %8450 = vmatprep.subr.bf16.mxu0 0
  %8451 = vmatpush1.bf16.msra.mxu0 %v7567
  %8452 = vmatprep.mubr.bf16.mxu0 %v7838
  %8453 = vmatmul.mubr.bf16.gmra.mrb[0].mxu0 %v7836
  %v8454 = vpop.f32.mrb[0].mxu0
  %v8455 = vadd.f32 %v8415, %v8454
  %v8456 = vpop.f32.mrb[0].mxu0
  %v8457 = vpop.f32.mrb[0].mxu0
  %v8458 = vpop.f32.mrb[0].mxu0
  %8459 = vdwg.mxu0
  %8460 = vmatprep.subr.bf16.mxu0 0
  %8461 = vmatpush1.bf16.msra.mxu0 %v7568
  %8462 = vmatprep.subr.bf16.mxu0 0
  %8463 = vmatpush1.bf16.msra.mxu0 %v7569
  %8464 = vmatprep.subr.bf16.mxu0 0
  %8465 = vmatpush1.bf16.msra.mxu0 %v7570
  %8466 = vmatprep.subr.bf16.mxu0 0
  %8467 = vmatpush1.bf16.msra.mxu0 %v7571
  %8468 = vmatprep.subr.bf16.mxu0 0
  %8469 = vmatpush1.bf16.msra.mxu0 %v7572
  %8470 = vmatprep.subr.bf16.mxu0 0
  %8471 = vmatpush1.bf16.msra.mxu0 %v7573
  %8472 = vmatprep.subr.bf16.mxu0 0
  %8473 = vmatpush1.bf16.msra.mxu0 %v7574
  %8474 = vmatprep.subr.bf16.mxu0 0
  %8475 = vmatpush1.bf16.msra.mxu0 %v7575
  %8476 = vmatprep.subr.bf16.mxu0 0
  %8477 = vmatpush1.bf16.msra.mxu0 %v7576
  %8478 = vmatprep.subr.bf16.mxu0 0
  %8479 = vmatpush1.bf16.msra.mxu0 %v7577
  %8480 = vmatprep.subr.bf16.mxu0 0
  %8481 = vmatpush1.bf16.msra.mxu0 %v7578
  %8482 = vmatprep.subr.bf16.mxu0 0
  %8483 = vmatpush1.bf16.msra.mxu0 %v7579
  %8484 = vmatprep.subr.bf16.mxu0 0
  %8485 = vmatpush1.bf16.msra.mxu0 %v7580
  %8486 = vmatprep.subr.bf16.mxu0 0
  %8487 = vmatpush1.bf16.msra.mxu0 %v7581
  %8488 = vmatprep.subr.bf16.mxu0 0
  %8489 = vmatpush1.bf16.msra.mxu0 %v7582
  %8490 = vmatprep.subr.bf16.mxu0 0
  %8491 = vmatpush1.bf16.msra.mxu0 %v7583
  %8492 = vmatprep.mubr.bf16.mxu0 %v7835
  %8493 = vmatmul.mubr.bf16.gmra.mrb[0].mxu0 %v7821
  %v8494 = vpop.f32.mrb[0].mxu0
  %v8495 = vadd.f32 %v8455, %v8494
  %v8496 = vpop.f32.mrb[0].mxu0
  %v8497 = vpop.f32.mrb[0].mxu0
  %v8498 = vpop.f32.mrb[0].mxu0
  %8499 = vdwg.mxu0
  %8500 = vmatprep.subr.bf16.mxu0 0
  %8501 = vmatpush1.bf16.msra.mxu0 %v7584
  %8502 = vmatprep.subr.bf16.mxu0 0
  %8503 = vmatpush1.bf16.msra.mxu0 %v7585
  %8504 = vmatprep.subr.bf16.mxu0 0
  %8505 = vmatpush1.bf16.msra.mxu0 %v7586
  %8506 = vmatprep.subr.bf16.mxu0 0
  %8507 = vmatpush1.bf16.msra.mxu0 %v7587
  %8508 = vmatprep.subr.bf16.mxu0 0
  %8509 = vmatpush1.bf16.msra.mxu0 %v7588
  %8510 = vmatprep.subr.bf16.mxu0 0
  %8511 = vmatpush1.bf16.msra.mxu0 %v7589
  %8512 = vmatprep.subr.bf16.mxu0 0
  %8513 = vmatpush1.bf16.msra.mxu0 %v7590
  %8514 = vmatprep.subr.bf16.mxu0 0
  %8515 = vmatpush1.bf16.msra.mxu0 %v7591
  %8516 = vmatprep.subr.bf16.mxu0 0
  %8517 = vmatpush1.bf16.msra.mxu0 %v7592
  %8518 = vmatprep.subr.bf16.mxu0 0
  %8519 = vmatpush1.bf16.msra.mxu0 %v7593
  %8520 = vmatprep.subr.bf16.mxu0 0
  %8521 = vmatpush1.bf16.msra.mxu0 %v7594
  %8522 = vmatprep.subr.bf16.mxu0 0
  %8523 = vmatpush1.bf16.msra.mxu0 %v7595
  %8524 = vmatprep.subr.bf16.mxu0 0
  %8525 = vmatpush1.bf16.msra.mxu0 %v7596
  %8526 = vmatprep.subr.bf16.mxu0 0
  %8527 = vmatpush1.bf16.msra.mxu0 %v7597
  %8528 = vmatprep.subr.bf16.mxu0 0
  %8529 = vmatpush1.bf16.msra.mxu0 %v7598
  %8530 = vmatprep.subr.bf16.mxu0 0
  %8531 = vmatpush1.bf16.msra.mxu0 %v7599
  %8532 = vmatprep.mubr.bf16.mxu0 %v7839
  %8533 = vmatmul.mubr.bf16.gmra.mrb[0].mxu0 %v7837
  %v8534 = vpop.f32.mrb[0].mxu0
  %v8535 = vadd.f32 %v8495, %v8534
  %v8536 = vpop.f32.mrb[0].mxu0
  %v8537 = vpop.f32.mrb[0].mxu0
  %v8538 = vpop.f32.mrb[0].mxu0
  %8539 = vdwg.mxu0
  %8540 = vmatprep.subr.bf16.mxu0 0
  %8541 = vmatpush1.bf16.msra.mxu0 %v7600
  %8542 = vmatprep.subr.bf16.mxu0 0
  %8543 = vmatpush1.bf16.msra.mxu0 %v7601
  %8544 = vmatprep.subr.bf16.mxu0 0
  %8545 = vmatpush1.bf16.msra.mxu0 %v7602
  %8546 = vmatprep.subr.bf16.mxu0 0
  %8547 = vmatpush1.bf16.msra.mxu0 %v7603
  %8548 = vmatprep.subr.bf16.mxu0 0
  %8549 = vmatpush1.bf16.msra.mxu0 %v7604
  %8550 = vmatprep.subr.bf16.mxu0 0
  %8551 = vmatpush1.bf16.msra.mxu0 %v7605
  %8552 = vmatprep.subr.bf16.mxu0 0
  %8553 = vmatpush1.bf16.msra.mxu0 %v7606
  %8554 = vmatprep.subr.bf16.mxu0 0
  %8555 = vmatpush1.bf16.msra.mxu0 %v7607
  %8556 = vmatprep.subr.bf16.mxu0 0
  %8557 = vmatpush1.bf16.msra.mxu0 %v7608
  %8558 = vmatprep.subr.bf16.mxu0 0
  %8559 = vmatpush1.bf16.msra.mxu0 %v7609
  %8560 = vmatprep.subr.bf16.mxu0 0
  %8561 = vmatpush1.bf16.msra.mxu0 %v7610
  %8562 = vmatprep.subr.bf16.mxu0 0
  %8563 = vmatpush1.bf16.msra.mxu0 %v7611
  %8564 = vmatprep.subr.bf16.mxu0 0
  %8565 = vmatpush1.bf16.msra.mxu0 %v7612
  %8566 = vmatprep.subr.bf16.mxu0 0
  %8567 = vmatpush1.bf16.msra.mxu0 %v7613
  %8568 = vmatprep.subr.bf16.mxu0 0
  %8569 = vmatpush1.bf16.msra.mxu0 %v7614
  %8570 = vmatprep.subr.bf16.mxu0 0
  %8571 = vmatpush1.bf16.msra.mxu0 %v7615
  %8572 = vmatprep.mubr.bf16.mxu0 %v7861
  %8573 = vmatmul.mubr.bf16.gmra.mrb[0].mxu0 %v7854
  %v8574 = vpop.f32.mrb[0].mxu0
  %v8575 = vadd.f32 %v8535, %v8574
  %v8576 = vpop.f32.mrb[0].mxu0
  %v8577 = vpop.f32.mrb[0].mxu0
  %v8578 = vpop.f32.mrb[0].mxu0
  %8579 = vdwg.mxu0
  %8580 = vmatprep.subr.bf16.mxu0 0
  %8581 = vmatpush1.bf16.msra.mxu0 %v7616
  %8582 = vmatprep.subr.bf16.mxu0 0
  %8583 = vmatpush1.bf16.msra.mxu0 %v7617
  %8584 = vmatprep.subr.bf16.mxu0 0
  %8585 = vmatpush1.bf16.msra.mxu0 %v7618
  %8586 = vmatprep.subr.bf16.mxu0 0
  %8587 = vmatpush1.bf16.msra.mxu0 %v7619
  %8588 = vmatprep.subr.bf16.mxu0 0
  %8589 = vmatpush1.bf16.msra.mxu0 %v7620
  %8590 = vmatprep.subr.bf16.mxu0 0
  %8591 = vmatpush1.bf16.msra.mxu0 %v7621
  %8592 = vmatprep.subr.bf16.mxu0 0
  %8593 = vmatpush1.bf16.msra.mxu0 %v7622
  %8594 = vmatprep.subr.bf16.mxu0 0
  %8595 = vmatpush1.bf16.msra.mxu0 %v7623
  %8596 = vmatprep.subr.bf16.mxu0 0
  %8597 = vmatpush1.bf16.msra.mxu0 %v7624
  %8598 = vmatprep.subr.bf16.mxu0 0
  %8599 = vmatpush1.bf16.msra.mxu0 %v7625
  %8600 = vmatprep.subr.bf16.mxu0 0
  %8601 = vmatpush1.bf16.msra.mxu0 %v7626
  %8602 = vmatprep.subr.bf16.mxu0 0
  %8603 = vmatpush1.bf16.msra.mxu0 %v7627
  %8604 = vmatprep.subr.bf16.mxu0 0
  %8605 = vmatpush1.bf16.msra.mxu0 %v7628
  %8606 = vmatprep.subr.bf16.mxu0 0
  %8607 = vmatpush1.bf16.msra.mxu0 %v7629
  %8608 = vmatprep.subr.bf16.mxu0 0
  %8609 = vmatpush1.bf16.msra.mxu0 %v7630
  %8610 = vmatprep.subr.bf16.mxu0 0
  %8611 = vmatpush1.bf16.msra.mxu0 %v7631
  %8612 = vmatprep.mubr.bf16.mxu0 %v7863
  %8613 = vmatmul.mubr.bf16.gmra.mrb[0].mxu0 %v7862
  %v8614 = vpop.f32.mrb[0].mxu0
  %v8615 = vadd.f32 %v8575, %v8614
  %v8616 = vpop.f32.mrb[0].mxu0
  %v8617 = vpop.f32.mrb[0].mxu0
  %v8618 = vpop.f32.mrb[0].mxu0
  %8619 = vdwg.mxu0
  %v8620 = vtanh.pop %v8615
  %v8621 = vld [vmem:[%s7] sm:$0x1]
  %v8623 = vlaneseq
  %v8624 = vshrl.u32 %v8623, 7
  %v8625 = vsub.s32 0, %v8624
  %v8626 = vrot.slane %v8621, %v8625
  %v8628 = vmul.f32 %v8620, %v8626
  %v8629 = vsel %vm924, %v8628, 0.0
  %8630 = vadd.xlane.f32.xlu0 %v8629
  %v8631 = vpop.xlane.xlu0 %8630
  %v8632 = vld [vmem:[#allocation6] sm:$0x1]
  %v8634 = vlaneseq
  %v8635 = vshrl.u32 %v8634, 7
  %v8636 = vsub.s32 0, %v8635
  %v8637 = vrot.slane %v8632, %v8636
  %v8639 = vadd.f32 %v8631, %v8637
  %vm8640 = vcmask 1024
  %8641 = vst.msk [vmem:[%s9] sm:$0x3] %vm8640, %v8639
  // Predicated region
  $region68: #{critic_forward.1} parent=0 // pred_check
    _
  $region69: #{critic_forward.1} parent=0 // pred_check_branch
    %8643 = sbr.rel (0) target = $region71
  $region70: #{critic_forward.1} parent=0 // pred_region
    _
  $region71: #{critic_forward.1} parent=0 // pred_fallthru
    _
  // Predicated region
  $region72: #{critic_forward.1} parent=0 // pred_check
    _
  $region73: #{critic_forward.1} parent=0 // pred_check_branch
    %8645 = sbr.rel (0) target = $region75
  $region74: #{critic_forward.1} parent=0 // pred_region
    _
  $region75: #{critic_forward.1} parent=0 // pred_fallthru
    _
  %8646 = vsyncmov [#allocation5]
  %s8647 = vpop.sfrf %8646
  %p8648 = scmp.eq.s32.totalorder %s8647, 0
  %p8649 = pneg %p8648
  %8651 = shalt.err (%p8649)

</llo_original>
